<compile_context>
chip_gen: v6e
topology: v6e:2x2x1
jax: 0.10.0
libtpu: 0.0.40
codegen_flags: <defaults>
</compile_context>

<pallas_src>
import math
import functools

import jax
import jax.numpy as jnp
from jax.experimental import pallas as pl
from jax.experimental.pallas import tpu as pltpu

# Hyperparameters (defaults of the PyTorch module)
FEATURE_SIZE = 5      # d_model
NUM_LAYERS = 3
NHEADS = 5            # head_dim = 1
DIM_FF = 2048         # nn.TransformerEncoderLayer default
LN_EPS = 1e-5


def _align8(v):
    return (v + 7) & ~7


# Sublane layout of the packed "smalls" tile (8-aligned section starts so the
# in-kernel slices never need a sublane shift).
OFF_WQ = 0                                             # rows [0, E)       Wq^T
OFF_WKV = _align8(OFF_WQ + FEATURE_SIZE)               # rows [8, 8+2E)    Wk;Wv rows (+ bias col at lane E)
OFF_WO = _align8(OFF_WKV + 2 * FEATURE_SIZE)           # rows [24, 24+E)   Wo^T
OFF_ROW = _align8(OFF_WO + FEATURE_SIZE)               # row 32            [bq|bo|g1|b1|bf2|g2|b2]
OFF_WDB = OFF_ROW + 1                                  # row 33            [wd|bd]   (layer 0 only)
SM_ROWS = OFF_WDB + 1                                  # 34
SM_COLS = 7 * FEATURE_SIZE                             # 35


def transformer_kernel(x_ref, smalls_ref, ffw_ref, w2t_ref, out_ref,
                       *, seq_len, batch, nheads):
    S, N, H = seq_len, batch, nheads
    NS = x_ref.shape[0]
    E = x_ref.shape[-1]
    L = smalls_ref.shape[0]
    assert E % H == 0 and E // H == 1, \
        "VPU outer-product attention path assumes head_dim == 1 (d_model == nhead)"
    scale = 1.0 / math.sqrt(E // H)     # == 1.0 here

    x = x_ref[...].astype(jnp.float32)                       # (NS, E), batch-major slab

    # Additive mask over the flat (NS, NS) score matrix: causal inside each
    # batch block, fully masked across batches.  Exact integer construction:
    # allowed[i, j]  <=>  0 <= i-j <= (i mod S).  (i mod S) comes from a 3-D
    # iota whose leading-dim reshape to (NS, NS) is layout-free.  -1e30 (not
    # -inf) is safe: the diagonal is always unmasked, so masked entries
    # underflow to exactly 0 after exp(s - max).
    row = jax.lax.broadcasted_iota(jnp.int32, (NS, NS), 0)
    col = jax.lax.broadcasted_iota(jnp.int32, (NS, NS), 1)
    row_loc = jax.lax.broadcasted_iota(jnp.int32, (N, S, NS), 1).reshape(NS, NS)
    d = row - col
    allowed = jnp.logical_and(d >= 0, d <= row_loc)
    mask = jnp.where(allowed, 0.0, -1e30).astype(jnp.float32)

    def layer_norm(y, g, b):
        mu = jnp.mean(y, axis=-1, keepdims=True)
        var = jnp.mean((y - mu) ** 2, axis=-1, keepdims=True)
        return (y - mu) * jax.lax.rsqrt(var + LN_EPS) * g + b

    # statically unrolled over the 3 layers and 5 heads (all tiny)
    for l in range(L):
        sm = smalls_ref[l]                                    # (SM_ROWS, SM_COLS) f32
        wq_t = sm[OFF_WQ:OFF_WQ + E, 0:E]                     # (E, E)   x @ Wq^T form
        wkv = sm[OFF_WKV:OFF_WKV + 2 * E, 0:E]                # (2E, E)  [Wk; Wv] row form
        bkv = sm[OFF_WKV:OFF_WKV + 2 * E, E:E + 1]            # (2E, 1)  [bk; bv] column
        wo_t = sm[OFF_WO:OFF_WO + E, 0:E]                     # (E, E)   row h = out-proj of head h
        prow = sm[OFF_ROW:OFF_ROW + 1, :]                     # (1, 7E)
        bq = prow[:, 0:E]
        bo = prow[:, E:2 * E]
        g1 = prow[:, 2 * E:3 * E]
        b1 = prow[:, 3 * E:4 * E]
        bf2 = prow[:, 4 * E:5 * E]
        g2 = prow[:, 5 * E:6 * E]
        b2 = prow[:, 6 * E:7 * E]

        # Q in row form; K/V projected directly into transposed (feature-major)
        # form so no in-kernel transpose is needed.  Both biases folded with a
        # single broadcast add each (no per-head lane extracts).
        q = jnp.dot(x, wq_t, preferred_element_type=jnp.float32) + bq          # (NS, E)
        kvT = jax.lax.dot_general(wkv, x, (((1,), (1,)), ((), ())),
                                  preferred_element_type=jnp.float32) + bkv    # (2E, NS)

        attn = jnp.zeros_like(x)                              # accumulates ctx @ Wo^T
        for h in range(H):
            qh = q[:, h:h + 1]                                # (NS, 1)
            kh = kvT[h:h + 1, :]                              # (1, NS)
            vh = kvT[E + h:E + h + 1, :]                      # (1, NS)

            s = qh * kh                                       # outer product (VPU broadcast)
            if scale != 1.0:
                s = s * scale
            s = s + mask                                      # (NS, NS)
            m = jnp.max(s, axis=-1, keepdims=True)
            e = jnp.exp(s - m)
            p = e * pl.reciprocal(jnp.sum(e, axis=-1, keepdims=True), approx=True)
            ctx_h = jnp.sum(p * vh, axis=-1, keepdims=True)                  # (NS, 1)
            attn = attn + ctx_h * wo_t[h:h + 1, :]            # fused output projection (VPU)

        # residual + post-LayerNorm (norm_first=False)
        x = layer_norm(x + attn + bo, g1, b1)

        # feed-forward: linear -> ReLU -> linear, bf16 MXU matmuls, f32 accum.
        # W1^T lane-dense, W2^T pre-transposed to MXU-native (FF, E).
        ffw_l = ffw_ref[l]                                    # (E+1, FF) bf16
        w1_t = ffw_l[0:E, :]                                  # (E, FF)
        bf1 = ffw_l[E:E + 1, :].astype(jnp.float32)           # (1, FF)
        h1 = jnp.maximum(
            jnp.dot(x.astype(jnp.bfloat16), w1_t,
                    preferred_element_type=jnp.float32) + bf1, 0.0)           # (NS, FF) f32
        ff = jnp.dot(h1.astype(jnp.bfloat16), w2t_ref[l],
                     preferred_element_type=jnp.float32) + bf2                # (NS, E)
        x = layer_norm(x + ff, g2, b2)

    # decoder Linear(E, 1), emitted lane-dense as (1, NS)
    sm0 = smalls_ref[0]
    wd = sm0[OFF_WDB:OFF_WDB + 1, 0:E]                        # (1, E)
    bd = sm0[OFF_WDB:OFF_WDB + 1, E:E + 1]                    # (1, 1)
    out = jax.lax.dot_general(wd, x, (((1,), (1,)), ((), ())),
                              preferred_element_type=jnp.float32) + bd
    out_ref[...] = out.astype(out_ref.dtype)


def init_params(key):
    """Deterministic synthetic parameters (shapes match the PyTorch module)."""
    E, L, FF = FEATURE_SIZE, NUM_LAYERS, DIM_FF
    ks = jax.random.split(key, 7)

    def u(k, shape, bound):
        return jax.random.uniform(k, shape, jnp.float32, -bound, bound)

    return dict(
        wqkv=u(ks[0], (L, 3 * E, E), math.sqrt(6.0 / (4 * E))),   # in_proj_weight
        bqkv=jnp.zeros((L, 1, 3 * E), jnp.float32),               # in_proj_bias
        wo=u(ks[1], (L, E, E), 1.0 / math.sqrt(E)),               # out_proj.weight
        bo=jnp.zeros((L, 1, E), jnp.float32),                     # out_proj.bias
        g1=jnp.ones((L, 1, E), jnp.float32),                      # norm1.weight
        b1=jnp.zeros((L, 1, E), jnp.float32),                     # norm1.bias
        w1=u(ks[2], (L, FF, E), 1.0 / math.sqrt(E)),              # linear1.weight
        bf1=u(ks[3], (L, 1, FF), 1.0 / math.sqrt(E)),             # linear1.bias
        w2=u(ks[4], (L, E, FF), 1.0 / math.sqrt(FF)),             # linear2.weight
        bf2=u(ks[5], (L, 1, E), 1.0 / math.sqrt(FF)),             # linear2.bias
        g2=jnp.ones((L, 1, E), jnp.float32),                      # norm2.weight
        b2=jnp.zeros((L, 1, E), jnp.float32),                     # norm2.bias
        wd=u(ks[6], (1, E), 0.1),                                 # decoder.weight (init_weights)
        bd=jnp.zeros((1, 1), jnp.float32),                        # decoder.bias   (zeroed)
    )


def pack_params(params):
    """One-time kernel-layout preparation (hoisted out of the jitted forward).

    Produces only 3 weight arrays (-> 4 prologue DMAs including the input):
      smalls (L, 34, 35)  f32  : Wq^T | [Wk;Wv]+bias col | Wo^T | bias/gain row | decoder
      ffw    (L, E+1, FF) bf16 : [W1^T ; bf1]  lane-dense
      w2t    (L, FF, E)   bf16 : W2^T, MXU-native (K, N) orientation
    """
    E, L = FEATURE_SIZE, NUM_LAYERS
    wqkv = params['wqkv']                                     # (L, 3E, E) = [Wq; Wk; Wv]
    bqkv = params['bqkv']                                     # (L, 1, 3E)

    smalls = jnp.zeros((L, SM_ROWS, SM_COLS), jnp.float32)
    # Wq^T (so kernel does x @ WqT)
    smalls = smalls.at[:, OFF_WQ:OFF_WQ + E, 0:E].set(
        jnp.transpose(wqkv[:, 0:E, :], (0, 2, 1)))
    # [Wk; Wv] kept in row form (kernel contracts with trans_b to get kvT)
    smalls = smalls.at[:, OFF_WKV:OFF_WKV + 2 * E, 0:E].set(wqkv[:, E:3 * E, :])
    # [bk; bv] as a (2E, 1) column -> single broadcast add onto kvT
    bkv_col = jnp.transpose(bqkv[:, :, E:3 * E], (0, 2, 1))   # (L, 2E, 1)
    smalls = smalls.at[:, OFF_WKV:OFF_WKV + 2 * E, E:E + 1].set(bkv_col)
    # Wo^T
    smalls = smalls.at[:, OFF_WO:OFF_WO + E, 0:E].set(
        jnp.transpose(params['wo'], (0, 2, 1)))
    # per-layer bias/gain row: [bq | bo | g1 | b1 | bf2 | g2 | b2]
    prow = jnp.concatenate(
        [bqkv[:, :, 0:E], params['bo'], params['g1'], params['b1'],
         params['bf2'], params['g2'], params['b2']], axis=-1)  # (L, 1, 7E)
    smalls = smalls.at[:, OFF_ROW:OFF_ROW + 1, :].set(prow)
    # decoder [weight | bias] stored once in layer 0's tile
    wdb = jnp.concatenate([params['wd'], params['bd']], axis=-1)   # (1, E+1)
    smalls = smalls.at[0, OFF_WDB, 0:E + 1].set(wdb[0])

    ffw = jnp.concatenate(
        [jnp.transpose(params['w1'], (0, 2, 1)),              # (L, E, FF) lane-dense W1^T
         params['bf1']], axis=1).astype(jnp.bfloat16)         # + bf1 row -> (L, E+1, FF)
    w2t = jnp.transpose(params['w2'], (0, 2, 1)).astype(jnp.bfloat16)   # (L, FF, E)

    return dict(smalls=smalls, ffw=ffw, w2t=w2t)


@jax.jit
def transformer_forward(src, kp):
    S, N, E = src.shape
    NS = N * S
    # (S, N, E) seq-major -> (N*S, E) batch-major slab for the kernel
    x2 = jnp.transpose(src, (1, 0, 2)).reshape(NS, E).astype(jnp.float32)

    kernel = functools.partial(transformer_kernel, seq_len=S, batch=N, nheads=NHEADS)
    out_row = pl.pallas_call(
        kernel,
        out_shape=jax.ShapeDtypeStruct((1, NS), jnp.float32),
        # Resident footprint is ~2 MiB (dominated by the lane-padded W2^T tiles
        # and the (NS, FF) f32 hidden activation); 32 MiB scoped VMEM is safe
        # on v5e/v6e/v7x.  No grid -> no pipelining needed at these sizes.
        compiler_params=pltpu.CompilerParams(vmem_limit_bytes=32 * 1024 * 1024),
    )(x2, kp['smalls'], kp['ffw'], kp['w2t'])

    # (1, N*S) lane-dense kernel output -> (S, N, 1) PyTorch layout
    return jnp.transpose(out_row.reshape(N, S), (1, 0))[:, :, None]


if __name__ == "__main__":
    key = jax.random.PRNGKey(0)
    pkey, xkey = jax.random.split(key)
    params = init_params(pkey)
    kparams = pack_params(params)        # one-time layout prep (outside the jitted path)

    S, N, E = 8, 2, FEATURE_SIZE         # seq=8, batch=2, features=5
    src = jax.random.normal(xkey, (S, N, E), jnp.float32)

    out = transformer_forward(src, kparams)
    out = jax.block_until_ready(out)

    assert out.shape == (S, N, 1), out.shape
    assert bool(jnp.all(jnp.isfinite(out)))
    print("KERNEL_OK")
</pallas_src>

<mosaic_0001>
module attributes {stable_mosaic.version = 11 : i64} {
  func.func @transformer_kernel(%arg0: memref<16x5xf32, #tpu.memory_space<vmem>>, %arg1: memref<3x34x35xf32, #tpu.memory_space<vmem>>, %arg2: memref<3x6x2048xbf16, #tpu.memory_space<vmem>>, %arg3: memref<3x2048x5xbf16, #tpu.memory_space<vmem>>, %arg4: memref<1x16xf32, #tpu.memory_space<vmem>>) attributes {dimension_semantics = [], scalar_prefetch = 0 : i64, scratch_operands = 0 : i64, tpu.core_type = #tpu.core_type<tc>} {
    %c0 = arith.constant 0 : index
    %c0_0 = arith.constant 0 : index
    %0 = vector.load %arg0[%c0, %c0_0] : memref<16x5xf32, #tpu.memory_space<vmem>>, vector<16x5xf32>
    %1 = tpu.iota {dimensions = array<i32: 0>} : vector<16x16xi32>
    %2 = tpu.iota {dimensions = array<i32: 1>} : vector<16x16xi32>
    %3 = tpu.iota {dimensions = array<i32: 1>} : vector<2x8x16xi32>
    %4 = vector.shape_cast %3 : vector<2x8x16xi32> to vector<16x16xi32>
    %5 = arith.subi %1, %2 : vector<16x16xi32>
    %c0_i32 = arith.constant 0 : i32
    %6 = vector.broadcast %c0_i32 : i32 to vector<16x16xi32>
    %7 = arith.cmpi sge, %5, %6 : vector<16x16xi32>
    %8 = arith.cmpi sle, %5, %4 : vector<16x16xi32>
    %9 = arith.andi %7, %8 : vector<16x16xi1>
    %cst = arith.constant 0.000000e+00 : f32
    %cst_1 = arith.constant -1.000000e+30 : f32
    %10 = vector.broadcast %cst : f32 to vector<16x16xf32>
    %11 = vector.broadcast %cst_1 : f32 to vector<16x16xf32>
    %12 = arith.select %9, %10, %11 : vector<16x16xi1>, vector<16x16xf32>
    %c0_2 = arith.constant 0 : index
    %c0_3 = arith.constant 0 : index
    %c0_4 = arith.constant 0 : index
    %13 = vector.load %arg1[%c0_2, %c0_3, %c0_4] : memref<3x34x35xf32, #tpu.memory_space<vmem>>, vector<1x34x35xf32>
    %14 = vector.shape_cast %13 : vector<1x34x35xf32> to vector<34x35xf32>
    %15 = vector.extract_strided_slice %14 {offsets = [0, 0], sizes = [5, 5], strides = [1, 1]} : vector<34x35xf32> to vector<5x5xf32>
    %16 = vector.extract_strided_slice %14 {offsets = [8, 0], sizes = [10, 5], strides = [1, 1]} : vector<34x35xf32> to vector<10x5xf32>
    %17 = vector.extract_strided_slice %14 {offsets = [8, 5], sizes = [10, 1], strides = [1, 1]} : vector<34x35xf32> to vector<10x1xf32>
    %18 = vector.extract_strided_slice %14 {offsets = [24, 0], sizes = [5, 5], strides = [1, 1]} : vector<34x35xf32> to vector<5x5xf32>
    %19 = vector.extract_strided_slice %14 {offsets = [32, 0], sizes = [1, 35], strides = [1, 1]} : vector<34x35xf32> to vector<1x35xf32>
    %20 = vector.extract_strided_slice %19 {offsets = [0, 0], sizes = [1, 5], strides = [1, 1]} : vector<1x35xf32> to vector<1x5xf32>
    %21 = vector.extract_strided_slice %19 {offsets = [0, 5], sizes = [1, 5], strides = [1, 1]} : vector<1x35xf32> to vector<1x5xf32>
    %22 = vector.extract_strided_slice %19 {offsets = [0, 10], sizes = [1, 5], strides = [1, 1]} : vector<1x35xf32> to vector<1x5xf32>
    %23 = vector.extract_strided_slice %19 {offsets = [0, 15], sizes = [1, 5], strides = [1, 1]} : vector<1x35xf32> to vector<1x5xf32>
    %24 = vector.extract_strided_slice %19 {offsets = [0, 20], sizes = [1, 5], strides = [1, 1]} : vector<1x35xf32> to vector<1x5xf32>
    %25 = vector.extract_strided_slice %19 {offsets = [0, 25], sizes = [1, 5], strides = [1, 1]} : vector<1x35xf32> to vector<1x5xf32>
    %26 = vector.extract_strided_slice %19 {offsets = [0, 30], sizes = [1, 5], strides = [1, 1]} : vector<1x35xf32> to vector<1x5xf32>
    %cst_5 = arith.constant dense<0.000000e+00> : vector<16x5xf32>
    %27 = tpu.matmul %0, %15, %cst_5 {dimension_numbers = #tpu.dot_dimension_numbers<[1], [0], [0], [1], [0, 0, 1, 1], [], []>} : vector<16x5xf32>, vector<5x5xf32>, vector<16x5xf32> -> vector<16x5xf32>
    %28 = vector.broadcast %20 : vector<1x5xf32> to vector<16x5xf32>
    %29 = arith.addf %27, %28 : vector<16x5xf32>
    %cst_6 = arith.constant dense<0.000000e+00> : vector<10x16xf32>
    %30 = tpu.matmul %16, %0, %cst_6 {dimension_numbers = #tpu.dot_dimension_numbers<[1], [1], [0], [0], [0, 0, 1, 0], [], []>} : vector<10x5xf32>, vector<16x5xf32>, vector<10x16xf32> -> vector<10x16xf32>
    %31 = vector.broadcast %17 : vector<10x1xf32> to vector<10x16xf32>
    %32 = arith.addf %30, %31 : vector<10x16xf32>
    %cst_7 = arith.constant 0.000000e+00 : f32
    %33 = vector.broadcast %cst_7 : f32 to vector<16x5xf32>
    %34 = vector.extract_strided_slice %29 {offsets = [0, 0], sizes = [16, 1], strides = [1, 1]} : vector<16x5xf32> to vector<16x1xf32>
    %35 = vector.extract_strided_slice %32 {offsets = [0, 0], sizes = [1, 16], strides = [1, 1]} : vector<10x16xf32> to vector<1x16xf32>
    %36 = vector.extract_strided_slice %32 {offsets = [5, 0], sizes = [1, 16], strides = [1, 1]} : vector<10x16xf32> to vector<1x16xf32>
    %37 = vector.broadcast %34 : vector<16x1xf32> to vector<16x16xf32>
    %38 = vector.broadcast %35 : vector<1x16xf32> to vector<16x16xf32>
    %39 = arith.mulf %37, %38 : vector<16x16xf32>
    %40 = arith.addf %39, %12 : vector<16x16xf32>
    %cst_8 = arith.constant dense<0xFF800000> : vector<16xf32>
    %41 = vector.multi_reduction <maximumf>, %40, %cst_8 [1] : vector<16x16xf32> to vector<16xf32>
    %42 = vector.shape_cast %41 : vector<16xf32> to vector<16x1xf32>
    %43 = vector.broadcast %42 : vector<16x1xf32> to vector<16x16xf32>
    %44 = arith.subf %40, %43 : vector<16x16xf32>
    %45 = math.exp %44 : vector<16x16xf32>
    %cst_9 = arith.constant dense<0.000000e+00> : vector<16xf32>
    %46 = vector.multi_reduction <add>, %45, %cst_9 [1] : vector<16x16xf32> to vector<16xf32>
    %47 = vector.shape_cast %46 : vector<16xf32> to vector<16x1xf32>
    %48 = tpu.reciprocal %47 {approx = true} : vector<16x1xf32> -> vector<16x1xf32>
    %49 = vector.broadcast %48 : vector<16x1xf32> to vector<16x16xf32>
    %50 = arith.mulf %45, %49 : vector<16x16xf32>
    %51 = vector.broadcast %36 : vector<1x16xf32> to vector<16x16xf32>
    %52 = arith.mulf %50, %51 : vector<16x16xf32>
    %cst_10 = arith.constant dense<0.000000e+00> : vector<16xf32>
    %53 = vector.multi_reduction <add>, %52, %cst_10 [1] : vector<16x16xf32> to vector<16xf32>
    %54 = vector.shape_cast %53 : vector<16xf32> to vector<16x1xf32>
    %55 = vector.extract_strided_slice %18 {offsets = [0, 0], sizes = [1, 5], strides = [1, 1]} : vector<5x5xf32> to vector<1x5xf32>
    %56 = vector.broadcast %54 : vector<16x1xf32> to vector<16x5xf32>
    %57 = vector.broadcast %55 : vector<1x5xf32> to vector<16x5xf32>
    %58 = arith.mulf %56, %57 : vector<16x5xf32>
    %59 = arith.addf %33, %58 : vector<16x5xf32>
    %60 = vector.extract_strided_slice %29 {offsets = [0, 1], sizes = [16, 1], strides = [1, 1]} : vector<16x5xf32> to vector<16x1xf32>
    %61 = vector.extract_strided_slice %32 {offsets = [1, 0], sizes = [1, 16], strides = [1, 1]} : vector<10x16xf32> to vector<1x16xf32>
    %62 = vector.extract_strided_slice %32 {offsets = [6, 0], sizes = [1, 16], strides = [1, 1]} : vector<10x16xf32> to vector<1x16xf32>
    %63 = vector.broadcast %60 : vector<16x1xf32> to vector<16x16xf32>
    %64 = vector.broadcast %61 : vector<1x16xf32> to vector<16x16xf32>
    %65 = arith.mulf %63, %64 : vector<16x16xf32>
    %66 = arith.addf %65, %12 : vector<16x16xf32>
    %cst_11 = arith.constant dense<0xFF800000> : vector<16xf32>
    %67 = vector.multi_reduction <maximumf>, %66, %cst_11 [1] : vector<16x16xf32> to vector<16xf32>
    %68 = vector.shape_cast %67 : vector<16xf32> to vector<16x1xf32>
    %69 = vector.broadcast %68 : vector<16x1xf32> to vector<16x16xf32>
    %70 = arith.subf %66, %69 : vector<16x16xf32>
    %71 = math.exp %70 : vector<16x16xf32>
    %cst_12 = arith.constant dense<0.000000e+00> : vector<16xf32>
    %72 = vector.multi_reduction <add>, %71, %cst_12 [1] : vector<16x16xf32> to vector<16xf32>
    %73 = vector.shape_cast %72 : vector<16xf32> to vector<16x1xf32>
    %74 = tpu.reciprocal %73 {approx = true} : vector<16x1xf32> -> vector<16x1xf32>
    %75 = vector.broadcast %74 : vector<16x1xf32> to vector<16x16xf32>
    %76 = arith.mulf %71, %75 : vector<16x16xf32>
    %77 = vector.broadcast %62 : vector<1x16xf32> to vector<16x16xf32>
    %78 = arith.mulf %76, %77 : vector<16x16xf32>
    %cst_13 = arith.constant dense<0.000000e+00> : vector<16xf32>
    %79 = vector.multi_reduction <add>, %78, %cst_13 [1] : vector<16x16xf32> to vector<16xf32>
    %80 = vector.shape_cast %79 : vector<16xf32> to vector<16x1xf32>
    %81 = vector.extract_strided_slice %18 {offsets = [1, 0], sizes = [1, 5], strides = [1, 1]} : vector<5x5xf32> to vector<1x5xf32>
    %82 = vector.broadcast %80 : vector<16x1xf32> to vector<16x5xf32>
    %83 = vector.broadcast %81 : vector<1x5xf32> to vector<16x5xf32>
    %84 = arith.mulf %82, %83 : vector<16x5xf32>
    %85 = arith.addf %59, %84 : vector<16x5xf32>
    %86 = vector.extract_strided_slice %29 {offsets = [0, 2], sizes = [16, 1], strides = [1, 1]} : vector<16x5xf32> to vector<16x1xf32>
    %87 = vector.extract_strided_slice %32 {offsets = [2, 0], sizes = [1, 16], strides = [1, 1]} : vector<10x16xf32> to vector<1x16xf32>
    %88 = vector.extract_strided_slice %32 {offsets = [7, 0], sizes = [1, 16], strides = [1, 1]} : vector<10x16xf32> to vector<1x16xf32>
    %89 = vector.broadcast %86 : vector<16x1xf32> to vector<16x16xf32>
    %90 = vector.broadcast %87 : vector<1x16xf32> to vector<16x16xf32>
    %91 = arith.mulf %89, %90 : vector<16x16xf32>
    %92 = arith.addf %91, %12 : vector<16x16xf32>
    %cst_14 = arith.constant dense<0xFF800000> : vector<16xf32>
    %93 = vector.multi_reduction <maximumf>, %92, %cst_14 [1] : vector<16x16xf32> to vector<16xf32>
    %94 = vector.shape_cast %93 : vector<16xf32> to vector<16x1xf32>
    %95 = vector.broadcast %94 : vector<16x1xf32> to vector<16x16xf32>
    %96 = arith.subf %92, %95 : vector<16x16xf32>
    %97 = math.exp %96 : vector<16x16xf32>
    %cst_15 = arith.constant dense<0.000000e+00> : vector<16xf32>
    %98 = vector.multi_reduction <add>, %97, %cst_15 [1] : vector<16x16xf32> to vector<16xf32>
    %99 = vector.shape_cast %98 : vector<16xf32> to vector<16x1xf32>
    %100 = tpu.reciprocal %99 {approx = true} : vector<16x1xf32> -> vector<16x1xf32>
    %101 = vector.broadcast %100 : vector<16x1xf32> to vector<16x16xf32>
    %102 = arith.mulf %97, %101 : vector<16x16xf32>
    %103 = vector.broadcast %88 : vector<1x16xf32> to vector<16x16xf32>
    %104 = arith.mulf %102, %103 : vector<16x16xf32>
    %cst_16 = arith.constant dense<0.000000e+00> : vector<16xf32>
    %105 = vector.multi_reduction <add>, %104, %cst_16 [1] : vector<16x16xf32> to vector<16xf32>
    %106 = vector.shape_cast %105 : vector<16xf32> to vector<16x1xf32>
    %107 = vector.extract_strided_slice %18 {offsets = [2, 0], sizes = [1, 5], strides = [1, 1]} : vector<5x5xf32> to vector<1x5xf32>
    %108 = vector.broadcast %106 : vector<16x1xf32> to vector<16x5xf32>
    %109 = vector.broadcast %107 : vector<1x5xf32> to vector<16x5xf32>
    %110 = arith.mulf %108, %109 : vector<16x5xf32>
    %111 = arith.addf %85, %110 : vector<16x5xf32>
    %112 = vector.extract_strided_slice %29 {offsets = [0, 3], sizes = [16, 1], strides = [1, 1]} : vector<16x5xf32> to vector<16x1xf32>
    %113 = vector.extract_strided_slice %32 {offsets = [3, 0], sizes = [1, 16], strides = [1, 1]} : vector<10x16xf32> to vector<1x16xf32>
    %114 = vector.extract_strided_slice %32 {offsets = [8, 0], sizes = [1, 16], strides = [1, 1]} : vector<10x16xf32> to vector<1x16xf32>
    %115 = vector.broadcast %112 : vector<16x1xf32> to vector<16x16xf32>
    %116 = vector.broadcast %113 : vector<1x16xf32> to vector<16x16xf32>
    %117 = arith.mulf %115, %116 : vector<16x16xf32>
    %118 = arith.addf %117, %12 : vector<16x16xf32>
    %cst_17 = arith.constant dense<0xFF800000> : vector<16xf32>
    %119 = vector.multi_reduction <maximumf>, %118, %cst_17 [1] : vector<16x16xf32> to vector<16xf32>
    %120 = vector.shape_cast %119 : vector<16xf32> to vector<16x1xf32>
    %121 = vector.broadcast %120 : vector<16x1xf32> to vector<16x16xf32>
    %122 = arith.subf %118, %121 : vector<16x16xf32>
    %123 = math.exp %122 : vector<16x16xf32>
    %cst_18 = arith.constant dense<0.000000e+00> : vector<16xf32>
    %124 = vector.multi_reduction <add>, %123, %cst_18 [1] : vector<16x16xf32> to vector<16xf32>
    %125 = vector.shape_cast %124 : vector<16xf32> to vector<16x1xf32>
    %126 = tpu.reciprocal %125 {approx = true} : vector<16x1xf32> -> vector<16x1xf32>
    %127 = vector.broadcast %126 : vector<16x1xf32> to vector<16x16xf32>
    %128 = arith.mulf %123, %127 : vector<16x16xf32>
    %129 = vector.broadcast %114 : vector<1x16xf32> to vector<16x16xf32>
    %130 = arith.mulf %128, %129 : vector<16x16xf32>
    %cst_19 = arith.constant dense<0.000000e+00> : vector<16xf32>
    %131 = vector.multi_reduction <add>, %130, %cst_19 [1] : vector<16x16xf32> to vector<16xf32>
    %132 = vector.shape_cast %131 : vector<16xf32> to vector<16x1xf32>
    %133 = vector.extract_strided_slice %18 {offsets = [3, 0], sizes = [1, 5], strides = [1, 1]} : vector<5x5xf32> to vector<1x5xf32>
    %134 = vector.broadcast %132 : vector<16x1xf32> to vector<16x5xf32>
    %135 = vector.broadcast %133 : vector<1x5xf32> to vector<16x5xf32>
    %136 = arith.mulf %134, %135 : vector<16x5xf32>
    %137 = arith.addf %111, %136 : vector<16x5xf32>
    %138 = vector.extract_strided_slice %29 {offsets = [0, 4], sizes = [16, 1], strides = [1, 1]} : vector<16x5xf32> to vector<16x1xf32>
    %139 = vector.extract_strided_slice %32 {offsets = [4, 0], sizes = [1, 16], strides = [1, 1]} : vector<10x16xf32> to vector<1x16xf32>
    %140 = vector.extract_strided_slice %32 {offsets = [9, 0], sizes = [1, 16], strides = [1, 1]} : vector<10x16xf32> to vector<1x16xf32>
    %141 = vector.broadcast %138 : vector<16x1xf32> to vector<16x16xf32>
    %142 = vector.broadcast %139 : vector<1x16xf32> to vector<16x16xf32>
    %143 = arith.mulf %141, %142 : vector<16x16xf32>
    %144 = arith.addf %143, %12 : vector<16x16xf32>
    %cst_20 = arith.constant dense<0xFF800000> : vector<16xf32>
    %145 = vector.multi_reduction <maximumf>, %144, %cst_20 [1] : vector<16x16xf32> to vector<16xf32>
    %146 = vector.shape_cast %145 : vector<16xf32> to vector<16x1xf32>
    %147 = vector.broadcast %146 : vector<16x1xf32> to vector<16x16xf32>
    %148 = arith.subf %144, %147 : vector<16x16xf32>
    %149 = math.exp %148 : vector<16x16xf32>
    %cst_21 = arith.constant dense<0.000000e+00> : vector<16xf32>
    %150 = vector.multi_reduction <add>, %149, %cst_21 [1] : vector<16x16xf32> to vector<16xf32>
    %151 = vector.shape_cast %150 : vector<16xf32> to vector<16x1xf32>
    %152 = tpu.reciprocal %151 {approx = true} : vector<16x1xf32> -> vector<16x1xf32>
    %153 = vector.broadcast %152 : vector<16x1xf32> to vector<16x16xf32>
    %154 = arith.mulf %149, %153 : vector<16x16xf32>
    %155 = vector.broadcast %140 : vector<1x16xf32> to vector<16x16xf32>
    %156 = arith.mulf %154, %155 : vector<16x16xf32>
    %cst_22 = arith.constant dense<0.000000e+00> : vector<16xf32>
    %157 = vector.multi_reduction <add>, %156, %cst_22 [1] : vector<16x16xf32> to vector<16xf32>
    %158 = vector.shape_cast %157 : vector<16xf32> to vector<16x1xf32>
    %159 = vector.extract_strided_slice %18 {offsets = [4, 0], sizes = [1, 5], strides = [1, 1]} : vector<5x5xf32> to vector<1x5xf32>
    %160 = vector.broadcast %158 : vector<16x1xf32> to vector<16x5xf32>
    %161 = vector.broadcast %159 : vector<1x5xf32> to vector<16x5xf32>
    %162 = arith.mulf %160, %161 : vector<16x5xf32>
    %163 = arith.addf %137, %162 : vector<16x5xf32>
    %164 = arith.addf %0, %163 : vector<16x5xf32>
    %165 = vector.broadcast %21 : vector<1x5xf32> to vector<16x5xf32>
    %166 = arith.addf %164, %165 : vector<16x5xf32>
    %cst_23 = arith.constant dense<0.000000e+00> : vector<16xf32>
    %167 = vector.multi_reduction <add>, %166, %cst_23 [1] : vector<16x5xf32> to vector<16xf32>
    %168 = vector.shape_cast %167 : vector<16xf32> to vector<16x1xf32>
    %cst_24 = arith.constant 5.000000e+00 : f32
    %169 = vector.broadcast %cst_24 : f32 to vector<16x1xf32>
    %170 = arith.divf %168, %169 : vector<16x1xf32>
    %171 = vector.broadcast %170 : vector<16x1xf32> to vector<16x5xf32>
    %172 = arith.subf %166, %171 : vector<16x5xf32>
    %173 = arith.mulf %172, %172 : vector<16x5xf32>
    %cst_25 = arith.constant dense<0.000000e+00> : vector<16xf32>
    %174 = vector.multi_reduction <add>, %173, %cst_25 [1] : vector<16x5xf32> to vector<16xf32>
    %175 = vector.shape_cast %174 : vector<16xf32> to vector<16x1xf32>
    %cst_26 = arith.constant 5.000000e+00 : f32
    %176 = vector.broadcast %cst_26 : f32 to vector<16x1xf32>
    %177 = arith.divf %175, %176 : vector<16x1xf32>
    %178 = vector.broadcast %170 : vector<16x1xf32> to vector<16x5xf32>
    %179 = arith.subf %166, %178 : vector<16x5xf32>
    %cst_27 = arith.constant 9.99999974E-6 : f32
    %180 = vector.broadcast %cst_27 : f32 to vector<16x1xf32>
    %181 = arith.addf %177, %180 : vector<16x1xf32>
    %182 = math.rsqrt %181 : vector<16x1xf32>
    %183 = vector.broadcast %182 : vector<16x1xf32> to vector<16x5xf32>
    %184 = arith.mulf %179, %183 : vector<16x5xf32>
    %185 = vector.broadcast %22 : vector<1x5xf32> to vector<16x5xf32>
    %186 = arith.mulf %184, %185 : vector<16x5xf32>
    %187 = vector.broadcast %23 : vector<1x5xf32> to vector<16x5xf32>
    %188 = arith.addf %186, %187 : vector<16x5xf32>
    %c0_28 = arith.constant 0 : index
    %c0_29 = arith.constant 0 : index
    %c0_30 = arith.constant 0 : index
    %189 = vector.load %arg2[%c0_28, %c0_29, %c0_30] : memref<3x6x2048xbf16, #tpu.memory_space<vmem>>, vector<1x6x2048xbf16>
    %190 = vector.shape_cast %189 : vector<1x6x2048xbf16> to vector<6x2048xbf16>
    %191 = vector.extract_strided_slice %190 {offsets = [0, 0], sizes = [5, 2048], strides = [1, 1]} : vector<6x2048xbf16> to vector<5x2048xbf16>
    %192 = vector.extract_strided_slice %190 {offsets = [5, 0], sizes = [1, 2048], strides = [1, 1]} : vector<6x2048xbf16> to vector<1x2048xbf16>
    %193 = arith.extf %192 : vector<1x2048xbf16> to vector<1x2048xf32>
    %194 = arith.truncf %188 : vector<16x5xf32> to vector<16x5xbf16>
    %cst_31 = arith.constant dense<0.000000e+00> : vector<16x2048xf32>
    %195 = tpu.matmul %194, %191, %cst_31 {dimension_numbers = #tpu.dot_dimension_numbers<[1], [0], [0], [1], [0, 0, 1, 1], [], []>} : vector<16x5xbf16>, vector<5x2048xbf16>, vector<16x2048xf32> -> vector<16x2048xf32>
    %196 = vector.broadcast %193 : vector<1x2048xf32> to vector<16x2048xf32>
    %197 = arith.addf %195, %196 : vector<16x2048xf32>
    %cst_32 = arith.constant 0.000000e+00 : f32
    %198 = vector.broadcast %cst_32 : f32 to vector<16x2048xf32>
    %199 = arith.maximumf %197, %198 : vector<16x2048xf32>
    %200 = arith.truncf %199 : vector<16x2048xf32> to vector<16x2048xbf16>
    %c0_33 = arith.constant 0 : index
    %c0_34 = arith.constant 0 : index
    %c0_35 = arith.constant 0 : index
    %201 = vector.load %arg3[%c0_33, %c0_34, %c0_35] : memref<3x2048x5xbf16, #tpu.memory_space<vmem>>, vector<1x2048x5xbf16>
    %202 = vector.shape_cast %201 : vector<1x2048x5xbf16> to vector<2048x5xbf16>
    %cst_36 = arith.constant dense<0.000000e+00> : vector<16x5xf32>
    %203 = tpu.matmul %200, %202, %cst_36 {dimension_numbers = #tpu.dot_dimension_numbers<[1], [0], [0], [1], [0, 0, 1, 1], [], []>} : vector<16x2048xbf16>, vector<2048x5xbf16>, vector<16x5xf32> -> vector<16x5xf32>
    %204 = vector.broadcast %24 : vector<1x5xf32> to vector<16x5xf32>
    %205 = arith.addf %203, %204 : vector<16x5xf32>
    %206 = arith.addf %188, %205 : vector<16x5xf32>
    %cst_37 = arith.constant dense<0.000000e+00> : vector<16xf32>
    %207 = vector.multi_reduction <add>, %206, %cst_37 [1] : vector<16x5xf32> to vector<16xf32>
    %208 = vector.shape_cast %207 : vector<16xf32> to vector<16x1xf32>
    %cst_38 = arith.constant 5.000000e+00 : f32
    %209 = vector.broadcast %cst_38 : f32 to vector<16x1xf32>
    %210 = arith.divf %208, %209 : vector<16x1xf32>
    %211 = vector.broadcast %210 : vector<16x1xf32> to vector<16x5xf32>
    %212 = arith.subf %206, %211 : vector<16x5xf32>
    %213 = arith.mulf %212, %212 : vector<16x5xf32>
    %cst_39 = arith.constant dense<0.000000e+00> : vector<16xf32>
    %214 = vector.multi_reduction <add>, %213, %cst_39 [1] : vector<16x5xf32> to vector<16xf32>
    %215 = vector.shape_cast %214 : vector<16xf32> to vector<16x1xf32>
    %cst_40 = arith.constant 5.000000e+00 : f32
    %216 = vector.broadcast %cst_40 : f32 to vector<16x1xf32>
    %217 = arith.divf %215, %216 : vector<16x1xf32>
    %218 = vector.broadcast %210 : vector<16x1xf32> to vector<16x5xf32>
    %219 = arith.subf %206, %218 : vector<16x5xf32>
    %cst_41 = arith.constant 9.99999974E-6 : f32
    %220 = vector.broadcast %cst_41 : f32 to vector<16x1xf32>
    %221 = arith.addf %217, %220 : vector<16x1xf32>
    %222 = math.rsqrt %221 : vector<16x1xf32>
    %223 = vector.broadcast %222 : vector<16x1xf32> to vector<16x5xf32>
    %224 = arith.mulf %219, %223 : vector<16x5xf32>
    %225 = vector.broadcast %25 : vector<1x5xf32> to vector<16x5xf32>
    %226 = arith.mulf %224, %225 : vector<16x5xf32>
    %227 = vector.broadcast %26 : vector<1x5xf32> to vector<16x5xf32>
    %228 = arith.addf %226, %227 : vector<16x5xf32>
    %c1 = arith.constant 1 : index
    %c0_42 = arith.constant 0 : index
    %c0_43 = arith.constant 0 : index
    %229 = vector.load %arg1[%c1, %c0_42, %c0_43] : memref<3x34x35xf32, #tpu.memory_space<vmem>>, vector<1x34x35xf32>
    %230 = vector.shape_cast %229 : vector<1x34x35xf32> to vector<34x35xf32>
    %231 = vector.extract_strided_slice %230 {offsets = [0, 0], sizes = [5, 5], strides = [1, 1]} : vector<34x35xf32> to vector<5x5xf32>
    %232 = vector.extract_strided_slice %230 {offsets = [8, 0], sizes = [10, 5], strides = [1, 1]} : vector<34x35xf32> to vector<10x5xf32>
    %233 = vector.extract_strided_slice %230 {offsets = [8, 5], sizes = [10, 1], strides = [1, 1]} : vector<34x35xf32> to vector<10x1xf32>
    %234 = vector.extract_strided_slice %230 {offsets = [24, 0], sizes = [5, 5], strides = [1, 1]} : vector<34x35xf32> to vector<5x5xf32>
    %235 = vector.extract_strided_slice %230 {offsets = [32, 0], sizes = [1, 35], strides = [1, 1]} : vector<34x35xf32> to vector<1x35xf32>
    %236 = vector.extract_strided_slice %235 {offsets = [0, 0], sizes = [1, 5], strides = [1, 1]} : vector<1x35xf32> to vector<1x5xf32>
    %237 = vector.extract_strided_slice %235 {offsets = [0, 5], sizes = [1, 5], strides = [1, 1]} : vector<1x35xf32> to vector<1x5xf32>
    %238 = vector.extract_strided_slice %235 {offsets = [0, 10], sizes = [1, 5], strides = [1, 1]} : vector<1x35xf32> to vector<1x5xf32>
    %239 = vector.extract_strided_slice %235 {offsets = [0, 15], sizes = [1, 5], strides = [1, 1]} : vector<1x35xf32> to vector<1x5xf32>
    %240 = vector.extract_strided_slice %235 {offsets = [0, 20], sizes = [1, 5], strides = [1, 1]} : vector<1x35xf32> to vector<1x5xf32>
    %241 = vector.extract_strided_slice %235 {offsets = [0, 25], sizes = [1, 5], strides = [1, 1]} : vector<1x35xf32> to vector<1x5xf32>
    %242 = vector.extract_strided_slice %235 {offsets = [0, 30], sizes = [1, 5], strides = [1, 1]} : vector<1x35xf32> to vector<1x5xf32>
    %cst_44 = arith.constant dense<0.000000e+00> : vector<16x5xf32>
    %243 = tpu.matmul %228, %231, %cst_44 {dimension_numbers = #tpu.dot_dimension_numbers<[1], [0], [0], [1], [0, 0, 1, 1], [], []>} : vector<16x5xf32>, vector<5x5xf32>, vector<16x5xf32> -> vector<16x5xf32>
    %244 = vector.broadcast %236 : vector<1x5xf32> to vector<16x5xf32>
    %245 = arith.addf %243, %244 : vector<16x5xf32>
    %cst_45 = arith.constant dense<0.000000e+00> : vector<10x16xf32>
    %246 = tpu.matmul %232, %228, %cst_45 {dimension_numbers = #tpu.dot_dimension_numbers<[1], [1], [0], [0], [0, 0, 1, 0], [], []>} : vector<10x5xf32>, vector<16x5xf32>, vector<10x16xf32> -> vector<10x16xf32>
    %247 = vector.broadcast %233 : vector<10x1xf32> to vector<10x16xf32>
    %248 = arith.addf %246, %247 : vector<10x16xf32>
    %cst_46 = arith.constant 0.000000e+00 : f32
    %249 = vector.broadcast %cst_46 : f32 to vector<16x5xf32>
    %250 = vector.extract_strided_slice %245 {offsets = [0, 0], sizes = [16, 1], strides = [1, 1]} : vector<16x5xf32> to vector<16x1xf32>
    %251 = vector.extract_strided_slice %248 {offsets = [0, 0], sizes = [1, 16], strides = [1, 1]} : vector<10x16xf32> to vector<1x16xf32>
    %252 = vector.extract_strided_slice %248 {offsets = [5, 0], sizes = [1, 16], strides = [1, 1]} : vector<10x16xf32> to vector<1x16xf32>
    %253 = vector.broadcast %250 : vector<16x1xf32> to vector<16x16xf32>
    %254 = vector.broadcast %251 : vector<1x16xf32> to vector<16x16xf32>
    %255 = arith.mulf %253, %254 : vector<16x16xf32>
    %256 = arith.addf %255, %12 : vector<16x16xf32>
    %cst_47 = arith.constant dense<0xFF800000> : vector<16xf32>
    %257 = vector.multi_reduction <maximumf>, %256, %cst_47 [1] : vector<16x16xf32> to vector<16xf32>
    %258 = vector.shape_cast %257 : vector<16xf32> to vector<16x1xf32>
    %259 = vector.broadcast %258 : vector<16x1xf32> to vector<16x16xf32>
    %260 = arith.subf %256, %259 : vector<16x16xf32>
    %261 = math.exp %260 : vector<16x16xf32>
    %cst_48 = arith.constant dense<0.000000e+00> : vector<16xf32>
    %262 = vector.multi_reduction <add>, %261, %cst_48 [1] : vector<16x16xf32> to vector<16xf32>
    %263 = vector.shape_cast %262 : vector<16xf32> to vector<16x1xf32>
    %264 = tpu.reciprocal %263 {approx = true} : vector<16x1xf32> -> vector<16x1xf32>
    %265 = vector.broadcast %264 : vector<16x1xf32> to vector<16x16xf32>
    %266 = arith.mulf %261, %265 : vector<16x16xf32>
    %267 = vector.broadcast %252 : vector<1x16xf32> to vector<16x16xf32>
    %268 = arith.mulf %266, %267 : vector<16x16xf32>
    %cst_49 = arith.constant dense<0.000000e+00> : vector<16xf32>
    %269 = vector.multi_reduction <add>, %268, %cst_49 [1] : vector<16x16xf32> to vector<16xf32>
    %270 = vector.shape_cast %269 : vector<16xf32> to vector<16x1xf32>
    %271 = vector.extract_strided_slice %234 {offsets = [0, 0], sizes = [1, 5], strides = [1, 1]} : vector<5x5xf32> to vector<1x5xf32>
    %272 = vector.broadcast %270 : vector<16x1xf32> to vector<16x5xf32>
    %273 = vector.broadcast %271 : vector<1x5xf32> to vector<16x5xf32>
    %274 = arith.mulf %272, %273 : vector<16x5xf32>
    %275 = arith.addf %249, %274 : vector<16x5xf32>
    %276 = vector.extract_strided_slice %245 {offsets = [0, 1], sizes = [16, 1], strides = [1, 1]} : vector<16x5xf32> to vector<16x1xf32>
    %277 = vector.extract_strided_slice %248 {offsets = [1, 0], sizes = [1, 16], strides = [1, 1]} : vector<10x16xf32> to vector<1x16xf32>
    %278 = vector.extract_strided_slice %248 {offsets = [6, 0], sizes = [1, 16], strides = [1, 1]} : vector<10x16xf32> to vector<1x16xf32>
    %279 = vector.broadcast %276 : vector<16x1xf32> to vector<16x16xf32>
    %280 = vector.broadcast %277 : vector<1x16xf32> to vector<16x16xf32>
    %281 = arith.mulf %279, %280 : vector<16x16xf32>
    %282 = arith.addf %281, %12 : vector<16x16xf32>
    %cst_50 = arith.constant dense<0xFF800000> : vector<16xf32>
    %283 = vector.multi_reduction <maximumf>, %282, %cst_50 [1] : vector<16x16xf32> to vector<16xf32>
    %284 = vector.shape_cast %283 : vector<16xf32> to vector<16x1xf32>
    %285 = vector.broadcast %284 : vector<16x1xf32> to vector<16x16xf32>
    %286 = arith.subf %282, %285 : vector<16x16xf32>
    %287 = math.exp %286 : vector<16x16xf32>
    %cst_51 = arith.constant dense<0.000000e+00> : vector<16xf32>
    %288 = vector.multi_reduction <add>, %287, %cst_51 [1] : vector<16x16xf32> to vector<16xf32>
    %289 = vector.shape_cast %288 : vector<16xf32> to vector<16x1xf32>
    %290 = tpu.reciprocal %289 {approx = true} : vector<16x1xf32> -> vector<16x1xf32>
    %291 = vector.broadcast %290 : vector<16x1xf32> to vector<16x16xf32>
    %292 = arith.mulf %287, %291 : vector<16x16xf32>
    %293 = vector.broadcast %278 : vector<1x16xf32> to vector<16x16xf32>
    %294 = arith.mulf %292, %293 : vector<16x16xf32>
    %cst_52 = arith.constant dense<0.000000e+00> : vector<16xf32>
    %295 = vector.multi_reduction <add>, %294, %cst_52 [1] : vector<16x16xf32> to vector<16xf32>
    %296 = vector.shape_cast %295 : vector<16xf32> to vector<16x1xf32>
    %297 = vector.extract_strided_slice %234 {offsets = [1, 0], sizes = [1, 5], strides = [1, 1]} : vector<5x5xf32> to vector<1x5xf32>
    %298 = vector.broadcast %296 : vector<16x1xf32> to vector<16x5xf32>
    %299 = vector.broadcast %297 : vector<1x5xf32> to vector<16x5xf32>
    %300 = arith.mulf %298, %299 : vector<16x5xf32>
    %301 = arith.addf %275, %300 : vector<16x5xf32>
    %302 = vector.extract_strided_slice %245 {offsets = [0, 2], sizes = [16, 1], strides = [1, 1]} : vector<16x5xf32> to vector<16x1xf32>
    %303 = vector.extract_strided_slice %248 {offsets = [2, 0], sizes = [1, 16], strides = [1, 1]} : vector<10x16xf32> to vector<1x16xf32>
    %304 = vector.extract_strided_slice %248 {offsets = [7, 0], sizes = [1, 16], strides = [1, 1]} : vector<10x16xf32> to vector<1x16xf32>
    %305 = vector.broadcast %302 : vector<16x1xf32> to vector<16x16xf32>
    %306 = vector.broadcast %303 : vector<1x16xf32> to vector<16x16xf32>
    %307 = arith.mulf %305, %306 : vector<16x16xf32>
    %308 = arith.addf %307, %12 : vector<16x16xf32>
    %cst_53 = arith.constant dense<0xFF800000> : vector<16xf32>
    %309 = vector.multi_reduction <maximumf>, %308, %cst_53 [1] : vector<16x16xf32> to vector<16xf32>
    %310 = vector.shape_cast %309 : vector<16xf32> to vector<16x1xf32>
    %311 = vector.broadcast %310 : vector<16x1xf32> to vector<16x16xf32>
    %312 = arith.subf %308, %311 : vector<16x16xf32>
    %313 = math.exp %312 : vector<16x16xf32>
    %cst_54 = arith.constant dense<0.000000e+00> : vector<16xf32>
    %314 = vector.multi_reduction <add>, %313, %cst_54 [1] : vector<16x16xf32> to vector<16xf32>
    %315 = vector.shape_cast %314 : vector<16xf32> to vector<16x1xf32>
    %316 = tpu.reciprocal %315 {approx = true} : vector<16x1xf32> -> vector<16x1xf32>
    %317 = vector.broadcast %316 : vector<16x1xf32> to vector<16x16xf32>
    %318 = arith.mulf %313, %317 : vector<16x16xf32>
    %319 = vector.broadcast %304 : vector<1x16xf32> to vector<16x16xf32>
    %320 = arith.mulf %318, %319 : vector<16x16xf32>
    %cst_55 = arith.constant dense<0.000000e+00> : vector<16xf32>
    %321 = vector.multi_reduction <add>, %320, %cst_55 [1] : vector<16x16xf32> to vector<16xf32>
    %322 = vector.shape_cast %321 : vector<16xf32> to vector<16x1xf32>
    %323 = vector.extract_strided_slice %234 {offsets = [2, 0], sizes = [1, 5], strides = [1, 1]} : vector<5x5xf32> to vector<1x5xf32>
    %324 = vector.broadcast %322 : vector<16x1xf32> to vector<16x5xf32>
    %325 = vector.broadcast %323 : vector<1x5xf32> to vector<16x5xf32>
    %326 = arith.mulf %324, %325 : vector<16x5xf32>
    %327 = arith.addf %301, %326 : vector<16x5xf32>
    %328 = vector.extract_strided_slice %245 {offsets = [0, 3], sizes = [16, 1], strides = [1, 1]} : vector<16x5xf32> to vector<16x1xf32>
    %329 = vector.extract_strided_slice %248 {offsets = [3, 0], sizes = [1, 16], strides = [1, 1]} : vector<10x16xf32> to vector<1x16xf32>
    %330 = vector.extract_strided_slice %248 {offsets = [8, 0], sizes = [1, 16], strides = [1, 1]} : vector<10x16xf32> to vector<1x16xf32>
    %331 = vector.broadcast %328 : vector<16x1xf32> to vector<16x16xf32>
    %332 = vector.broadcast %329 : vector<1x16xf32> to vector<16x16xf32>
    %333 = arith.mulf %331, %332 : vector<16x16xf32>
    %334 = arith.addf %333, %12 : vector<16x16xf32>
    %cst_56 = arith.constant dense<0xFF800000> : vector<16xf32>
    %335 = vector.multi_reduction <maximumf>, %334, %cst_56 [1] : vector<16x16xf32> to vector<16xf32>
    %336 = vector.shape_cast %335 : vector<16xf32> to vector<16x1xf32>
    %337 = vector.broadcast %336 : vector<16x1xf32> to vector<16x16xf32>
    %338 = arith.subf %334, %337 : vector<16x16xf32>
    %339 = math.exp %338 : vector<16x16xf32>
    %cst_57 = arith.constant dense<0.000000e+00> : vector<16xf32>
    %340 = vector.multi_reduction <add>, %339, %cst_57 [1] : vector<16x16xf32> to vector<16xf32>
    %341 = vector.shape_cast %340 : vector<16xf32> to vector<16x1xf32>
    %342 = tpu.reciprocal %341 {approx = true} : vector<16x1xf32> -> vector<16x1xf32>
    %343 = vector.broadcast %342 : vector<16x1xf32> to vector<16x16xf32>
    %344 = arith.mulf %339, %343 : vector<16x16xf32>
    %345 = vector.broadcast %330 : vector<1x16xf32> to vector<16x16xf32>
    %346 = arith.mulf %344, %345 : vector<16x16xf32>
    %cst_58 = arith.constant dense<0.000000e+00> : vector<16xf32>
    %347 = vector.multi_reduction <add>, %346, %cst_58 [1] : vector<16x16xf32> to vector<16xf32>
    %348 = vector.shape_cast %347 : vector<16xf32> to vector<16x1xf32>
    %349 = vector.extract_strided_slice %234 {offsets = [3, 0], sizes = [1, 5], strides = [1, 1]} : vector<5x5xf32> to vector<1x5xf32>
    %350 = vector.broadcast %348 : vector<16x1xf32> to vector<16x5xf32>
    %351 = vector.broadcast %349 : vector<1x5xf32> to vector<16x5xf32>
    %352 = arith.mulf %350, %351 : vector<16x5xf32>
    %353 = arith.addf %327, %352 : vector<16x5xf32>
    %354 = vector.extract_strided_slice %245 {offsets = [0, 4], sizes = [16, 1], strides = [1, 1]} : vector<16x5xf32> to vector<16x1xf32>
    %355 = vector.extract_strided_slice %248 {offsets = [4, 0], sizes = [1, 16], strides = [1, 1]} : vector<10x16xf32> to vector<1x16xf32>
    %356 = vector.extract_strided_slice %248 {offsets = [9, 0], sizes = [1, 16], strides = [1, 1]} : vector<10x16xf32> to vector<1x16xf32>
    %357 = vector.broadcast %354 : vector<16x1xf32> to vector<16x16xf32>
    %358 = vector.broadcast %355 : vector<1x16xf32> to vector<16x16xf32>
    %359 = arith.mulf %357, %358 : vector<16x16xf32>
    %360 = arith.addf %359, %12 : vector<16x16xf32>
    %cst_59 = arith.constant dense<0xFF800000> : vector<16xf32>
    %361 = vector.multi_reduction <maximumf>, %360, %cst_59 [1] : vector<16x16xf32> to vector<16xf32>
    %362 = vector.shape_cast %361 : vector<16xf32> to vector<16x1xf32>
    %363 = vector.broadcast %362 : vector<16x1xf32> to vector<16x16xf32>
    %364 = arith.subf %360, %363 : vector<16x16xf32>
    %365 = math.exp %364 : vector<16x16xf32>
    %cst_60 = arith.constant dense<0.000000e+00> : vector<16xf32>
    %366 = vector.multi_reduction <add>, %365, %cst_60 [1] : vector<16x16xf32> to vector<16xf32>
    %367 = vector.shape_cast %366 : vector<16xf32> to vector<16x1xf32>
    %368 = tpu.reciprocal %367 {approx = true} : vector<16x1xf32> -> vector<16x1xf32>
    %369 = vector.broadcast %368 : vector<16x1xf32> to vector<16x16xf32>
    %370 = arith.mulf %365, %369 : vector<16x16xf32>
    %371 = vector.broadcast %356 : vector<1x16xf32> to vector<16x16xf32>
    %372 = arith.mulf %370, %371 : vector<16x16xf32>
    %cst_61 = arith.constant dense<0.000000e+00> : vector<16xf32>
    %373 = vector.multi_reduction <add>, %372, %cst_61 [1] : vector<16x16xf32> to vector<16xf32>
    %374 = vector.shape_cast %373 : vector<16xf32> to vector<16x1xf32>
    %375 = vector.extract_strided_slice %234 {offsets = [4, 0], sizes = [1, 5], strides = [1, 1]} : vector<5x5xf32> to vector<1x5xf32>
    %376 = vector.broadcast %374 : vector<16x1xf32> to vector<16x5xf32>
    %377 = vector.broadcast %375 : vector<1x5xf32> to vector<16x5xf32>
    %378 = arith.mulf %376, %377 : vector<16x5xf32>
    %379 = arith.addf %353, %378 : vector<16x5xf32>
    %380 = arith.addf %228, %379 : vector<16x5xf32>
    %381 = vector.broadcast %237 : vector<1x5xf32> to vector<16x5xf32>
    %382 = arith.addf %380, %381 : vector<16x5xf32>
    %cst_62 = arith.constant dense<0.000000e+00> : vector<16xf32>
    %383 = vector.multi_reduction <add>, %382, %cst_62 [1] : vector<16x5xf32> to vector<16xf32>
    %384 = vector.shape_cast %383 : vector<16xf32> to vector<16x1xf32>
    %cst_63 = arith.constant 5.000000e+00 : f32
    %385 = vector.broadcast %cst_63 : f32 to vector<16x1xf32>
    %386 = arith.divf %384, %385 : vector<16x1xf32>
    %387 = vector.broadcast %386 : vector<16x1xf32> to vector<16x5xf32>
    %388 = arith.subf %382, %387 : vector<16x5xf32>
    %389 = arith.mulf %388, %388 : vector<16x5xf32>
    %cst_64 = arith.constant dense<0.000000e+00> : vector<16xf32>
    %390 = vector.multi_reduction <add>, %389, %cst_64 [1] : vector<16x5xf32> to vector<16xf32>
    %391 = vector.shape_cast %390 : vector<16xf32> to vector<16x1xf32>
    %cst_65 = arith.constant 5.000000e+00 : f32
    %392 = vector.broadcast %cst_65 : f32 to vector<16x1xf32>
    %393 = arith.divf %391, %392 : vector<16x1xf32>
    %394 = vector.broadcast %386 : vector<16x1xf32> to vector<16x5xf32>
    %395 = arith.subf %382, %394 : vector<16x5xf32>
    %cst_66 = arith.constant 9.99999974E-6 : f32
    %396 = vector.broadcast %cst_66 : f32 to vector<16x1xf32>
    %397 = arith.addf %393, %396 : vector<16x1xf32>
    %398 = math.rsqrt %397 : vector<16x1xf32>
    %399 = vector.broadcast %398 : vector<16x1xf32> to vector<16x5xf32>
    %400 = arith.mulf %395, %399 : vector<16x5xf32>
    %401 = vector.broadcast %238 : vector<1x5xf32> to vector<16x5xf32>
    %402 = arith.mulf %400, %401 : vector<16x5xf32>
    %403 = vector.broadcast %239 : vector<1x5xf32> to vector<16x5xf32>
    %404 = arith.addf %402, %403 : vector<16x5xf32>
    %c1_67 = arith.constant 1 : index
    %c0_68 = arith.constant 0 : index
    %c0_69 = arith.constant 0 : index
    %405 = vector.load %arg2[%c1_67, %c0_68, %c0_69] : memref<3x6x2048xbf16, #tpu.memory_space<vmem>>, vector<1x6x2048xbf16>
    %406 = vector.shape_cast %405 : vector<1x6x2048xbf16> to vector<6x2048xbf16>
    %407 = vector.extract_strided_slice %406 {offsets = [0, 0], sizes = [5, 2048], strides = [1, 1]} : vector<6x2048xbf16> to vector<5x2048xbf16>
    %408 = vector.extract_strided_slice %406 {offsets = [5, 0], sizes = [1, 2048], strides = [1, 1]} : vector<6x2048xbf16> to vector<1x2048xbf16>
    %409 = arith.extf %408 : vector<1x2048xbf16> to vector<1x2048xf32>
    %410 = arith.truncf %404 : vector<16x5xf32> to vector<16x5xbf16>
    %cst_70 = arith.constant dense<0.000000e+00> : vector<16x2048xf32>
    %411 = tpu.matmul %410, %407, %cst_70 {dimension_numbers = #tpu.dot_dimension_numbers<[1], [0], [0], [1], [0, 0, 1, 1], [], []>} : vector<16x5xbf16>, vector<5x2048xbf16>, vector<16x2048xf32> -> vector<16x2048xf32>
    %412 = vector.broadcast %409 : vector<1x2048xf32> to vector<16x2048xf32>
    %413 = arith.addf %411, %412 : vector<16x2048xf32>
    %cst_71 = arith.constant 0.000000e+00 : f32
    %414 = vector.broadcast %cst_71 : f32 to vector<16x2048xf32>
    %415 = arith.maximumf %413, %414 : vector<16x2048xf32>
    %416 = arith.truncf %415 : vector<16x2048xf32> to vector<16x2048xbf16>
    %c1_72 = arith.constant 1 : index
    %c0_73 = arith.constant 0 : index
    %c0_74 = arith.constant 0 : index
    %417 = vector.load %arg3[%c1_72, %c0_73, %c0_74] : memref<3x2048x5xbf16, #tpu.memory_space<vmem>>, vector<1x2048x5xbf16>
    %418 = vector.shape_cast %417 : vector<1x2048x5xbf16> to vector<2048x5xbf16>
    %cst_75 = arith.constant dense<0.000000e+00> : vector<16x5xf32>
    %419 = tpu.matmul %416, %418, %cst_75 {dimension_numbers = #tpu.dot_dimension_numbers<[1], [0], [0], [1], [0, 0, 1, 1], [], []>} : vector<16x2048xbf16>, vector<2048x5xbf16>, vector<16x5xf32> -> vector<16x5xf32>
    %420 = vector.broadcast %240 : vector<1x5xf32> to vector<16x5xf32>
    %421 = arith.addf %419, %420 : vector<16x5xf32>
    %422 = arith.addf %404, %421 : vector<16x5xf32>
    %cst_76 = arith.constant dense<0.000000e+00> : vector<16xf32>
    %423 = vector.multi_reduction <add>, %422, %cst_76 [1] : vector<16x5xf32> to vector<16xf32>
    %424 = vector.shape_cast %423 : vector<16xf32> to vector<16x1xf32>
    %cst_77 = arith.constant 5.000000e+00 : f32
    %425 = vector.broadcast %cst_77 : f32 to vector<16x1xf32>
    %426 = arith.divf %424, %425 : vector<16x1xf32>
    %427 = vector.broadcast %426 : vector<16x1xf32> to vector<16x5xf32>
    %428 = arith.subf %422, %427 : vector<16x5xf32>
    %429 = arith.mulf %428, %428 : vector<16x5xf32>
    %cst_78 = arith.constant dense<0.000000e+00> : vector<16xf32>
    %430 = vector.multi_reduction <add>, %429, %cst_78 [1] : vector<16x5xf32> to vector<16xf32>
    %431 = vector.shape_cast %430 : vector<16xf32> to vector<16x1xf32>
    %cst_79 = arith.constant 5.000000e+00 : f32
    %432 = vector.broadcast %cst_79 : f32 to vector<16x1xf32>
    %433 = arith.divf %431, %432 : vector<16x1xf32>
    %434 = vector.broadcast %426 : vector<16x1xf32> to vector<16x5xf32>
    %435 = arith.subf %422, %434 : vector<16x5xf32>
    %cst_80 = arith.constant 9.99999974E-6 : f32
    %436 = vector.broadcast %cst_80 : f32 to vector<16x1xf32>
    %437 = arith.addf %433, %436 : vector<16x1xf32>
    %438 = math.rsqrt %437 : vector<16x1xf32>
    %439 = vector.broadcast %438 : vector<16x1xf32> to vector<16x5xf32>
    %440 = arith.mulf %435, %439 : vector<16x5xf32>
    %441 = vector.broadcast %241 : vector<1x5xf32> to vector<16x5xf32>
    %442 = arith.mulf %440, %441 : vector<16x5xf32>
    %443 = vector.broadcast %242 : vector<1x5xf32> to vector<16x5xf32>
    %444 = arith.addf %442, %443 : vector<16x5xf32>
    %c2 = arith.constant 2 : index
    %c0_81 = arith.constant 0 : index
    %c0_82 = arith.constant 0 : index
    %445 = vector.load %arg1[%c2, %c0_81, %c0_82] : memref<3x34x35xf32, #tpu.memory_space<vmem>>, vector<1x34x35xf32>
    %446 = vector.shape_cast %445 : vector<1x34x35xf32> to vector<34x35xf32>
    %447 = vector.extract_strided_slice %446 {offsets = [0, 0], sizes = [5, 5], strides = [1, 1]} : vector<34x35xf32> to vector<5x5xf32>
    %448 = vector.extract_strided_slice %446 {offsets = [8, 0], sizes = [10, 5], strides = [1, 1]} : vector<34x35xf32> to vector<10x5xf32>
    %449 = vector.extract_strided_slice %446 {offsets = [8, 5], sizes = [10, 1], strides = [1, 1]} : vector<34x35xf32> to vector<10x1xf32>
    %450 = vector.extract_strided_slice %446 {offsets = [24, 0], sizes = [5, 5], strides = [1, 1]} : vector<34x35xf32> to vector<5x5xf32>
    %451 = vector.extract_strided_slice %446 {offsets = [32, 0], sizes = [1, 35], strides = [1, 1]} : vector<34x35xf32> to vector<1x35xf32>
    %452 = vector.extract_strided_slice %451 {offsets = [0, 0], sizes = [1, 5], strides = [1, 1]} : vector<1x35xf32> to vector<1x5xf32>
    %453 = vector.extract_strided_slice %451 {offsets = [0, 5], sizes = [1, 5], strides = [1, 1]} : vector<1x35xf32> to vector<1x5xf32>
    %454 = vector.extract_strided_slice %451 {offsets = [0, 10], sizes = [1, 5], strides = [1, 1]} : vector<1x35xf32> to vector<1x5xf32>
    %455 = vector.extract_strided_slice %451 {offsets = [0, 15], sizes = [1, 5], strides = [1, 1]} : vector<1x35xf32> to vector<1x5xf32>
    %456 = vector.extract_strided_slice %451 {offsets = [0, 20], sizes = [1, 5], strides = [1, 1]} : vector<1x35xf32> to vector<1x5xf32>
    %457 = vector.extract_strided_slice %451 {offsets = [0, 25], sizes = [1, 5], strides = [1, 1]} : vector<1x35xf32> to vector<1x5xf32>
    %458 = vector.extract_strided_slice %451 {offsets = [0, 30], sizes = [1, 5], strides = [1, 1]} : vector<1x35xf32> to vector<1x5xf32>
    %cst_83 = arith.constant dense<0.000000e+00> : vector<16x5xf32>
    %459 = tpu.matmul %444, %447, %cst_83 {dimension_numbers = #tpu.dot_dimension_numbers<[1], [0], [0], [1], [0, 0, 1, 1], [], []>} : vector<16x5xf32>, vector<5x5xf32>, vector<16x5xf32> -> vector<16x5xf32>
    %460 = vector.broadcast %452 : vector<1x5xf32> to vector<16x5xf32>
    %461 = arith.addf %459, %460 : vector<16x5xf32>
    %cst_84 = arith.constant dense<0.000000e+00> : vector<10x16xf32>
    %462 = tpu.matmul %448, %444, %cst_84 {dimension_numbers = #tpu.dot_dimension_numbers<[1], [1], [0], [0], [0, 0, 1, 0], [], []>} : vector<10x5xf32>, vector<16x5xf32>, vector<10x16xf32> -> vector<10x16xf32>
    %463 = vector.broadcast %449 : vector<10x1xf32> to vector<10x16xf32>
    %464 = arith.addf %462, %463 : vector<10x16xf32>
    %cst_85 = arith.constant 0.000000e+00 : f32
    %465 = vector.broadcast %cst_85 : f32 to vector<16x5xf32>
    %466 = vector.extract_strided_slice %461 {offsets = [0, 0], sizes = [16, 1], strides = [1, 1]} : vector<16x5xf32> to vector<16x1xf32>
    %467 = vector.extract_strided_slice %464 {offsets = [0, 0], sizes = [1, 16], strides = [1, 1]} : vector<10x16xf32> to vector<1x16xf32>
    %468 = vector.extract_strided_slice %464 {offsets = [5, 0], sizes = [1, 16], strides = [1, 1]} : vector<10x16xf32> to vector<1x16xf32>
    %469 = vector.broadcast %466 : vector<16x1xf32> to vector<16x16xf32>
    %470 = vector.broadcast %467 : vector<1x16xf32> to vector<16x16xf32>
    %471 = arith.mulf %469, %470 : vector<16x16xf32>
    %472 = arith.addf %471, %12 : vector<16x16xf32>
    %cst_86 = arith.constant dense<0xFF800000> : vector<16xf32>
    %473 = vector.multi_reduction <maximumf>, %472, %cst_86 [1] : vector<16x16xf32> to vector<16xf32>
    %474 = vector.shape_cast %473 : vector<16xf32> to vector<16x1xf32>
    %475 = vector.broadcast %474 : vector<16x1xf32> to vector<16x16xf32>
    %476 = arith.subf %472, %475 : vector<16x16xf32>
    %477 = math.exp %476 : vector<16x16xf32>
    %cst_87 = arith.constant dense<0.000000e+00> : vector<16xf32>
    %478 = vector.multi_reduction <add>, %477, %cst_87 [1] : vector<16x16xf32> to vector<16xf32>
    %479 = vector.shape_cast %478 : vector<16xf32> to vector<16x1xf32>
    %480 = tpu.reciprocal %479 {approx = true} : vector<16x1xf32> -> vector<16x1xf32>
    %481 = vector.broadcast %480 : vector<16x1xf32> to vector<16x16xf32>
    %482 = arith.mulf %477, %481 : vector<16x16xf32>
    %483 = vector.broadcast %468 : vector<1x16xf32> to vector<16x16xf32>
    %484 = arith.mulf %482, %483 : vector<16x16xf32>
    %cst_88 = arith.constant dense<0.000000e+00> : vector<16xf32>
    %485 = vector.multi_reduction <add>, %484, %cst_88 [1] : vector<16x16xf32> to vector<16xf32>
    %486 = vector.shape_cast %485 : vector<16xf32> to vector<16x1xf32>
    %487 = vector.extract_strided_slice %450 {offsets = [0, 0], sizes = [1, 5], strides = [1, 1]} : vector<5x5xf32> to vector<1x5xf32>
    %488 = vector.broadcast %486 : vector<16x1xf32> to vector<16x5xf32>
    %489 = vector.broadcast %487 : vector<1x5xf32> to vector<16x5xf32>
    %490 = arith.mulf %488, %489 : vector<16x5xf32>
    %491 = arith.addf %465, %490 : vector<16x5xf32>
    %492 = vector.extract_strided_slice %461 {offsets = [0, 1], sizes = [16, 1], strides = [1, 1]} : vector<16x5xf32> to vector<16x1xf32>
    %493 = vector.extract_strided_slice %464 {offsets = [1, 0], sizes = [1, 16], strides = [1, 1]} : vector<10x16xf32> to vector<1x16xf32>
    %494 = vector.extract_strided_slice %464 {offsets = [6, 0], sizes = [1, 16], strides = [1, 1]} : vector<10x16xf32> to vector<1x16xf32>
    %495 = vector.broadcast %492 : vector<16x1xf32> to vector<16x16xf32>
    %496 = vector.broadcast %493 : vector<1x16xf32> to vector<16x16xf32>
    %497 = arith.mulf %495, %496 : vector<16x16xf32>
    %498 = arith.addf %497, %12 : vector<16x16xf32>
    %cst_89 = arith.constant dense<0xFF800000> : vector<16xf32>
    %499 = vector.multi_reduction <maximumf>, %498, %cst_89 [1] : vector<16x16xf32> to vector<16xf32>
    %500 = vector.shape_cast %499 : vector<16xf32> to vector<16x1xf32>
    %501 = vector.broadcast %500 : vector<16x1xf32> to vector<16x16xf32>
    %502 = arith.subf %498, %501 : vector<16x16xf32>
    %503 = math.exp %502 : vector<16x16xf32>
    %cst_90 = arith.constant dense<0.000000e+00> : vector<16xf32>
    %504 = vector.multi_reduction <add>, %503, %cst_90 [1] : vector<16x16xf32> to vector<16xf32>
    %505 = vector.shape_cast %504 : vector<16xf32> to vector<16x1xf32>
    %506 = tpu.reciprocal %505 {approx = true} : vector<16x1xf32> -> vector<16x1xf32>
    %507 = vector.broadcast %506 : vector<16x1xf32> to vector<16x16xf32>
    %508 = arith.mulf %503, %507 : vector<16x16xf32>
    %509 = vector.broadcast %494 : vector<1x16xf32> to vector<16x16xf32>
    %510 = arith.mulf %508, %509 : vector<16x16xf32>
    %cst_91 = arith.constant dense<0.000000e+00> : vector<16xf32>
    %511 = vector.multi_reduction <add>, %510, %cst_91 [1] : vector<16x16xf32> to vector<16xf32>
    %512 = vector.shape_cast %511 : vector<16xf32> to vector<16x1xf32>
    %513 = vector.extract_strided_slice %450 {offsets = [1, 0], sizes = [1, 5], strides = [1, 1]} : vector<5x5xf32> to vector<1x5xf32>
    %514 = vector.broadcast %512 : vector<16x1xf32> to vector<16x5xf32>
    %515 = vector.broadcast %513 : vector<1x5xf32> to vector<16x5xf32>
    %516 = arith.mulf %514, %515 : vector<16x5xf32>
    %517 = arith.addf %491, %516 : vector<16x5xf32>
    %518 = vector.extract_strided_slice %461 {offsets = [0, 2], sizes = [16, 1], strides = [1, 1]} : vector<16x5xf32> to vector<16x1xf32>
    %519 = vector.extract_strided_slice %464 {offsets = [2, 0], sizes = [1, 16], strides = [1, 1]} : vector<10x16xf32> to vector<1x16xf32>
    %520 = vector.extract_strided_slice %464 {offsets = [7, 0], sizes = [1, 16], strides = [1, 1]} : vector<10x16xf32> to vector<1x16xf32>
    %521 = vector.broadcast %518 : vector<16x1xf32> to vector<16x16xf32>
    %522 = vector.broadcast %519 : vector<1x16xf32> to vector<16x16xf32>
    %523 = arith.mulf %521, %522 : vector<16x16xf32>
    %524 = arith.addf %523, %12 : vector<16x16xf32>
    %cst_92 = arith.constant dense<0xFF800000> : vector<16xf32>
    %525 = vector.multi_reduction <maximumf>, %524, %cst_92 [1] : vector<16x16xf32> to vector<16xf32>
    %526 = vector.shape_cast %525 : vector<16xf32> to vector<16x1xf32>
    %527 = vector.broadcast %526 : vector<16x1xf32> to vector<16x16xf32>
    %528 = arith.subf %524, %527 : vector<16x16xf32>
    %529 = math.exp %528 : vector<16x16xf32>
    %cst_93 = arith.constant dense<0.000000e+00> : vector<16xf32>
    %530 = vector.multi_reduction <add>, %529, %cst_93 [1] : vector<16x16xf32> to vector<16xf32>
    %531 = vector.shape_cast %530 : vector<16xf32> to vector<16x1xf32>
    %532 = tpu.reciprocal %531 {approx = true} : vector<16x1xf32> -> vector<16x1xf32>
    %533 = vector.broadcast %532 : vector<16x1xf32> to vector<16x16xf32>
    %534 = arith.mulf %529, %533 : vector<16x16xf32>
    %535 = vector.broadcast %520 : vector<1x16xf32> to vector<16x16xf32>
    %536 = arith.mulf %534, %535 : vector<16x16xf32>
    %cst_94 = arith.constant dense<0.000000e+00> : vector<16xf32>
    %537 = vector.multi_reduction <add>, %536, %cst_94 [1] : vector<16x16xf32> to vector<16xf32>
    %538 = vector.shape_cast %537 : vector<16xf32> to vector<16x1xf32>
    %539 = vector.extract_strided_slice %450 {offsets = [2, 0], sizes = [1, 5], strides = [1, 1]} : vector<5x5xf32> to vector<1x5xf32>
    %540 = vector.broadcast %538 : vector<16x1xf32> to vector<16x5xf32>
    %541 = vector.broadcast %539 : vector<1x5xf32> to vector<16x5xf32>
    %542 = arith.mulf %540, %541 : vector<16x5xf32>
    %543 = arith.addf %517, %542 : vector<16x5xf32>
    %544 = vector.extract_strided_slice %461 {offsets = [0, 3], sizes = [16, 1], strides = [1, 1]} : vector<16x5xf32> to vector<16x1xf32>
    %545 = vector.extract_strided_slice %464 {offsets = [3, 0], sizes = [1, 16], strides = [1, 1]} : vector<10x16xf32> to vector<1x16xf32>
    %546 = vector.extract_strided_slice %464 {offsets = [8, 0], sizes = [1, 16], strides = [1, 1]} : vector<10x16xf32> to vector<1x16xf32>
    %547 = vector.broadcast %544 : vector<16x1xf32> to vector<16x16xf32>
    %548 = vector.broadcast %545 : vector<1x16xf32> to vector<16x16xf32>
    %549 = arith.mulf %547, %548 : vector<16x16xf32>
    %550 = arith.addf %549, %12 : vector<16x16xf32>
    %cst_95 = arith.constant dense<0xFF800000> : vector<16xf32>
    %551 = vector.multi_reduction <maximumf>, %550, %cst_95 [1] : vector<16x16xf32> to vector<16xf32>
    %552 = vector.shape_cast %551 : vector<16xf32> to vector<16x1xf32>
    %553 = vector.broadcast %552 : vector<16x1xf32> to vector<16x16xf32>
    %554 = arith.subf %550, %553 : vector<16x16xf32>
    %555 = math.exp %554 : vector<16x16xf32>
    %cst_96 = arith.constant dense<0.000000e+00> : vector<16xf32>
    %556 = vector.multi_reduction <add>, %555, %cst_96 [1] : vector<16x16xf32> to vector<16xf32>
    %557 = vector.shape_cast %556 : vector<16xf32> to vector<16x1xf32>
    %558 = tpu.reciprocal %557 {approx = true} : vector<16x1xf32> -> vector<16x1xf32>
    %559 = vector.broadcast %558 : vector<16x1xf32> to vector<16x16xf32>
    %560 = arith.mulf %555, %559 : vector<16x16xf32>
    %561 = vector.broadcast %546 : vector<1x16xf32> to vector<16x16xf32>
    %562 = arith.mulf %560, %561 : vector<16x16xf32>
    %cst_97 = arith.constant dense<0.000000e+00> : vector<16xf32>
    %563 = vector.multi_reduction <add>, %562, %cst_97 [1] : vector<16x16xf32> to vector<16xf32>
    %564 = vector.shape_cast %563 : vector<16xf32> to vector<16x1xf32>
    %565 = vector.extract_strided_slice %450 {offsets = [3, 0], sizes = [1, 5], strides = [1, 1]} : vector<5x5xf32> to vector<1x5xf32>
    %566 = vector.broadcast %564 : vector<16x1xf32> to vector<16x5xf32>
    %567 = vector.broadcast %565 : vector<1x5xf32> to vector<16x5xf32>
    %568 = arith.mulf %566, %567 : vector<16x5xf32>
    %569 = arith.addf %543, %568 : vector<16x5xf32>
    %570 = vector.extract_strided_slice %461 {offsets = [0, 4], sizes = [16, 1], strides = [1, 1]} : vector<16x5xf32> to vector<16x1xf32>
    %571 = vector.extract_strided_slice %464 {offsets = [4, 0], sizes = [1, 16], strides = [1, 1]} : vector<10x16xf32> to vector<1x16xf32>
    %572 = vector.extract_strided_slice %464 {offsets = [9, 0], sizes = [1, 16], strides = [1, 1]} : vector<10x16xf32> to vector<1x16xf32>
    %573 = vector.broadcast %570 : vector<16x1xf32> to vector<16x16xf32>
    %574 = vector.broadcast %571 : vector<1x16xf32> to vector<16x16xf32>
    %575 = arith.mulf %573, %574 : vector<16x16xf32>
    %576 = arith.addf %575, %12 : vector<16x16xf32>
    %cst_98 = arith.constant dense<0xFF800000> : vector<16xf32>
    %577 = vector.multi_reduction <maximumf>, %576, %cst_98 [1] : vector<16x16xf32> to vector<16xf32>
    %578 = vector.shape_cast %577 : vector<16xf32> to vector<16x1xf32>
    %579 = vector.broadcast %578 : vector<16x1xf32> to vector<16x16xf32>
    %580 = arith.subf %576, %579 : vector<16x16xf32>
    %581 = math.exp %580 : vector<16x16xf32>
    %cst_99 = arith.constant dense<0.000000e+00> : vector<16xf32>
    %582 = vector.multi_reduction <add>, %581, %cst_99 [1] : vector<16x16xf32> to vector<16xf32>
    %583 = vector.shape_cast %582 : vector<16xf32> to vector<16x1xf32>
    %584 = tpu.reciprocal %583 {approx = true} : vector<16x1xf32> -> vector<16x1xf32>
    %585 = vector.broadcast %584 : vector<16x1xf32> to vector<16x16xf32>
    %586 = arith.mulf %581, %585 : vector<16x16xf32>
    %587 = vector.broadcast %572 : vector<1x16xf32> to vector<16x16xf32>
    %588 = arith.mulf %586, %587 : vector<16x16xf32>
    %cst_100 = arith.constant dense<0.000000e+00> : vector<16xf32>
    %589 = vector.multi_reduction <add>, %588, %cst_100 [1] : vector<16x16xf32> to vector<16xf32>
    %590 = vector.shape_cast %589 : vector<16xf32> to vector<16x1xf32>
    %591 = vector.extract_strided_slice %450 {offsets = [4, 0], sizes = [1, 5], strides = [1, 1]} : vector<5x5xf32> to vector<1x5xf32>
    %592 = vector.broadcast %590 : vector<16x1xf32> to vector<16x5xf32>
    %593 = vector.broadcast %591 : vector<1x5xf32> to vector<16x5xf32>
    %594 = arith.mulf %592, %593 : vector<16x5xf32>
    %595 = arith.addf %569, %594 : vector<16x5xf32>
    %596 = arith.addf %444, %595 : vector<16x5xf32>
    %597 = vector.broadcast %453 : vector<1x5xf32> to vector<16x5xf32>
    %598 = arith.addf %596, %597 : vector<16x5xf32>
    %cst_101 = arith.constant dense<0.000000e+00> : vector<16xf32>
    %599 = vector.multi_reduction <add>, %598, %cst_101 [1] : vector<16x5xf32> to vector<16xf32>
    %600 = vector.shape_cast %599 : vector<16xf32> to vector<16x1xf32>
    %cst_102 = arith.constant 5.000000e+00 : f32
    %601 = vector.broadcast %cst_102 : f32 to vector<16x1xf32>
    %602 = arith.divf %600, %601 : vector<16x1xf32>
    %603 = vector.broadcast %602 : vector<16x1xf32> to vector<16x5xf32>
    %604 = arith.subf %598, %603 : vector<16x5xf32>
    %605 = arith.mulf %604, %604 : vector<16x5xf32>
    %cst_103 = arith.constant dense<0.000000e+00> : vector<16xf32>
    %606 = vector.multi_reduction <add>, %605, %cst_103 [1] : vector<16x5xf32> to vector<16xf32>
    %607 = vector.shape_cast %606 : vector<16xf32> to vector<16x1xf32>
    %cst_104 = arith.constant 5.000000e+00 : f32
    %608 = vector.broadcast %cst_104 : f32 to vector<16x1xf32>
    %609 = arith.divf %607, %608 : vector<16x1xf32>
    %610 = vector.broadcast %602 : vector<16x1xf32> to vector<16x5xf32>
    %611 = arith.subf %598, %610 : vector<16x5xf32>
    %cst_105 = arith.constant 9.99999974E-6 : f32
    %612 = vector.broadcast %cst_105 : f32 to vector<16x1xf32>
    %613 = arith.addf %609, %612 : vector<16x1xf32>
    %614 = math.rsqrt %613 : vector<16x1xf32>
    %615 = vector.broadcast %614 : vector<16x1xf32> to vector<16x5xf32>
    %616 = arith.mulf %611, %615 : vector<16x5xf32>
    %617 = vector.broadcast %454 : vector<1x5xf32> to vector<16x5xf32>
    %618 = arith.mulf %616, %617 : vector<16x5xf32>
    %619 = vector.broadcast %455 : vector<1x5xf32> to vector<16x5xf32>
    %620 = arith.addf %618, %619 : vector<16x5xf32>
    %c2_106 = arith.constant 2 : index
    %c0_107 = arith.constant 0 : index
    %c0_108 = arith.constant 0 : index
    %621 = vector.load %arg2[%c2_106, %c0_107, %c0_108] : memref<3x6x2048xbf16, #tpu.memory_space<vmem>>, vector<1x6x2048xbf16>
    %622 = vector.shape_cast %621 : vector<1x6x2048xbf16> to vector<6x2048xbf16>
    %623 = vector.extract_strided_slice %622 {offsets = [0, 0], sizes = [5, 2048], strides = [1, 1]} : vector<6x2048xbf16> to vector<5x2048xbf16>
    %624 = vector.extract_strided_slice %622 {offsets = [5, 0], sizes = [1, 2048], strides = [1, 1]} : vector<6x2048xbf16> to vector<1x2048xbf16>
    %625 = arith.extf %624 : vector<1x2048xbf16> to vector<1x2048xf32>
    %626 = arith.truncf %620 : vector<16x5xf32> to vector<16x5xbf16>
    %cst_109 = arith.constant dense<0.000000e+00> : vector<16x2048xf32>
    %627 = tpu.matmul %626, %623, %cst_109 {dimension_numbers = #tpu.dot_dimension_numbers<[1], [0], [0], [1], [0, 0, 1, 1], [], []>} : vector<16x5xbf16>, vector<5x2048xbf16>, vector<16x2048xf32> -> vector<16x2048xf32>
    %628 = vector.broadcast %625 : vector<1x2048xf32> to vector<16x2048xf32>
    %629 = arith.addf %627, %628 : vector<16x2048xf32>
    %cst_110 = arith.constant 0.000000e+00 : f32
    %630 = vector.broadcast %cst_110 : f32 to vector<16x2048xf32>
    %631 = arith.maximumf %629, %630 : vector<16x2048xf32>
    %632 = arith.truncf %631 : vector<16x2048xf32> to vector<16x2048xbf16>
    %c2_111 = arith.constant 2 : index
    %c0_112 = arith.constant 0 : index
    %c0_113 = arith.constant 0 : index
    %633 = vector.load %arg3[%c2_111, %c0_112, %c0_113] : memref<3x2048x5xbf16, #tpu.memory_space<vmem>>, vector<1x2048x5xbf16>
    %634 = vector.shape_cast %633 : vector<1x2048x5xbf16> to vector<2048x5xbf16>
    %cst_114 = arith.constant dense<0.000000e+00> : vector<16x5xf32>
    %635 = tpu.matmul %632, %634, %cst_114 {dimension_numbers = #tpu.dot_dimension_numbers<[1], [0], [0], [1], [0, 0, 1, 1], [], []>} : vector<16x2048xbf16>, vector<2048x5xbf16>, vector<16x5xf32> -> vector<16x5xf32>
    %636 = vector.broadcast %456 : vector<1x5xf32> to vector<16x5xf32>
    %637 = arith.addf %635, %636 : vector<16x5xf32>
    %638 = arith.addf %620, %637 : vector<16x5xf32>
    %cst_115 = arith.constant dense<0.000000e+00> : vector<16xf32>
    %639 = vector.multi_reduction <add>, %638, %cst_115 [1] : vector<16x5xf32> to vector<16xf32>
    %640 = vector.shape_cast %639 : vector<16xf32> to vector<16x1xf32>
    %cst_116 = arith.constant 5.000000e+00 : f32
    %641 = vector.broadcast %cst_116 : f32 to vector<16x1xf32>
    %642 = arith.divf %640, %641 : vector<16x1xf32>
    %643 = vector.broadcast %642 : vector<16x1xf32> to vector<16x5xf32>
    %644 = arith.subf %638, %643 : vector<16x5xf32>
    %645 = arith.mulf %644, %644 : vector<16x5xf32>
    %cst_117 = arith.constant dense<0.000000e+00> : vector<16xf32>
    %646 = vector.multi_reduction <add>, %645, %cst_117 [1] : vector<16x5xf32> to vector<16xf32>
    %647 = vector.shape_cast %646 : vector<16xf32> to vector<16x1xf32>
    %cst_118 = arith.constant 5.000000e+00 : f32
    %648 = vector.broadcast %cst_118 : f32 to vector<16x1xf32>
    %649 = arith.divf %647, %648 : vector<16x1xf32>
    %650 = vector.broadcast %642 : vector<16x1xf32> to vector<16x5xf32>
    %651 = arith.subf %638, %650 : vector<16x5xf32>
    %cst_119 = arith.constant 9.99999974E-6 : f32
    %652 = vector.broadcast %cst_119 : f32 to vector<16x1xf32>
    %653 = arith.addf %649, %652 : vector<16x1xf32>
    %654 = math.rsqrt %653 : vector<16x1xf32>
    %655 = vector.broadcast %654 : vector<16x1xf32> to vector<16x5xf32>
    %656 = arith.mulf %651, %655 : vector<16x5xf32>
    %657 = vector.broadcast %457 : vector<1x5xf32> to vector<16x5xf32>
    %658 = arith.mulf %656, %657 : vector<16x5xf32>
    %659 = vector.broadcast %458 : vector<1x5xf32> to vector<16x5xf32>
    %660 = arith.addf %658, %659 : vector<16x5xf32>
    %c0_120 = arith.constant 0 : index
    %c0_121 = arith.constant 0 : index
    %c0_122 = arith.constant 0 : index
    %661 = vector.load %arg1[%c0_120, %c0_121, %c0_122] : memref<3x34x35xf32, #tpu.memory_space<vmem>>, vector<1x34x35xf32>
    %662 = vector.shape_cast %661 : vector<1x34x35xf32> to vector<34x35xf32>
    %663 = vector.extract_strided_slice %662 {offsets = [33, 0], sizes = [1, 5], strides = [1, 1]} : vector<34x35xf32> to vector<1x5xf32>
    %664 = vector.extract_strided_slice %662 {offsets = [33, 5], sizes = [1, 1], strides = [1, 1]} : vector<34x35xf32> to vector<1x1xf32>
    %cst_123 = arith.constant dense<0.000000e+00> : vector<1x16xf32>
    %665 = tpu.matmul %663, %660, %cst_123 {dimension_numbers = #tpu.dot_dimension_numbers<[1], [1], [0], [0], [0, 0, 1, 0], [], []>} : vector<1x5xf32>, vector<16x5xf32>, vector<1x16xf32> -> vector<1x16xf32>
    %666 = vector.broadcast %664 : vector<1x1xf32> to vector<1x16xf32>
    %667 = arith.addf %665, %666 : vector<1x16xf32>
    %c0_124 = arith.constant 0 : index
    %c0_125 = arith.constant 0 : index
    %668 = vector.load %arg4[%c0_124, %c0_125] : memref<1x16xf32, #tpu.memory_space<vmem>>, vector<1x16xf32>
    tpu.vector_store %arg4[%c0_124, %c0_125], %667 {strides = array<i32>} : memref<1x16xf32, #tpu.memory_space<vmem>>, vector<1x16xf32>,
    return
  }
}

</mosaic_0001>

<llo_original>
// kernel: transformer_forward.1
$region0: #{transformer_forward.1}
  #allocation0 [shape = 'u32[]', space=smem, size = 0x4, offset = 0x4, fixed_abs, tag = 'smem constant byte address 0x4 - core index']
  #allocation1 [shape = 'u32[144,128]{1,0:T(1,128)}', space=vmem, size = 0x12000, scoped, tag = 'internal scratch']
  %s0 = inlined_call_operand.vmem [shape: f32[16,5], index: 0, kind: input, shape index: {}]
  %s1 = inlined_call_operand.vmem [shape: f32[3,34,35], index: 1, kind: input, shape index: {}]
  %s2 = inlined_call_operand.vmem [shape: bf16[3,6,2048], index: 2, kind: input, shape index: {}]
  %s3 = inlined_call_operand.vmem [shape: bf16[3,2048,5], index: 3, kind: input, shape index: {}]
  %s4 = inlined_call_operand.vmem [shape: f32[1,16], index: 4, kind: output, shape index: {}]
  %s5 = sld [smem:[#allocation0]]
  $region26: #{transformer_forward.1} parent=0
    _
  %s7 = ssub.s32 1, %s5
  %s8 = scalar_select 0, %s7, %s5
  // Predicated region
  $region2: #{transformer_forward.1} parent=0 // pred_check
    _
  $region3: #{transformer_forward.1} parent=0 // pred_check_branch
    %10 = sbr.rel (0) target = $region5
  $region4: #{transformer_forward.1} parent=0 // pred_region
    _
  $region5: #{transformer_forward.1} parent=0 // pred_fallthru
    _
  // Predicated region
  $region6: #{transformer_forward.1} parent=0 // pred_check
    _
  $region7: #{transformer_forward.1} parent=0 // pred_check_branch
    %12 = sbr.rel (0) target = $region9
  $region8: #{transformer_forward.1} parent=0 // pred_region
    _
  $region9: #{transformer_forward.1} parent=0 // pred_fallthru
    _
  // Predicated region
  $region10: #{transformer_forward.1} parent=0 // pred_check
    _
  $region11: #{transformer_forward.1} parent=0 // pred_check_branch
    %14 = sbr.rel (0) target = $region13
  $region12: #{transformer_forward.1} parent=0 // pred_region
    _
  $region13: #{transformer_forward.1} parent=0 // pred_fallthru
    _
  // Predicated region
  $region14: #{transformer_forward.1} parent=0 // pred_check
    _
  $region15: #{transformer_forward.1} parent=0 // pred_check_branch
    %16 = sbr.rel (0) target = $region17
  $region16: #{transformer_forward.1} parent=0 // pred_region
    _
  $region17: #{transformer_forward.1} parent=0 // pred_fallthru
    _
  %v18 = vld [vmem:[%s0] sm:$0xff]
  %v19 = vld [vmem:[%s0 + $0x8] sm:$0xff]
  %v20 = vlaneseq
  %v21 = vshrl.u32 %v20, 7
  %v22 = vadd.s32 %v21, 8
  %v23 = vlaneseq
  %v24 = vand.u32 %v23, 127
  %v25 = vsub.s32 %v21, %v24
  %v26 = vsub.s32 %v22, %v24
  %vm27 = vcmp.ge.s32.totalorder %v25, 0
  %vm28 = vcmp.ge.s32.totalorder %v26, 0
  %vm29 = vcmp.le.s32.totalorder %v25, %v21
  %vm30 = vcmp.le.s32.totalorder %v26, %v21
  %vm31 = vmand %vm27, %vm29
  %vm32 = vmand %vm28, %vm30
  %v33 = vsel %vm31, 0.0, -1e+30
  %v34 = vsel %vm32, 0.0, -1e+30
  %v35 = vld [vmem:[%s1] sm:$0xff]
  %v36 = vld [vmem:[%s1 + $0x8] sm:$0xff]
  %v37 = vld [vmem:[%s1 + $0x10] sm:$0xff]
  %v38 = vld [vmem:[%s1 + $0x18] sm:$0xff]
  %v39 = vld [vmem:[%s1 + $0x20] sm:$0x3]
  %v40 = vlaneseq
  %v41 = vshrl.u32 %v40, 7
  %v42 = vsub.s32 0, %v41
  %v43 = vrot.slane %v39, %v42
  %vm44 = vcmask 39936
  %v46 = vsel %vm44, %v18, 0
  %v49 = vsel %vm44, %v19, 0
  %vm51 = vcmask 1044480
  %v53 = vsel %vm51, %v35, 0
  %55 = vmatprep.subr.mxu0 0.0
  %56 = vmatpush1.msra.mxu0 0.0
  %57 = vmatprep.subr.mxu0 0.0
  %58 = vmatpush1.msra.mxu0 0.0
  %59 = vmatprep.subr.mxu0 0.0
  %60 = vmatpush1.msra.mxu0 0.0
  %61 = vmatprep.subr.mxu0 0.0
  %62 = vmatpush1.msra.mxu0 0.0
  %63 = vmatprep.subr.mxu0 0.0
  %64 = vmatpush1.msra.mxu0 0.0
  %65 = vmatprep.subr.mxu0 0.0
  %66 = vmatpush1.msra.mxu0 0.0
  %67 = vmatprep.subr.mxu0 0.0
  %68 = vmatpush1.msra.mxu0 0.0
  %69 = vmatprep.subr.mxu0 0.0
  %70 = vmatpush1.msra.mxu0 0.0
  %71 = vmatprep.subr.mxu0 0.0
  %72 = vmatpush1.msra.mxu0 0.0
  %73 = vmatprep.subr.mxu0 0.0
  %74 = vmatpush1.msra.mxu0 0.0
  %75 = vmatprep.subr.mxu0 0.0
  %76 = vmatpush1.msra.mxu0 0.0
  %77 = vmatprep.subr.mxu0 0.0
  %78 = vmatpush1.msra.mxu0 0.0
  %79 = vmatprep.subr.mxu0 0.0
  %80 = vmatpush1.msra.mxu0 0.0
  %81 = vmatprep.subr.mxu0 0.0
  %82 = vmatpush1.msra.mxu0 0.0
  %83 = vmatprep.subr.mxu0 0.0
  %84 = vmatpush1.msra.mxu0 0.0
  %85 = vmatprep.subr.mxu0 0.0
  %86 = vmatpush1.msra.mxu0 %v53
  %87 = vmatprep.subr.mxu0 0.0
  %88 = vmatpush2.msra.mxu0 0.0
  %89 = vmatprep.subr.mxu0 0.0
  %90 = vmatpush2.msra.mxu0 0.0
  %91 = vmatprep.subr.mxu0 0.0
  %92 = vmatpush2.msra.mxu0 0.0
  %93 = vmatprep.subr.mxu0 0.0
  %94 = vmatpush2.msra.mxu0 0.0
  %95 = vmatprep.subr.mxu0 0.0
  %96 = vmatpush2.msra.mxu0 0.0
  %97 = vmatprep.subr.mxu0 0.0
  %98 = vmatpush2.msra.mxu0 0.0
  %99 = vmatprep.subr.mxu0 0.0
  %100 = vmatpush2.msra.mxu0 0.0
  %101 = vmatprep.subr.mxu0 0.0
  %102 = vmatpush2.msra.mxu0 0.0
  %103 = vmatprep.subr.mxu0 0.0
  %104 = vmatpush2.msra.mxu0 0.0
  %105 = vmatprep.subr.mxu0 0.0
  %106 = vmatpush2.msra.mxu0 0.0
  %107 = vmatprep.subr.mxu0 0.0
  %108 = vmatpush2.msra.mxu0 0.0
  %109 = vmatprep.subr.mxu0 0.0
  %110 = vmatpush2.msra.mxu0 0.0
  %111 = vmatprep.subr.mxu0 0.0
  %112 = vmatpush2.msra.mxu0 0.0
  %113 = vmatprep.subr.mxu0 0.0
  %114 = vmatpush2.msra.mxu0 0.0
  %115 = vmatprep.subr.mxu0 0.0
  %116 = vmatpush2.msra.mxu0 0.0
  %117 = vmatprep.subr.mxu0 0.0
  %118 = vmatpush2.msra.mxu0 0.0
  %119 = vmatprep.mubr.f32.mxu0 0.0
  %120 = vmatmul.mubr.f32.gmra.mxu0 %v46
  %v121 = vpop.f32.mrf.mxu0
  %v122 = vadd.f32 %v43, %v121
  %v123 = vpop.f32.mrf.mxu0
  %124 = vmatprep.mubr.f32.mxu0 0.0
  %125 = vmatmul.mubr.f32.gmra.mxu0 %v49
  %v126 = vpop.f32.mrf.mxu0
  %v127 = vadd.f32 %v43, %v126
  %v128 = vpop.f32.mrf.mxu0
  %129 = vdwg.mxu0
  %131 = vset.pattern.permute.xlu0 5
  %132 = vperm.xlu0 %131, %v36
  %v133 = vpop.permute.xlu0 %132
  %136 = vset.pattern.permute.xlu0 5
  %137 = vperm.xlu0 %136, %v37
  %v138 = vpop.permute.xlu0 %137
  %v140 = vsel %vm44, %v36, 0
  %v142 = vsel %vm44, %v37, 0
  %144 = vmatprep.subr.mxu0 0.0
  %145 = vmatpush1.xpose.msra.mxu0 0.0
  %146 = vmatprep.subr.mxu0 0.0
  %147 = vmatpush1.xpose.msra.mxu0 0.0
  %148 = vmatprep.subr.mxu0 0.0
  %149 = vmatpush1.xpose.msra.mxu0 0.0
  %150 = vmatprep.subr.mxu0 0.0
  %151 = vmatpush1.xpose.msra.mxu0 0.0
  %152 = vmatprep.subr.mxu0 0.0
  %153 = vmatpush1.xpose.msra.mxu0 0.0
  %154 = vmatprep.subr.mxu0 0.0
  %155 = vmatpush1.xpose.msra.mxu0 0.0
  %156 = vmatprep.subr.mxu0 0.0
  %157 = vmatpush1.xpose.msra.mxu0 0.0
  %158 = vmatprep.subr.mxu0 0.0
  %159 = vmatpush1.xpose.msra.mxu0 0.0
  %160 = vmatprep.subr.mxu0 0.0
  %161 = vmatpush1.xpose.msra.mxu0 0.0
  %162 = vmatprep.subr.mxu0 0.0
  %163 = vmatpush1.xpose.msra.mxu0 0.0
  %164 = vmatprep.subr.mxu0 0.0
  %165 = vmatpush1.xpose.msra.mxu0 0.0
  %166 = vmatprep.subr.mxu0 0.0
  %167 = vmatpush1.xpose.msra.mxu0 0.0
  %168 = vmatprep.subr.mxu0 0.0
  %169 = vmatpush1.xpose.msra.mxu0 0.0
  %170 = vmatprep.subr.mxu0 0.0
  %171 = vmatpush1.xpose.msra.mxu0 0.0
  %172 = vmatprep.subr.mxu0 0.0
  %173 = vmatpush1.xpose.msra.mxu0 %v49
  %174 = vmatprep.subr.mxu0 0.0
  %175 = vmatpush1.xpose.msra.mxu0 %v46
  %176 = vmatprep.subr.mxu0 0.0
  %177 = vmatpush2.xpose.msra.mxu0 0.0
  %178 = vmatprep.subr.mxu0 0.0
  %179 = vmatpush2.xpose.msra.mxu0 0.0
  %180 = vmatprep.subr.mxu0 0.0
  %181 = vmatpush2.xpose.msra.mxu0 0.0
  %182 = vmatprep.subr.mxu0 0.0
  %183 = vmatpush2.xpose.msra.mxu0 0.0
  %184 = vmatprep.subr.mxu0 0.0
  %185 = vmatpush2.xpose.msra.mxu0 0.0
  %186 = vmatprep.subr.mxu0 0.0
  %187 = vmatpush2.xpose.msra.mxu0 0.0
  %188 = vmatprep.subr.mxu0 0.0
  %189 = vmatpush2.xpose.msra.mxu0 0.0
  %190 = vmatprep.subr.mxu0 0.0
  %191 = vmatpush2.xpose.msra.mxu0 0.0
  %192 = vmatprep.subr.mxu0 0.0
  %193 = vmatpush2.xpose.msra.mxu0 0.0
  %194 = vmatprep.subr.mxu0 0.0
  %195 = vmatpush2.xpose.msra.mxu0 0.0
  %196 = vmatprep.subr.mxu0 0.0
  %197 = vmatpush2.xpose.msra.mxu0 0.0
  %198 = vmatprep.subr.mxu0 0.0
  %199 = vmatpush2.xpose.msra.mxu0 0.0
  %200 = vmatprep.subr.mxu0 0.0
  %201 = vmatpush2.xpose.msra.mxu0 0.0
  %202 = vmatprep.subr.mxu0 0.0
  %203 = vmatpush2.xpose.msra.mxu0 0.0
  %204 = vmatprep.subr.mxu0 0.0
  %205 = vmatpush2.xpose.msra.mxu0 0.0
  %206 = vmatprep.subr.mxu0 0.0
  %207 = vmatpush2.xpose.msra.mxu0 0.0
  %208 = vmatprep.mubr.f32.mxu0 0.0
  %209 = vmatmul.mubr.f32.gmra.mxu0 %v140
  %v210 = vpop.f32.mrf.mxu0
  %v211 = vadd.f32 %v133, %v210
  %v212 = vpop.f32.mrf.mxu0
  %213 = vmatprep.mubr.f32.mxu0 0.0
  %214 = vmatmul.mubr.f32.gmra.mxu0 %v142
  %v215 = vpop.f32.mrf.mxu0
  %v216 = vadd.f32 %v138, %v215
  %v217 = vpop.f32.mrf.mxu0
  %218 = vdwg.mxu0
  %220 = vset.pattern.permute.xlu0 0
  %221 = vperm.xlu0 %220, %v122
  %v222 = vpop.permute.xlu0 %221
  %225 = vset.pattern.permute.xlu0 0
  %226 = vperm.xlu0 %225, %v127
  %v227 = vpop.permute.xlu0 %226
  %v229 = vlaneseq
  %v230 = vshrl.u32 %v229, 7
  %v231 = vsub.s32 0, %v230
  %v232 = vrot.slane %v211, %v231
  %v233 = vmul.f32 %v222, %v232
  %v234 = vmul.f32 %v227, %v232
  %v235 = vadd.f32 %v233, %v33
  %v236 = vadd.f32 %v234, %v34
  %vm237 = vcmask 130048
  %v238 = vsel %vm237, %v235, -inf
  %239 = vmax.xlane.f32.xlu0 %v238
  %v240 = vpop.xlane.xlu0 %239
  %v241 = vsel %vm237, %v236, -inf
  %242 = vmax.xlane.f32.xlu0 %v241
  %v243 = vpop.xlane.xlu0 %242
  %v244 = vsub.f32 %v235, %v240
  %v245 = vsub.f32 %v236, %v243
  %v246 = vmul.f32 %v244, 1.442695
  %v247 = vpow.pop %v246
  %v248 = vmul.f32 %v245, 1.442695
  %v249 = vpow.pop %v248
  %v250 = vsel %vm237, %v247, 0.0
  %251 = vadd.xlane.f32.xlu0 %v250
  %v252 = vpop.xlane.xlu0 %251
  %v253 = vsel %vm237, %v249, 0.0
  %254 = vadd.xlane.f32.xlu0 %v253
  %v255 = vpop.xlane.xlu0 %254
  %v256 = vrcp.pop %v252
  %v257 = vrcp.pop %v255
  %v258 = vmul.f32 %v247, %v256
  %v259 = vmul.f32 %v249, %v257
  %v260 = vlaneseq
  %v261 = vshrl.u32 %v260, 7
  %v262 = vsub.s32 5, %v261
  %v263 = vrot.slane %v211, %v262
  %v264 = vmul.f32 %v258, %v263
  %v265 = vmul.f32 %v259, %v263
  %v266 = vsel %vm237, %v264, 0.0
  %267 = vadd.xlane.f32.xlu0 %v266
  %v268 = vpop.xlane.xlu0 %267
  %v269 = vsel %vm237, %v265, 0.0
  %270 = vadd.xlane.f32.xlu0 %v269
  %v271 = vpop.xlane.xlu0 %270
  %v272 = vlaneseq
  %v273 = vshrl.u32 %v272, 7
  %v274 = vsub.s32 0, %v273
  %v275 = vrot.slane %v38, %v274
  %v276 = vmul.f32 %v268, %v275
  %v277 = vmul.f32 %v271, %v275
  %v278 = vadd.f32 %v276, 0.0
  %v279 = vadd.f32 %v277, 0.0
  %280 = vset.pattern.permute.xlu0 1
  %281 = vperm.xlu0 %280, %v122
  %v282 = vpop.permute.xlu0 %281
  %284 = vset.pattern.permute.xlu0 1
  %285 = vperm.xlu0 %284, %v127
  %v286 = vpop.permute.xlu0 %285
  %v288 = vlaneseq
  %v289 = vshrl.u32 %v288, 7
  %v290 = vsub.s32 1, %v289
  %v291 = vrot.slane %v211, %v290
  %v292 = vmul.f32 %v282, %v291
  %v293 = vmul.f32 %v286, %v291
  %v294 = vadd.f32 %v292, %v33
  %v295 = vadd.f32 %v293, %v34
  %v296 = vsel %vm237, %v294, -inf
  %297 = vmax.xlane.f32.xlu0 %v296
  %v298 = vpop.xlane.xlu0 %297
  %v299 = vsel %vm237, %v295, -inf
  %300 = vmax.xlane.f32.xlu0 %v299
  %v301 = vpop.xlane.xlu0 %300
  %v302 = vsub.f32 %v294, %v298
  %v303 = vsub.f32 %v295, %v301
  %v304 = vmul.f32 %v302, 1.442695
  %v305 = vpow.pop %v304
  %v306 = vmul.f32 %v303, 1.442695
  %v307 = vpow.pop %v306
  %v308 = vsel %vm237, %v305, 0.0
  %309 = vadd.xlane.f32.xlu0 %v308
  %v310 = vpop.xlane.xlu0 %309
  %v311 = vsel %vm237, %v307, 0.0
  %312 = vadd.xlane.f32.xlu0 %v311
  %v313 = vpop.xlane.xlu0 %312
  %v314 = vrcp.pop %v310
  %v315 = vrcp.pop %v313
  %v316 = vmul.f32 %v305, %v314
  %v317 = vmul.f32 %v307, %v315
  %v318 = vlaneseq
  %v319 = vshrl.u32 %v318, 7
  %v320 = vsub.s32 6, %v319
  %v321 = vrot.slane %v211, %v320
  %v322 = vmul.f32 %v316, %v321
  %v323 = vmul.f32 %v317, %v321
  %v324 = vsel %vm237, %v322, 0.0
  %325 = vadd.xlane.f32.xlu0 %v324
  %v326 = vpop.xlane.xlu0 %325
  %v327 = vsel %vm237, %v323, 0.0
  %328 = vadd.xlane.f32.xlu0 %v327
  %v329 = vpop.xlane.xlu0 %328
  %v330 = vlaneseq
  %v331 = vshrl.u32 %v330, 7
  %v332 = vsub.s32 1, %v331
  %v333 = vrot.slane %v38, %v332
  %v334 = vmul.f32 %v326, %v333
  %v335 = vmul.f32 %v329, %v333
  %v336 = vadd.f32 %v278, %v334
  %v337 = vadd.f32 %v279, %v335
  %338 = vset.pattern.permute.xlu0 2
  %339 = vperm.xlu0 %338, %v122
  %v340 = vpop.permute.xlu0 %339
  %342 = vset.pattern.permute.xlu0 2
  %343 = vperm.xlu0 %342, %v127
  %v344 = vpop.permute.xlu0 %343
  %v346 = vlaneseq
  %v347 = vshrl.u32 %v346, 7
  %v348 = vsub.s32 2, %v347
  %v349 = vrot.slane %v211, %v348
  %v350 = vmul.f32 %v340, %v349
  %v351 = vmul.f32 %v344, %v349
  %v352 = vadd.f32 %v350, %v33
  %v353 = vadd.f32 %v351, %v34
  %v354 = vsel %vm237, %v352, -inf
  %355 = vmax.xlane.f32.xlu0 %v354
  %v356 = vpop.xlane.xlu0 %355
  %v357 = vsel %vm237, %v353, -inf
  %358 = vmax.xlane.f32.xlu0 %v357
  %v359 = vpop.xlane.xlu0 %358
  %v360 = vsub.f32 %v352, %v356
  %v361 = vsub.f32 %v353, %v359
  %v362 = vmul.f32 %v360, 1.442695
  %v363 = vpow.pop %v362
  %v364 = vmul.f32 %v361, 1.442695
  %v365 = vpow.pop %v364
  %v366 = vsel %vm237, %v363, 0.0
  %367 = vadd.xlane.f32.xlu0 %v366
  %v368 = vpop.xlane.xlu0 %367
  %v369 = vsel %vm237, %v365, 0.0
  %370 = vadd.xlane.f32.xlu0 %v369
  %v371 = vpop.xlane.xlu0 %370
  %v372 = vrcp.pop %v368
  %v373 = vrcp.pop %v371
  %v374 = vmul.f32 %v363, %v372
  %v375 = vmul.f32 %v365, %v373
  %v376 = vlaneseq
  %v377 = vshrl.u32 %v376, 7
  %v378 = vsub.s32 7, %v377
  %v379 = vrot.slane %v211, %v378
  %v380 = vmul.f32 %v374, %v379
  %v381 = vmul.f32 %v375, %v379
  %v382 = vsel %vm237, %v380, 0.0
  %383 = vadd.xlane.f32.xlu0 %v382
  %v384 = vpop.xlane.xlu0 %383
  %v385 = vsel %vm237, %v381, 0.0
  %386 = vadd.xlane.f32.xlu0 %v385
  %v387 = vpop.xlane.xlu0 %386
  %v388 = vlaneseq
  %v389 = vshrl.u32 %v388, 7
  %v390 = vsub.s32 2, %v389
  %v391 = vrot.slane %v38, %v390
  %v392 = vmul.f32 %v384, %v391
  %v393 = vmul.f32 %v387, %v391
  %v394 = vadd.f32 %v336, %v392
  %v395 = vadd.f32 %v337, %v393
  %396 = vset.pattern.permute.xlu0 3
  %397 = vperm.xlu0 %396, %v122
  %v398 = vpop.permute.xlu0 %397
  %400 = vset.pattern.permute.xlu0 3
  %401 = vperm.xlu0 %400, %v127
  %v402 = vpop.permute.xlu0 %401
  %v404 = vlaneseq
  %v405 = vshrl.u32 %v404, 7
  %v406 = vsub.s32 3, %v405
  %v407 = vrot.slane %v211, %v406
  %v408 = vmul.f32 %v398, %v407
  %v409 = vmul.f32 %v402, %v407
  %v410 = vadd.f32 %v408, %v33
  %v411 = vadd.f32 %v409, %v34
  %v412 = vsel %vm237, %v410, -inf
  %413 = vmax.xlane.f32.xlu0 %v412
  %v414 = vpop.xlane.xlu0 %413
  %v415 = vsel %vm237, %v411, -inf
  %416 = vmax.xlane.f32.xlu0 %v415
  %v417 = vpop.xlane.xlu0 %416
  %v418 = vsub.f32 %v410, %v414
  %v419 = vsub.f32 %v411, %v417
  %v420 = vmul.f32 %v418, 1.442695
  %v421 = vpow.pop %v420
  %v422 = vmul.f32 %v419, 1.442695
  %v423 = vpow.pop %v422
  %v424 = vsel %vm237, %v421, 0.0
  %425 = vadd.xlane.f32.xlu0 %v424
  %v426 = vpop.xlane.xlu0 %425
  %v427 = vsel %vm237, %v423, 0.0
  %428 = vadd.xlane.f32.xlu0 %v427
  %v429 = vpop.xlane.xlu0 %428
  %v430 = vrcp.pop %v426
  %v431 = vrcp.pop %v429
  %v432 = vmul.f32 %v421, %v430
  %v433 = vmul.f32 %v423, %v431
  %v434 = vlaneseq
  %v435 = vshrl.u32 %v434, 7
  %v436 = vsub.s32 0, %v435
  %v437 = vrot.slane %v216, %v436
  %v438 = vmul.f32 %v432, %v437
  %v439 = vmul.f32 %v433, %v437
  %v440 = vsel %vm237, %v438, 0.0
  %441 = vadd.xlane.f32.xlu0 %v440
  %v442 = vpop.xlane.xlu0 %441
  %v443 = vsel %vm237, %v439, 0.0
  %444 = vadd.xlane.f32.xlu0 %v443
  %v445 = vpop.xlane.xlu0 %444
  %v446 = vlaneseq
  %v447 = vshrl.u32 %v446, 7
  %v448 = vsub.s32 3, %v447
  %v449 = vrot.slane %v38, %v448
  %v450 = vmul.f32 %v442, %v449
  %v451 = vmul.f32 %v445, %v449
  %v452 = vadd.f32 %v394, %v450
  %v453 = vadd.f32 %v395, %v451
  %454 = vset.pattern.permute.xlu0 4
  %455 = vperm.xlu0 %454, %v122
  %v456 = vpop.permute.xlu0 %455
  %458 = vset.pattern.permute.xlu0 4
  %459 = vperm.xlu0 %458, %v127
  %v460 = vpop.permute.xlu0 %459
  %v462 = vlaneseq
  %v463 = vshrl.u32 %v462, 7
  %v464 = vsub.s32 4, %v463
  %v465 = vrot.slane %v211, %v464
  %v466 = vmul.f32 %v456, %v465
  %v467 = vmul.f32 %v460, %v465
  %v468 = vadd.f32 %v466, %v33
  %v469 = vadd.f32 %v467, %v34
  %v470 = vsel %vm237, %v468, -inf
  %471 = vmax.xlane.f32.xlu0 %v470
  %v472 = vpop.xlane.xlu0 %471
  %v473 = vsel %vm237, %v469, -inf
  %474 = vmax.xlane.f32.xlu0 %v473
  %v475 = vpop.xlane.xlu0 %474
  %v476 = vsub.f32 %v468, %v472
  %v477 = vsub.f32 %v469, %v475
  %v478 = vmul.f32 %v476, 1.442695
  %v479 = vpow.pop %v478
  %v480 = vmul.f32 %v477, 1.442695
  %v481 = vpow.pop %v480
  %v482 = vsel %vm237, %v479, 0.0
  %483 = vadd.xlane.f32.xlu0 %v482
  %v484 = vpop.xlane.xlu0 %483
  %v485 = vsel %vm237, %v481, 0.0
  %486 = vadd.xlane.f32.xlu0 %v485
  %v487 = vpop.xlane.xlu0 %486
  %v488 = vrcp.pop %v484
  %v489 = vrcp.pop %v487
  %v490 = vmul.f32 %v479, %v488
  %v491 = vmul.f32 %v481, %v489
  %v492 = vlaneseq
  %v493 = vshrl.u32 %v492, 7
  %v494 = vsub.s32 1, %v493
  %v495 = vrot.slane %v216, %v494
  %v496 = vmul.f32 %v490, %v495
  %v497 = vmul.f32 %v491, %v495
  %v498 = vsel %vm237, %v496, 0.0
  %499 = vadd.xlane.f32.xlu0 %v498
  %v500 = vpop.xlane.xlu0 %499
  %v501 = vsel %vm237, %v497, 0.0
  %502 = vadd.xlane.f32.xlu0 %v501
  %v503 = vpop.xlane.xlu0 %502
  %v504 = vlaneseq
  %v505 = vshrl.u32 %v504, 7
  %v506 = vsub.s32 4, %v505
  %v507 = vrot.slane %v38, %v506
  %v508 = vmul.f32 %v500, %v507
  %v509 = vmul.f32 %v503, %v507
  %v510 = vadd.f32 %v452, %v508
  %v511 = vadd.f32 %v453, %v509
  %v512 = vadd.f32 %v18, %v510
  %v513 = vadd.f32 %v19, %v511
  %515 = vrot.lane.b32.xlu0 %v43, 123
  %v516 = vpop.permute.xlu0 %515
  %v518 = vadd.f32 %v512, %v516
  %v519 = vadd.f32 %v513, %v516
  %v520 = vsel %vm44, %v518, 0.0
  %521 = vadd.xlane.f32.xlu0 %v520
  %v522 = vpop.xlane.xlu0 %521
  %v523 = vsel %vm44, %v519, 0.0
  %524 = vadd.xlane.f32.xlu0 %v523
  %v525 = vpop.xlane.xlu0 %524
  %v526 = vrcp.pop 5.0
  %v527 = vmul.f32 %v522, %v526
  %v528 = vmul.f32 %v525, %v526
  %v529 = vsub.f32 %v518, %v527
  %v530 = vsub.f32 %v519, %v528
  %v531 = vmul.f32 %v529, %v529
  %v532 = vmul.f32 %v530, %v530
  %v533 = vsel %vm44, %v531, 0.0
  %534 = vadd.xlane.f32.xlu0 %v533
  %v535 = vpop.xlane.xlu0 %534
  %v536 = vsel %vm44, %v532, 0.0
  %537 = vadd.xlane.f32.xlu0 %v536
  %v538 = vpop.xlane.xlu0 %537
  %v539 = vmul.f32 %v535, %v526
  %v540 = vmul.f32 %v538, %v526
  %v541 = vadd.f32 %v539, 1e-05
  %v542 = vadd.f32 %v540, 1e-05
  %v543 = vrsqrt.pop %v541
  %v544 = vrsqrt.pop %v542
  %v545 = vmul.f32 %v529, %v543
  %v546 = vmul.f32 %v530, %v544
  %547 = vrot.lane.b32.xlu0 %v43, 118
  %v548 = vpop.permute.xlu0 %547
  %v550 = vmul.f32 %v545, %v548
  %v551 = vmul.f32 %v546, %v548
  %552 = vrot.lane.b32.xlu0 %v43, 113
  %v553 = vpop.permute.xlu0 %552
  %v555 = vadd.f32 %v550, %v553
  %v556 = vadd.f32 %v551, %v553
  %v557 = vld [vmem:[%s2] sm:$0x77]
  %v558 = vld [vmem:[%s2 + $0x8] sm:$0x77]
  %v559 = vld [vmem:[%s2 + $0x10] sm:$0x77]
  %v560 = vld [vmem:[%s2 + $0x18] sm:$0x77]
  %v561 = vld [vmem:[%s2 + $0x20] sm:$0x77]
  %v562 = vld [vmem:[%s2 + $0x28] sm:$0x77]
  %v563 = vld [vmem:[%s2 + $0x30] sm:$0x77]
  %v564 = vld [vmem:[%s2 + $0x38] sm:$0x77]
  %v565 = vunpack.c.l.bf16 %v557
  %v566 = vunpack.c.h.bf16 %v557
  %v567 = vunpack.c.l.bf16 %v558
  %v568 = vunpack.c.h.bf16 %v558
  %v569 = vunpack.c.l.bf16 %v559
  %v570 = vunpack.c.h.bf16 %v559
  %v571 = vunpack.c.l.bf16 %v560
  %v572 = vunpack.c.h.bf16 %v560
  %v573 = vunpack.c.l.bf16 %v561
  %v574 = vunpack.c.h.bf16 %v561
  %v575 = vunpack.c.l.bf16 %v562
  %v576 = vunpack.c.h.bf16 %v562
  %v577 = vunpack.c.l.bf16 %v563
  %v578 = vunpack.c.h.bf16 %v563
  %v579 = vunpack.c.l.bf16 %v564
  %v580 = vunpack.c.h.bf16 %v564
  %v581 = vpack.c.bf16 %v556, %v555
  %v582 = vlaneseq
  %v583 = vshrl.u32 %v582, 7
  %v584 = vsub.s32 5, %v583
  %v585 = vrot.slane %v565, %v584
  %v586 = vlaneseq
  %v587 = vshrl.u32 %v586, 7
  %v588 = vsub.s32 5, %v587
  %v589 = vrot.slane %v566, %v588
  %v590 = vlaneseq
  %v591 = vshrl.u32 %v590, 7
  %v592 = vsub.s32 5, %v591
  %v593 = vrot.slane %v567, %v592
  %v594 = vlaneseq
  %v595 = vshrl.u32 %v594, 7
  %v596 = vsub.s32 5, %v595
  %v597 = vrot.slane %v568, %v596
  %v598 = vlaneseq
  %v599 = vshrl.u32 %v598, 7
  %v600 = vsub.s32 5, %v599
  %v601 = vrot.slane %v569, %v600
  %v602 = vlaneseq
  %v603 = vshrl.u32 %v602, 7
  %v604 = vsub.s32 5, %v603
  %v605 = vrot.slane %v570, %v604
  %v606 = vlaneseq
  %v607 = vshrl.u32 %v606, 7
  %v608 = vsub.s32 5, %v607
  %v609 = vrot.slane %v571, %v608
  %v610 = vlaneseq
  %v611 = vshrl.u32 %v610, 7
  %v612 = vsub.s32 5, %v611
  %v613 = vrot.slane %v572, %v612
  %v614 = vlaneseq
  %v615 = vshrl.u32 %v614, 7
  %v616 = vsub.s32 5, %v615
  %v617 = vrot.slane %v573, %v616
  %v618 = vlaneseq
  %v619 = vshrl.u32 %v618, 7
  %v620 = vsub.s32 5, %v619
  %v621 = vrot.slane %v574, %v620
  %v622 = vlaneseq
  %v623 = vshrl.u32 %v622, 7
  %v624 = vsub.s32 5, %v623
  %v625 = vrot.slane %v575, %v624
  %v626 = vlaneseq
  %v627 = vshrl.u32 %v626, 7
  %v628 = vsub.s32 5, %v627
  %v629 = vrot.slane %v576, %v628
  %v630 = vlaneseq
  %v631 = vshrl.u32 %v630, 7
  %v632 = vsub.s32 5, %v631
  %v633 = vrot.slane %v577, %v632
  %v634 = vlaneseq
  %v635 = vshrl.u32 %v634, 7
  %v636 = vsub.s32 5, %v635
  %v637 = vrot.slane %v578, %v636
  %v638 = vlaneseq
  %v639 = vshrl.u32 %v638, 7
  %v640 = vsub.s32 5, %v639
  %v641 = vrot.slane %v579, %v640
  %v642 = vlaneseq
  %v643 = vshrl.u32 %v642, 7
  %v644 = vsub.s32 5, %v643
  %v645 = vrot.slane %v580, %v644
  %v654 = vunpack.c.l.b16 %v557
  %v655 = vunpack.c.h.b16 %v557
  %v656 = vunpack.c.l.b16 %v558
  %v657 = vunpack.c.h.b16 %v558
  %v658 = vunpack.c.l.b16 %v559
  %v659 = vunpack.c.h.b16 %v559
  %v660 = vunpack.c.l.b16 %v560
  %v661 = vunpack.c.h.b16 %v560
  %v662 = vunpack.c.l.b16 %v561
  %v663 = vunpack.c.h.b16 %v561
  %v664 = vunpack.c.l.b16 %v562
  %v665 = vunpack.c.h.b16 %v562
  %v666 = vunpack.c.l.b16 %v563
  %v667 = vunpack.c.h.b16 %v563
  %v668 = vunpack.c.l.b16 %v564
  %v669 = vunpack.c.h.b16 %v564
  %v670 = vpack.c.b16 %v654, %v654
  %v671 = vpack.c.b16 %v655, %v655
  %v672 = vpack.c.b16 %v656, %v656
  %v673 = vpack.c.b16 %v657, %v657
  %v674 = vpack.c.b16 %v658, %v658
  %v675 = vpack.c.b16 %v659, %v659
  %v676 = vpack.c.b16 %v660, %v660
  %v677 = vpack.c.b16 %v661, %v661
  %v678 = vpack.c.b16 %v662, %v662
  %v679 = vpack.c.b16 %v663, %v663
  %v680 = vpack.c.b16 %v664, %v664
  %v681 = vpack.c.b16 %v665, %v665
  %v682 = vpack.c.b16 %v666, %v666
  %v683 = vpack.c.b16 %v667, %v667
  %v684 = vpack.c.b16 %v668, %v668
  %v685 = vpack.c.b16 %v669, %v669
  %v687 = vsel %vm44, %v581, 0
  %vm689 = vcmask 1041408
  %vm690 = vcmask 1042432
  %v691 = vsel %vm689, 4294967295, 65535
  %v692 = vsel %vm690, %v691, 0
  %v694 = vand.u32 %v670, %v692
  %v697 = vand.u32 %v671, %v692
  %v700 = vand.u32 %v672, %v692
  %v703 = vand.u32 %v673, %v692
  %v706 = vand.u32 %v674, %v692
  %v709 = vand.u32 %v675, %v692
  %v712 = vand.u32 %v676, %v692
  %v715 = vand.u32 %v677, %v692
  %v718 = vand.u32 %v678, %v692
  %v721 = vand.u32 %v679, %v692
  %v724 = vand.u32 %v680, %v692
  %v727 = vand.u32 %v681, %v692
  %v730 = vand.u32 %v682, %v692
  %v733 = vand.u32 %v683, %v692
  %v736 = vand.u32 %v684, %v692
  %v739 = vand.u32 %v685, %v692
  %741 = vmatprep.subr.bf16.mxu0 0
  %742 = vmatpush1.bf16.msra.mxu0 0
  %743 = vmatprep.subr.bf16.mxu0 0
  %744 = vmatpush1.bf16.msra.mxu0 0
  %745 = vmatprep.subr.bf16.mxu0 0
  %746 = vmatpush1.bf16.msra.mxu0 0
  %747 = vmatprep.subr.bf16.mxu0 0
  %748 = vmatpush1.bf16.msra.mxu0 0
  %749 = vmatprep.subr.bf16.mxu0 0
  %750 = vmatpush1.bf16.msra.mxu0 0
  %751 = vmatprep.subr.bf16.mxu0 0
  %752 = vmatpush1.bf16.msra.mxu0 0
  %753 = vmatprep.subr.bf16.mxu0 0
  %754 = vmatpush1.bf16.msra.mxu0 0
  %755 = vmatprep.subr.bf16.mxu0 %v697
  %756 = vmatpush1.bf16.msra.mxu0 %v694
  %757 = vmatprep.subr.bf16.mxu0 0
  %758 = vmatpush2.bf16.msra.mxu0 0
  %759 = vmatprep.subr.bf16.mxu0 0
  %760 = vmatpush2.bf16.msra.mxu0 0
  %761 = vmatprep.subr.bf16.mxu0 0
  %762 = vmatpush2.bf16.msra.mxu0 0
  %763 = vmatprep.subr.bf16.mxu0 0
  %764 = vmatpush2.bf16.msra.mxu0 0
  %765 = vmatprep.subr.bf16.mxu0 0
  %766 = vmatpush2.bf16.msra.mxu0 0
  %767 = vmatprep.subr.bf16.mxu0 0
  %768 = vmatpush2.bf16.msra.mxu0 0
  %769 = vmatprep.subr.bf16.mxu0 0
  %770 = vmatpush2.bf16.msra.mxu0 0
  %771 = vmatprep.subr.bf16.mxu0 0
  %772 = vmatpush2.bf16.msra.mxu0 0
  %773 = vmatprep.mubr.bf16.mxu0 0
  %774 = vmatmul.mubr.bf16.gmra.mxu0 %v687
  %v775 = vpop.f32.mrf.mxu0
  %v776 = vadd.f32 %v585, %v775
  %v777 = vpop.f32.mrf.mxu0
  %v778 = vadd.f32 %v589, %v777
  %v779 = vpop.f32.mrf.mxu0
  %v780 = vadd.f32 %v585, %v779
  %v781 = vpop.f32.mrf.mxu0
  %v782 = vadd.f32 %v589, %v781
  %783 = vdwg.mxu0
  %784 = vmatprep.subr.bf16.mxu0 0
  %785 = vmatpush1.bf16.msra.mxu0 0
  %786 = vmatprep.subr.bf16.mxu0 0
  %787 = vmatpush1.bf16.msra.mxu0 0
  %788 = vmatprep.subr.bf16.mxu0 0
  %789 = vmatpush1.bf16.msra.mxu0 0
  %790 = vmatprep.subr.bf16.mxu0 0
  %791 = vmatpush1.bf16.msra.mxu0 0
  %792 = vmatprep.subr.bf16.mxu0 0
  %793 = vmatpush1.bf16.msra.mxu0 0
  %794 = vmatprep.subr.bf16.mxu0 0
  %795 = vmatpush1.bf16.msra.mxu0 0
  %796 = vmatprep.subr.bf16.mxu0 0
  %797 = vmatpush1.bf16.msra.mxu0 0
  %798 = vmatprep.subr.bf16.mxu0 %v703
  %799 = vmatpush1.bf16.msra.mxu0 %v700
  %800 = vmatprep.subr.bf16.mxu0 0
  %801 = vmatpush2.bf16.msra.mxu0 0
  %802 = vmatprep.subr.bf16.mxu0 0
  %803 = vmatpush2.bf16.msra.mxu0 0
  %804 = vmatprep.subr.bf16.mxu0 0
  %805 = vmatpush2.bf16.msra.mxu0 0
  %806 = vmatprep.subr.bf16.mxu0 0
  %807 = vmatpush2.bf16.msra.mxu0 0
  %808 = vmatprep.subr.bf16.mxu0 0
  %809 = vmatpush2.bf16.msra.mxu0 0
  %810 = vmatprep.subr.bf16.mxu0 0
  %811 = vmatpush2.bf16.msra.mxu0 0
  %812 = vmatprep.subr.bf16.mxu0 0
  %813 = vmatpush2.bf16.msra.mxu0 0
  %814 = vmatprep.subr.bf16.mxu0 0
  %815 = vmatpush2.bf16.msra.mxu0 0
  %816 = vmatprep.mubr.bf16.mxu0 0
  %817 = vmatmul.mubr.bf16.gmra.mxu0 %v687
  %v818 = vpop.f32.mrf.mxu0
  %v819 = vadd.f32 %v593, %v818
  %v820 = vpop.f32.mrf.mxu0
  %v821 = vadd.f32 %v597, %v820
  %v822 = vpop.f32.mrf.mxu0
  %v823 = vadd.f32 %v593, %v822
  %v824 = vpop.f32.mrf.mxu0
  %v825 = vadd.f32 %v597, %v824
  %826 = vdwg.mxu0
  %827 = vmatprep.subr.bf16.mxu0 0
  %828 = vmatpush1.bf16.msra.mxu0 0
  %829 = vmatprep.subr.bf16.mxu0 0
  %830 = vmatpush1.bf16.msra.mxu0 0
  %831 = vmatprep.subr.bf16.mxu0 0
  %832 = vmatpush1.bf16.msra.mxu0 0
  %833 = vmatprep.subr.bf16.mxu0 0
  %834 = vmatpush1.bf16.msra.mxu0 0
  %835 = vmatprep.subr.bf16.mxu0 0
  %836 = vmatpush1.bf16.msra.mxu0 0
  %837 = vmatprep.subr.bf16.mxu0 0
  %838 = vmatpush1.bf16.msra.mxu0 0
  %839 = vmatprep.subr.bf16.mxu0 0
  %840 = vmatpush1.bf16.msra.mxu0 0
  %841 = vmatprep.subr.bf16.mxu0 %v709
  %842 = vmatpush1.bf16.msra.mxu0 %v706
  %843 = vmatprep.subr.bf16.mxu0 0
  %844 = vmatpush2.bf16.msra.mxu0 0
  %845 = vmatprep.subr.bf16.mxu0 0
  %846 = vmatpush2.bf16.msra.mxu0 0
  %847 = vmatprep.subr.bf16.mxu0 0
  %848 = vmatpush2.bf16.msra.mxu0 0
  %849 = vmatprep.subr.bf16.mxu0 0
  %850 = vmatpush2.bf16.msra.mxu0 0
  %851 = vmatprep.subr.bf16.mxu0 0
  %852 = vmatpush2.bf16.msra.mxu0 0
  %853 = vmatprep.subr.bf16.mxu0 0
  %854 = vmatpush2.bf16.msra.mxu0 0
  %855 = vmatprep.subr.bf16.mxu0 0
  %856 = vmatpush2.bf16.msra.mxu0 0
  %857 = vmatprep.subr.bf16.mxu0 0
  %858 = vmatpush2.bf16.msra.mxu0 0
  %859 = vmatprep.mubr.bf16.mxu0 0
  %860 = vmatmul.mubr.bf16.gmra.mxu0 %v687
  %v861 = vpop.f32.mrf.mxu0
  %v862 = vadd.f32 %v601, %v861
  %v863 = vpop.f32.mrf.mxu0
  %v864 = vadd.f32 %v605, %v863
  %v865 = vpop.f32.mrf.mxu0
  %v866 = vadd.f32 %v601, %v865
  %v867 = vpop.f32.mrf.mxu0
  %v868 = vadd.f32 %v605, %v867
  %869 = vdwg.mxu0
  %870 = vmatprep.subr.bf16.mxu0 0
  %871 = vmatpush1.bf16.msra.mxu0 0
  %872 = vmatprep.subr.bf16.mxu0 0
  %873 = vmatpush1.bf16.msra.mxu0 0
  %874 = vmatprep.subr.bf16.mxu0 0
  %875 = vmatpush1.bf16.msra.mxu0 0
  %876 = vmatprep.subr.bf16.mxu0 0
  %877 = vmatpush1.bf16.msra.mxu0 0
  %878 = vmatprep.subr.bf16.mxu0 0
  %879 = vmatpush1.bf16.msra.mxu0 0
  %880 = vmatprep.subr.bf16.mxu0 0
  %881 = vmatpush1.bf16.msra.mxu0 0
  %882 = vmatprep.subr.bf16.mxu0 0
  %883 = vmatpush1.bf16.msra.mxu0 0
  %884 = vmatprep.subr.bf16.mxu0 %v715
  %885 = vmatpush1.bf16.msra.mxu0 %v712
  %886 = vmatprep.subr.bf16.mxu0 0
  %887 = vmatpush2.bf16.msra.mxu0 0
  %888 = vmatprep.subr.bf16.mxu0 0
  %889 = vmatpush2.bf16.msra.mxu0 0
  %890 = vmatprep.subr.bf16.mxu0 0
  %891 = vmatpush2.bf16.msra.mxu0 0
  %892 = vmatprep.subr.bf16.mxu0 0
  %893 = vmatpush2.bf16.msra.mxu0 0
  %894 = vmatprep.subr.bf16.mxu0 0
  %895 = vmatpush2.bf16.msra.mxu0 0
  %896 = vmatprep.subr.bf16.mxu0 0
  %897 = vmatpush2.bf16.msra.mxu0 0
  %898 = vmatprep.subr.bf16.mxu0 0
  %899 = vmatpush2.bf16.msra.mxu0 0
  %900 = vmatprep.subr.bf16.mxu0 0
  %901 = vmatpush2.bf16.msra.mxu0 0
  %902 = vmatprep.mubr.bf16.mxu0 0
  %903 = vmatmul.mubr.bf16.gmra.mxu0 %v687
  %v904 = vpop.f32.mrf.mxu0
  %v905 = vadd.f32 %v609, %v904
  %v906 = vpop.f32.mrf.mxu0
  %v907 = vadd.f32 %v613, %v906
  %v908 = vpop.f32.mrf.mxu0
  %v909 = vadd.f32 %v609, %v908
  %v910 = vpop.f32.mrf.mxu0
  %v911 = vadd.f32 %v613, %v910
  %912 = vdwg.mxu0
  %913 = vmatprep.subr.bf16.mxu0 0
  %914 = vmatpush1.bf16.msra.mxu0 0
  %915 = vmatprep.subr.bf16.mxu0 0
  %916 = vmatpush1.bf16.msra.mxu0 0
  %917 = vmatprep.subr.bf16.mxu0 0
  %918 = vmatpush1.bf16.msra.mxu0 0
  %919 = vmatprep.subr.bf16.mxu0 0
  %920 = vmatpush1.bf16.msra.mxu0 0
  %921 = vmatprep.subr.bf16.mxu0 0
  %922 = vmatpush1.bf16.msra.mxu0 0
  %923 = vmatprep.subr.bf16.mxu0 0
  %924 = vmatpush1.bf16.msra.mxu0 0
  %925 = vmatprep.subr.bf16.mxu0 0
  %926 = vmatpush1.bf16.msra.mxu0 0
  %927 = vmatprep.subr.bf16.mxu0 %v721
  %928 = vmatpush1.bf16.msra.mxu0 %v718
  %929 = vmatprep.subr.bf16.mxu0 0
  %930 = vmatpush2.bf16.msra.mxu0 0
  %931 = vmatprep.subr.bf16.mxu0 0
  %932 = vmatpush2.bf16.msra.mxu0 0
  %933 = vmatprep.subr.bf16.mxu0 0
  %934 = vmatpush2.bf16.msra.mxu0 0
  %935 = vmatprep.subr.bf16.mxu0 0
  %936 = vmatpush2.bf16.msra.mxu0 0
  %937 = vmatprep.subr.bf16.mxu0 0
  %938 = vmatpush2.bf16.msra.mxu0 0
  %939 = vmatprep.subr.bf16.mxu0 0
  %940 = vmatpush2.bf16.msra.mxu0 0
  %941 = vmatprep.subr.bf16.mxu0 0
  %942 = vmatpush2.bf16.msra.mxu0 0
  %943 = vmatprep.subr.bf16.mxu0 0
  %944 = vmatpush2.bf16.msra.mxu0 0
  %945 = vmatprep.mubr.bf16.mxu0 0
  %946 = vmatmul.mubr.bf16.gmra.mxu0 %v687
  %v947 = vpop.f32.mrf.mxu0
  %v948 = vadd.f32 %v617, %v947
  %v949 = vpop.f32.mrf.mxu0
  %v950 = vadd.f32 %v621, %v949
  %v951 = vpop.f32.mrf.mxu0
  %v952 = vadd.f32 %v617, %v951
  %v953 = vpop.f32.mrf.mxu0
  %v954 = vadd.f32 %v621, %v953
  %955 = vdwg.mxu0
  %956 = vmatprep.subr.bf16.mxu0 0
  %957 = vmatpush1.bf16.msra.mxu0 0
  %958 = vmatprep.subr.bf16.mxu0 0
  %959 = vmatpush1.bf16.msra.mxu0 0
  %960 = vmatprep.subr.bf16.mxu0 0
  %961 = vmatpush1.bf16.msra.mxu0 0
  %962 = vmatprep.subr.bf16.mxu0 0
  %963 = vmatpush1.bf16.msra.mxu0 0
  %964 = vmatprep.subr.bf16.mxu0 0
  %965 = vmatpush1.bf16.msra.mxu0 0
  %966 = vmatprep.subr.bf16.mxu0 0
  %967 = vmatpush1.bf16.msra.mxu0 0
  %968 = vmatprep.subr.bf16.mxu0 0
  %969 = vmatpush1.bf16.msra.mxu0 0
  %970 = vmatprep.subr.bf16.mxu0 %v727
  %971 = vmatpush1.bf16.msra.mxu0 %v724
  %972 = vmatprep.subr.bf16.mxu0 0
  %973 = vmatpush2.bf16.msra.mxu0 0
  %974 = vmatprep.subr.bf16.mxu0 0
  %975 = vmatpush2.bf16.msra.mxu0 0
  %976 = vmatprep.subr.bf16.mxu0 0
  %977 = vmatpush2.bf16.msra.mxu0 0
  %978 = vmatprep.subr.bf16.mxu0 0
  %979 = vmatpush2.bf16.msra.mxu0 0
  %980 = vmatprep.subr.bf16.mxu0 0
  %981 = vmatpush2.bf16.msra.mxu0 0
  %982 = vmatprep.subr.bf16.mxu0 0
  %983 = vmatpush2.bf16.msra.mxu0 0
  %984 = vmatprep.subr.bf16.mxu0 0
  %985 = vmatpush2.bf16.msra.mxu0 0
  %986 = vmatprep.subr.bf16.mxu0 0
  %987 = vmatpush2.bf16.msra.mxu0 0
  %988 = vmatprep.mubr.bf16.mxu0 0
  %989 = vmatmul.mubr.bf16.gmra.mxu0 %v687
  %v990 = vpop.f32.mrf.mxu0
  %v991 = vadd.f32 %v625, %v990
  %v992 = vpop.f32.mrf.mxu0
  %v993 = vadd.f32 %v629, %v992
  %v994 = vpop.f32.mrf.mxu0
  %v995 = vadd.f32 %v625, %v994
  %v996 = vpop.f32.mrf.mxu0
  %v997 = vadd.f32 %v629, %v996
  %998 = vdwg.mxu0
  %999 = vmatprep.subr.bf16.mxu0 0
  %1000 = vmatpush1.bf16.msra.mxu0 0
  %1001 = vmatprep.subr.bf16.mxu0 0
  %1002 = vmatpush1.bf16.msra.mxu0 0
  %1003 = vmatprep.subr.bf16.mxu0 0
  %1004 = vmatpush1.bf16.msra.mxu0 0
  %1005 = vmatprep.subr.bf16.mxu0 0
  %1006 = vmatpush1.bf16.msra.mxu0 0
  %1007 = vmatprep.subr.bf16.mxu0 0
  %1008 = vmatpush1.bf16.msra.mxu0 0
  %1009 = vmatprep.subr.bf16.mxu0 0
  %1010 = vmatpush1.bf16.msra.mxu0 0
  %1011 = vmatprep.subr.bf16.mxu0 0
  %1012 = vmatpush1.bf16.msra.mxu0 0
  %1013 = vmatprep.subr.bf16.mxu0 %v733
  %1014 = vmatpush1.bf16.msra.mxu0 %v730
  %1015 = vmatprep.subr.bf16.mxu0 0
  %1016 = vmatpush2.bf16.msra.mxu0 0
  %1017 = vmatprep.subr.bf16.mxu0 0
  %1018 = vmatpush2.bf16.msra.mxu0 0
  %1019 = vmatprep.subr.bf16.mxu0 0
  %1020 = vmatpush2.bf16.msra.mxu0 0
  %1021 = vmatprep.subr.bf16.mxu0 0
  %1022 = vmatpush2.bf16.msra.mxu0 0
  %1023 = vmatprep.subr.bf16.mxu0 0
  %1024 = vmatpush2.bf16.msra.mxu0 0
  %1025 = vmatprep.subr.bf16.mxu0 0
  %1026 = vmatpush2.bf16.msra.mxu0 0
  %1027 = vmatprep.subr.bf16.mxu0 0
  %1028 = vmatpush2.bf16.msra.mxu0 0
  %1029 = vmatprep.subr.bf16.mxu0 0
  %1030 = vmatpush2.bf16.msra.mxu0 0
  %1031 = vmatprep.mubr.bf16.mxu0 0
  %1032 = vmatmul.mubr.bf16.gmra.mxu0 %v687
  %v1033 = vpop.f32.mrf.mxu0
  %v1034 = vadd.f32 %v633, %v1033
  %v1035 = vpop.f32.mrf.mxu0
  %v1036 = vadd.f32 %v637, %v1035
  %v1037 = vpop.f32.mrf.mxu0
  %v1038 = vadd.f32 %v633, %v1037
  %v1039 = vpop.f32.mrf.mxu0
  %v1040 = vadd.f32 %v637, %v1039
  %1041 = vdwg.mxu0
  %1042 = vmatprep.subr.bf16.mxu0 0
  %1043 = vmatpush1.bf16.msra.mxu0 0
  %1044 = vmatprep.subr.bf16.mxu0 0
  %1045 = vmatpush1.bf16.msra.mxu0 0
  %1046 = vmatprep.subr.bf16.mxu0 0
  %1047 = vmatpush1.bf16.msra.mxu0 0
  %1048 = vmatprep.subr.bf16.mxu0 0
  %1049 = vmatpush1.bf16.msra.mxu0 0
  %1050 = vmatprep.subr.bf16.mxu0 0
  %1051 = vmatpush1.bf16.msra.mxu0 0
  %1052 = vmatprep.subr.bf16.mxu0 0
  %1053 = vmatpush1.bf16.msra.mxu0 0
  %1054 = vmatprep.subr.bf16.mxu0 0
  %1055 = vmatpush1.bf16.msra.mxu0 0
  %1056 = vmatprep.subr.bf16.mxu0 %v739
  %1057 = vmatpush1.bf16.msra.mxu0 %v736
  %1058 = vmatprep.subr.bf16.mxu0 0
  %1059 = vmatpush2.bf16.msra.mxu0 0
  %1060 = vmatprep.subr.bf16.mxu0 0
  %1061 = vmatpush2.bf16.msra.mxu0 0
  %1062 = vmatprep.subr.bf16.mxu0 0
  %1063 = vmatpush2.bf16.msra.mxu0 0
  %1064 = vmatprep.subr.bf16.mxu0 0
  %1065 = vmatpush2.bf16.msra.mxu0 0
  %1066 = vmatprep.subr.bf16.mxu0 0
  %1067 = vmatpush2.bf16.msra.mxu0 0
  %1068 = vmatprep.subr.bf16.mxu0 0
  %1069 = vmatpush2.bf16.msra.mxu0 0
  %1070 = vmatprep.subr.bf16.mxu0 0
  %1071 = vmatpush2.bf16.msra.mxu0 0
  %1072 = vmatprep.subr.bf16.mxu0 0
  %1073 = vmatpush2.bf16.msra.mxu0 0
  %1074 = vmatprep.mubr.bf16.mxu0 0
  %1075 = vmatmul.mubr.bf16.gmra.mxu0 %v687
  %v1076 = vpop.f32.mrf.mxu0
  %v1077 = vadd.f32 %v641, %v1076
  %v1078 = vpop.f32.mrf.mxu0
  %v1079 = vadd.f32 %v645, %v1078
  %v1080 = vpop.f32.mrf.mxu0
  %v1081 = vadd.f32 %v641, %v1080
  %v1082 = vpop.f32.mrf.mxu0
  %v1083 = vadd.f32 %v645, %v1082
  %1084 = vdwg.mxu0
  %v1085 = vmax.f32 %v776, 0.0
  %v1086 = vmax.f32 %v778, 0.0
  %v1087 = vmax.f32 %v819, 0.0
  %v1088 = vmax.f32 %v821, 0.0
  %v1089 = vmax.f32 %v862, 0.0
  %v1090 = vmax.f32 %v864, 0.0
  %v1091 = vmax.f32 %v905, 0.0
  %v1092 = vmax.f32 %v907, 0.0
  %v1093 = vmax.f32 %v948, 0.0
  %v1094 = vmax.f32 %v950, 0.0
  %v1095 = vmax.f32 %v991, 0.0
  %v1096 = vmax.f32 %v993, 0.0
  %v1097 = vmax.f32 %v1034, 0.0
  %v1098 = vmax.f32 %v1036, 0.0
  %v1099 = vmax.f32 %v1077, 0.0
  %v1100 = vmax.f32 %v1079, 0.0
  %v1101 = vmax.f32 %v780, 0.0
  %v1102 = vmax.f32 %v782, 0.0
  %v1103 = vmax.f32 %v823, 0.0
  %v1104 = vmax.f32 %v825, 0.0
  %v1105 = vmax.f32 %v866, 0.0
  %v1106 = vmax.f32 %v868, 0.0
  %v1107 = vmax.f32 %v909, 0.0
  %v1108 = vmax.f32 %v911, 0.0
  %v1109 = vmax.f32 %v952, 0.0
  %v1110 = vmax.f32 %v954, 0.0
  %v1111 = vmax.f32 %v995, 0.0
  %v1112 = vmax.f32 %v997, 0.0
  %v1113 = vmax.f32 %v1038, 0.0
  %v1114 = vmax.f32 %v1040, 0.0
  %v1115 = vmax.f32 %v1081, 0.0
  %v1116 = vmax.f32 %v1083, 0.0
  %v1117 = vpack.c.bf16 %v1101, %v1085
  %v1118 = vpack.c.bf16 %v1102, %v1086
  %v1119 = vpack.c.bf16 %v1103, %v1087
  %v1120 = vpack.c.bf16 %v1104, %v1088
  %v1121 = vpack.c.bf16 %v1105, %v1089
  %v1122 = vpack.c.bf16 %v1106, %v1090
  %v1123 = vpack.c.bf16 %v1107, %v1091
  %v1124 = vpack.c.bf16 %v1108, %v1092
  %v1125 = vpack.c.bf16 %v1109, %v1093
  %v1126 = vpack.c.bf16 %v1110, %v1094
  %v1127 = vpack.c.bf16 %v1111, %v1095
  %v1128 = vpack.c.bf16 %v1112, %v1096
  %v1129 = vpack.c.bf16 %v1113, %v1097
  %v1130 = vpack.c.bf16 %v1114, %v1098
  %v1131 = vpack.c.bf16 %v1115, %v1099
  %v1132 = vpack.c.bf16 %v1116, %v1100
  %v1133 = vld [vmem:[%s3] sm:$0xf]
  %v1134 = vld [vmem:[%s3 + $0x4] sm:$0xf]
  %v1135 = vld [vmem:[%s3 + $0x8] sm:$0xf]
  %v1136 = vld [vmem:[%s3 + $0xc] sm:$0xf]
  %v1137 = vld [vmem:[%s3 + $0x10] sm:$0xf]
  %v1138 = vld [vmem:[%s3 + $0x14] sm:$0xf]
  %v1139 = vld [vmem:[%s3 + $0x18] sm:$0xf]
  %v1140 = vld [vmem:[%s3 + $0x1c] sm:$0xf]
  %v1141 = vld [vmem:[%s3 + $0x20] sm:$0xf]
  %v1142 = vld [vmem:[%s3 + $0x24] sm:$0xf]
  %v1143 = vld [vmem:[%s3 + $0x28] sm:$0xf]
  %v1144 = vld [vmem:[%s3 + $0x2c] sm:$0xf]
  %v1145 = vld [vmem:[%s3 + $0x30] sm:$0xf]
  %v1146 = vld [vmem:[%s3 + $0x34] sm:$0xf]
  %v1147 = vld [vmem:[%s3 + $0x38] sm:$0xf]
  %v1148 = vld [vmem:[%s3 + $0x3c] sm:$0xf]
  %v1149 = vld [vmem:[%s3 + $0x40] sm:$0xf]
  %v1150 = vld [vmem:[%s3 + $0x44] sm:$0xf]
  %v1151 = vld [vmem:[%s3 + $0x48] sm:$0xf]
  %v1152 = vld [vmem:[%s3 + $0x4c] sm:$0xf]
  %v1153 = vld [vmem:[%s3 + $0x50] sm:$0xf]
  %v1154 = vld [vmem:[%s3 + $0x54] sm:$0xf]
  %v1155 = vld [vmem:[%s3 + $0x58] sm:$0xf]
  %v1156 = vld [vmem:[%s3 + $0x5c] sm:$0xf]
  %v1157 = vld [vmem:[%s3 + $0x60] sm:$0xf]
  %v1158 = vld [vmem:[%s3 + $0x64] sm:$0xf]
  %v1159 = vld [vmem:[%s3 + $0x68] sm:$0xf]
  %v1160 = vld [vmem:[%s3 + $0x6c] sm:$0xf]
  %v1161 = vld [vmem:[%s3 + $0x70] sm:$0xf]
  %v1162 = vld [vmem:[%s3 + $0x74] sm:$0xf]
  %v1163 = vld [vmem:[%s3 + $0x78] sm:$0xf]
  %v1164 = vld [vmem:[%s3 + $0x7c] sm:$0xf]
  %v1165 = vld [vmem:[%s3 + $0x80] sm:$0xf]
  %v1166 = vld [vmem:[%s3 + $0x84] sm:$0xf]
  %v1167 = vld [vmem:[%s3 + $0x88] sm:$0xf]
  %v1168 = vld [vmem:[%s3 + $0x8c] sm:$0xf]
  %v1169 = vld [vmem:[%s3 + $0x90] sm:$0xf]
  %v1170 = vld [vmem:[%s3 + $0x94] sm:$0xf]
  %v1171 = vld [vmem:[%s3 + $0x98] sm:$0xf]
  %v1172 = vld [vmem:[%s3 + $0x9c] sm:$0xf]
  %v1173 = vld [vmem:[%s3 + $0xa0] sm:$0xf]
  %v1174 = vld [vmem:[%s3 + $0xa4] sm:$0xf]
  %v1175 = vld [vmem:[%s3 + $0xa8] sm:$0xf]
  %v1176 = vld [vmem:[%s3 + $0xac] sm:$0xf]
  %v1177 = vld [vmem:[%s3 + $0xb0] sm:$0xf]
  %v1178 = vld [vmem:[%s3 + $0xb4] sm:$0xf]
  %v1179 = vld [vmem:[%s3 + $0xb8] sm:$0xf]
  %v1180 = vld [vmem:[%s3 + $0xbc] sm:$0xf]
  %v1181 = vld [vmem:[%s3 + $0xc0] sm:$0xf]
  %v1182 = vld [vmem:[%s3 + $0xc4] sm:$0xf]
  %v1183 = vld [vmem:[%s3 + $0xc8] sm:$0xf]
  %v1184 = vld [vmem:[%s3 + $0xcc] sm:$0xf]
  %v1185 = vld [vmem:[%s3 + $0xd0] sm:$0xf]
  %v1186 = vld [vmem:[%s3 + $0xd4] sm:$0xf]
  %v1187 = vld [vmem:[%s3 + $0xd8] sm:$0xf]
  %v1188 = vld [vmem:[%s3 + $0xdc] sm:$0xf]
  %v1189 = vld [vmem:[%s3 + $0xe0] sm:$0xf]
  %v1190 = vld [vmem:[%s3 + $0xe4] sm:$0xf]
  %v1191 = vld [vmem:[%s3 + $0xe8] sm:$0xf]
  %v1192 = vld [vmem:[%s3 + $0xec] sm:$0xf]
  %v1193 = vld [vmem:[%s3 + $0xf0] sm:$0xf]
  %v1194 = vld [vmem:[%s3 + $0xf4] sm:$0xf]
  %v1195 = vld [vmem:[%s3 + $0xf8] sm:$0xf]
  %v1196 = vld [vmem:[%s3 + $0xfc] sm:$0xf]
  %v1197 = vld [vmem:[%s3 + $0x100] sm:$0xf]
  %v1198 = vld [vmem:[%s3 + $0x104] sm:$0xf]
  %v1199 = vld [vmem:[%s3 + $0x108] sm:$0xf]
  %v1200 = vld [vmem:[%s3 + $0x10c] sm:$0xf]
  %v1201 = vld [vmem:[%s3 + $0x110] sm:$0xf]
  %v1202 = vld [vmem:[%s3 + $0x114] sm:$0xf]
  %v1203 = vld [vmem:[%s3 + $0x118] sm:$0xf]
  %v1204 = vld [vmem:[%s3 + $0x11c] sm:$0xf]
  %v1205 = vld [vmem:[%s3 + $0x120] sm:$0xf]
  %v1206 = vld [vmem:[%s3 + $0x124] sm:$0xf]
  %v1207 = vld [vmem:[%s3 + $0x128] sm:$0xf]
  %v1208 = vld [vmem:[%s3 + $0x12c] sm:$0xf]
  %v1209 = vld [vmem:[%s3 + $0x130] sm:$0xf]
  %v1210 = vld [vmem:[%s3 + $0x134] sm:$0xf]
  %v1211 = vld [vmem:[%s3 + $0x138] sm:$0xf]
  %v1212 = vld [vmem:[%s3 + $0x13c] sm:$0xf]
  %v1213 = vld [vmem:[%s3 + $0x140] sm:$0xf]
  %v1214 = vld [vmem:[%s3 + $0x144] sm:$0xf]
  %v1215 = vld [vmem:[%s3 + $0x148] sm:$0xf]
  %v1216 = vld [vmem:[%s3 + $0x14c] sm:$0xf]
  %v1217 = vld [vmem:[%s3 + $0x150] sm:$0xf]
  %v1218 = vld [vmem:[%s3 + $0x154] sm:$0xf]
  %v1219 = vld [vmem:[%s3 + $0x158] sm:$0xf]
  %v1220 = vld [vmem:[%s3 + $0x15c] sm:$0xf]
  %v1221 = vld [vmem:[%s3 + $0x160] sm:$0xf]
  %v1222 = vld [vmem:[%s3 + $0x164] sm:$0xf]
  %v1223 = vld [vmem:[%s3 + $0x168] sm:$0xf]
  %v1224 = vld [vmem:[%s3 + $0x16c] sm:$0xf]
  %v1225 = vld [vmem:[%s3 + $0x170] sm:$0xf]
  %v1226 = vld [vmem:[%s3 + $0x174] sm:$0xf]
  %v1227 = vld [vmem:[%s3 + $0x178] sm:$0xf]
  %v1228 = vld [vmem:[%s3 + $0x17c] sm:$0xf]
  %v1229 = vld [vmem:[%s3 + $0x180] sm:$0xf]
  %v1230 = vld [vmem:[%s3 + $0x184] sm:$0xf]
  %v1231 = vld [vmem:[%s3 + $0x188] sm:$0xf]
  %v1232 = vld [vmem:[%s3 + $0x18c] sm:$0xf]
  %v1233 = vld [vmem:[%s3 + $0x190] sm:$0xf]
  %v1234 = vld [vmem:[%s3 + $0x194] sm:$0xf]
  %v1235 = vld [vmem:[%s3 + $0x198] sm:$0xf]
  %v1236 = vld [vmem:[%s3 + $0x19c] sm:$0xf]
  %v1237 = vld [vmem:[%s3 + $0x1a0] sm:$0xf]
  %v1238 = vld [vmem:[%s3 + $0x1a4] sm:$0xf]
  %v1239 = vld [vmem:[%s3 + $0x1a8] sm:$0xf]
  %v1240 = vld [vmem:[%s3 + $0x1ac] sm:$0xf]
  %v1241 = vld [vmem:[%s3 + $0x1b0] sm:$0xf]
  %v1242 = vld [vmem:[%s3 + $0x1b4] sm:$0xf]
  %v1243 = vld [vmem:[%s3 + $0x1b8] sm:$0xf]
  %v1244 = vld [vmem:[%s3 + $0x1bc] sm:$0xf]
  %v1245 = vld [vmem:[%s3 + $0x1c0] sm:$0xf]
  %v1246 = vld [vmem:[%s3 + $0x1c4] sm:$0xf]
  %v1247 = vld [vmem:[%s3 + $0x1c8] sm:$0xf]
  %v1248 = vld [vmem:[%s3 + $0x1cc] sm:$0xf]
  %v1249 = vld [vmem:[%s3 + $0x1d0] sm:$0xf]
  %v1250 = vld [vmem:[%s3 + $0x1d4] sm:$0xf]
  %v1251 = vld [vmem:[%s3 + $0x1d8] sm:$0xf]
  %v1252 = vld [vmem:[%s3 + $0x1dc] sm:$0xf]
  %v1253 = vld [vmem:[%s3 + $0x1e0] sm:$0xf]
  %v1254 = vld [vmem:[%s3 + $0x1e4] sm:$0xf]
  %v1255 = vld [vmem:[%s3 + $0x1e8] sm:$0xf]
  %v1256 = vld [vmem:[%s3 + $0x1ec] sm:$0xf]
  %v1257 = vld [vmem:[%s3 + $0x1f0] sm:$0xf]
  %v1258 = vld [vmem:[%s3 + $0x1f4] sm:$0xf]
  %v1259 = vld [vmem:[%s3 + $0x1f8] sm:$0xf]
  %v1260 = vld [vmem:[%s3 + $0x1fc] sm:$0xf]
  %v1261 = vld [vmem:[%s3 + $0x200] sm:$0xf]
  %v1262 = vld [vmem:[%s3 + $0x204] sm:$0xf]
  %v1263 = vld [vmem:[%s3 + $0x208] sm:$0xf]
  %v1264 = vld [vmem:[%s3 + $0x20c] sm:$0xf]
  %v1265 = vld [vmem:[%s3 + $0x210] sm:$0xf]
  %v1266 = vld [vmem:[%s3 + $0x214] sm:$0xf]
  %v1267 = vld [vmem:[%s3 + $0x218] sm:$0xf]
  %v1268 = vld [vmem:[%s3 + $0x21c] sm:$0xf]
  %v1269 = vld [vmem:[%s3 + $0x220] sm:$0xf]
  %v1270 = vld [vmem:[%s3 + $0x224] sm:$0xf]
  %v1271 = vld [vmem:[%s3 + $0x228] sm:$0xf]
  %v1272 = vld [vmem:[%s3 + $0x22c] sm:$0xf]
  %v1273 = vld [vmem:[%s3 + $0x230] sm:$0xf]
  %v1274 = vld [vmem:[%s3 + $0x234] sm:$0xf]
  %v1275 = vld [vmem:[%s3 + $0x238] sm:$0xf]
  %v1276 = vld [vmem:[%s3 + $0x23c] sm:$0xf]
  %v1277 = vld [vmem:[%s3 + $0x240] sm:$0xf]
  %v1278 = vld [vmem:[%s3 + $0x244] sm:$0xf]
  %v1279 = vld [vmem:[%s3 + $0x248] sm:$0xf]
  %v1280 = vld [vmem:[%s3 + $0x24c] sm:$0xf]
  %v1281 = vld [vmem:[%s3 + $0x250] sm:$0xf]
  %v1282 = vld [vmem:[%s3 + $0x254] sm:$0xf]
  %v1283 = vld [vmem:[%s3 + $0x258] sm:$0xf]
  %v1284 = vld [vmem:[%s3 + $0x25c] sm:$0xf]
  %v1285 = vld [vmem:[%s3 + $0x260] sm:$0xf]
  %v1286 = vld [vmem:[%s3 + $0x264] sm:$0xf]
  %v1287 = vld [vmem:[%s3 + $0x268] sm:$0xf]
  %v1288 = vld [vmem:[%s3 + $0x26c] sm:$0xf]
  %v1289 = vld [vmem:[%s3 + $0x270] sm:$0xf]
  %v1290 = vld [vmem:[%s3 + $0x274] sm:$0xf]
  %v1291 = vld [vmem:[%s3 + $0x278] sm:$0xf]
  %v1292 = vld [vmem:[%s3 + $0x27c] sm:$0xf]
  %v1293 = vld [vmem:[%s3 + $0x280] sm:$0xf]
  %v1294 = vld [vmem:[%s3 + $0x284] sm:$0xf]
  %v1295 = vld [vmem:[%s3 + $0x288] sm:$0xf]
  %v1296 = vld [vmem:[%s3 + $0x28c] sm:$0xf]
  %v1297 = vld [vmem:[%s3 + $0x290] sm:$0xf]
  %v1298 = vld [vmem:[%s3 + $0x294] sm:$0xf]
  %v1299 = vld [vmem:[%s3 + $0x298] sm:$0xf]
  %v1300 = vld [vmem:[%s3 + $0x29c] sm:$0xf]
  %v1301 = vld [vmem:[%s3 + $0x2a0] sm:$0xf]
  %v1302 = vld [vmem:[%s3 + $0x2a4] sm:$0xf]
  %v1303 = vld [vmem:[%s3 + $0x2a8] sm:$0xf]
  %v1304 = vld [vmem:[%s3 + $0x2ac] sm:$0xf]
  %v1305 = vld [vmem:[%s3 + $0x2b0] sm:$0xf]
  %v1306 = vld [vmem:[%s3 + $0x2b4] sm:$0xf]
  %v1307 = vld [vmem:[%s3 + $0x2b8] sm:$0xf]
  %v1308 = vld [vmem:[%s3 + $0x2bc] sm:$0xf]
  %v1309 = vld [vmem:[%s3 + $0x2c0] sm:$0xf]
  %v1310 = vld [vmem:[%s3 + $0x2c4] sm:$0xf]
  %v1311 = vld [vmem:[%s3 + $0x2c8] sm:$0xf]
  %v1312 = vld [vmem:[%s3 + $0x2cc] sm:$0xf]
  %v1313 = vld [vmem:[%s3 + $0x2d0] sm:$0xf]
  %v1314 = vld [vmem:[%s3 + $0x2d4] sm:$0xf]
  %v1315 = vld [vmem:[%s3 + $0x2d8] sm:$0xf]
  %v1316 = vld [vmem:[%s3 + $0x2dc] sm:$0xf]
  %v1317 = vld [vmem:[%s3 + $0x2e0] sm:$0xf]
  %v1318 = vld [vmem:[%s3 + $0x2e4] sm:$0xf]
  %v1319 = vld [vmem:[%s3 + $0x2e8] sm:$0xf]
  %v1320 = vld [vmem:[%s3 + $0x2ec] sm:$0xf]
  %v1321 = vld [vmem:[%s3 + $0x2f0] sm:$0xf]
  %v1322 = vld [vmem:[%s3 + $0x2f4] sm:$0xf]
  %v1323 = vld [vmem:[%s3 + $0x2f8] sm:$0xf]
  %v1324 = vld [vmem:[%s3 + $0x2fc] sm:$0xf]
  %v1325 = vld [vmem:[%s3 + $0x300] sm:$0xf]
  %v1326 = vld [vmem:[%s3 + $0x304] sm:$0xf]
  %v1327 = vld [vmem:[%s3 + $0x308] sm:$0xf]
  %v1328 = vld [vmem:[%s3 + $0x30c] sm:$0xf]
  %v1329 = vld [vmem:[%s3 + $0x310] sm:$0xf]
  %v1330 = vld [vmem:[%s3 + $0x314] sm:$0xf]
  %v1331 = vld [vmem:[%s3 + $0x318] sm:$0xf]
  %v1332 = vld [vmem:[%s3 + $0x31c] sm:$0xf]
  %v1333 = vld [vmem:[%s3 + $0x320] sm:$0xf]
  %v1334 = vld [vmem:[%s3 + $0x324] sm:$0xf]
  %v1335 = vld [vmem:[%s3 + $0x328] sm:$0xf]
  %v1336 = vld [vmem:[%s3 + $0x32c] sm:$0xf]
  %v1337 = vld [vmem:[%s3 + $0x330] sm:$0xf]
  %v1338 = vld [vmem:[%s3 + $0x334] sm:$0xf]
  %v1339 = vld [vmem:[%s3 + $0x338] sm:$0xf]
  %v1340 = vld [vmem:[%s3 + $0x33c] sm:$0xf]
  %v1341 = vld [vmem:[%s3 + $0x340] sm:$0xf]
  %v1342 = vld [vmem:[%s3 + $0x344] sm:$0xf]
  %v1343 = vld [vmem:[%s3 + $0x348] sm:$0xf]
  %v1344 = vld [vmem:[%s3 + $0x34c] sm:$0xf]
  %v1345 = vld [vmem:[%s3 + $0x350] sm:$0xf]
  %v1346 = vld [vmem:[%s3 + $0x354] sm:$0xf]
  %v1347 = vld [vmem:[%s3 + $0x358] sm:$0xf]
  %v1348 = vld [vmem:[%s3 + $0x35c] sm:$0xf]
  %v1349 = vld [vmem:[%s3 + $0x360] sm:$0xf]
  %v1350 = vld [vmem:[%s3 + $0x364] sm:$0xf]
  %v1351 = vld [vmem:[%s3 + $0x368] sm:$0xf]
  %v1352 = vld [vmem:[%s3 + $0x36c] sm:$0xf]
  %v1353 = vld [vmem:[%s3 + $0x370] sm:$0xf]
  %v1354 = vld [vmem:[%s3 + $0x374] sm:$0xf]
  %v1355 = vld [vmem:[%s3 + $0x378] sm:$0xf]
  %v1356 = vld [vmem:[%s3 + $0x37c] sm:$0xf]
  %v1357 = vld [vmem:[%s3 + $0x380] sm:$0xf]
  %v1358 = vld [vmem:[%s3 + $0x384] sm:$0xf]
  %v1359 = vld [vmem:[%s3 + $0x388] sm:$0xf]
  %v1360 = vld [vmem:[%s3 + $0x38c] sm:$0xf]
  %v1361 = vld [vmem:[%s3 + $0x390] sm:$0xf]
  %v1362 = vld [vmem:[%s3 + $0x394] sm:$0xf]
  %v1363 = vld [vmem:[%s3 + $0x398] sm:$0xf]
  %v1364 = vld [vmem:[%s3 + $0x39c] sm:$0xf]
  %v1365 = vld [vmem:[%s3 + $0x3a0] sm:$0xf]
  %v1366 = vld [vmem:[%s3 + $0x3a4] sm:$0xf]
  %v1367 = vld [vmem:[%s3 + $0x3a8] sm:$0xf]
  %v1368 = vld [vmem:[%s3 + $0x3ac] sm:$0xf]
  %v1369 = vld [vmem:[%s3 + $0x3b0] sm:$0xf]
  %v1370 = vld [vmem:[%s3 + $0x3b4] sm:$0xf]
  %v1371 = vld [vmem:[%s3 + $0x3b8] sm:$0xf]
  %v1372 = vld [vmem:[%s3 + $0x3bc] sm:$0xf]
  %v1373 = vld [vmem:[%s3 + $0x3c0] sm:$0xf]
  %v1374 = vld [vmem:[%s3 + $0x3c4] sm:$0xf]
  %v1375 = vld [vmem:[%s3 + $0x3c8] sm:$0xf]
  %v1376 = vld [vmem:[%s3 + $0x3cc] sm:$0xf]
  %v1377 = vld [vmem:[%s3 + $0x3d0] sm:$0xf]
  %v1378 = vld [vmem:[%s3 + $0x3d4] sm:$0xf]
  %v1379 = vld [vmem:[%s3 + $0x3d8] sm:$0xf]
  %v1380 = vld [vmem:[%s3 + $0x3dc] sm:$0xf]
  %v1381 = vld [vmem:[%s3 + $0x3e0] sm:$0xf]
  %v1382 = vld [vmem:[%s3 + $0x3e4] sm:$0xf]
  %v1383 = vld [vmem:[%s3 + $0x3e8] sm:$0xf]
  %v1384 = vld [vmem:[%s3 + $0x3ec] sm:$0xf]
  %v1385 = vld [vmem:[%s3 + $0x3f0] sm:$0xf]
  %v1386 = vld [vmem:[%s3 + $0x3f4] sm:$0xf]
  %v1387 = vld [vmem:[%s3 + $0x3f8] sm:$0xf]
  %v1388 = vld [vmem:[%s3 + $0x3fc] sm:$0xf]
  %v1645 = vunpack.c.l.b16 %v1133
  %v1646 = vunpack.c.l.b16 %v1134
  %v1647 = vunpack.c.l.b16 %v1135
  %v1648 = vunpack.c.l.b16 %v1136
  %v1649 = vunpack.c.l.b16 %v1137
  %v1650 = vunpack.c.l.b16 %v1138
  %v1651 = vunpack.c.l.b16 %v1139
  %v1652 = vunpack.c.l.b16 %v1140
  %v1653 = vunpack.c.l.b16 %v1141
  %v1654 = vunpack.c.l.b16 %v1142
  %v1655 = vunpack.c.l.b16 %v1143
  %v1656 = vunpack.c.l.b16 %v1144
  %v1657 = vunpack.c.l.b16 %v1145
  %v1658 = vunpack.c.l.b16 %v1146
  %v1659 = vunpack.c.l.b16 %v1147
  %v1660 = vunpack.c.l.b16 %v1148
  %v1661 = vunpack.c.l.b16 %v1149
  %v1662 = vunpack.c.l.b16 %v1150
  %v1663 = vunpack.c.l.b16 %v1151
  %v1664 = vunpack.c.l.b16 %v1152
  %v1665 = vunpack.c.l.b16 %v1153
  %v1666 = vunpack.c.l.b16 %v1154
  %v1667 = vunpack.c.l.b16 %v1155
  %v1668 = vunpack.c.l.b16 %v1156
  %v1669 = vunpack.c.l.b16 %v1157
  %v1670 = vunpack.c.l.b16 %v1158
  %v1671 = vunpack.c.l.b16 %v1159
  %v1672 = vunpack.c.l.b16 %v1160
  %v1673 = vunpack.c.l.b16 %v1161
  %v1674 = vunpack.c.l.b16 %v1162
  %v1675 = vunpack.c.l.b16 %v1163
  %v1676 = vunpack.c.l.b16 %v1164
  %v1677 = vunpack.c.l.b16 %v1165
  %v1678 = vunpack.c.l.b16 %v1166
  %v1679 = vunpack.c.l.b16 %v1167
  %v1680 = vunpack.c.l.b16 %v1168
  %v1681 = vunpack.c.l.b16 %v1169
  %v1682 = vunpack.c.l.b16 %v1170
  %v1683 = vunpack.c.l.b16 %v1171
  %v1684 = vunpack.c.l.b16 %v1172
  %v1685 = vunpack.c.l.b16 %v1173
  %v1686 = vunpack.c.l.b16 %v1174
  %v1687 = vunpack.c.l.b16 %v1175
  %v1688 = vunpack.c.l.b16 %v1176
  %v1689 = vunpack.c.l.b16 %v1177
  %v1690 = vunpack.c.l.b16 %v1178
  %v1691 = vunpack.c.l.b16 %v1179
  %v1692 = vunpack.c.l.b16 %v1180
  %v1693 = vunpack.c.l.b16 %v1181
  %v1694 = vunpack.c.l.b16 %v1182
  %v1695 = vunpack.c.l.b16 %v1183
  %v1696 = vunpack.c.l.b16 %v1184
  %v1697 = vunpack.c.l.b16 %v1185
  %v1698 = vunpack.c.l.b16 %v1186
  %v1699 = vunpack.c.l.b16 %v1187
  %v1700 = vunpack.c.l.b16 %v1188
  %v1701 = vunpack.c.l.b16 %v1189
  %v1702 = vunpack.c.l.b16 %v1190
  %v1703 = vunpack.c.l.b16 %v1191
  %v1704 = vunpack.c.l.b16 %v1192
  %v1705 = vunpack.c.l.b16 %v1193
  %v1706 = vunpack.c.l.b16 %v1194
  %v1707 = vunpack.c.l.b16 %v1195
  %v1708 = vunpack.c.l.b16 %v1196
  %v1709 = vunpack.c.l.b16 %v1197
  %v1710 = vunpack.c.l.b16 %v1198
  %v1711 = vunpack.c.l.b16 %v1199
  %v1712 = vunpack.c.l.b16 %v1200
  %v1713 = vunpack.c.l.b16 %v1201
  %v1714 = vunpack.c.l.b16 %v1202
  %v1715 = vunpack.c.l.b16 %v1203
  %v1716 = vunpack.c.l.b16 %v1204
  %v1717 = vunpack.c.l.b16 %v1205
  %v1718 = vunpack.c.l.b16 %v1206
  %v1719 = vunpack.c.l.b16 %v1207
  %v1720 = vunpack.c.l.b16 %v1208
  %v1721 = vunpack.c.l.b16 %v1209
  %v1722 = vunpack.c.l.b16 %v1210
  %v1723 = vunpack.c.l.b16 %v1211
  %v1724 = vunpack.c.l.b16 %v1212
  %v1725 = vunpack.c.l.b16 %v1213
  %v1726 = vunpack.c.l.b16 %v1214
  %v1727 = vunpack.c.l.b16 %v1215
  %v1728 = vunpack.c.l.b16 %v1216
  %v1729 = vunpack.c.l.b16 %v1217
  %v1730 = vunpack.c.l.b16 %v1218
  %v1731 = vunpack.c.l.b16 %v1219
  %v1732 = vunpack.c.l.b16 %v1220
  %v1733 = vunpack.c.l.b16 %v1221
  %v1734 = vunpack.c.l.b16 %v1222
  %v1735 = vunpack.c.l.b16 %v1223
  %v1736 = vunpack.c.l.b16 %v1224
  %v1737 = vunpack.c.l.b16 %v1225
  %v1738 = vunpack.c.l.b16 %v1226
  %v1739 = vunpack.c.l.b16 %v1227
  %v1740 = vunpack.c.l.b16 %v1228
  %v1741 = vunpack.c.l.b16 %v1229
  %v1742 = vunpack.c.l.b16 %v1230
  %v1743 = vunpack.c.l.b16 %v1231
  %v1744 = vunpack.c.l.b16 %v1232
  %v1745 = vunpack.c.l.b16 %v1233
  %v1746 = vunpack.c.l.b16 %v1234
  %v1747 = vunpack.c.l.b16 %v1235
  %v1748 = vunpack.c.l.b16 %v1236
  %v1749 = vunpack.c.l.b16 %v1237
  %v1750 = vunpack.c.l.b16 %v1238
  %v1751 = vunpack.c.l.b16 %v1239
  %v1752 = vunpack.c.l.b16 %v1240
  %v1753 = vunpack.c.l.b16 %v1241
  %v1754 = vunpack.c.l.b16 %v1242
  %v1755 = vunpack.c.l.b16 %v1243
  %v1756 = vunpack.c.l.b16 %v1244
  %v1757 = vunpack.c.l.b16 %v1245
  %v1758 = vunpack.c.l.b16 %v1246
  %v1759 = vunpack.c.l.b16 %v1247
  %v1760 = vunpack.c.l.b16 %v1248
  %v1761 = vunpack.c.l.b16 %v1249
  %v1762 = vunpack.c.l.b16 %v1250
  %v1763 = vunpack.c.l.b16 %v1251
  %v1764 = vunpack.c.l.b16 %v1252
  %v1765 = vunpack.c.l.b16 %v1253
  %v1766 = vunpack.c.l.b16 %v1254
  %v1767 = vunpack.c.l.b16 %v1255
  %v1768 = vunpack.c.l.b16 %v1256
  %v1769 = vunpack.c.l.b16 %v1257
  %v1770 = vunpack.c.l.b16 %v1258
  %v1771 = vunpack.c.l.b16 %v1259
  %v1772 = vunpack.c.l.b16 %v1260
  %v1773 = vunpack.c.l.b16 %v1261
  %v1774 = vunpack.c.l.b16 %v1262
  %v1775 = vunpack.c.l.b16 %v1263
  %v1776 = vunpack.c.l.b16 %v1264
  %v1777 = vunpack.c.l.b16 %v1265
  %v1778 = vunpack.c.l.b16 %v1266
  %v1779 = vunpack.c.l.b16 %v1267
  %v1780 = vunpack.c.l.b16 %v1268
  %v1781 = vunpack.c.l.b16 %v1269
  %v1782 = vunpack.c.l.b16 %v1270
  %v1783 = vunpack.c.l.b16 %v1271
  %v1784 = vunpack.c.l.b16 %v1272
  %v1785 = vunpack.c.l.b16 %v1273
  %v1786 = vunpack.c.l.b16 %v1274
  %v1787 = vunpack.c.l.b16 %v1275
  %v1788 = vunpack.c.l.b16 %v1276
  %v1789 = vunpack.c.l.b16 %v1277
  %v1790 = vunpack.c.l.b16 %v1278
  %v1791 = vunpack.c.l.b16 %v1279
  %v1792 = vunpack.c.l.b16 %v1280
  %v1793 = vunpack.c.l.b16 %v1281
  %v1794 = vunpack.c.l.b16 %v1282
  %v1795 = vunpack.c.l.b16 %v1283
  %v1796 = vunpack.c.l.b16 %v1284
  %v1797 = vunpack.c.l.b16 %v1285
  %v1798 = vunpack.c.l.b16 %v1286
  %v1799 = vunpack.c.l.b16 %v1287
  %v1800 = vunpack.c.l.b16 %v1288
  %v1801 = vunpack.c.l.b16 %v1289
  %v1802 = vunpack.c.l.b16 %v1290
  %v1803 = vunpack.c.l.b16 %v1291
  %v1804 = vunpack.c.l.b16 %v1292
  %v1805 = vunpack.c.l.b16 %v1293
  %v1806 = vunpack.c.l.b16 %v1294
  %v1807 = vunpack.c.l.b16 %v1295
  %v1808 = vunpack.c.l.b16 %v1296
  %v1809 = vunpack.c.l.b16 %v1297
  %v1810 = vunpack.c.l.b16 %v1298
  %v1811 = vunpack.c.l.b16 %v1299
  %v1812 = vunpack.c.l.b16 %v1300
  %v1813 = vunpack.c.l.b16 %v1301
  %v1814 = vunpack.c.l.b16 %v1302
  %v1815 = vunpack.c.l.b16 %v1303
  %v1816 = vunpack.c.l.b16 %v1304
  %v1817 = vunpack.c.l.b16 %v1305
  %v1818 = vunpack.c.l.b16 %v1306
  %v1819 = vunpack.c.l.b16 %v1307
  %v1820 = vunpack.c.l.b16 %v1308
  %v1821 = vunpack.c.l.b16 %v1309
  %v1822 = vunpack.c.l.b16 %v1310
  %v1823 = vunpack.c.l.b16 %v1311
  %v1824 = vunpack.c.l.b16 %v1312
  %v1825 = vunpack.c.l.b16 %v1313
  %v1826 = vunpack.c.l.b16 %v1314
  %v1827 = vunpack.c.l.b16 %v1315
  %v1828 = vunpack.c.l.b16 %v1316
  %v1829 = vunpack.c.l.b16 %v1317
  %v1830 = vunpack.c.l.b16 %v1318
  %v1831 = vunpack.c.l.b16 %v1319
  %v1832 = vunpack.c.l.b16 %v1320
  %v1833 = vunpack.c.l.b16 %v1321
  %v1834 = vunpack.c.l.b16 %v1322
  %v1835 = vunpack.c.l.b16 %v1323
  %v1836 = vunpack.c.l.b16 %v1324
  %v1837 = vunpack.c.l.b16 %v1325
  %v1838 = vunpack.c.l.b16 %v1326
  %v1839 = vunpack.c.l.b16 %v1327
  %v1840 = vunpack.c.l.b16 %v1328
  %v1841 = vunpack.c.l.b16 %v1329
  %v1842 = vunpack.c.l.b16 %v1330
  %v1843 = vunpack.c.l.b16 %v1331
  %v1844 = vunpack.c.l.b16 %v1332
  %v1845 = vunpack.c.l.b16 %v1333
  %v1846 = vunpack.c.l.b16 %v1334
  %v1847 = vunpack.c.l.b16 %v1335
  %v1848 = vunpack.c.l.b16 %v1336
  %v1849 = vunpack.c.l.b16 %v1337
  %v1850 = vunpack.c.l.b16 %v1338
  %v1851 = vunpack.c.l.b16 %v1339
  %v1852 = vunpack.c.l.b16 %v1340
  %v1853 = vunpack.c.l.b16 %v1341
  %v1854 = vunpack.c.l.b16 %v1342
  %v1855 = vunpack.c.l.b16 %v1343
  %v1856 = vunpack.c.l.b16 %v1344
  %v1857 = vunpack.c.l.b16 %v1345
  %v1858 = vunpack.c.l.b16 %v1346
  %v1859 = vunpack.c.l.b16 %v1347
  %v1860 = vunpack.c.l.b16 %v1348
  %v1861 = vunpack.c.l.b16 %v1349
  %v1862 = vunpack.c.l.b16 %v1350
  %v1863 = vunpack.c.l.b16 %v1351
  %v1864 = vunpack.c.l.b16 %v1352
  %v1865 = vunpack.c.l.b16 %v1353
  %v1866 = vunpack.c.l.b16 %v1354
  %v1867 = vunpack.c.l.b16 %v1355
  %v1868 = vunpack.c.l.b16 %v1356
  %v1869 = vunpack.c.l.b16 %v1357
  %v1870 = vunpack.c.l.b16 %v1358
  %v1871 = vunpack.c.l.b16 %v1359
  %v1872 = vunpack.c.l.b16 %v1360
  %v1873 = vunpack.c.l.b16 %v1361
  %v1874 = vunpack.c.l.b16 %v1362
  %v1875 = vunpack.c.l.b16 %v1363
  %v1876 = vunpack.c.l.b16 %v1364
  %v1877 = vunpack.c.l.b16 %v1365
  %v1878 = vunpack.c.l.b16 %v1366
  %v1879 = vunpack.c.l.b16 %v1367
  %v1880 = vunpack.c.l.b16 %v1368
  %v1881 = vunpack.c.l.b16 %v1369
  %v1882 = vunpack.c.l.b16 %v1370
  %v1883 = vunpack.c.l.b16 %v1371
  %v1884 = vunpack.c.l.b16 %v1372
  %v1885 = vunpack.c.l.b16 %v1373
  %v1886 = vunpack.c.l.b16 %v1374
  %v1887 = vunpack.c.l.b16 %v1375
  %v1888 = vunpack.c.l.b16 %v1376
  %v1889 = vunpack.c.l.b16 %v1377
  %v1890 = vunpack.c.l.b16 %v1378
  %v1891 = vunpack.c.l.b16 %v1379
  %v1892 = vunpack.c.l.b16 %v1380
  %v1893 = vunpack.c.l.b16 %v1381
  %v1894 = vunpack.c.l.b16 %v1382
  %v1895 = vunpack.c.l.b16 %v1383
  %v1896 = vunpack.c.l.b16 %v1384
  %v1897 = vunpack.c.l.b16 %v1385
  %v1898 = vunpack.c.l.b16 %v1386
  %v1899 = vunpack.c.l.b16 %v1387
  %v1900 = vunpack.c.l.b16 %v1388
  %v1901 = vpack.c.b16 %v1646, %v1645
  %v1902 = vpack.c.b16 %v1648, %v1647
  %v1903 = vpack.c.b16 %v1650, %v1649
  %v1904 = vpack.c.b16 %v1652, %v1651
  %v1905 = vpack.c.b16 %v1654, %v1653
  %v1906 = vpack.c.b16 %v1656, %v1655
  %v1907 = vpack.c.b16 %v1658, %v1657
  %v1908 = vpack.c.b16 %v1660, %v1659
  %v1909 = vpack.c.b16 %v1662, %v1661
  %v1910 = vpack.c.b16 %v1664, %v1663
  %v1911 = vpack.c.b16 %v1666, %v1665
  %v1912 = vpack.c.b16 %v1668, %v1667
  %v1913 = vpack.c.b16 %v1670, %v1669
  %v1914 = vpack.c.b16 %v1672, %v1671
  %v1915 = vpack.c.b16 %v1674, %v1673
  %v1916 = vpack.c.b16 %v1676, %v1675
  %v1917 = vpack.c.b16 %v1678, %v1677
  %v1918 = vpack.c.b16 %v1680, %v1679
  %v1919 = vpack.c.b16 %v1682, %v1681
  %v1920 = vpack.c.b16 %v1684, %v1683
  %v1921 = vpack.c.b16 %v1686, %v1685
  %v1922 = vpack.c.b16 %v1688, %v1687
  %v1923 = vpack.c.b16 %v1690, %v1689
  %v1924 = vpack.c.b16 %v1692, %v1691
  %v1925 = vpack.c.b16 %v1694, %v1693
  %v1926 = vpack.c.b16 %v1696, %v1695
  %v1927 = vpack.c.b16 %v1698, %v1697
  %v1928 = vpack.c.b16 %v1700, %v1699
  %v1929 = vpack.c.b16 %v1702, %v1701
  %v1930 = vpack.c.b16 %v1704, %v1703
  %v1931 = vpack.c.b16 %v1706, %v1705
  %v1932 = vpack.c.b16 %v1708, %v1707
  %v1933 = vpack.c.b16 %v1710, %v1709
  %v1934 = vpack.c.b16 %v1712, %v1711
  %v1935 = vpack.c.b16 %v1714, %v1713
  %v1936 = vpack.c.b16 %v1716, %v1715
  %v1937 = vpack.c.b16 %v1718, %v1717
  %v1938 = vpack.c.b16 %v1720, %v1719
  %v1939 = vpack.c.b16 %v1722, %v1721
  %v1940 = vpack.c.b16 %v1724, %v1723
  %v1941 = vpack.c.b16 %v1726, %v1725
  %v1942 = vpack.c.b16 %v1728, %v1727
  %v1943 = vpack.c.b16 %v1730, %v1729
  %v1944 = vpack.c.b16 %v1732, %v1731
  %v1945 = vpack.c.b16 %v1734, %v1733
  %v1946 = vpack.c.b16 %v1736, %v1735
  %v1947 = vpack.c.b16 %v1738, %v1737
  %v1948 = vpack.c.b16 %v1740, %v1739
  %v1949 = vpack.c.b16 %v1742, %v1741
  %v1950 = vpack.c.b16 %v1744, %v1743
  %v1951 = vpack.c.b16 %v1746, %v1745
  %v1952 = vpack.c.b16 %v1748, %v1747
  %v1953 = vpack.c.b16 %v1750, %v1749
  %v1954 = vpack.c.b16 %v1752, %v1751
  %v1955 = vpack.c.b16 %v1754, %v1753
  %v1956 = vpack.c.b16 %v1756, %v1755
  %v1957 = vpack.c.b16 %v1758, %v1757
  %v1958 = vpack.c.b16 %v1760, %v1759
  %v1959 = vpack.c.b16 %v1762, %v1761
  %v1960 = vpack.c.b16 %v1764, %v1763
  %v1961 = vpack.c.b16 %v1766, %v1765
  %v1962 = vpack.c.b16 %v1768, %v1767
  %v1963 = vpack.c.b16 %v1770, %v1769
  %v1964 = vpack.c.b16 %v1772, %v1771
  %v1965 = vpack.c.b16 %v1774, %v1773
  %v1966 = vpack.c.b16 %v1776, %v1775
  %v1967 = vpack.c.b16 %v1778, %v1777
  %v1968 = vpack.c.b16 %v1780, %v1779
  %v1969 = vpack.c.b16 %v1782, %v1781
  %v1970 = vpack.c.b16 %v1784, %v1783
  %v1971 = vpack.c.b16 %v1786, %v1785
  %v1972 = vpack.c.b16 %v1788, %v1787
  %v1973 = vpack.c.b16 %v1790, %v1789
  %v1974 = vpack.c.b16 %v1792, %v1791
  %v1975 = vpack.c.b16 %v1794, %v1793
  %v1976 = vpack.c.b16 %v1796, %v1795
  %v1977 = vpack.c.b16 %v1798, %v1797
  %v1978 = vpack.c.b16 %v1800, %v1799
  %v1979 = vpack.c.b16 %v1802, %v1801
  %v1980 = vpack.c.b16 %v1804, %v1803
  %v1981 = vpack.c.b16 %v1806, %v1805
  %v1982 = vpack.c.b16 %v1808, %v1807
  %v1983 = vpack.c.b16 %v1810, %v1809
  %v1984 = vpack.c.b16 %v1812, %v1811
  %v1985 = vpack.c.b16 %v1814, %v1813
  %v1986 = vpack.c.b16 %v1816, %v1815
  %v1987 = vpack.c.b16 %v1818, %v1817
  %v1988 = vpack.c.b16 %v1820, %v1819
  %v1989 = vpack.c.b16 %v1822, %v1821
  %v1990 = vpack.c.b16 %v1824, %v1823
  %v1991 = vpack.c.b16 %v1826, %v1825
  %v1992 = vpack.c.b16 %v1828, %v1827
  %v1993 = vpack.c.b16 %v1830, %v1829
  %v1994 = vpack.c.b16 %v1832, %v1831
  %v1995 = vpack.c.b16 %v1834, %v1833
  %v1996 = vpack.c.b16 %v1836, %v1835
  %v1997 = vpack.c.b16 %v1838, %v1837
  %v1998 = vpack.c.b16 %v1840, %v1839
  %v1999 = vpack.c.b16 %v1842, %v1841
  %v2000 = vpack.c.b16 %v1844, %v1843
  %v2001 = vpack.c.b16 %v1846, %v1845
  %v2002 = vpack.c.b16 %v1848, %v1847
  %v2003 = vpack.c.b16 %v1850, %v1849
  %v2004 = vpack.c.b16 %v1852, %v1851
  %v2005 = vpack.c.b16 %v1854, %v1853
  %v2006 = vpack.c.b16 %v1856, %v1855
  %v2007 = vpack.c.b16 %v1858, %v1857
  %v2008 = vpack.c.b16 %v1860, %v1859
  %v2009 = vpack.c.b16 %v1862, %v1861
  %v2010 = vpack.c.b16 %v1864, %v1863
  %v2011 = vpack.c.b16 %v1866, %v1865
  %v2012 = vpack.c.b16 %v1868, %v1867
  %v2013 = vpack.c.b16 %v1870, %v1869
  %v2014 = vpack.c.b16 %v1872, %v1871
  %v2015 = vpack.c.b16 %v1874, %v1873
  %v2016 = vpack.c.b16 %v1876, %v1875
  %v2017 = vpack.c.b16 %v1878, %v1877
  %v2018 = vpack.c.b16 %v1880, %v1879
  %v2019 = vpack.c.b16 %v1882, %v1881
  %v2020 = vpack.c.b16 %v1884, %v1883
  %v2021 = vpack.c.b16 %v1886, %v1885
  %v2022 = vpack.c.b16 %v1888, %v1887
  %v2023 = vpack.c.b16 %v1890, %v1889
  %v2024 = vpack.c.b16 %v1892, %v1891
  %v2025 = vpack.c.b16 %v1894, %v1893
  %v2026 = vpack.c.b16 %v1896, %v1895
  %v2027 = vpack.c.b16 %v1898, %v1897
  %v2028 = vpack.c.b16 %v1900, %v1899
  %2157 = vrot.lane.b32.xlu0 %v43, 108
  %v2158 = vpop.permute.xlu0 %2157
  %2160 = vmatprep.subr.bf16.mxu0 0
  %2161 = vmatpush1.bf16.msra.mxu0 %v1908
  %2162 = vmatprep.subr.bf16.mxu0 0
  %2163 = vmatpush1.bf16.msra.mxu0 %v1907
  %2164 = vmatprep.subr.bf16.mxu0 0
  %2165 = vmatpush1.bf16.msra.mxu0 %v1906
  %2166 = vmatprep.subr.bf16.mxu0 0
  %2167 = vmatpush1.bf16.msra.mxu0 %v1905
  %2168 = vmatprep.subr.bf16.mxu0 0
  %2169 = vmatpush1.bf16.msra.mxu0 %v1904
  %2170 = vmatprep.subr.bf16.mxu0 0
  %2171 = vmatpush1.bf16.msra.mxu0 %v1903
  %2172 = vmatprep.subr.bf16.mxu0 0
  %2173 = vmatpush1.bf16.msra.mxu0 %v1902
  %2174 = vmatprep.subr.bf16.mxu0 0
  %2175 = vmatpush1.bf16.msra.mxu0 %v1901
  %2176 = vmatprep.subr.bf16.mxu0 0
  %2177 = vmatpush2.bf16.msra.mxu0 %v1916
  %2178 = vmatprep.subr.bf16.mxu0 0
  %2179 = vmatpush2.bf16.msra.mxu0 %v1915
  %2180 = vmatprep.subr.bf16.mxu0 0
  %2181 = vmatpush2.bf16.msra.mxu0 %v1914
  %2182 = vmatprep.subr.bf16.mxu0 0
  %2183 = vmatpush2.bf16.msra.mxu0 %v1913
  %2184 = vmatprep.subr.bf16.mxu0 0
  %2185 = vmatpush2.bf16.msra.mxu0 %v1912
  %2186 = vmatprep.subr.bf16.mxu0 0
  %2187 = vmatpush2.bf16.msra.mxu0 %v1911
  %2188 = vmatprep.subr.bf16.mxu0 0
  %2189 = vmatpush2.bf16.msra.mxu0 %v1910
  %2190 = vmatprep.subr.bf16.mxu0 0
  %2191 = vmatpush2.bf16.msra.mxu0 %v1909
  %2192 = vmatprep.mubr.bf16.mxu0 %v1118
  %2193 = vmatmul.mubr.bf16.gmra.mxu0 %v1117
  %v2194 = vpop.f32.mrf.mxu0
  %v2195 = vadd.f32 %v2158, %v2194
  %v2196 = vpop.f32.mrf.mxu0
  %v2197 = vpop.f32.mrf.mxu0
  %v2198 = vadd.f32 %v2158, %v2197
  %v2199 = vpop.f32.mrf.mxu0
  %2200 = vdwg.mxu0
  %2201 = vmatprep.subr.bf16.mxu0 0
  %2202 = vmatpush1.bf16.msra.mxu0 %v1924
  %2203 = vmatprep.subr.bf16.mxu0 0
  %2204 = vmatpush1.bf16.msra.mxu0 %v1923
  %2205 = vmatprep.subr.bf16.mxu0 0
  %2206 = vmatpush1.bf16.msra.mxu0 %v1922
  %2207 = vmatprep.subr.bf16.mxu0 0
  %2208 = vmatpush1.bf16.msra.mxu0 %v1921
  %2209 = vmatprep.subr.bf16.mxu0 0
  %2210 = vmatpush1.bf16.msra.mxu0 %v1920
  %2211 = vmatprep.subr.bf16.mxu0 0
  %2212 = vmatpush1.bf16.msra.mxu0 %v1919
  %2213 = vmatprep.subr.bf16.mxu0 0
  %2214 = vmatpush1.bf16.msra.mxu0 %v1918
  %2215 = vmatprep.subr.bf16.mxu0 0
  %2216 = vmatpush1.bf16.msra.mxu0 %v1917
  %2217 = vmatprep.subr.bf16.mxu0 0
  %2218 = vmatpush2.bf16.msra.mxu0 %v1932
  %2219 = vmatprep.subr.bf16.mxu0 0
  %2220 = vmatpush2.bf16.msra.mxu0 %v1931
  %2221 = vmatprep.subr.bf16.mxu0 0
  %2222 = vmatpush2.bf16.msra.mxu0 %v1930
  %2223 = vmatprep.subr.bf16.mxu0 0
  %2224 = vmatpush2.bf16.msra.mxu0 %v1929
  %2225 = vmatprep.subr.bf16.mxu0 0
  %2226 = vmatpush2.bf16.msra.mxu0 %v1928
  %2227 = vmatprep.subr.bf16.mxu0 0
  %2228 = vmatpush2.bf16.msra.mxu0 %v1927
  %2229 = vmatprep.subr.bf16.mxu0 0
  %2230 = vmatpush2.bf16.msra.mxu0 %v1926
  %2231 = vmatprep.subr.bf16.mxu0 0
  %2232 = vmatpush2.bf16.msra.mxu0 %v1925
  %2233 = vmatprep.mubr.bf16.mxu0 %v1120
  %2234 = vmatmul.mubr.bf16.gmra.mxu0 %v1119
  %v2235 = vpop.f32.mrf.mxu0
  %v2236 = vadd.f32 %v2195, %v2235
  %v2237 = vpop.f32.mrf.mxu0
  %v2238 = vpop.f32.mrf.mxu0
  %v2239 = vadd.f32 %v2198, %v2238
  %v2240 = vpop.f32.mrf.mxu0
  %2241 = vdwg.mxu0
  %2242 = vmatprep.subr.bf16.mxu0 0
  %2243 = vmatpush1.bf16.msra.mxu0 %v1940
  %2244 = vmatprep.subr.bf16.mxu0 0
  %2245 = vmatpush1.bf16.msra.mxu0 %v1939
  %2246 = vmatprep.subr.bf16.mxu0 0
  %2247 = vmatpush1.bf16.msra.mxu0 %v1938
  %2248 = vmatprep.subr.bf16.mxu0 0
  %2249 = vmatpush1.bf16.msra.mxu0 %v1937
  %2250 = vmatprep.subr.bf16.mxu0 0
  %2251 = vmatpush1.bf16.msra.mxu0 %v1936
  %2252 = vmatprep.subr.bf16.mxu0 0
  %2253 = vmatpush1.bf16.msra.mxu0 %v1935
  %2254 = vmatprep.subr.bf16.mxu0 0
  %2255 = vmatpush1.bf16.msra.mxu0 %v1934
  %2256 = vmatprep.subr.bf16.mxu0 0
  %2257 = vmatpush1.bf16.msra.mxu0 %v1933
  %2258 = vmatprep.subr.bf16.mxu0 0
  %2259 = vmatpush2.bf16.msra.mxu0 %v1948
  %2260 = vmatprep.subr.bf16.mxu0 0
  %2261 = vmatpush2.bf16.msra.mxu0 %v1947
  %2262 = vmatprep.subr.bf16.mxu0 0
  %2263 = vmatpush2.bf16.msra.mxu0 %v1946
  %2264 = vmatprep.subr.bf16.mxu0 0
  %2265 = vmatpush2.bf16.msra.mxu0 %v1945
  %2266 = vmatprep.subr.bf16.mxu0 0
  %2267 = vmatpush2.bf16.msra.mxu0 %v1944
  %2268 = vmatprep.subr.bf16.mxu0 0
  %2269 = vmatpush2.bf16.msra.mxu0 %v1943
  %2270 = vmatprep.subr.bf16.mxu0 0
  %2271 = vmatpush2.bf16.msra.mxu0 %v1942
  %2272 = vmatprep.subr.bf16.mxu0 0
  %2273 = vmatpush2.bf16.msra.mxu0 %v1941
  %2274 = vmatprep.mubr.bf16.mxu0 %v1122
  %2275 = vmatmul.mubr.bf16.gmra.mxu0 %v1121
  %v2276 = vpop.f32.mrf.mxu0
  %v2277 = vadd.f32 %v2236, %v2276
  %v2278 = vpop.f32.mrf.mxu0
  %v2279 = vpop.f32.mrf.mxu0
  %v2280 = vadd.f32 %v2239, %v2279
  %v2281 = vpop.f32.mrf.mxu0
  %2282 = vdwg.mxu0
  %2283 = vmatprep.subr.bf16.mxu0 0
  %2284 = vmatpush1.bf16.msra.mxu0 %v1956
  %2285 = vmatprep.subr.bf16.mxu0 0
  %2286 = vmatpush1.bf16.msra.mxu0 %v1955
  %2287 = vmatprep.subr.bf16.mxu0 0
  %2288 = vmatpush1.bf16.msra.mxu0 %v1954
  %2289 = vmatprep.subr.bf16.mxu0 0
  %2290 = vmatpush1.bf16.msra.mxu0 %v1953
  %2291 = vmatprep.subr.bf16.mxu0 0
  %2292 = vmatpush1.bf16.msra.mxu0 %v1952
  %2293 = vmatprep.subr.bf16.mxu0 0
  %2294 = vmatpush1.bf16.msra.mxu0 %v1951
  %2295 = vmatprep.subr.bf16.mxu0 0
  %2296 = vmatpush1.bf16.msra.mxu0 %v1950
  %2297 = vmatprep.subr.bf16.mxu0 0
  %2298 = vmatpush1.bf16.msra.mxu0 %v1949
  %2299 = vmatprep.subr.bf16.mxu0 0
  %2300 = vmatpush2.bf16.msra.mxu0 %v1964
  %2301 = vmatprep.subr.bf16.mxu0 0
  %2302 = vmatpush2.bf16.msra.mxu0 %v1963
  %2303 = vmatprep.subr.bf16.mxu0 0
  %2304 = vmatpush2.bf16.msra.mxu0 %v1962
  %2305 = vmatprep.subr.bf16.mxu0 0
  %2306 = vmatpush2.bf16.msra.mxu0 %v1961
  %2307 = vmatprep.subr.bf16.mxu0 0
  %2308 = vmatpush2.bf16.msra.mxu0 %v1960
  %2309 = vmatprep.subr.bf16.mxu0 0
  %2310 = vmatpush2.bf16.msra.mxu0 %v1959
  %2311 = vmatprep.subr.bf16.mxu0 0
  %2312 = vmatpush2.bf16.msra.mxu0 %v1958
  %2313 = vmatprep.subr.bf16.mxu0 0
  %2314 = vmatpush2.bf16.msra.mxu0 %v1957
  %2315 = vmatprep.mubr.bf16.mxu0 %v1124
  %2316 = vmatmul.mubr.bf16.gmra.mxu0 %v1123
  %v2317 = vpop.f32.mrf.mxu0
  %v2318 = vadd.f32 %v2277, %v2317
  %v2319 = vpop.f32.mrf.mxu0
  %v2320 = vpop.f32.mrf.mxu0
  %v2321 = vadd.f32 %v2280, %v2320
  %v2322 = vpop.f32.mrf.mxu0
  %2323 = vdwg.mxu0
  %2324 = vmatprep.subr.bf16.mxu0 0
  %2325 = vmatpush1.bf16.msra.mxu0 %v1972
  %2326 = vmatprep.subr.bf16.mxu0 0
  %2327 = vmatpush1.bf16.msra.mxu0 %v1971
  %2328 = vmatprep.subr.bf16.mxu0 0
  %2329 = vmatpush1.bf16.msra.mxu0 %v1970
  %2330 = vmatprep.subr.bf16.mxu0 0
  %2331 = vmatpush1.bf16.msra.mxu0 %v1969
  %2332 = vmatprep.subr.bf16.mxu0 0
  %2333 = vmatpush1.bf16.msra.mxu0 %v1968
  %2334 = vmatprep.subr.bf16.mxu0 0
  %2335 = vmatpush1.bf16.msra.mxu0 %v1967
  %2336 = vmatprep.subr.bf16.mxu0 0
  %2337 = vmatpush1.bf16.msra.mxu0 %v1966
  %2338 = vmatprep.subr.bf16.mxu0 0
  %2339 = vmatpush1.bf16.msra.mxu0 %v1965
  %2340 = vmatprep.subr.bf16.mxu0 0
  %2341 = vmatpush2.bf16.msra.mxu0 %v1980
  %2342 = vmatprep.subr.bf16.mxu0 0
  %2343 = vmatpush2.bf16.msra.mxu0 %v1979
  %2344 = vmatprep.subr.bf16.mxu0 0
  %2345 = vmatpush2.bf16.msra.mxu0 %v1978
  %2346 = vmatprep.subr.bf16.mxu0 0
  %2347 = vmatpush2.bf16.msra.mxu0 %v1977
  %2348 = vmatprep.subr.bf16.mxu0 0
  %2349 = vmatpush2.bf16.msra.mxu0 %v1976
  %2350 = vmatprep.subr.bf16.mxu0 0
  %2351 = vmatpush2.bf16.msra.mxu0 %v1975
  %2352 = vmatprep.subr.bf16.mxu0 0
  %2353 = vmatpush2.bf16.msra.mxu0 %v1974
  %2354 = vmatprep.subr.bf16.mxu0 0
  %2355 = vmatpush2.bf16.msra.mxu0 %v1973
  %2356 = vmatprep.mubr.bf16.mxu0 %v1126
  %2357 = vmatmul.mubr.bf16.gmra.mxu0 %v1125
  %v2358 = vpop.f32.mrf.mxu0
  %v2359 = vadd.f32 %v2318, %v2358
  %v2360 = vpop.f32.mrf.mxu0
  %v2361 = vpop.f32.mrf.mxu0
  %v2362 = vadd.f32 %v2321, %v2361
  %v2363 = vpop.f32.mrf.mxu0
  %2364 = vdwg.mxu0
  %2365 = vmatprep.subr.bf16.mxu0 0
  %2366 = vmatpush1.bf16.msra.mxu0 %v1988
  %2367 = vmatprep.subr.bf16.mxu0 0
  %2368 = vmatpush1.bf16.msra.mxu0 %v1987
  %2369 = vmatprep.subr.bf16.mxu0 0
  %2370 = vmatpush1.bf16.msra.mxu0 %v1986
  %2371 = vmatprep.subr.bf16.mxu0 0
  %2372 = vmatpush1.bf16.msra.mxu0 %v1985
  %2373 = vmatprep.subr.bf16.mxu0 0
  %2374 = vmatpush1.bf16.msra.mxu0 %v1984
  %2375 = vmatprep.subr.bf16.mxu0 0
  %2376 = vmatpush1.bf16.msra.mxu0 %v1983
  %2377 = vmatprep.subr.bf16.mxu0 0
  %2378 = vmatpush1.bf16.msra.mxu0 %v1982
  %2379 = vmatprep.subr.bf16.mxu0 0
  %2380 = vmatpush1.bf16.msra.mxu0 %v1981
  %2381 = vmatprep.subr.bf16.mxu0 0
  %2382 = vmatpush2.bf16.msra.mxu0 %v1996
  %2383 = vmatprep.subr.bf16.mxu0 0
  %2384 = vmatpush2.bf16.msra.mxu0 %v1995
  %2385 = vmatprep.subr.bf16.mxu0 0
  %2386 = vmatpush2.bf16.msra.mxu0 %v1994
  %2387 = vmatprep.subr.bf16.mxu0 0
  %2388 = vmatpush2.bf16.msra.mxu0 %v1993
  %2389 = vmatprep.subr.bf16.mxu0 0
  %2390 = vmatpush2.bf16.msra.mxu0 %v1992
  %2391 = vmatprep.subr.bf16.mxu0 0
  %2392 = vmatpush2.bf16.msra.mxu0 %v1991
  %2393 = vmatprep.subr.bf16.mxu0 0
  %2394 = vmatpush2.bf16.msra.mxu0 %v1990
  %2395 = vmatprep.subr.bf16.mxu0 0
  %2396 = vmatpush2.bf16.msra.mxu0 %v1989
  %2397 = vmatprep.mubr.bf16.mxu0 %v1128
  %2398 = vmatmul.mubr.bf16.gmra.mxu0 %v1127
  %v2399 = vpop.f32.mrf.mxu0
  %v2400 = vadd.f32 %v2359, %v2399
  %v2401 = vpop.f32.mrf.mxu0
  %v2402 = vpop.f32.mrf.mxu0
  %v2403 = vadd.f32 %v2362, %v2402
  %v2404 = vpop.f32.mrf.mxu0
  %2405 = vdwg.mxu0
  %2406 = vmatprep.subr.bf16.mxu0 0
  %2407 = vmatpush1.bf16.msra.mxu0 %v2004
  %2408 = vmatprep.subr.bf16.mxu0 0
  %2409 = vmatpush1.bf16.msra.mxu0 %v2003
  %2410 = vmatprep.subr.bf16.mxu0 0
  %2411 = vmatpush1.bf16.msra.mxu0 %v2002
  %2412 = vmatprep.subr.bf16.mxu0 0
  %2413 = vmatpush1.bf16.msra.mxu0 %v2001
  %2414 = vmatprep.subr.bf16.mxu0 0
  %2415 = vmatpush1.bf16.msra.mxu0 %v2000
  %2416 = vmatprep.subr.bf16.mxu0 0
  %2417 = vmatpush1.bf16.msra.mxu0 %v1999
  %2418 = vmatprep.subr.bf16.mxu0 0
  %2419 = vmatpush1.bf16.msra.mxu0 %v1998
  %2420 = vmatprep.subr.bf16.mxu0 0
  %2421 = vmatpush1.bf16.msra.mxu0 %v1997
  %2422 = vmatprep.subr.bf16.mxu0 0
  %2423 = vmatpush2.bf16.msra.mxu0 %v2012
  %2424 = vmatprep.subr.bf16.mxu0 0
  %2425 = vmatpush2.bf16.msra.mxu0 %v2011
  %2426 = vmatprep.subr.bf16.mxu0 0
  %2427 = vmatpush2.bf16.msra.mxu0 %v2010
  %2428 = vmatprep.subr.bf16.mxu0 0
  %2429 = vmatpush2.bf16.msra.mxu0 %v2009
  %2430 = vmatprep.subr.bf16.mxu0 0
  %2431 = vmatpush2.bf16.msra.mxu0 %v2008
  %2432 = vmatprep.subr.bf16.mxu0 0
  %2433 = vmatpush2.bf16.msra.mxu0 %v2007
  %2434 = vmatprep.subr.bf16.mxu0 0
  %2435 = vmatpush2.bf16.msra.mxu0 %v2006
  %2436 = vmatprep.subr.bf16.mxu0 0
  %2437 = vmatpush2.bf16.msra.mxu0 %v2005
  %2438 = vmatprep.mubr.bf16.mxu0 %v1130
  %2439 = vmatmul.mubr.bf16.gmra.mxu0 %v1129
  %v2440 = vpop.f32.mrf.mxu0
  %v2441 = vadd.f32 %v2400, %v2440
  %v2442 = vpop.f32.mrf.mxu0
  %v2443 = vpop.f32.mrf.mxu0
  %v2444 = vadd.f32 %v2403, %v2443
  %v2445 = vpop.f32.mrf.mxu0
  %2446 = vdwg.mxu0
  %2447 = vmatprep.subr.bf16.mxu0 0
  %2448 = vmatpush1.bf16.msra.mxu0 %v2020
  %2449 = vmatprep.subr.bf16.mxu0 0
  %2450 = vmatpush1.bf16.msra.mxu0 %v2019
  %2451 = vmatprep.subr.bf16.mxu0 0
  %2452 = vmatpush1.bf16.msra.mxu0 %v2018
  %2453 = vmatprep.subr.bf16.mxu0 0
  %2454 = vmatpush1.bf16.msra.mxu0 %v2017
  %2455 = vmatprep.subr.bf16.mxu0 0
  %2456 = vmatpush1.bf16.msra.mxu0 %v2016
  %2457 = vmatprep.subr.bf16.mxu0 0
  %2458 = vmatpush1.bf16.msra.mxu0 %v2015
  %2459 = vmatprep.subr.bf16.mxu0 0
  %2460 = vmatpush1.bf16.msra.mxu0 %v2014
  %2461 = vmatprep.subr.bf16.mxu0 0
  %2462 = vmatpush1.bf16.msra.mxu0 %v2013
  %2463 = vmatprep.subr.bf16.mxu0 0
  %2464 = vmatpush2.bf16.msra.mxu0 %v2028
  %2465 = vmatprep.subr.bf16.mxu0 0
  %2466 = vmatpush2.bf16.msra.mxu0 %v2027
  %2467 = vmatprep.subr.bf16.mxu0 0
  %2468 = vmatpush2.bf16.msra.mxu0 %v2026
  %2469 = vmatprep.subr.bf16.mxu0 0
  %2470 = vmatpush2.bf16.msra.mxu0 %v2025
  %2471 = vmatprep.subr.bf16.mxu0 0
  %2472 = vmatpush2.bf16.msra.mxu0 %v2024
  %2473 = vmatprep.subr.bf16.mxu0 0
  %2474 = vmatpush2.bf16.msra.mxu0 %v2023
  %2475 = vmatprep.subr.bf16.mxu0 0
  %2476 = vmatpush2.bf16.msra.mxu0 %v2022
  %2477 = vmatprep.subr.bf16.mxu0 0
  %2478 = vmatpush2.bf16.msra.mxu0 %v2021
  %2479 = vmatprep.mubr.bf16.mxu0 %v1132
  %2480 = vmatmul.mubr.bf16.gmra.mxu0 %v1131
  %v2481 = vpop.f32.mrf.mxu0
  %v2482 = vadd.f32 %v2441, %v2481
  %v2483 = vpop.f32.mrf.mxu0
  %v2484 = vpop.f32.mrf.mxu0
  %v2485 = vadd.f32 %v2444, %v2484
  %v2486 = vpop.f32.mrf.mxu0
  %2487 = vdwg.mxu0
  %v2488 = vadd.f32 %v555, %v2482
  %v2489 = vadd.f32 %v556, %v2485
  %v2490 = vsel %vm44, %v2488, 0.0
  %2491 = vadd.xlane.f32.xlu0 %v2490
  %v2492 = vpop.xlane.xlu0 %2491
  %v2493 = vsel %vm44, %v2489, 0.0
  %2494 = vadd.xlane.f32.xlu0 %v2493
  %v2495 = vpop.xlane.xlu0 %2494
  %v2496 = vmul.f32 %v2492, %v526
  %v2497 = vmul.f32 %v2495, %v526
  %v2498 = vsub.f32 %v2488, %v2496
  %v2499 = vsub.f32 %v2489, %v2497
  %v2500 = vmul.f32 %v2498, %v2498
  %v2501 = vmul.f32 %v2499, %v2499
  %v2502 = vsel %vm44, %v2500, 0.0
  %2503 = vadd.xlane.f32.xlu0 %v2502
  %v2504 = vpop.xlane.xlu0 %2503
  %v2505 = vsel %vm44, %v2501, 0.0
  %2506 = vadd.xlane.f32.xlu0 %v2505
  %v2507 = vpop.xlane.xlu0 %2506
  %v2508 = vmul.f32 %v2504, %v526
  %v2509 = vmul.f32 %v2507, %v526
  %v2510 = vadd.f32 %v2508, 1e-05
  %v2511 = vadd.f32 %v2509, 1e-05
  %v2512 = vrsqrt.pop %v2510
  %v2513 = vrsqrt.pop %v2511
  %v2514 = vmul.f32 %v2498, %v2512
  %v2515 = vmul.f32 %v2499, %v2513
  %2516 = vrot.lane.b32.xlu0 %v43, 103
  %v2517 = vpop.permute.xlu0 %2516
  %v2519 = vmul.f32 %v2514, %v2517
  %v2520 = vmul.f32 %v2515, %v2517
  %2521 = vrot.lane.b32.xlu0 %v43, 98
  %v2522 = vpop.permute.xlu0 %2521
  %v2524 = vadd.f32 %v2519, %v2522
  %v2525 = vadd.f32 %v2520, %v2522
  %s2526 = scalar_lea.vmem %s1, 40
  %v2527 = vld [vmem:[%s2526] sm:$0xff]
  %v2528 = vld [vmem:[%s2526 + $0x8] sm:$0xff]
  %v2529 = vld [vmem:[%s2526 + $0x10] sm:$0xff]
  %v2530 = vld [vmem:[%s2526 + $0x18] sm:$0xff]
  %v2531 = vld [vmem:[%s2526 + $0x20] sm:$0x3]
  %v2532 = vlaneseq
  %v2533 = vshrl.u32 %v2532, 7
  %v2534 = vsub.s32 0, %v2533
  %v2535 = vrot.slane %v2531, %v2534
  %v2537 = vsel %vm44, %v2524, 0
  %v2540 = vsel %vm44, %v2525, 0
  %v2543 = vsel %vm51, %v2527, 0
  %2545 = vmatprep.subr.mxu0 0.0
  %2546 = vmatpush1.msra.mxu0 0.0
  %2547 = vmatprep.subr.mxu0 0.0
  %2548 = vmatpush1.msra.mxu0 0.0
  %2549 = vmatprep.subr.mxu0 0.0
  %2550 = vmatpush1.msra.mxu0 0.0
  %2551 = vmatprep.subr.mxu0 0.0
  %2552 = vmatpush1.msra.mxu0 0.0
  %2553 = vmatprep.subr.mxu0 0.0
  %2554 = vmatpush1.msra.mxu0 0.0
  %2555 = vmatprep.subr.mxu0 0.0
  %2556 = vmatpush1.msra.mxu0 0.0
  %2557 = vmatprep.subr.mxu0 0.0
  %2558 = vmatpush1.msra.mxu0 0.0
  %2559 = vmatprep.subr.mxu0 0.0
  %2560 = vmatpush1.msra.mxu0 0.0
  %2561 = vmatprep.subr.mxu0 0.0
  %2562 = vmatpush1.msra.mxu0 0.0
  %2563 = vmatprep.subr.mxu0 0.0
  %2564 = vmatpush1.msra.mxu0 0.0
  %2565 = vmatprep.subr.mxu0 0.0
  %2566 = vmatpush1.msra.mxu0 0.0
  %2567 = vmatprep.subr.mxu0 0.0
  %2568 = vmatpush1.msra.mxu0 0.0
  %2569 = vmatprep.subr.mxu0 0.0
  %2570 = vmatpush1.msra.mxu0 0.0
  %2571 = vmatprep.subr.mxu0 0.0
  %2572 = vmatpush1.msra.mxu0 0.0
  %2573 = vmatprep.subr.mxu0 0.0
  %2574 = vmatpush1.msra.mxu0 0.0
  %2575 = vmatprep.subr.mxu0 0.0
  %2576 = vmatpush1.msra.mxu0 %v2543
  %2577 = vmatprep.subr.mxu0 0.0
  %2578 = vmatpush2.msra.mxu0 0.0
  %2579 = vmatprep.subr.mxu0 0.0
  %2580 = vmatpush2.msra.mxu0 0.0
  %2581 = vmatprep.subr.mxu0 0.0
  %2582 = vmatpush2.msra.mxu0 0.0
  %2583 = vmatprep.subr.mxu0 0.0
  %2584 = vmatpush2.msra.mxu0 0.0
  %2585 = vmatprep.subr.mxu0 0.0
  %2586 = vmatpush2.msra.mxu0 0.0
  %2587 = vmatprep.subr.mxu0 0.0
  %2588 = vmatpush2.msra.mxu0 0.0
  %2589 = vmatprep.subr.mxu0 0.0
  %2590 = vmatpush2.msra.mxu0 0.0
  %2591 = vmatprep.subr.mxu0 0.0
  %2592 = vmatpush2.msra.mxu0 0.0
  %2593 = vmatprep.subr.mxu0 0.0
  %2594 = vmatpush2.msra.mxu0 0.0
  %2595 = vmatprep.subr.mxu0 0.0
  %2596 = vmatpush2.msra.mxu0 0.0
  %2597 = vmatprep.subr.mxu0 0.0
  %2598 = vmatpush2.msra.mxu0 0.0
  %2599 = vmatprep.subr.mxu0 0.0
  %2600 = vmatpush2.msra.mxu0 0.0
  %2601 = vmatprep.subr.mxu0 0.0
  %2602 = vmatpush2.msra.mxu0 0.0
  %2603 = vmatprep.subr.mxu0 0.0
  %2604 = vmatpush2.msra.mxu0 0.0
  %2605 = vmatprep.subr.mxu0 0.0
  %2606 = vmatpush2.msra.mxu0 0.0
  %2607 = vmatprep.subr.mxu0 0.0
  %2608 = vmatpush2.msra.mxu0 0.0
  %2609 = vmatprep.mubr.f32.mxu0 0.0
  %2610 = vmatmul.mubr.f32.gmra.mxu0 %v2537
  %v2611 = vpop.f32.mrf.mxu0
  %v2612 = vadd.f32 %v2535, %v2611
  %v2613 = vpop.f32.mrf.mxu0
  %2614 = vmatprep.mubr.f32.mxu0 0.0
  %2615 = vmatmul.mubr.f32.gmra.mxu0 %v2540
  %v2616 = vpop.f32.mrf.mxu0
  %v2617 = vadd.f32 %v2535, %v2616
  %v2618 = vpop.f32.mrf.mxu0
  %2619 = vdwg.mxu0
  %2621 = vset.pattern.permute.xlu0 5
  %2622 = vperm.xlu0 %2621, %v2528
  %v2623 = vpop.permute.xlu0 %2622
  %2626 = vset.pattern.permute.xlu0 5
  %2627 = vperm.xlu0 %2626, %v2529
  %v2628 = vpop.permute.xlu0 %2627
  %v2630 = vsel %vm44, %v2528, 0
  %v2632 = vsel %vm44, %v2529, 0
  %2634 = vmatprep.subr.mxu0 0.0
  %2635 = vmatpush1.xpose.msra.mxu0 0.0
  %2636 = vmatprep.subr.mxu0 0.0
  %2637 = vmatpush1.xpose.msra.mxu0 0.0
  %2638 = vmatprep.subr.mxu0 0.0
  %2639 = vmatpush1.xpose.msra.mxu0 0.0
  %2640 = vmatprep.subr.mxu0 0.0
  %2641 = vmatpush1.xpose.msra.mxu0 0.0
  %2642 = vmatprep.subr.mxu0 0.0
  %2643 = vmatpush1.xpose.msra.mxu0 0.0
  %2644 = vmatprep.subr.mxu0 0.0
  %2645 = vmatpush1.xpose.msra.mxu0 0.0
  %2646 = vmatprep.subr.mxu0 0.0
  %2647 = vmatpush1.xpose.msra.mxu0 0.0
  %2648 = vmatprep.subr.mxu0 0.0
  %2649 = vmatpush1.xpose.msra.mxu0 0.0
  %2650 = vmatprep.subr.mxu0 0.0
  %2651 = vmatpush1.xpose.msra.mxu0 0.0
  %2652 = vmatprep.subr.mxu0 0.0
  %2653 = vmatpush1.xpose.msra.mxu0 0.0
  %2654 = vmatprep.subr.mxu0 0.0
  %2655 = vmatpush1.xpose.msra.mxu0 0.0
  %2656 = vmatprep.subr.mxu0 0.0
  %2657 = vmatpush1.xpose.msra.mxu0 0.0
  %2658 = vmatprep.subr.mxu0 0.0
  %2659 = vmatpush1.xpose.msra.mxu0 0.0
  %2660 = vmatprep.subr.mxu0 0.0
  %2661 = vmatpush1.xpose.msra.mxu0 0.0
  %2662 = vmatprep.subr.mxu0 0.0
  %2663 = vmatpush1.xpose.msra.mxu0 %v2540
  %2664 = vmatprep.subr.mxu0 0.0
  %2665 = vmatpush1.xpose.msra.mxu0 %v2537
  %2666 = vmatprep.subr.mxu0 0.0
  %2667 = vmatpush2.xpose.msra.mxu0 0.0
  %2668 = vmatprep.subr.mxu0 0.0
  %2669 = vmatpush2.xpose.msra.mxu0 0.0
  %2670 = vmatprep.subr.mxu0 0.0
  %2671 = vmatpush2.xpose.msra.mxu0 0.0
  %2672 = vmatprep.subr.mxu0 0.0
  %2673 = vmatpush2.xpose.msra.mxu0 0.0
  %2674 = vmatprep.subr.mxu0 0.0
  %2675 = vmatpush2.xpose.msra.mxu0 0.0
  %2676 = vmatprep.subr.mxu0 0.0
  %2677 = vmatpush2.xpose.msra.mxu0 0.0
  %2678 = vmatprep.subr.mxu0 0.0
  %2679 = vmatpush2.xpose.msra.mxu0 0.0
  %2680 = vmatprep.subr.mxu0 0.0
  %2681 = vmatpush2.xpose.msra.mxu0 0.0
  %2682 = vmatprep.subr.mxu0 0.0
  %2683 = vmatpush2.xpose.msra.mxu0 0.0
  %2684 = vmatprep.subr.mxu0 0.0
  %2685 = vmatpush2.xpose.msra.mxu0 0.0
  %2686 = vmatprep.subr.mxu0 0.0
  %2687 = vmatpush2.xpose.msra.mxu0 0.0
  %2688 = vmatprep.subr.mxu0 0.0
  %2689 = vmatpush2.xpose.msra.mxu0 0.0
  %2690 = vmatprep.subr.mxu0 0.0
  %2691 = vmatpush2.xpose.msra.mxu0 0.0
  %2692 = vmatprep.subr.mxu0 0.0
  %2693 = vmatpush2.xpose.msra.mxu0 0.0
  %2694 = vmatprep.subr.mxu0 0.0
  %2695 = vmatpush2.xpose.msra.mxu0 0.0
  %2696 = vmatprep.subr.mxu0 0.0
  %2697 = vmatpush2.xpose.msra.mxu0 0.0
  %2698 = vmatprep.mubr.f32.mxu0 0.0
  %2699 = vmatmul.mubr.f32.gmra.mxu0 %v2630
  %v2700 = vpop.f32.mrf.mxu0
  %v2701 = vadd.f32 %v2623, %v2700
  %v2702 = vpop.f32.mrf.mxu0
  %2703 = vmatprep.mubr.f32.mxu0 0.0
  %2704 = vmatmul.mubr.f32.gmra.mxu0 %v2632
  %v2705 = vpop.f32.mrf.mxu0
  %v2706 = vadd.f32 %v2628, %v2705
  %v2707 = vpop.f32.mrf.mxu0
  %2708 = vdwg.mxu0
  %2710 = vset.pattern.permute.xlu0 0
  %2711 = vperm.xlu0 %2710, %v2612
  %v2712 = vpop.permute.xlu0 %2711
  %2715 = vset.pattern.permute.xlu0 0
  %2716 = vperm.xlu0 %2715, %v2617
  %v2717 = vpop.permute.xlu0 %2716
  %v2719 = vlaneseq
  %v2720 = vshrl.u32 %v2719, 7
  %v2721 = vsub.s32 0, %v2720
  %v2722 = vrot.slane %v2701, %v2721
  %v2723 = vmul.f32 %v2712, %v2722
  %v2724 = vmul.f32 %v2717, %v2722
  %v2725 = vadd.f32 %v2723, %v33
  %v2726 = vadd.f32 %v2724, %v34
  %v2727 = vsel %vm237, %v2725, -inf
  %2728 = vmax.xlane.f32.xlu0 %v2727
  %v2729 = vpop.xlane.xlu0 %2728
  %v2730 = vsel %vm237, %v2726, -inf
  %2731 = vmax.xlane.f32.xlu0 %v2730
  %v2732 = vpop.xlane.xlu0 %2731
  %v2733 = vsub.f32 %v2725, %v2729
  %v2734 = vsub.f32 %v2726, %v2732
  %v2735 = vmul.f32 %v2733, 1.442695
  %v2736 = vpow.pop %v2735
  %v2737 = vmul.f32 %v2734, 1.442695
  %v2738 = vpow.pop %v2737
  %v2739 = vsel %vm237, %v2736, 0.0
  %2740 = vadd.xlane.f32.xlu0 %v2739
  %v2741 = vpop.xlane.xlu0 %2740
  %v2742 = vsel %vm237, %v2738, 0.0
  %2743 = vadd.xlane.f32.xlu0 %v2742
  %v2744 = vpop.xlane.xlu0 %2743
  %v2745 = vrcp.pop %v2741
  %v2746 = vrcp.pop %v2744
  %v2747 = vmul.f32 %v2736, %v2745
  %v2748 = vmul.f32 %v2738, %v2746
  %v2749 = vlaneseq
  %v2750 = vshrl.u32 %v2749, 7
  %v2751 = vsub.s32 5, %v2750
  %v2752 = vrot.slane %v2701, %v2751
  %v2753 = vmul.f32 %v2747, %v2752
  %v2754 = vmul.f32 %v2748, %v2752
  %v2755 = vsel %vm237, %v2753, 0.0
  %2756 = vadd.xlane.f32.xlu0 %v2755
  %v2757 = vpop.xlane.xlu0 %2756
  %v2758 = vsel %vm237, %v2754, 0.0
  %2759 = vadd.xlane.f32.xlu0 %v2758
  %v2760 = vpop.xlane.xlu0 %2759
  %v2761 = vlaneseq
  %v2762 = vshrl.u32 %v2761, 7
  %v2763 = vsub.s32 0, %v2762
  %v2764 = vrot.slane %v2530, %v2763
  %v2765 = vmul.f32 %v2757, %v2764
  %v2766 = vmul.f32 %v2760, %v2764
  %v2767 = vadd.f32 %v2765, 0.0
  %v2768 = vadd.f32 %v2766, 0.0
  %2769 = vset.pattern.permute.xlu0 1
  %2770 = vperm.xlu0 %2769, %v2612
  %v2771 = vpop.permute.xlu0 %2770
  %2773 = vset.pattern.permute.xlu0 1
  %2774 = vperm.xlu0 %2773, %v2617
  %v2775 = vpop.permute.xlu0 %2774
  %v2777 = vlaneseq
  %v2778 = vshrl.u32 %v2777, 7
  %v2779 = vsub.s32 1, %v2778
  %v2780 = vrot.slane %v2701, %v2779
  %v2781 = vmul.f32 %v2771, %v2780
  %v2782 = vmul.f32 %v2775, %v2780
  %v2783 = vadd.f32 %v2781, %v33
  %v2784 = vadd.f32 %v2782, %v34
  %v2785 = vsel %vm237, %v2783, -inf
  %2786 = vmax.xlane.f32.xlu0 %v2785
  %v2787 = vpop.xlane.xlu0 %2786
  %v2788 = vsel %vm237, %v2784, -inf
  %2789 = vmax.xlane.f32.xlu0 %v2788
  %v2790 = vpop.xlane.xlu0 %2789
  %v2791 = vsub.f32 %v2783, %v2787
  %v2792 = vsub.f32 %v2784, %v2790
  %v2793 = vmul.f32 %v2791, 1.442695
  %v2794 = vpow.pop %v2793
  %v2795 = vmul.f32 %v2792, 1.442695
  %v2796 = vpow.pop %v2795
  %v2797 = vsel %vm237, %v2794, 0.0
  %2798 = vadd.xlane.f32.xlu0 %v2797
  %v2799 = vpop.xlane.xlu0 %2798
  %v2800 = vsel %vm237, %v2796, 0.0
  %2801 = vadd.xlane.f32.xlu0 %v2800
  %v2802 = vpop.xlane.xlu0 %2801
  %v2803 = vrcp.pop %v2799
  %v2804 = vrcp.pop %v2802
  %v2805 = vmul.f32 %v2794, %v2803
  %v2806 = vmul.f32 %v2796, %v2804
  %v2807 = vlaneseq
  %v2808 = vshrl.u32 %v2807, 7
  %v2809 = vsub.s32 6, %v2808
  %v2810 = vrot.slane %v2701, %v2809
  %v2811 = vmul.f32 %v2805, %v2810
  %v2812 = vmul.f32 %v2806, %v2810
  %v2813 = vsel %vm237, %v2811, 0.0
  %2814 = vadd.xlane.f32.xlu0 %v2813
  %v2815 = vpop.xlane.xlu0 %2814
  %v2816 = vsel %vm237, %v2812, 0.0
  %2817 = vadd.xlane.f32.xlu0 %v2816
  %v2818 = vpop.xlane.xlu0 %2817
  %v2819 = vlaneseq
  %v2820 = vshrl.u32 %v2819, 7
  %v2821 = vsub.s32 1, %v2820
  %v2822 = vrot.slane %v2530, %v2821
  %v2823 = vmul.f32 %v2815, %v2822
  %v2824 = vmul.f32 %v2818, %v2822
  %v2825 = vadd.f32 %v2767, %v2823
  %v2826 = vadd.f32 %v2768, %v2824
  %2827 = vset.pattern.permute.xlu0 2
  %2828 = vperm.xlu0 %2827, %v2612
  %v2829 = vpop.permute.xlu0 %2828
  %2831 = vset.pattern.permute.xlu0 2
  %2832 = vperm.xlu0 %2831, %v2617
  %v2833 = vpop.permute.xlu0 %2832
  %v2835 = vlaneseq
  %v2836 = vshrl.u32 %v2835, 7
  %v2837 = vsub.s32 2, %v2836
  %v2838 = vrot.slane %v2701, %v2837
  %v2839 = vmul.f32 %v2829, %v2838
  %v2840 = vmul.f32 %v2833, %v2838
  %v2841 = vadd.f32 %v2839, %v33
  %v2842 = vadd.f32 %v2840, %v34
  %v2843 = vsel %vm237, %v2841, -inf
  %2844 = vmax.xlane.f32.xlu0 %v2843
  %v2845 = vpop.xlane.xlu0 %2844
  %v2846 = vsel %vm237, %v2842, -inf
  %2847 = vmax.xlane.f32.xlu0 %v2846
  %v2848 = vpop.xlane.xlu0 %2847
  %v2849 = vsub.f32 %v2841, %v2845
  %v2850 = vsub.f32 %v2842, %v2848
  %v2851 = vmul.f32 %v2849, 1.442695
  %v2852 = vpow.pop %v2851
  %v2853 = vmul.f32 %v2850, 1.442695
  %v2854 = vpow.pop %v2853
  %v2855 = vsel %vm237, %v2852, 0.0
  %2856 = vadd.xlane.f32.xlu0 %v2855
  %v2857 = vpop.xlane.xlu0 %2856
  %v2858 = vsel %vm237, %v2854, 0.0
  %2859 = vadd.xlane.f32.xlu0 %v2858
  %v2860 = vpop.xlane.xlu0 %2859
  %v2861 = vrcp.pop %v2857
  %v2862 = vrcp.pop %v2860
  %v2863 = vmul.f32 %v2852, %v2861
  %v2864 = vmul.f32 %v2854, %v2862
  %v2865 = vlaneseq
  %v2866 = vshrl.u32 %v2865, 7
  %v2867 = vsub.s32 7, %v2866
  %v2868 = vrot.slane %v2701, %v2867
  %v2869 = vmul.f32 %v2863, %v2868
  %v2870 = vmul.f32 %v2864, %v2868
  %v2871 = vsel %vm237, %v2869, 0.0
  %2872 = vadd.xlane.f32.xlu0 %v2871
  %v2873 = vpop.xlane.xlu0 %2872
  %v2874 = vsel %vm237, %v2870, 0.0
  %2875 = vadd.xlane.f32.xlu0 %v2874
  %v2876 = vpop.xlane.xlu0 %2875
  %v2877 = vlaneseq
  %v2878 = vshrl.u32 %v2877, 7
  %v2879 = vsub.s32 2, %v2878
  %v2880 = vrot.slane %v2530, %v2879
  %v2881 = vmul.f32 %v2873, %v2880
  %v2882 = vmul.f32 %v2876, %v2880
  %v2883 = vadd.f32 %v2825, %v2881
  %v2884 = vadd.f32 %v2826, %v2882
  %2885 = vset.pattern.permute.xlu0 3
  %2886 = vperm.xlu0 %2885, %v2612
  %v2887 = vpop.permute.xlu0 %2886
  %2889 = vset.pattern.permute.xlu0 3
  %2890 = vperm.xlu0 %2889, %v2617
  %v2891 = vpop.permute.xlu0 %2890
  %v2893 = vlaneseq
  %v2894 = vshrl.u32 %v2893, 7
  %v2895 = vsub.s32 3, %v2894
  %v2896 = vrot.slane %v2701, %v2895
  %v2897 = vmul.f32 %v2887, %v2896
  %v2898 = vmul.f32 %v2891, %v2896
  %v2899 = vadd.f32 %v2897, %v33
  %v2900 = vadd.f32 %v2898, %v34
  %v2901 = vsel %vm237, %v2899, -inf
  %2902 = vmax.xlane.f32.xlu0 %v2901
  %v2903 = vpop.xlane.xlu0 %2902
  %v2904 = vsel %vm237, %v2900, -inf
  %2905 = vmax.xlane.f32.xlu0 %v2904
  %v2906 = vpop.xlane.xlu0 %2905
  %v2907 = vsub.f32 %v2899, %v2903
  %v2908 = vsub.f32 %v2900, %v2906
  %v2909 = vmul.f32 %v2907, 1.442695
  %v2910 = vpow.pop %v2909
  %v2911 = vmul.f32 %v2908, 1.442695
  %v2912 = vpow.pop %v2911
  %v2913 = vsel %vm237, %v2910, 0.0
  %2914 = vadd.xlane.f32.xlu0 %v2913
  %v2915 = vpop.xlane.xlu0 %2914
  %v2916 = vsel %vm237, %v2912, 0.0
  %2917 = vadd.xlane.f32.xlu0 %v2916
  %v2918 = vpop.xlane.xlu0 %2917
  %v2919 = vrcp.pop %v2915
  %v2920 = vrcp.pop %v2918
  %v2921 = vmul.f32 %v2910, %v2919
  %v2922 = vmul.f32 %v2912, %v2920
  %v2923 = vlaneseq
  %v2924 = vshrl.u32 %v2923, 7
  %v2925 = vsub.s32 0, %v2924
  %v2926 = vrot.slane %v2706, %v2925
  %v2927 = vmul.f32 %v2921, %v2926
  %v2928 = vmul.f32 %v2922, %v2926
  %v2929 = vsel %vm237, %v2927, 0.0
  %2930 = vadd.xlane.f32.xlu0 %v2929
  %v2931 = vpop.xlane.xlu0 %2930
  %v2932 = vsel %vm237, %v2928, 0.0
  %2933 = vadd.xlane.f32.xlu0 %v2932
  %v2934 = vpop.xlane.xlu0 %2933
  %v2935 = vlaneseq
  %v2936 = vshrl.u32 %v2935, 7
  %v2937 = vsub.s32 3, %v2936
  %v2938 = vrot.slane %v2530, %v2937
  %v2939 = vmul.f32 %v2931, %v2938
  %v2940 = vmul.f32 %v2934, %v2938
  %v2941 = vadd.f32 %v2883, %v2939
  %v2942 = vadd.f32 %v2884, %v2940
  %2943 = vset.pattern.permute.xlu0 4
  %2944 = vperm.xlu0 %2943, %v2612
  %v2945 = vpop.permute.xlu0 %2944
  %2947 = vset.pattern.permute.xlu0 4
  %2948 = vperm.xlu0 %2947, %v2617
  %v2949 = vpop.permute.xlu0 %2948
  %v2951 = vlaneseq
  %v2952 = vshrl.u32 %v2951, 7
  %v2953 = vsub.s32 4, %v2952
  %v2954 = vrot.slane %v2701, %v2953
  %v2955 = vmul.f32 %v2945, %v2954
  %v2956 = vmul.f32 %v2949, %v2954
  %v2957 = vadd.f32 %v2955, %v33
  %v2958 = vadd.f32 %v2956, %v34
  %v2959 = vsel %vm237, %v2957, -inf
  %2960 = vmax.xlane.f32.xlu0 %v2959
  %v2961 = vpop.xlane.xlu0 %2960
  %v2962 = vsel %vm237, %v2958, -inf
  %2963 = vmax.xlane.f32.xlu0 %v2962
  %v2964 = vpop.xlane.xlu0 %2963
  %v2965 = vsub.f32 %v2957, %v2961
  %v2966 = vsub.f32 %v2958, %v2964
  %v2967 = vmul.f32 %v2965, 1.442695
  %v2968 = vpow.pop %v2967
  %v2969 = vmul.f32 %v2966, 1.442695
  %v2970 = vpow.pop %v2969
  %v2971 = vsel %vm237, %v2968, 0.0
  %2972 = vadd.xlane.f32.xlu0 %v2971
  %v2973 = vpop.xlane.xlu0 %2972
  %v2974 = vsel %vm237, %v2970, 0.0
  %2975 = vadd.xlane.f32.xlu0 %v2974
  %v2976 = vpop.xlane.xlu0 %2975
  %v2977 = vrcp.pop %v2973
  %v2978 = vrcp.pop %v2976
  %v2979 = vmul.f32 %v2968, %v2977
  %v2980 = vmul.f32 %v2970, %v2978
  %v2981 = vlaneseq
  %v2982 = vshrl.u32 %v2981, 7
  %v2983 = vsub.s32 1, %v2982
  %v2984 = vrot.slane %v2706, %v2983
  %v2985 = vmul.f32 %v2979, %v2984
  %v2986 = vmul.f32 %v2980, %v2984
  %v2987 = vsel %vm237, %v2985, 0.0
  %2988 = vadd.xlane.f32.xlu0 %v2987
  %v2989 = vpop.xlane.xlu0 %2988
  %v2990 = vsel %vm237, %v2986, 0.0
  %2991 = vadd.xlane.f32.xlu0 %v2990
  %v2992 = vpop.xlane.xlu0 %2991
  %v2993 = vlaneseq
  %v2994 = vshrl.u32 %v2993, 7
  %v2995 = vsub.s32 4, %v2994
  %v2996 = vrot.slane %v2530, %v2995
  %v2997 = vmul.f32 %v2989, %v2996
  %v2998 = vmul.f32 %v2992, %v2996
  %v2999 = vadd.f32 %v2941, %v2997
  %v3000 = vadd.f32 %v2942, %v2998
  %v3001 = vadd.f32 %v2524, %v2999
  %v3002 = vadd.f32 %v2525, %v3000
  %3004 = vrot.lane.b32.xlu0 %v2535, 123
  %v3005 = vpop.permute.xlu0 %3004
  %v3007 = vadd.f32 %v3001, %v3005
  %v3008 = vadd.f32 %v3002, %v3005
  %v3009 = vsel %vm44, %v3007, 0.0
  %3010 = vadd.xlane.f32.xlu0 %v3009
  %v3011 = vpop.xlane.xlu0 %3010
  %v3012 = vsel %vm44, %v3008, 0.0
  %3013 = vadd.xlane.f32.xlu0 %v3012
  %v3014 = vpop.xlane.xlu0 %3013
  %v3015 = vmul.f32 %v3011, %v526
  %v3016 = vmul.f32 %v3014, %v526
  %v3017 = vsub.f32 %v3007, %v3015
  %v3018 = vsub.f32 %v3008, %v3016
  %v3019 = vmul.f32 %v3017, %v3017
  %v3020 = vmul.f32 %v3018, %v3018
  %v3021 = vsel %vm44, %v3019, 0.0
  %3022 = vadd.xlane.f32.xlu0 %v3021
  %v3023 = vpop.xlane.xlu0 %3022
  %v3024 = vsel %vm44, %v3020, 0.0
  %3025 = vadd.xlane.f32.xlu0 %v3024
  %v3026 = vpop.xlane.xlu0 %3025
  %v3027 = vmul.f32 %v3023, %v526
  %v3028 = vmul.f32 %v3026, %v526
  %v3029 = vadd.f32 %v3027, 1e-05
  %v3030 = vadd.f32 %v3028, 1e-05
  %v3031 = vrsqrt.pop %v3029
  %v3032 = vrsqrt.pop %v3030
  %v3033 = vmul.f32 %v3017, %v3031
  %v3034 = vmul.f32 %v3018, %v3032
  %3035 = vrot.lane.b32.xlu0 %v2535, 118
  %v3036 = vpop.permute.xlu0 %3035
  %v3038 = vmul.f32 %v3033, %v3036
  %v3039 = vmul.f32 %v3034, %v3036
  %3040 = vrot.lane.b32.xlu0 %v2535, 113
  %v3041 = vpop.permute.xlu0 %3040
  %v3043 = vadd.f32 %v3038, %v3041
  %v3044 = vadd.f32 %v3039, %v3041
  %s3045 = scalar_lea.vmem %s2, 64
  %v3046 = vld [vmem:[%s3045] sm:$0x77]
  %v3047 = vld [vmem:[%s3045 + $0x8] sm:$0x77]
  %v3048 = vld [vmem:[%s3045 + $0x10] sm:$0x77]
  %v3049 = vld [vmem:[%s3045 + $0x18] sm:$0x77]
  %v3050 = vld [vmem:[%s3045 + $0x20] sm:$0x77]
  %v3051 = vld [vmem:[%s3045 + $0x28] sm:$0x77]
  %v3052 = vld [vmem:[%s3045 + $0x30] sm:$0x77]
  %v3053 = vld [vmem:[%s3045 + $0x38] sm:$0x77]
  %v3054 = vunpack.c.l.bf16 %v3046
  %v3055 = vunpack.c.h.bf16 %v3046
  %v3056 = vunpack.c.l.bf16 %v3047
  %v3057 = vunpack.c.h.bf16 %v3047
  %v3058 = vunpack.c.l.bf16 %v3048
  %v3059 = vunpack.c.h.bf16 %v3048
  %v3060 = vunpack.c.l.bf16 %v3049
  %v3061 = vunpack.c.h.bf16 %v3049
  %v3062 = vunpack.c.l.bf16 %v3050
  %v3063 = vunpack.c.h.bf16 %v3050
  %v3064 = vunpack.c.l.bf16 %v3051
  %v3065 = vunpack.c.h.bf16 %v3051
  %v3066 = vunpack.c.l.bf16 %v3052
  %v3067 = vunpack.c.h.bf16 %v3052
  %v3068 = vunpack.c.l.bf16 %v3053
  %v3069 = vunpack.c.h.bf16 %v3053
  %v3070 = vpack.c.bf16 %v3044, %v3043
  %v3071 = vlaneseq
  %v3072 = vshrl.u32 %v3071, 7
  %v3073 = vsub.s32 5, %v3072
  %v3074 = vrot.slane %v3054, %v3073
  %v3075 = vlaneseq
  %v3076 = vshrl.u32 %v3075, 7
  %v3077 = vsub.s32 5, %v3076
  %v3078 = vrot.slane %v3055, %v3077
  %v3079 = vlaneseq
  %v3080 = vshrl.u32 %v3079, 7
  %v3081 = vsub.s32 5, %v3080
  %v3082 = vrot.slane %v3056, %v3081
  %v3083 = vlaneseq
  %v3084 = vshrl.u32 %v3083, 7
  %v3085 = vsub.s32 5, %v3084
  %v3086 = vrot.slane %v3057, %v3085
  %v3087 = vlaneseq
  %v3088 = vshrl.u32 %v3087, 7
  %v3089 = vsub.s32 5, %v3088
  %v3090 = vrot.slane %v3058, %v3089
  %v3091 = vlaneseq
  %v3092 = vshrl.u32 %v3091, 7
  %v3093 = vsub.s32 5, %v3092
  %v3094 = vrot.slane %v3059, %v3093
  %v3095 = vlaneseq
  %v3096 = vshrl.u32 %v3095, 7
  %v3097 = vsub.s32 5, %v3096
  %v3098 = vrot.slane %v3060, %v3097
  %v3099 = vlaneseq
  %v3100 = vshrl.u32 %v3099, 7
  %v3101 = vsub.s32 5, %v3100
  %v3102 = vrot.slane %v3061, %v3101
  %v3103 = vlaneseq
  %v3104 = vshrl.u32 %v3103, 7
  %v3105 = vsub.s32 5, %v3104
  %v3106 = vrot.slane %v3062, %v3105
  %v3107 = vlaneseq
  %v3108 = vshrl.u32 %v3107, 7
  %v3109 = vsub.s32 5, %v3108
  %v3110 = vrot.slane %v3063, %v3109
  %v3111 = vlaneseq
  %v3112 = vshrl.u32 %v3111, 7
  %v3113 = vsub.s32 5, %v3112
  %v3114 = vrot.slane %v3064, %v3113
  %v3115 = vlaneseq
  %v3116 = vshrl.u32 %v3115, 7
  %v3117 = vsub.s32 5, %v3116
  %v3118 = vrot.slane %v3065, %v3117
  %v3119 = vlaneseq
  %v3120 = vshrl.u32 %v3119, 7
  %v3121 = vsub.s32 5, %v3120
  %v3122 = vrot.slane %v3066, %v3121
  %v3123 = vlaneseq
  %v3124 = vshrl.u32 %v3123, 7
  %v3125 = vsub.s32 5, %v3124
  %v3126 = vrot.slane %v3067, %v3125
  %v3127 = vlaneseq
  %v3128 = vshrl.u32 %v3127, 7
  %v3129 = vsub.s32 5, %v3128
  %v3130 = vrot.slane %v3068, %v3129
  %v3131 = vlaneseq
  %v3132 = vshrl.u32 %v3131, 7
  %v3133 = vsub.s32 5, %v3132
  %v3134 = vrot.slane %v3069, %v3133
  %v3143 = vunpack.c.l.b16 %v3046
  %v3144 = vunpack.c.h.b16 %v3046
  %v3145 = vunpack.c.l.b16 %v3047
  %v3146 = vunpack.c.h.b16 %v3047
  %v3147 = vunpack.c.l.b16 %v3048
  %v3148 = vunpack.c.h.b16 %v3048
  %v3149 = vunpack.c.l.b16 %v3049
  %v3150 = vunpack.c.h.b16 %v3049
  %v3151 = vunpack.c.l.b16 %v3050
  %v3152 = vunpack.c.h.b16 %v3050
  %v3153 = vunpack.c.l.b16 %v3051
  %v3154 = vunpack.c.h.b16 %v3051
  %v3155 = vunpack.c.l.b16 %v3052
  %v3156 = vunpack.c.h.b16 %v3052
  %v3157 = vunpack.c.l.b16 %v3053
  %v3158 = vunpack.c.h.b16 %v3053
  %v3159 = vpack.c.b16 %v3143, %v3143
  %v3160 = vpack.c.b16 %v3144, %v3144
  %v3161 = vpack.c.b16 %v3145, %v3145
  %v3162 = vpack.c.b16 %v3146, %v3146
  %v3163 = vpack.c.b16 %v3147, %v3147
  %v3164 = vpack.c.b16 %v3148, %v3148
  %v3165 = vpack.c.b16 %v3149, %v3149
  %v3166 = vpack.c.b16 %v3150, %v3150
  %v3167 = vpack.c.b16 %v3151, %v3151
  %v3168 = vpack.c.b16 %v3152, %v3152
  %v3169 = vpack.c.b16 %v3153, %v3153
  %v3170 = vpack.c.b16 %v3154, %v3154
  %v3171 = vpack.c.b16 %v3155, %v3155
  %v3172 = vpack.c.b16 %v3156, %v3156
  %v3173 = vpack.c.b16 %v3157, %v3157
  %v3174 = vpack.c.b16 %v3158, %v3158
  %v3176 = vsel %vm44, %v3070, 0
  %v3179 = vand.u32 %v3159, %v692
  %v3182 = vand.u32 %v3160, %v692
  %v3185 = vand.u32 %v3161, %v692
  %v3188 = vand.u32 %v3162, %v692
  %v3191 = vand.u32 %v3163, %v692
  %v3194 = vand.u32 %v3164, %v692
  %v3197 = vand.u32 %v3165, %v692
  %v3200 = vand.u32 %v3166, %v692
  %v3203 = vand.u32 %v3167, %v692
  %v3206 = vand.u32 %v3168, %v692
  %v3209 = vand.u32 %v3169, %v692
  %v3212 = vand.u32 %v3170, %v692
  %v3215 = vand.u32 %v3171, %v692
  %v3218 = vand.u32 %v3172, %v692
  %v3221 = vand.u32 %v3173, %v692
  %v3224 = vand.u32 %v3174, %v692
  %3226 = vmatprep.subr.bf16.mxu0 0
  %3227 = vmatpush1.bf16.msra.mxu0 0
  %3228 = vmatprep.subr.bf16.mxu0 0
  %3229 = vmatpush1.bf16.msra.mxu0 0
  %3230 = vmatprep.subr.bf16.mxu0 0
  %3231 = vmatpush1.bf16.msra.mxu0 0
  %3232 = vmatprep.subr.bf16.mxu0 0
  %3233 = vmatpush1.bf16.msra.mxu0 0
  %3234 = vmatprep.subr.bf16.mxu0 0
  %3235 = vmatpush1.bf16.msra.mxu0 0
  %3236 = vmatprep.subr.bf16.mxu0 0
  %3237 = vmatpush1.bf16.msra.mxu0 0
  %3238 = vmatprep.subr.bf16.mxu0 0
  %3239 = vmatpush1.bf16.msra.mxu0 0
  %3240 = vmatprep.subr.bf16.mxu0 %v3182
  %3241 = vmatpush1.bf16.msra.mxu0 %v3179
  %3242 = vmatprep.subr.bf16.mxu0 0
  %3243 = vmatpush2.bf16.msra.mxu0 0
  %3244 = vmatprep.subr.bf16.mxu0 0
  %3245 = vmatpush2.bf16.msra.mxu0 0
  %3246 = vmatprep.subr.bf16.mxu0 0
  %3247 = vmatpush2.bf16.msra.mxu0 0
  %3248 = vmatprep.subr.bf16.mxu0 0
  %3249 = vmatpush2.bf16.msra.mxu0 0
  %3250 = vmatprep.subr.bf16.mxu0 0
  %3251 = vmatpush2.bf16.msra.mxu0 0
  %3252 = vmatprep.subr.bf16.mxu0 0
  %3253 = vmatpush2.bf16.msra.mxu0 0
  %3254 = vmatprep.subr.bf16.mxu0 0
  %3255 = vmatpush2.bf16.msra.mxu0 0
  %3256 = vmatprep.subr.bf16.mxu0 0
  %3257 = vmatpush2.bf16.msra.mxu0 0
  %3258 = vmatprep.mubr.bf16.mxu0 0
  %3259 = vmatmul.mubr.bf16.gmra.mxu0 %v3176
  %v3260 = vpop.f32.mrf.mxu0
  %v3261 = vadd.f32 %v3074, %v3260
  %v3262 = vpop.f32.mrf.mxu0
  %v3263 = vadd.f32 %v3078, %v3262
  %v3264 = vpop.f32.mrf.mxu0
  %v3265 = vadd.f32 %v3074, %v3264
  %v3266 = vpop.f32.mrf.mxu0
  %v3267 = vadd.f32 %v3078, %v3266
  %3268 = vdwg.mxu0
  %3269 = vmatprep.subr.bf16.mxu0 0
  %3270 = vmatpush1.bf16.msra.mxu0 0
  %3271 = vmatprep.subr.bf16.mxu0 0
  %3272 = vmatpush1.bf16.msra.mxu0 0
  %3273 = vmatprep.subr.bf16.mxu0 0
  %3274 = vmatpush1.bf16.msra.mxu0 0
  %3275 = vmatprep.subr.bf16.mxu0 0
  %3276 = vmatpush1.bf16.msra.mxu0 0
  %3277 = vmatprep.subr.bf16.mxu0 0
  %3278 = vmatpush1.bf16.msra.mxu0 0
  %3279 = vmatprep.subr.bf16.mxu0 0
  %3280 = vmatpush1.bf16.msra.mxu0 0
  %3281 = vmatprep.subr.bf16.mxu0 0
  %3282 = vmatpush1.bf16.msra.mxu0 0
  %3283 = vmatprep.subr.bf16.mxu0 %v3188
  %3284 = vmatpush1.bf16.msra.mxu0 %v3185
  %3285 = vmatprep.subr.bf16.mxu0 0
  %3286 = vmatpush2.bf16.msra.mxu0 0
  %3287 = vmatprep.subr.bf16.mxu0 0
  %3288 = vmatpush2.bf16.msra.mxu0 0
  %3289 = vmatprep.subr.bf16.mxu0 0
  %3290 = vmatpush2.bf16.msra.mxu0 0
  %3291 = vmatprep.subr.bf16.mxu0 0
  %3292 = vmatpush2.bf16.msra.mxu0 0
  %3293 = vmatprep.subr.bf16.mxu0 0
  %3294 = vmatpush2.bf16.msra.mxu0 0
  %3295 = vmatprep.subr.bf16.mxu0 0
  %3296 = vmatpush2.bf16.msra.mxu0 0
  %3297 = vmatprep.subr.bf16.mxu0 0
  %3298 = vmatpush2.bf16.msra.mxu0 0
  %3299 = vmatprep.subr.bf16.mxu0 0
  %3300 = vmatpush2.bf16.msra.mxu0 0
  %3301 = vmatprep.mubr.bf16.mxu0 0
  %3302 = vmatmul.mubr.bf16.gmra.mxu0 %v3176
  %v3303 = vpop.f32.mrf.mxu0
  %v3304 = vadd.f32 %v3082, %v3303
  %v3305 = vpop.f32.mrf.mxu0
  %v3306 = vadd.f32 %v3086, %v3305
  %v3307 = vpop.f32.mrf.mxu0
  %v3308 = vadd.f32 %v3082, %v3307
  %v3309 = vpop.f32.mrf.mxu0
  %v3310 = vadd.f32 %v3086, %v3309
  %3311 = vdwg.mxu0
  %3312 = vmatprep.subr.bf16.mxu0 0
  %3313 = vmatpush1.bf16.msra.mxu0 0
  %3314 = vmatprep.subr.bf16.mxu0 0
  %3315 = vmatpush1.bf16.msra.mxu0 0
  %3316 = vmatprep.subr.bf16.mxu0 0
  %3317 = vmatpush1.bf16.msra.mxu0 0
  %3318 = vmatprep.subr.bf16.mxu0 0
  %3319 = vmatpush1.bf16.msra.mxu0 0
  %3320 = vmatprep.subr.bf16.mxu0 0
  %3321 = vmatpush1.bf16.msra.mxu0 0
  %3322 = vmatprep.subr.bf16.mxu0 0
  %3323 = vmatpush1.bf16.msra.mxu0 0
  %3324 = vmatprep.subr.bf16.mxu0 0
  %3325 = vmatpush1.bf16.msra.mxu0 0
  %3326 = vmatprep.subr.bf16.mxu0 %v3194
  %3327 = vmatpush1.bf16.msra.mxu0 %v3191
  %3328 = vmatprep.subr.bf16.mxu0 0
  %3329 = vmatpush2.bf16.msra.mxu0 0
  %3330 = vmatprep.subr.bf16.mxu0 0
  %3331 = vmatpush2.bf16.msra.mxu0 0
  %3332 = vmatprep.subr.bf16.mxu0 0
  %3333 = vmatpush2.bf16.msra.mxu0 0
  %3334 = vmatprep.subr.bf16.mxu0 0
  %3335 = vmatpush2.bf16.msra.mxu0 0
  %3336 = vmatprep.subr.bf16.mxu0 0
  %3337 = vmatpush2.bf16.msra.mxu0 0
  %3338 = vmatprep.subr.bf16.mxu0 0
  %3339 = vmatpush2.bf16.msra.mxu0 0
  %3340 = vmatprep.subr.bf16.mxu0 0
  %3341 = vmatpush2.bf16.msra.mxu0 0
  %3342 = vmatprep.subr.bf16.mxu0 0
  %3343 = vmatpush2.bf16.msra.mxu0 0
  %3344 = vmatprep.mubr.bf16.mxu0 0
  %3345 = vmatmul.mubr.bf16.gmra.mxu0 %v3176
  %v3346 = vpop.f32.mrf.mxu0
  %v3347 = vadd.f32 %v3090, %v3346
  %v3348 = vpop.f32.mrf.mxu0
  %v3349 = vadd.f32 %v3094, %v3348
  %v3350 = vpop.f32.mrf.mxu0
  %v3351 = vadd.f32 %v3090, %v3350
  %v3352 = vpop.f32.mrf.mxu0
  %v3353 = vadd.f32 %v3094, %v3352
  %3354 = vdwg.mxu0
  %3355 = vmatprep.subr.bf16.mxu0 0
  %3356 = vmatpush1.bf16.msra.mxu0 0
  %3357 = vmatprep.subr.bf16.mxu0 0
  %3358 = vmatpush1.bf16.msra.mxu0 0
  %3359 = vmatprep.subr.bf16.mxu0 0
  %3360 = vmatpush1.bf16.msra.mxu0 0
  %3361 = vmatprep.subr.bf16.mxu0 0
  %3362 = vmatpush1.bf16.msra.mxu0 0
  %3363 = vmatprep.subr.bf16.mxu0 0
  %3364 = vmatpush1.bf16.msra.mxu0 0
  %3365 = vmatprep.subr.bf16.mxu0 0
  %3366 = vmatpush1.bf16.msra.mxu0 0
  %3367 = vmatprep.subr.bf16.mxu0 0
  %3368 = vmatpush1.bf16.msra.mxu0 0
  %3369 = vmatprep.subr.bf16.mxu0 %v3200
  %3370 = vmatpush1.bf16.msra.mxu0 %v3197
  %3371 = vmatprep.subr.bf16.mxu0 0
  %3372 = vmatpush2.bf16.msra.mxu0 0
  %3373 = vmatprep.subr.bf16.mxu0 0
  %3374 = vmatpush2.bf16.msra.mxu0 0
  %3375 = vmatprep.subr.bf16.mxu0 0
  %3376 = vmatpush2.bf16.msra.mxu0 0
  %3377 = vmatprep.subr.bf16.mxu0 0
  %3378 = vmatpush2.bf16.msra.mxu0 0
  %3379 = vmatprep.subr.bf16.mxu0 0
  %3380 = vmatpush2.bf16.msra.mxu0 0
  %3381 = vmatprep.subr.bf16.mxu0 0
  %3382 = vmatpush2.bf16.msra.mxu0 0
  %3383 = vmatprep.subr.bf16.mxu0 0
  %3384 = vmatpush2.bf16.msra.mxu0 0
  %3385 = vmatprep.subr.bf16.mxu0 0
  %3386 = vmatpush2.bf16.msra.mxu0 0
  %3387 = vmatprep.mubr.bf16.mxu0 0
  %3388 = vmatmul.mubr.bf16.gmra.mxu0 %v3176
  %v3389 = vpop.f32.mrf.mxu0
  %v3390 = vadd.f32 %v3098, %v3389
  %v3391 = vpop.f32.mrf.mxu0
  %v3392 = vadd.f32 %v3102, %v3391
  %v3393 = vpop.f32.mrf.mxu0
  %v3394 = vadd.f32 %v3098, %v3393
  %v3395 = vpop.f32.mrf.mxu0
  %v3396 = vadd.f32 %v3102, %v3395
  %3397 = vdwg.mxu0
  %3398 = vmatprep.subr.bf16.mxu0 0
  %3399 = vmatpush1.bf16.msra.mxu0 0
  %3400 = vmatprep.subr.bf16.mxu0 0
  %3401 = vmatpush1.bf16.msra.mxu0 0
  %3402 = vmatprep.subr.bf16.mxu0 0
  %3403 = vmatpush1.bf16.msra.mxu0 0
  %3404 = vmatprep.subr.bf16.mxu0 0
  %3405 = vmatpush1.bf16.msra.mxu0 0
  %3406 = vmatprep.subr.bf16.mxu0 0
  %3407 = vmatpush1.bf16.msra.mxu0 0
  %3408 = vmatprep.subr.bf16.mxu0 0
  %3409 = vmatpush1.bf16.msra.mxu0 0
  %3410 = vmatprep.subr.bf16.mxu0 0
  %3411 = vmatpush1.bf16.msra.mxu0 0
  %3412 = vmatprep.subr.bf16.mxu0 %v3206
  %3413 = vmatpush1.bf16.msra.mxu0 %v3203
  %3414 = vmatprep.subr.bf16.mxu0 0
  %3415 = vmatpush2.bf16.msra.mxu0 0
  %3416 = vmatprep.subr.bf16.mxu0 0
  %3417 = vmatpush2.bf16.msra.mxu0 0
  %3418 = vmatprep.subr.bf16.mxu0 0
  %3419 = vmatpush2.bf16.msra.mxu0 0
  %3420 = vmatprep.subr.bf16.mxu0 0
  %3421 = vmatpush2.bf16.msra.mxu0 0
  %3422 = vmatprep.subr.bf16.mxu0 0
  %3423 = vmatpush2.bf16.msra.mxu0 0
  %3424 = vmatprep.subr.bf16.mxu0 0
  %3425 = vmatpush2.bf16.msra.mxu0 0
  %3426 = vmatprep.subr.bf16.mxu0 0
  %3427 = vmatpush2.bf16.msra.mxu0 0
  %3428 = vmatprep.subr.bf16.mxu0 0
  %3429 = vmatpush2.bf16.msra.mxu0 0
  %3430 = vmatprep.mubr.bf16.mxu0 0
  %3431 = vmatmul.mubr.bf16.gmra.mxu0 %v3176
  %v3432 = vpop.f32.mrf.mxu0
  %v3433 = vadd.f32 %v3106, %v3432
  %v3434 = vpop.f32.mrf.mxu0
  %v3435 = vadd.f32 %v3110, %v3434
  %v3436 = vpop.f32.mrf.mxu0
  %v3437 = vadd.f32 %v3106, %v3436
  %v3438 = vpop.f32.mrf.mxu0
  %v3439 = vadd.f32 %v3110, %v3438
  %3440 = vdwg.mxu0
  %3441 = vmatprep.subr.bf16.mxu0 0
  %3442 = vmatpush1.bf16.msra.mxu0 0
  %3443 = vmatprep.subr.bf16.mxu0 0
  %3444 = vmatpush1.bf16.msra.mxu0 0
  %3445 = vmatprep.subr.bf16.mxu0 0
  %3446 = vmatpush1.bf16.msra.mxu0 0
  %3447 = vmatprep.subr.bf16.mxu0 0
  %3448 = vmatpush1.bf16.msra.mxu0 0
  %3449 = vmatprep.subr.bf16.mxu0 0
  %3450 = vmatpush1.bf16.msra.mxu0 0
  %3451 = vmatprep.subr.bf16.mxu0 0
  %3452 = vmatpush1.bf16.msra.mxu0 0
  %3453 = vmatprep.subr.bf16.mxu0 0
  %3454 = vmatpush1.bf16.msra.mxu0 0
  %3455 = vmatprep.subr.bf16.mxu0 %v3212
  %3456 = vmatpush1.bf16.msra.mxu0 %v3209
  %3457 = vmatprep.subr.bf16.mxu0 0
  %3458 = vmatpush2.bf16.msra.mxu0 0
  %3459 = vmatprep.subr.bf16.mxu0 0
  %3460 = vmatpush2.bf16.msra.mxu0 0
  %3461 = vmatprep.subr.bf16.mxu0 0
  %3462 = vmatpush2.bf16.msra.mxu0 0
  %3463 = vmatprep.subr.bf16.mxu0 0
  %3464 = vmatpush2.bf16.msra.mxu0 0
  %3465 = vmatprep.subr.bf16.mxu0 0
  %3466 = vmatpush2.bf16.msra.mxu0 0
  %3467 = vmatprep.subr.bf16.mxu0 0
  %3468 = vmatpush2.bf16.msra.mxu0 0
  %3469 = vmatprep.subr.bf16.mxu0 0
  %3470 = vmatpush2.bf16.msra.mxu0 0
  %3471 = vmatprep.subr.bf16.mxu0 0
  %3472 = vmatpush2.bf16.msra.mxu0 0
  %3473 = vmatprep.mubr.bf16.mxu0 0
  %3474 = vmatmul.mubr.bf16.gmra.mxu0 %v3176
  %v3475 = vpop.f32.mrf.mxu0
  %v3476 = vadd.f32 %v3114, %v3475
  %v3477 = vpop.f32.mrf.mxu0
  %v3478 = vadd.f32 %v3118, %v3477
  %v3479 = vpop.f32.mrf.mxu0
  %v3480 = vadd.f32 %v3114, %v3479
  %v3481 = vpop.f32.mrf.mxu0
  %v3482 = vadd.f32 %v3118, %v3481
  %3483 = vdwg.mxu0
  %3484 = vmatprep.subr.bf16.mxu0 0
  %3485 = vmatpush1.bf16.msra.mxu0 0
  %3486 = vmatprep.subr.bf16.mxu0 0
  %3487 = vmatpush1.bf16.msra.mxu0 0
  %3488 = vmatprep.subr.bf16.mxu0 0
  %3489 = vmatpush1.bf16.msra.mxu0 0
  %3490 = vmatprep.subr.bf16.mxu0 0
  %3491 = vmatpush1.bf16.msra.mxu0 0
  %3492 = vmatprep.subr.bf16.mxu0 0
  %3493 = vmatpush1.bf16.msra.mxu0 0
  %3494 = vmatprep.subr.bf16.mxu0 0
  %3495 = vmatpush1.bf16.msra.mxu0 0
  %3496 = vmatprep.subr.bf16.mxu0 0
  %3497 = vmatpush1.bf16.msra.mxu0 0
  %3498 = vmatprep.subr.bf16.mxu0 %v3218
  %3499 = vmatpush1.bf16.msra.mxu0 %v3215
  %3500 = vmatprep.subr.bf16.mxu0 0
  %3501 = vmatpush2.bf16.msra.mxu0 0
  %3502 = vmatprep.subr.bf16.mxu0 0
  %3503 = vmatpush2.bf16.msra.mxu0 0
  %3504 = vmatprep.subr.bf16.mxu0 0
  %3505 = vmatpush2.bf16.msra.mxu0 0
  %3506 = vmatprep.subr.bf16.mxu0 0
  %3507 = vmatpush2.bf16.msra.mxu0 0
  %3508 = vmatprep.subr.bf16.mxu0 0
  %3509 = vmatpush2.bf16.msra.mxu0 0
  %3510 = vmatprep.subr.bf16.mxu0 0
  %3511 = vmatpush2.bf16.msra.mxu0 0
  %3512 = vmatprep.subr.bf16.mxu0 0
  %3513 = vmatpush2.bf16.msra.mxu0 0
  %3514 = vmatprep.subr.bf16.mxu0 0
  %3515 = vmatpush2.bf16.msra.mxu0 0
  %3516 = vmatprep.mubr.bf16.mxu0 0
  %3517 = vmatmul.mubr.bf16.gmra.mxu0 %v3176
  %v3518 = vpop.f32.mrf.mxu0
  %v3519 = vadd.f32 %v3122, %v3518
  %v3520 = vpop.f32.mrf.mxu0
  %v3521 = vadd.f32 %v3126, %v3520
  %v3522 = vpop.f32.mrf.mxu0
  %v3523 = vadd.f32 %v3122, %v3522
  %v3524 = vpop.f32.mrf.mxu0
  %v3525 = vadd.f32 %v3126, %v3524
  %3526 = vdwg.mxu0
  %3527 = vmatprep.subr.bf16.mxu0 0
  %3528 = vmatpush1.bf16.msra.mxu0 0
  %3529 = vmatprep.subr.bf16.mxu0 0
  %3530 = vmatpush1.bf16.msra.mxu0 0
  %3531 = vmatprep.subr.bf16.mxu0 0
  %3532 = vmatpush1.bf16.msra.mxu0 0
  %3533 = vmatprep.subr.bf16.mxu0 0
  %3534 = vmatpush1.bf16.msra.mxu0 0
  %3535 = vmatprep.subr.bf16.mxu0 0
  %3536 = vmatpush1.bf16.msra.mxu0 0
  %3537 = vmatprep.subr.bf16.mxu0 0
  %3538 = vmatpush1.bf16.msra.mxu0 0
  %3539 = vmatprep.subr.bf16.mxu0 0
  %3540 = vmatpush1.bf16.msra.mxu0 0
  %3541 = vmatprep.subr.bf16.mxu0 %v3224
  %3542 = vmatpush1.bf16.msra.mxu0 %v3221
  %3543 = vmatprep.subr.bf16.mxu0 0
  %3544 = vmatpush2.bf16.msra.mxu0 0
  %3545 = vmatprep.subr.bf16.mxu0 0
  %3546 = vmatpush2.bf16.msra.mxu0 0
  %3547 = vmatprep.subr.bf16.mxu0 0
  %3548 = vmatpush2.bf16.msra.mxu0 0
  %3549 = vmatprep.subr.bf16.mxu0 0
  %3550 = vmatpush2.bf16.msra.mxu0 0
  %3551 = vmatprep.subr.bf16.mxu0 0
  %3552 = vmatpush2.bf16.msra.mxu0 0
  %3553 = vmatprep.subr.bf16.mxu0 0
  %3554 = vmatpush2.bf16.msra.mxu0 0
  %3555 = vmatprep.subr.bf16.mxu0 0
  %3556 = vmatpush2.bf16.msra.mxu0 0
  %3557 = vmatprep.subr.bf16.mxu0 0
  %3558 = vmatpush2.bf16.msra.mxu0 0
  %3559 = vmatprep.mubr.bf16.mxu0 0
  %3560 = vmatmul.mubr.bf16.gmra.mxu0 %v3176
  %v3561 = vpop.f32.mrf.mxu0
  %v3562 = vadd.f32 %v3130, %v3561
  %v3563 = vpop.f32.mrf.mxu0
  %v3564 = vadd.f32 %v3134, %v3563
  %v3565 = vpop.f32.mrf.mxu0
  %v3566 = vadd.f32 %v3130, %v3565
  %v3567 = vpop.f32.mrf.mxu0
  %v3568 = vadd.f32 %v3134, %v3567
  %3569 = vdwg.mxu0
  %v3570 = vmax.f32 %v3261, 0.0
  %v3571 = vmax.f32 %v3263, 0.0
  %v3572 = vmax.f32 %v3304, 0.0
  %v3573 = vmax.f32 %v3306, 0.0
  %v3574 = vmax.f32 %v3347, 0.0
  %v3575 = vmax.f32 %v3349, 0.0
  %v3576 = vmax.f32 %v3390, 0.0
  %v3577 = vmax.f32 %v3392, 0.0
  %v3578 = vmax.f32 %v3433, 0.0
  %v3579 = vmax.f32 %v3435, 0.0
  %v3580 = vmax.f32 %v3476, 0.0
  %v3581 = vmax.f32 %v3478, 0.0
  %v3582 = vmax.f32 %v3519, 0.0
  %v3583 = vmax.f32 %v3521, 0.0
  %v3584 = vmax.f32 %v3562, 0.0
  %v3585 = vmax.f32 %v3564, 0.0
  %v3586 = vmax.f32 %v3265, 0.0
  %v3587 = vmax.f32 %v3267, 0.0
  %v3588 = vmax.f32 %v3308, 0.0
  %v3589 = vmax.f32 %v3310, 0.0
  %v3590 = vmax.f32 %v3351, 0.0
  %v3591 = vmax.f32 %v3353, 0.0
  %v3592 = vmax.f32 %v3394, 0.0
  %v3593 = vmax.f32 %v3396, 0.0
  %v3594 = vmax.f32 %v3437, 0.0
  %v3595 = vmax.f32 %v3439, 0.0
  %v3596 = vmax.f32 %v3480, 0.0
  %v3597 = vmax.f32 %v3482, 0.0
  %v3598 = vmax.f32 %v3523, 0.0
  %v3599 = vmax.f32 %v3525, 0.0
  %v3600 = vmax.f32 %v3566, 0.0
  %v3601 = vmax.f32 %v3568, 0.0
  %v3602 = vpack.c.bf16 %v3586, %v3570
  %v3603 = vpack.c.bf16 %v3587, %v3571
  %v3604 = vpack.c.bf16 %v3588, %v3572
  %v3605 = vpack.c.bf16 %v3589, %v3573
  %v3606 = vpack.c.bf16 %v3590, %v3574
  %v3607 = vpack.c.bf16 %v3591, %v3575
  %v3608 = vpack.c.bf16 %v3592, %v3576
  %v3609 = vpack.c.bf16 %v3593, %v3577
  %v3610 = vpack.c.bf16 %v3594, %v3578
  %v3611 = vpack.c.bf16 %v3595, %v3579
  %v3612 = vpack.c.bf16 %v3596, %v3580
  %v3613 = vpack.c.bf16 %v3597, %v3581
  %v3614 = vpack.c.bf16 %v3598, %v3582
  %v3615 = vpack.c.bf16 %v3599, %v3583
  %v3616 = vpack.c.bf16 %v3600, %v3584
  %v3617 = vpack.c.bf16 %v3601, %v3585
  %s3618 = scalar_lea.vmem %s3, 1024
  %v3619 = vld [vmem:[%s3618] sm:$0xf]
  %v3620 = vld [vmem:[%s3618 + $0x4] sm:$0xf]
  %v3621 = vld [vmem:[%s3618 + $0x8] sm:$0xf]
  %v3622 = vld [vmem:[%s3618 + $0xc] sm:$0xf]
  %v3623 = vld [vmem:[%s3618 + $0x10] sm:$0xf]
  %v3624 = vld [vmem:[%s3618 + $0x14] sm:$0xf]
  %v3625 = vld [vmem:[%s3618 + $0x18] sm:$0xf]
  %v3626 = vld [vmem:[%s3618 + $0x1c] sm:$0xf]
  %v3627 = vld [vmem:[%s3618 + $0x20] sm:$0xf]
  %v3628 = vld [vmem:[%s3618 + $0x24] sm:$0xf]
  %v3629 = vld [vmem:[%s3618 + $0x28] sm:$0xf]
  %v3630 = vld [vmem:[%s3618 + $0x2c] sm:$0xf]
  %v3631 = vld [vmem:[%s3618 + $0x30] sm:$0xf]
  %v3632 = vld [vmem:[%s3618 + $0x34] sm:$0xf]
  %v3633 = vld [vmem:[%s3618 + $0x38] sm:$0xf]
  %v3634 = vld [vmem:[%s3618 + $0x3c] sm:$0xf]
  %v3635 = vld [vmem:[%s3618 + $0x40] sm:$0xf]
  %v3636 = vld [vmem:[%s3618 + $0x44] sm:$0xf]
  %v3637 = vld [vmem:[%s3618 + $0x48] sm:$0xf]
  %v3638 = vld [vmem:[%s3618 + $0x4c] sm:$0xf]
  %v3639 = vld [vmem:[%s3618 + $0x50] sm:$0xf]
  %v3640 = vld [vmem:[%s3618 + $0x54] sm:$0xf]
  %v3641 = vld [vmem:[%s3618 + $0x58] sm:$0xf]
  %v3642 = vld [vmem:[%s3618 + $0x5c] sm:$0xf]
  %v3643 = vld [vmem:[%s3618 + $0x60] sm:$0xf]
  %v3644 = vld [vmem:[%s3618 + $0x64] sm:$0xf]
  %v3645 = vld [vmem:[%s3618 + $0x68] sm:$0xf]
  %v3646 = vld [vmem:[%s3618 + $0x6c] sm:$0xf]
  %v3647 = vld [vmem:[%s3618 + $0x70] sm:$0xf]
  %v3648 = vld [vmem:[%s3618 + $0x74] sm:$0xf]
  %v3649 = vld [vmem:[%s3618 + $0x78] sm:$0xf]
  %v3650 = vld [vmem:[%s3618 + $0x7c] sm:$0xf]
  %v3651 = vld [vmem:[%s3618 + $0x80] sm:$0xf]
  %v3652 = vld [vmem:[%s3618 + $0x84] sm:$0xf]
  %v3653 = vld [vmem:[%s3618 + $0x88] sm:$0xf]
  %v3654 = vld [vmem:[%s3618 + $0x8c] sm:$0xf]
  %v3655 = vld [vmem:[%s3618 + $0x90] sm:$0xf]
  %v3656 = vld [vmem:[%s3618 + $0x94] sm:$0xf]
  %v3657 = vld [vmem:[%s3618 + $0x98] sm:$0xf]
  %v3658 = vld [vmem:[%s3618 + $0x9c] sm:$0xf]
  %v3659 = vld [vmem:[%s3618 + $0xa0] sm:$0xf]
  %v3660 = vld [vmem:[%s3618 + $0xa4] sm:$0xf]
  %v3661 = vld [vmem:[%s3618 + $0xa8] sm:$0xf]
  %v3662 = vld [vmem:[%s3618 + $0xac] sm:$0xf]
  %v3663 = vld [vmem:[%s3618 + $0xb0] sm:$0xf]
  %v3664 = vld [vmem:[%s3618 + $0xb4] sm:$0xf]
  %v3665 = vld [vmem:[%s3618 + $0xb8] sm:$0xf]
  %v3666 = vld [vmem:[%s3618 + $0xbc] sm:$0xf]
  %v3667 = vld [vmem:[%s3618 + $0xc0] sm:$0xf]
  %v3668 = vld [vmem:[%s3618 + $0xc4] sm:$0xf]
  %v3669 = vld [vmem:[%s3618 + $0xc8] sm:$0xf]
  %v3670 = vld [vmem:[%s3618 + $0xcc] sm:$0xf]
  %v3671 = vld [vmem:[%s3618 + $0xd0] sm:$0xf]
  %v3672 = vld [vmem:[%s3618 + $0xd4] sm:$0xf]
  %v3673 = vld [vmem:[%s3618 + $0xd8] sm:$0xf]
  %v3674 = vld [vmem:[%s3618 + $0xdc] sm:$0xf]
  %v3675 = vld [vmem:[%s3618 + $0xe0] sm:$0xf]
  %v3676 = vld [vmem:[%s3618 + $0xe4] sm:$0xf]
  %v3677 = vld [vmem:[%s3618 + $0xe8] sm:$0xf]
  %v3678 = vld [vmem:[%s3618 + $0xec] sm:$0xf]
  %v3679 = vld [vmem:[%s3618 + $0xf0] sm:$0xf]
  %v3680 = vld [vmem:[%s3618 + $0xf4] sm:$0xf]
  %v3681 = vld [vmem:[%s3618 + $0xf8] sm:$0xf]
  %v3682 = vld [vmem:[%s3618 + $0xfc] sm:$0xf]
  %v3683 = vld [vmem:[%s3618 + $0x100] sm:$0xf]
  %v3684 = vld [vmem:[%s3618 + $0x104] sm:$0xf]
  %v3685 = vld [vmem:[%s3618 + $0x108] sm:$0xf]
  %v3686 = vld [vmem:[%s3618 + $0x10c] sm:$0xf]
  %v3687 = vld [vmem:[%s3618 + $0x110] sm:$0xf]
  %v3688 = vld [vmem:[%s3618 + $0x114] sm:$0xf]
  %v3689 = vld [vmem:[%s3618 + $0x118] sm:$0xf]
  %v3690 = vld [vmem:[%s3618 + $0x11c] sm:$0xf]
  %v3691 = vld [vmem:[%s3618 + $0x120] sm:$0xf]
  %v3692 = vld [vmem:[%s3618 + $0x124] sm:$0xf]
  %v3693 = vld [vmem:[%s3618 + $0x128] sm:$0xf]
  %v3694 = vld [vmem:[%s3618 + $0x12c] sm:$0xf]
  %v3695 = vld [vmem:[%s3618 + $0x130] sm:$0xf]
  %v3696 = vld [vmem:[%s3618 + $0x134] sm:$0xf]
  %v3697 = vld [vmem:[%s3618 + $0x138] sm:$0xf]
  %v3698 = vld [vmem:[%s3618 + $0x13c] sm:$0xf]
  %v3699 = vld [vmem:[%s3618 + $0x140] sm:$0xf]
  %v3700 = vld [vmem:[%s3618 + $0x144] sm:$0xf]
  %v3701 = vld [vmem:[%s3618 + $0x148] sm:$0xf]
  %v3702 = vld [vmem:[%s3618 + $0x14c] sm:$0xf]
  %v3703 = vld [vmem:[%s3618 + $0x150] sm:$0xf]
  %v3704 = vld [vmem:[%s3618 + $0x154] sm:$0xf]
  %v3705 = vld [vmem:[%s3618 + $0x158] sm:$0xf]
  %v3706 = vld [vmem:[%s3618 + $0x15c] sm:$0xf]
  %v3707 = vld [vmem:[%s3618 + $0x160] sm:$0xf]
  %v3708 = vld [vmem:[%s3618 + $0x164] sm:$0xf]
  %v3709 = vld [vmem:[%s3618 + $0x168] sm:$0xf]
  %v3710 = vld [vmem:[%s3618 + $0x16c] sm:$0xf]
  %v3711 = vld [vmem:[%s3618 + $0x170] sm:$0xf]
  %v3712 = vld [vmem:[%s3618 + $0x174] sm:$0xf]
  %v3713 = vld [vmem:[%s3618 + $0x178] sm:$0xf]
  %v3714 = vld [vmem:[%s3618 + $0x17c] sm:$0xf]
  %v3715 = vld [vmem:[%s3618 + $0x180] sm:$0xf]
  %v3716 = vld [vmem:[%s3618 + $0x184] sm:$0xf]
  %v3717 = vld [vmem:[%s3618 + $0x188] sm:$0xf]
  %v3718 = vld [vmem:[%s3618 + $0x18c] sm:$0xf]
  %v3719 = vld [vmem:[%s3618 + $0x190] sm:$0xf]
  %v3720 = vld [vmem:[%s3618 + $0x194] sm:$0xf]
  %v3721 = vld [vmem:[%s3618 + $0x198] sm:$0xf]
  %v3722 = vld [vmem:[%s3618 + $0x19c] sm:$0xf]
  %v3723 = vld [vmem:[%s3618 + $0x1a0] sm:$0xf]
  %v3724 = vld [vmem:[%s3618 + $0x1a4] sm:$0xf]
  %v3725 = vld [vmem:[%s3618 + $0x1a8] sm:$0xf]
  %v3726 = vld [vmem:[%s3618 + $0x1ac] sm:$0xf]
  %v3727 = vld [vmem:[%s3618 + $0x1b0] sm:$0xf]
  %v3728 = vld [vmem:[%s3618 + $0x1b4] sm:$0xf]
  %v3729 = vld [vmem:[%s3618 + $0x1b8] sm:$0xf]
  %v3730 = vld [vmem:[%s3618 + $0x1bc] sm:$0xf]
  %v3731 = vld [vmem:[%s3618 + $0x1c0] sm:$0xf]
  %v3732 = vld [vmem:[%s3618 + $0x1c4] sm:$0xf]
  %v3733 = vld [vmem:[%s3618 + $0x1c8] sm:$0xf]
  %v3734 = vld [vmem:[%s3618 + $0x1cc] sm:$0xf]
  %v3735 = vld [vmem:[%s3618 + $0x1d0] sm:$0xf]
  %v3736 = vld [vmem:[%s3618 + $0x1d4] sm:$0xf]
  %v3737 = vld [vmem:[%s3618 + $0x1d8] sm:$0xf]
  %v3738 = vld [vmem:[%s3618 + $0x1dc] sm:$0xf]
  %v3739 = vld [vmem:[%s3618 + $0x1e0] sm:$0xf]
  %v3740 = vld [vmem:[%s3618 + $0x1e4] sm:$0xf]
  %v3741 = vld [vmem:[%s3618 + $0x1e8] sm:$0xf]
  %v3742 = vld [vmem:[%s3618 + $0x1ec] sm:$0xf]
  %v3743 = vld [vmem:[%s3618 + $0x1f0] sm:$0xf]
  %v3744 = vld [vmem:[%s3618 + $0x1f4] sm:$0xf]
  %v3745 = vld [vmem:[%s3618 + $0x1f8] sm:$0xf]
  %v3746 = vld [vmem:[%s3618 + $0x1fc] sm:$0xf]
  %v3747 = vld [vmem:[%s3618 + $0x200] sm:$0xf]
  %v3748 = vld [vmem:[%s3618 + $0x204] sm:$0xf]
  %v3749 = vld [vmem:[%s3618 + $0x208] sm:$0xf]
  %v3750 = vld [vmem:[%s3618 + $0x20c] sm:$0xf]
  %v3751 = vld [vmem:[%s3618 + $0x210] sm:$0xf]
  %v3752 = vld [vmem:[%s3618 + $0x214] sm:$0xf]
  %v3753 = vld [vmem:[%s3618 + $0x218] sm:$0xf]
  %v3754 = vld [vmem:[%s3618 + $0x21c] sm:$0xf]
  %v3755 = vld [vmem:[%s3618 + $0x220] sm:$0xf]
  %v3756 = vld [vmem:[%s3618 + $0x224] sm:$0xf]
  %v3757 = vld [vmem:[%s3618 + $0x228] sm:$0xf]
  %v3758 = vld [vmem:[%s3618 + $0x22c] sm:$0xf]
  %v3759 = vld [vmem:[%s3618 + $0x230] sm:$0xf]
  %v3760 = vld [vmem:[%s3618 + $0x234] sm:$0xf]
  %v3761 = vld [vmem:[%s3618 + $0x238] sm:$0xf]
  %v3762 = vld [vmem:[%s3618 + $0x23c] sm:$0xf]
  %v3763 = vld [vmem:[%s3618 + $0x240] sm:$0xf]
  %v3764 = vld [vmem:[%s3618 + $0x244] sm:$0xf]
  %v3765 = vld [vmem:[%s3618 + $0x248] sm:$0xf]
  %v3766 = vld [vmem:[%s3618 + $0x24c] sm:$0xf]
  %v3767 = vld [vmem:[%s3618 + $0x250] sm:$0xf]
  %v3768 = vld [vmem:[%s3618 + $0x254] sm:$0xf]
  %v3769 = vld [vmem:[%s3618 + $0x258] sm:$0xf]
  %v3770 = vld [vmem:[%s3618 + $0x25c] sm:$0xf]
  %v3771 = vld [vmem:[%s3618 + $0x260] sm:$0xf]
  %v3772 = vld [vmem:[%s3618 + $0x264] sm:$0xf]
  %v3773 = vld [vmem:[%s3618 + $0x268] sm:$0xf]
  %v3774 = vld [vmem:[%s3618 + $0x26c] sm:$0xf]
  %v3775 = vld [vmem:[%s3618 + $0x270] sm:$0xf]
  %v3776 = vld [vmem:[%s3618 + $0x274] sm:$0xf]
  %v3777 = vld [vmem:[%s3618 + $0x278] sm:$0xf]
  %v3778 = vld [vmem:[%s3618 + $0x27c] sm:$0xf]
  %v3779 = vld [vmem:[%s3618 + $0x280] sm:$0xf]
  %v3780 = vld [vmem:[%s3618 + $0x284] sm:$0xf]
  %v3781 = vld [vmem:[%s3618 + $0x288] sm:$0xf]
  %v3782 = vld [vmem:[%s3618 + $0x28c] sm:$0xf]
  %v3783 = vld [vmem:[%s3618 + $0x290] sm:$0xf]
  %v3784 = vld [vmem:[%s3618 + $0x294] sm:$0xf]
  %v3785 = vld [vmem:[%s3618 + $0x298] sm:$0xf]
  %v3786 = vld [vmem:[%s3618 + $0x29c] sm:$0xf]
  %v3787 = vld [vmem:[%s3618 + $0x2a0] sm:$0xf]
  %v3788 = vld [vmem:[%s3618 + $0x2a4] sm:$0xf]
  %v3789 = vld [vmem:[%s3618 + $0x2a8] sm:$0xf]
  %v3790 = vld [vmem:[%s3618 + $0x2ac] sm:$0xf]
  %v3791 = vld [vmem:[%s3618 + $0x2b0] sm:$0xf]
  %v3792 = vld [vmem:[%s3618 + $0x2b4] sm:$0xf]
  %v3793 = vld [vmem:[%s3618 + $0x2b8] sm:$0xf]
  %v3794 = vld [vmem:[%s3618 + $0x2bc] sm:$0xf]
  %v3795 = vld [vmem:[%s3618 + $0x2c0] sm:$0xf]
  %v3796 = vld [vmem:[%s3618 + $0x2c4] sm:$0xf]
  %v3797 = vld [vmem:[%s3618 + $0x2c8] sm:$0xf]
  %v3798 = vld [vmem:[%s3618 + $0x2cc] sm:$0xf]
  %v3799 = vld [vmem:[%s3618 + $0x2d0] sm:$0xf]
  %v3800 = vld [vmem:[%s3618 + $0x2d4] sm:$0xf]
  %v3801 = vld [vmem:[%s3618 + $0x2d8] sm:$0xf]
  %v3802 = vld [vmem:[%s3618 + $0x2dc] sm:$0xf]
  %v3803 = vld [vmem:[%s3618 + $0x2e0] sm:$0xf]
  %v3804 = vld [vmem:[%s3618 + $0x2e4] sm:$0xf]
  %v3805 = vld [vmem:[%s3618 + $0x2e8] sm:$0xf]
  %v3806 = vld [vmem:[%s3618 + $0x2ec] sm:$0xf]
  %v3807 = vld [vmem:[%s3618 + $0x2f0] sm:$0xf]
  %v3808 = vld [vmem:[%s3618 + $0x2f4] sm:$0xf]
  %v3809 = vld [vmem:[%s3618 + $0x2f8] sm:$0xf]
  %v3810 = vld [vmem:[%s3618 + $0x2fc] sm:$0xf]
  %v3811 = vld [vmem:[%s3618 + $0x300] sm:$0xf]
  %v3812 = vld [vmem:[%s3618 + $0x304] sm:$0xf]
  %v3813 = vld [vmem:[%s3618 + $0x308] sm:$0xf]
  %v3814 = vld [vmem:[%s3618 + $0x30c] sm:$0xf]
  %v3815 = vld [vmem:[%s3618 + $0x310] sm:$0xf]
  %v3816 = vld [vmem:[%s3618 + $0x314] sm:$0xf]
  %v3817 = vld [vmem:[%s3618 + $0x318] sm:$0xf]
  %v3818 = vld [vmem:[%s3618 + $0x31c] sm:$0xf]
  %v3819 = vld [vmem:[%s3618 + $0x320] sm:$0xf]
  %v3820 = vld [vmem:[%s3618 + $0x324] sm:$0xf]
  %v3821 = vld [vmem:[%s3618 + $0x328] sm:$0xf]
  %v3822 = vld [vmem:[%s3618 + $0x32c] sm:$0xf]
  %v3823 = vld [vmem:[%s3618 + $0x330] sm:$0xf]
  %v3824 = vld [vmem:[%s3618 + $0x334] sm:$0xf]
  %v3825 = vld [vmem:[%s3618 + $0x338] sm:$0xf]
  %v3826 = vld [vmem:[%s3618 + $0x33c] sm:$0xf]
  %v3827 = vld [vmem:[%s3618 + $0x340] sm:$0xf]
  %v3828 = vld [vmem:[%s3618 + $0x344] sm:$0xf]
  %v3829 = vld [vmem:[%s3618 + $0x348] sm:$0xf]
  %v3830 = vld [vmem:[%s3618 + $0x34c] sm:$0xf]
  %v3831 = vld [vmem:[%s3618 + $0x350] sm:$0xf]
  %v3832 = vld [vmem:[%s3618 + $0x354] sm:$0xf]
  %v3833 = vld [vmem:[%s3618 + $0x358] sm:$0xf]
  %v3834 = vld [vmem:[%s3618 + $0x35c] sm:$0xf]
  %v3835 = vld [vmem:[%s3618 + $0x360] sm:$0xf]
  %v3836 = vld [vmem:[%s3618 + $0x364] sm:$0xf]
  %v3837 = vld [vmem:[%s3618 + $0x368] sm:$0xf]
  %v3838 = vld [vmem:[%s3618 + $0x36c] sm:$0xf]
  %v3839 = vld [vmem:[%s3618 + $0x370] sm:$0xf]
  %v3840 = vld [vmem:[%s3618 + $0x374] sm:$0xf]
  %v3841 = vld [vmem:[%s3618 + $0x378] sm:$0xf]
  %v3842 = vld [vmem:[%s3618 + $0x37c] sm:$0xf]
  %v3843 = vld [vmem:[%s3618 + $0x380] sm:$0xf]
  %v3844 = vld [vmem:[%s3618 + $0x384] sm:$0xf]
  %v3845 = vld [vmem:[%s3618 + $0x388] sm:$0xf]
  %v3846 = vld [vmem:[%s3618 + $0x38c] sm:$0xf]
  %v3847 = vld [vmem:[%s3618 + $0x390] sm:$0xf]
  %v3848 = vld [vmem:[%s3618 + $0x394] sm:$0xf]
  %v3849 = vld [vmem:[%s3618 + $0x398] sm:$0xf]
  %v3850 = vld [vmem:[%s3618 + $0x39c] sm:$0xf]
  %v3851 = vld [vmem:[%s3618 + $0x3a0] sm:$0xf]
  %v3852 = vld [vmem:[%s3618 + $0x3a4] sm:$0xf]
  %v3853 = vld [vmem:[%s3618 + $0x3a8] sm:$0xf]
  %v3854 = vld [vmem:[%s3618 + $0x3ac] sm:$0xf]
  %v3855 = vld [vmem:[%s3618 + $0x3b0] sm:$0xf]
  %v3856 = vld [vmem:[%s3618 + $0x3b4] sm:$0xf]
  %v3857 = vld [vmem:[%s3618 + $0x3b8] sm:$0xf]
  %v3858 = vld [vmem:[%s3618 + $0x3bc] sm:$0xf]
  %v3859 = vld [vmem:[%s3618 + $0x3c0] sm:$0xf]
  %v3860 = vld [vmem:[%s3618 + $0x3c4] sm:$0xf]
  %v3861 = vld [vmem:[%s3618 + $0x3c8] sm:$0xf]
  %v3862 = vld [vmem:[%s3618 + $0x3cc] sm:$0xf]
  %v3863 = vld [vmem:[%s3618 + $0x3d0] sm:$0xf]
  %v3864 = vld [vmem:[%s3618 + $0x3d4] sm:$0xf]
  %v3865 = vld [vmem:[%s3618 + $0x3d8] sm:$0xf]
  %v3866 = vld [vmem:[%s3618 + $0x3dc] sm:$0xf]
  %v3867 = vld [vmem:[%s3618 + $0x3e0] sm:$0xf]
  %v3868 = vld [vmem:[%s3618 + $0x3e4] sm:$0xf]
  %v3869 = vld [vmem:[%s3618 + $0x3e8] sm:$0xf]
  %v3870 = vld [vmem:[%s3618 + $0x3ec] sm:$0xf]
  %v3871 = vld [vmem:[%s3618 + $0x3f0] sm:$0xf]
  %v3872 = vld [vmem:[%s3618 + $0x3f4] sm:$0xf]
  %v3873 = vld [vmem:[%s3618 + $0x3f8] sm:$0xf]
  %v3874 = vld [vmem:[%s3618 + $0x3fc] sm:$0xf]
  %v4131 = vunpack.c.l.b16 %v3619
  %v4132 = vunpack.c.l.b16 %v3620
  %v4133 = vunpack.c.l.b16 %v3621
  %v4134 = vunpack.c.l.b16 %v3622
  %v4135 = vunpack.c.l.b16 %v3623
  %v4136 = vunpack.c.l.b16 %v3624
  %v4137 = vunpack.c.l.b16 %v3625
  %v4138 = vunpack.c.l.b16 %v3626
  %v4139 = vunpack.c.l.b16 %v3627
  %v4140 = vunpack.c.l.b16 %v3628
  %v4141 = vunpack.c.l.b16 %v3629
  %v4142 = vunpack.c.l.b16 %v3630
  %v4143 = vunpack.c.l.b16 %v3631
  %v4144 = vunpack.c.l.b16 %v3632
  %v4145 = vunpack.c.l.b16 %v3633
  %v4146 = vunpack.c.l.b16 %v3634
  %v4147 = vunpack.c.l.b16 %v3635
  %v4148 = vunpack.c.l.b16 %v3636
  %v4149 = vunpack.c.l.b16 %v3637
  %v4150 = vunpack.c.l.b16 %v3638
  %v4151 = vunpack.c.l.b16 %v3639
  %v4152 = vunpack.c.l.b16 %v3640
  %v4153 = vunpack.c.l.b16 %v3641
  %v4154 = vunpack.c.l.b16 %v3642
  %v4155 = vunpack.c.l.b16 %v3643
  %v4156 = vunpack.c.l.b16 %v3644
  %v4157 = vunpack.c.l.b16 %v3645
  %v4158 = vunpack.c.l.b16 %v3646
  %v4159 = vunpack.c.l.b16 %v3647
  %v4160 = vunpack.c.l.b16 %v3648
  %v4161 = vunpack.c.l.b16 %v3649
  %v4162 = vunpack.c.l.b16 %v3650
  %v4163 = vunpack.c.l.b16 %v3651
  %v4164 = vunpack.c.l.b16 %v3652
  %v4165 = vunpack.c.l.b16 %v3653
  %v4166 = vunpack.c.l.b16 %v3654
  %v4167 = vunpack.c.l.b16 %v3655
  %v4168 = vunpack.c.l.b16 %v3656
  %v4169 = vunpack.c.l.b16 %v3657
  %v4170 = vunpack.c.l.b16 %v3658
  %v4171 = vunpack.c.l.b16 %v3659
  %v4172 = vunpack.c.l.b16 %v3660
  %v4173 = vunpack.c.l.b16 %v3661
  %v4174 = vunpack.c.l.b16 %v3662
  %v4175 = vunpack.c.l.b16 %v3663
  %v4176 = vunpack.c.l.b16 %v3664
  %v4177 = vunpack.c.l.b16 %v3665
  %v4178 = vunpack.c.l.b16 %v3666
  %v4179 = vunpack.c.l.b16 %v3667
  %v4180 = vunpack.c.l.b16 %v3668
  %v4181 = vunpack.c.l.b16 %v3669
  %v4182 = vunpack.c.l.b16 %v3670
  %v4183 = vunpack.c.l.b16 %v3671
  %v4184 = vunpack.c.l.b16 %v3672
  %v4185 = vunpack.c.l.b16 %v3673
  %v4186 = vunpack.c.l.b16 %v3674
  %v4187 = vunpack.c.l.b16 %v3675
  %v4188 = vunpack.c.l.b16 %v3676
  %v4189 = vunpack.c.l.b16 %v3677
  %v4190 = vunpack.c.l.b16 %v3678
  %v4191 = vunpack.c.l.b16 %v3679
  %v4192 = vunpack.c.l.b16 %v3680
  %v4193 = vunpack.c.l.b16 %v3681
  %v4194 = vunpack.c.l.b16 %v3682
  %v4195 = vunpack.c.l.b16 %v3683
  %v4196 = vunpack.c.l.b16 %v3684
  %v4197 = vunpack.c.l.b16 %v3685
  %v4198 = vunpack.c.l.b16 %v3686
  %v4199 = vunpack.c.l.b16 %v3687
  %v4200 = vunpack.c.l.b16 %v3688
  %v4201 = vunpack.c.l.b16 %v3689
  %v4202 = vunpack.c.l.b16 %v3690
  %v4203 = vunpack.c.l.b16 %v3691
  %v4204 = vunpack.c.l.b16 %v3692
  %v4205 = vunpack.c.l.b16 %v3693
  %v4206 = vunpack.c.l.b16 %v3694
  %v4207 = vunpack.c.l.b16 %v3695
  %v4208 = vunpack.c.l.b16 %v3696
  %v4209 = vunpack.c.l.b16 %v3697
  %v4210 = vunpack.c.l.b16 %v3698
  %v4211 = vunpack.c.l.b16 %v3699
  %v4212 = vunpack.c.l.b16 %v3700
  %v4213 = vunpack.c.l.b16 %v3701
  %v4214 = vunpack.c.l.b16 %v3702
  %v4215 = vunpack.c.l.b16 %v3703
  %v4216 = vunpack.c.l.b16 %v3704
  %v4217 = vunpack.c.l.b16 %v3705
  %v4218 = vunpack.c.l.b16 %v3706
  %v4219 = vunpack.c.l.b16 %v3707
  %v4220 = vunpack.c.l.b16 %v3708
  %v4221 = vunpack.c.l.b16 %v3709
  %v4222 = vunpack.c.l.b16 %v3710
  %v4223 = vunpack.c.l.b16 %v3711
  %v4224 = vunpack.c.l.b16 %v3712
  %v4225 = vunpack.c.l.b16 %v3713
  %v4226 = vunpack.c.l.b16 %v3714
  %v4227 = vunpack.c.l.b16 %v3715
  %v4228 = vunpack.c.l.b16 %v3716
  %v4229 = vunpack.c.l.b16 %v3717
  %v4230 = vunpack.c.l.b16 %v3718
  %v4231 = vunpack.c.l.b16 %v3719
  %v4232 = vunpack.c.l.b16 %v3720
  %v4233 = vunpack.c.l.b16 %v3721
  %v4234 = vunpack.c.l.b16 %v3722
  %v4235 = vunpack.c.l.b16 %v3723
  %v4236 = vunpack.c.l.b16 %v3724
  %v4237 = vunpack.c.l.b16 %v3725
  %v4238 = vunpack.c.l.b16 %v3726
  %v4239 = vunpack.c.l.b16 %v3727
  %v4240 = vunpack.c.l.b16 %v3728
  %v4241 = vunpack.c.l.b16 %v3729
  %v4242 = vunpack.c.l.b16 %v3730
  %v4243 = vunpack.c.l.b16 %v3731
  %v4244 = vunpack.c.l.b16 %v3732
  %v4245 = vunpack.c.l.b16 %v3733
  %v4246 = vunpack.c.l.b16 %v3734
  %v4247 = vunpack.c.l.b16 %v3735
  %v4248 = vunpack.c.l.b16 %v3736
  %v4249 = vunpack.c.l.b16 %v3737
  %v4250 = vunpack.c.l.b16 %v3738
  %v4251 = vunpack.c.l.b16 %v3739
  %v4252 = vunpack.c.l.b16 %v3740
  %v4253 = vunpack.c.l.b16 %v3741
  %v4254 = vunpack.c.l.b16 %v3742
  %v4255 = vunpack.c.l.b16 %v3743
  %v4256 = vunpack.c.l.b16 %v3744
  %v4257 = vunpack.c.l.b16 %v3745
  %v4258 = vunpack.c.l.b16 %v3746
  %v4259 = vunpack.c.l.b16 %v3747
  %v4260 = vunpack.c.l.b16 %v3748
  %v4261 = vunpack.c.l.b16 %v3749
  %v4262 = vunpack.c.l.b16 %v3750
  %v4263 = vunpack.c.l.b16 %v3751
  %v4264 = vunpack.c.l.b16 %v3752
  %v4265 = vunpack.c.l.b16 %v3753
  %v4266 = vunpack.c.l.b16 %v3754
  %v4267 = vunpack.c.l.b16 %v3755
  %v4268 = vunpack.c.l.b16 %v3756
  %v4269 = vunpack.c.l.b16 %v3757
  %v4270 = vunpack.c.l.b16 %v3758
  %v4271 = vunpack.c.l.b16 %v3759
  %v4272 = vunpack.c.l.b16 %v3760
  %v4273 = vunpack.c.l.b16 %v3761
  %v4274 = vunpack.c.l.b16 %v3762
  %v4275 = vunpack.c.l.b16 %v3763
  %v4276 = vunpack.c.l.b16 %v3764
  %v4277 = vunpack.c.l.b16 %v3765
  %v4278 = vunpack.c.l.b16 %v3766
  %v4279 = vunpack.c.l.b16 %v3767
  %v4280 = vunpack.c.l.b16 %v3768
  %v4281 = vunpack.c.l.b16 %v3769
  %v4282 = vunpack.c.l.b16 %v3770
  %v4283 = vunpack.c.l.b16 %v3771
  %v4284 = vunpack.c.l.b16 %v3772
  %v4285 = vunpack.c.l.b16 %v3773
  %v4286 = vunpack.c.l.b16 %v3774
  %v4287 = vunpack.c.l.b16 %v3775
  %v4288 = vunpack.c.l.b16 %v3776
  %v4289 = vunpack.c.l.b16 %v3777
  %v4290 = vunpack.c.l.b16 %v3778
  %v4291 = vunpack.c.l.b16 %v3779
  %v4292 = vunpack.c.l.b16 %v3780
  %v4293 = vunpack.c.l.b16 %v3781
  %v4294 = vunpack.c.l.b16 %v3782
  %v4295 = vunpack.c.l.b16 %v3783
  %v4296 = vunpack.c.l.b16 %v3784
  %v4297 = vunpack.c.l.b16 %v3785
  %v4298 = vunpack.c.l.b16 %v3786
  %v4299 = vunpack.c.l.b16 %v3787
  %v4300 = vunpack.c.l.b16 %v3788
  %v4301 = vunpack.c.l.b16 %v3789
  %v4302 = vunpack.c.l.b16 %v3790
  %v4303 = vunpack.c.l.b16 %v3791
  %v4304 = vunpack.c.l.b16 %v3792
  %v4305 = vunpack.c.l.b16 %v3793
  %v4306 = vunpack.c.l.b16 %v3794
  %v4307 = vunpack.c.l.b16 %v3795
  %v4308 = vunpack.c.l.b16 %v3796
  %v4309 = vunpack.c.l.b16 %v3797
  %v4310 = vunpack.c.l.b16 %v3798
  %v4311 = vunpack.c.l.b16 %v3799
  %v4312 = vunpack.c.l.b16 %v3800
  %v4313 = vunpack.c.l.b16 %v3801
  %v4314 = vunpack.c.l.b16 %v3802
  %v4315 = vunpack.c.l.b16 %v3803
  %v4316 = vunpack.c.l.b16 %v3804
  %v4317 = vunpack.c.l.b16 %v3805
  %v4318 = vunpack.c.l.b16 %v3806
  %v4319 = vunpack.c.l.b16 %v3807
  %v4320 = vunpack.c.l.b16 %v3808
  %v4321 = vunpack.c.l.b16 %v3809
  %v4322 = vunpack.c.l.b16 %v3810
  %v4323 = vunpack.c.l.b16 %v3811
  %v4324 = vunpack.c.l.b16 %v3812
  %v4325 = vunpack.c.l.b16 %v3813
  %v4326 = vunpack.c.l.b16 %v3814
  %v4327 = vunpack.c.l.b16 %v3815
  %v4328 = vunpack.c.l.b16 %v3816
  %v4329 = vunpack.c.l.b16 %v3817
  %v4330 = vunpack.c.l.b16 %v3818
  %v4331 = vunpack.c.l.b16 %v3819
  %v4332 = vunpack.c.l.b16 %v3820
  %v4333 = vunpack.c.l.b16 %v3821
  %v4334 = vunpack.c.l.b16 %v3822
  %v4335 = vunpack.c.l.b16 %v3823
  %v4336 = vunpack.c.l.b16 %v3824
  %v4337 = vunpack.c.l.b16 %v3825
  %v4338 = vunpack.c.l.b16 %v3826
  %v4339 = vunpack.c.l.b16 %v3827
  %v4340 = vunpack.c.l.b16 %v3828
  %v4341 = vunpack.c.l.b16 %v3829
  %v4342 = vunpack.c.l.b16 %v3830
  %v4343 = vunpack.c.l.b16 %v3831
  %v4344 = vunpack.c.l.b16 %v3832
  %v4345 = vunpack.c.l.b16 %v3833
  %v4346 = vunpack.c.l.b16 %v3834
  %v4347 = vunpack.c.l.b16 %v3835
  %v4348 = vunpack.c.l.b16 %v3836
  %v4349 = vunpack.c.l.b16 %v3837
  %v4350 = vunpack.c.l.b16 %v3838
  %v4351 = vunpack.c.l.b16 %v3839
  %v4352 = vunpack.c.l.b16 %v3840
  %v4353 = vunpack.c.l.b16 %v3841
  %v4354 = vunpack.c.l.b16 %v3842
  %v4355 = vunpack.c.l.b16 %v3843
  %v4356 = vunpack.c.l.b16 %v3844
  %v4357 = vunpack.c.l.b16 %v3845
  %v4358 = vunpack.c.l.b16 %v3846
  %v4359 = vunpack.c.l.b16 %v3847
  %v4360 = vunpack.c.l.b16 %v3848
  %v4361 = vunpack.c.l.b16 %v3849
  %v4362 = vunpack.c.l.b16 %v3850
  %v4363 = vunpack.c.l.b16 %v3851
  %v4364 = vunpack.c.l.b16 %v3852
  %v4365 = vunpack.c.l.b16 %v3853
  %v4366 = vunpack.c.l.b16 %v3854
  %v4367 = vunpack.c.l.b16 %v3855
  %v4368 = vunpack.c.l.b16 %v3856
  %v4369 = vunpack.c.l.b16 %v3857
  %v4370 = vunpack.c.l.b16 %v3858
  %v4371 = vunpack.c.l.b16 %v3859
  %v4372 = vunpack.c.l.b16 %v3860
  %v4373 = vunpack.c.l.b16 %v3861
  %v4374 = vunpack.c.l.b16 %v3862
  %v4375 = vunpack.c.l.b16 %v3863
  %v4376 = vunpack.c.l.b16 %v3864
  %v4377 = vunpack.c.l.b16 %v3865
  %v4378 = vunpack.c.l.b16 %v3866
  %v4379 = vunpack.c.l.b16 %v3867
  %v4380 = vunpack.c.l.b16 %v3868
  %v4381 = vunpack.c.l.b16 %v3869
  %v4382 = vunpack.c.l.b16 %v3870
  %v4383 = vunpack.c.l.b16 %v3871
  %v4384 = vunpack.c.l.b16 %v3872
  %v4385 = vunpack.c.l.b16 %v3873
  %v4386 = vunpack.c.l.b16 %v3874
  %v4387 = vpack.c.b16 %v4132, %v4131
  %v4388 = vpack.c.b16 %v4134, %v4133
  %v4389 = vpack.c.b16 %v4136, %v4135
  %v4390 = vpack.c.b16 %v4138, %v4137
  %v4391 = vpack.c.b16 %v4140, %v4139
  %v4392 = vpack.c.b16 %v4142, %v4141
  %v4393 = vpack.c.b16 %v4144, %v4143
  %v4394 = vpack.c.b16 %v4146, %v4145
  %v4395 = vpack.c.b16 %v4148, %v4147
  %v4396 = vpack.c.b16 %v4150, %v4149
  %v4397 = vpack.c.b16 %v4152, %v4151
  %v4398 = vpack.c.b16 %v4154, %v4153
  %v4399 = vpack.c.b16 %v4156, %v4155
  %v4400 = vpack.c.b16 %v4158, %v4157
  %v4401 = vpack.c.b16 %v4160, %v4159
  %v4402 = vpack.c.b16 %v4162, %v4161
  %v4403 = vpack.c.b16 %v4164, %v4163
  %v4404 = vpack.c.b16 %v4166, %v4165
  %v4405 = vpack.c.b16 %v4168, %v4167
  %v4406 = vpack.c.b16 %v4170, %v4169
  %v4407 = vpack.c.b16 %v4172, %v4171
  %v4408 = vpack.c.b16 %v4174, %v4173
  %v4409 = vpack.c.b16 %v4176, %v4175
  %v4410 = vpack.c.b16 %v4178, %v4177
  %v4411 = vpack.c.b16 %v4180, %v4179
  %v4412 = vpack.c.b16 %v4182, %v4181
  %v4413 = vpack.c.b16 %v4184, %v4183
  %v4414 = vpack.c.b16 %v4186, %v4185
  %v4415 = vpack.c.b16 %v4188, %v4187
  %v4416 = vpack.c.b16 %v4190, %v4189
  %v4417 = vpack.c.b16 %v4192, %v4191
  %v4418 = vpack.c.b16 %v4194, %v4193
  %v4419 = vpack.c.b16 %v4196, %v4195
  %v4420 = vpack.c.b16 %v4198, %v4197
  %v4421 = vpack.c.b16 %v4200, %v4199
  %v4422 = vpack.c.b16 %v4202, %v4201
  %v4423 = vpack.c.b16 %v4204, %v4203
  %v4424 = vpack.c.b16 %v4206, %v4205
  %v4425 = vpack.c.b16 %v4208, %v4207
  %v4426 = vpack.c.b16 %v4210, %v4209
  %v4427 = vpack.c.b16 %v4212, %v4211
  %v4428 = vpack.c.b16 %v4214, %v4213
  %v4429 = vpack.c.b16 %v4216, %v4215
  %v4430 = vpack.c.b16 %v4218, %v4217
  %v4431 = vpack.c.b16 %v4220, %v4219
  %v4432 = vpack.c.b16 %v4222, %v4221
  %v4433 = vpack.c.b16 %v4224, %v4223
  %v4434 = vpack.c.b16 %v4226, %v4225
  %v4435 = vpack.c.b16 %v4228, %v4227
  %v4436 = vpack.c.b16 %v4230, %v4229
  %v4437 = vpack.c.b16 %v4232, %v4231
  %v4438 = vpack.c.b16 %v4234, %v4233
  %v4439 = vpack.c.b16 %v4236, %v4235
  %v4440 = vpack.c.b16 %v4238, %v4237
  %v4441 = vpack.c.b16 %v4240, %v4239
  %v4442 = vpack.c.b16 %v4242, %v4241
  %v4443 = vpack.c.b16 %v4244, %v4243
  %v4444 = vpack.c.b16 %v4246, %v4245
  %v4445 = vpack.c.b16 %v4248, %v4247
  %v4446 = vpack.c.b16 %v4250, %v4249
  %v4447 = vpack.c.b16 %v4252, %v4251
  %v4448 = vpack.c.b16 %v4254, %v4253
  %v4449 = vpack.c.b16 %v4256, %v4255
  %v4450 = vpack.c.b16 %v4258, %v4257
  %v4451 = vpack.c.b16 %v4260, %v4259
  %v4452 = vpack.c.b16 %v4262, %v4261
  %v4453 = vpack.c.b16 %v4264, %v4263
  %v4454 = vpack.c.b16 %v4266, %v4265
  %v4455 = vpack.c.b16 %v4268, %v4267
  %v4456 = vpack.c.b16 %v4270, %v4269
  %v4457 = vpack.c.b16 %v4272, %v4271
  %v4458 = vpack.c.b16 %v4274, %v4273
  %v4459 = vpack.c.b16 %v4276, %v4275
  %v4460 = vpack.c.b16 %v4278, %v4277
  %v4461 = vpack.c.b16 %v4280, %v4279
  %v4462 = vpack.c.b16 %v4282, %v4281
  %v4463 = vpack.c.b16 %v4284, %v4283
  %v4464 = vpack.c.b16 %v4286, %v4285
  %v4465 = vpack.c.b16 %v4288, %v4287
  %v4466 = vpack.c.b16 %v4290, %v4289
  %v4467 = vpack.c.b16 %v4292, %v4291
  %v4468 = vpack.c.b16 %v4294, %v4293
  %v4469 = vpack.c.b16 %v4296, %v4295
  %v4470 = vpack.c.b16 %v4298, %v4297
  %v4471 = vpack.c.b16 %v4300, %v4299
  %v4472 = vpack.c.b16 %v4302, %v4301
  %v4473 = vpack.c.b16 %v4304, %v4303
  %v4474 = vpack.c.b16 %v4306, %v4305
  %v4475 = vpack.c.b16 %v4308, %v4307
  %v4476 = vpack.c.b16 %v4310, %v4309
  %v4477 = vpack.c.b16 %v4312, %v4311
  %v4478 = vpack.c.b16 %v4314, %v4313
  %v4479 = vpack.c.b16 %v4316, %v4315
  %v4480 = vpack.c.b16 %v4318, %v4317
  %v4481 = vpack.c.b16 %v4320, %v4319
  %v4482 = vpack.c.b16 %v4322, %v4321
  %v4483 = vpack.c.b16 %v4324, %v4323
  %v4484 = vpack.c.b16 %v4326, %v4325
  %v4485 = vpack.c.b16 %v4328, %v4327
  %v4486 = vpack.c.b16 %v4330, %v4329
  %v4487 = vpack.c.b16 %v4332, %v4331
  %v4488 = vpack.c.b16 %v4334, %v4333
  %v4489 = vpack.c.b16 %v4336, %v4335
  %v4490 = vpack.c.b16 %v4338, %v4337
  %v4491 = vpack.c.b16 %v4340, %v4339
  %v4492 = vpack.c.b16 %v4342, %v4341
  %v4493 = vpack.c.b16 %v4344, %v4343
  %v4494 = vpack.c.b16 %v4346, %v4345
  %v4495 = vpack.c.b16 %v4348, %v4347
  %v4496 = vpack.c.b16 %v4350, %v4349
  %v4497 = vpack.c.b16 %v4352, %v4351
  %v4498 = vpack.c.b16 %v4354, %v4353
  %v4499 = vpack.c.b16 %v4356, %v4355
  %v4500 = vpack.c.b16 %v4358, %v4357
  %v4501 = vpack.c.b16 %v4360, %v4359
  %v4502 = vpack.c.b16 %v4362, %v4361
  %v4503 = vpack.c.b16 %v4364, %v4363
  %v4504 = vpack.c.b16 %v4366, %v4365
  %v4505 = vpack.c.b16 %v4368, %v4367
  %v4506 = vpack.c.b16 %v4370, %v4369
  %v4507 = vpack.c.b16 %v4372, %v4371
  %v4508 = vpack.c.b16 %v4374, %v4373
  %v4509 = vpack.c.b16 %v4376, %v4375
  %v4510 = vpack.c.b16 %v4378, %v4377
  %v4511 = vpack.c.b16 %v4380, %v4379
  %v4512 = vpack.c.b16 %v4382, %v4381
  %v4513 = vpack.c.b16 %v4384, %v4383
  %v4514 = vpack.c.b16 %v4386, %v4385
  %4643 = vrot.lane.b32.xlu0 %v2535, 108
  %v4644 = vpop.permute.xlu0 %4643
  %4646 = vmatprep.subr.bf16.mxu0 0
  %4647 = vmatpush1.bf16.msra.mxu0 %v4394
  %4648 = vmatprep.subr.bf16.mxu0 0
  %4649 = vmatpush1.bf16.msra.mxu0 %v4393
  %4650 = vmatprep.subr.bf16.mxu0 0
  %4651 = vmatpush1.bf16.msra.mxu0 %v4392
  %4652 = vmatprep.subr.bf16.mxu0 0
  %4653 = vmatpush1.bf16.msra.mxu0 %v4391
  %4654 = vmatprep.subr.bf16.mxu0 0
  %4655 = vmatpush1.bf16.msra.mxu0 %v4390
  %4656 = vmatprep.subr.bf16.mxu0 0
  %4657 = vmatpush1.bf16.msra.mxu0 %v4389
  %4658 = vmatprep.subr.bf16.mxu0 0
  %4659 = vmatpush1.bf16.msra.mxu0 %v4388
  %4660 = vmatprep.subr.bf16.mxu0 0
  %4661 = vmatpush1.bf16.msra.mxu0 %v4387
  %4662 = vmatprep.subr.bf16.mxu0 0
  %4663 = vmatpush2.bf16.msra.mxu0 %v4402
  %4664 = vmatprep.subr.bf16.mxu0 0
  %4665 = vmatpush2.bf16.msra.mxu0 %v4401
  %4666 = vmatprep.subr.bf16.mxu0 0
  %4667 = vmatpush2.bf16.msra.mxu0 %v4400
  %4668 = vmatprep.subr.bf16.mxu0 0
  %4669 = vmatpush2.bf16.msra.mxu0 %v4399
  %4670 = vmatprep.subr.bf16.mxu0 0
  %4671 = vmatpush2.bf16.msra.mxu0 %v4398
  %4672 = vmatprep.subr.bf16.mxu0 0
  %4673 = vmatpush2.bf16.msra.mxu0 %v4397
  %4674 = vmatprep.subr.bf16.mxu0 0
  %4675 = vmatpush2.bf16.msra.mxu0 %v4396
  %4676 = vmatprep.subr.bf16.mxu0 0
  %4677 = vmatpush2.bf16.msra.mxu0 %v4395
  %4678 = vmatprep.mubr.bf16.mxu0 %v3603
  %4679 = vmatmul.mubr.bf16.gmra.mxu0 %v3602
  %v4680 = vpop.f32.mrf.mxu0
  %v4681 = vadd.f32 %v4644, %v4680
  %v4682 = vpop.f32.mrf.mxu0
  %v4683 = vpop.f32.mrf.mxu0
  %v4684 = vadd.f32 %v4644, %v4683
  %v4685 = vpop.f32.mrf.mxu0
  %4686 = vdwg.mxu0
  %4687 = vmatprep.subr.bf16.mxu0 0
  %4688 = vmatpush1.bf16.msra.mxu0 %v4410
  %4689 = vmatprep.subr.bf16.mxu0 0
  %4690 = vmatpush1.bf16.msra.mxu0 %v4409
  %4691 = vmatprep.subr.bf16.mxu0 0
  %4692 = vmatpush1.bf16.msra.mxu0 %v4408
  %4693 = vmatprep.subr.bf16.mxu0 0
  %4694 = vmatpush1.bf16.msra.mxu0 %v4407
  %4695 = vmatprep.subr.bf16.mxu0 0
  %4696 = vmatpush1.bf16.msra.mxu0 %v4406
  %4697 = vmatprep.subr.bf16.mxu0 0
  %4698 = vmatpush1.bf16.msra.mxu0 %v4405
  %4699 = vmatprep.subr.bf16.mxu0 0
  %4700 = vmatpush1.bf16.msra.mxu0 %v4404
  %4701 = vmatprep.subr.bf16.mxu0 0
  %4702 = vmatpush1.bf16.msra.mxu0 %v4403
  %4703 = vmatprep.subr.bf16.mxu0 0
  %4704 = vmatpush2.bf16.msra.mxu0 %v4418
  %4705 = vmatprep.subr.bf16.mxu0 0
  %4706 = vmatpush2.bf16.msra.mxu0 %v4417
  %4707 = vmatprep.subr.bf16.mxu0 0
  %4708 = vmatpush2.bf16.msra.mxu0 %v4416
  %4709 = vmatprep.subr.bf16.mxu0 0
  %4710 = vmatpush2.bf16.msra.mxu0 %v4415
  %4711 = vmatprep.subr.bf16.mxu0 0
  %4712 = vmatpush2.bf16.msra.mxu0 %v4414
  %4713 = vmatprep.subr.bf16.mxu0 0
  %4714 = vmatpush2.bf16.msra.mxu0 %v4413
  %4715 = vmatprep.subr.bf16.mxu0 0
  %4716 = vmatpush2.bf16.msra.mxu0 %v4412
  %4717 = vmatprep.subr.bf16.mxu0 0
  %4718 = vmatpush2.bf16.msra.mxu0 %v4411
  %4719 = vmatprep.mubr.bf16.mxu0 %v3605
  %4720 = vmatmul.mubr.bf16.gmra.mxu0 %v3604
  %v4721 = vpop.f32.mrf.mxu0
  %v4722 = vadd.f32 %v4681, %v4721
  %v4723 = vpop.f32.mrf.mxu0
  %v4724 = vpop.f32.mrf.mxu0
  %v4725 = vadd.f32 %v4684, %v4724
  %v4726 = vpop.f32.mrf.mxu0
  %4727 = vdwg.mxu0
  %4728 = vmatprep.subr.bf16.mxu0 0
  %4729 = vmatpush1.bf16.msra.mxu0 %v4426
  %4730 = vmatprep.subr.bf16.mxu0 0
  %4731 = vmatpush1.bf16.msra.mxu0 %v4425
  %4732 = vmatprep.subr.bf16.mxu0 0
  %4733 = vmatpush1.bf16.msra.mxu0 %v4424
  %4734 = vmatprep.subr.bf16.mxu0 0
  %4735 = vmatpush1.bf16.msra.mxu0 %v4423
  %4736 = vmatprep.subr.bf16.mxu0 0
  %4737 = vmatpush1.bf16.msra.mxu0 %v4422
  %4738 = vmatprep.subr.bf16.mxu0 0
  %4739 = vmatpush1.bf16.msra.mxu0 %v4421
  %4740 = vmatprep.subr.bf16.mxu0 0
  %4741 = vmatpush1.bf16.msra.mxu0 %v4420
  %4742 = vmatprep.subr.bf16.mxu0 0
  %4743 = vmatpush1.bf16.msra.mxu0 %v4419
  %4744 = vmatprep.subr.bf16.mxu0 0
  %4745 = vmatpush2.bf16.msra.mxu0 %v4434
  %4746 = vmatprep.subr.bf16.mxu0 0
  %4747 = vmatpush2.bf16.msra.mxu0 %v4433
  %4748 = vmatprep.subr.bf16.mxu0 0
  %4749 = vmatpush2.bf16.msra.mxu0 %v4432
  %4750 = vmatprep.subr.bf16.mxu0 0
  %4751 = vmatpush2.bf16.msra.mxu0 %v4431
  %4752 = vmatprep.subr.bf16.mxu0 0
  %4753 = vmatpush2.bf16.msra.mxu0 %v4430
  %4754 = vmatprep.subr.bf16.mxu0 0
  %4755 = vmatpush2.bf16.msra.mxu0 %v4429
  %4756 = vmatprep.subr.bf16.mxu0 0
  %4757 = vmatpush2.bf16.msra.mxu0 %v4428
  %4758 = vmatprep.subr.bf16.mxu0 0
  %4759 = vmatpush2.bf16.msra.mxu0 %v4427
  %4760 = vmatprep.mubr.bf16.mxu0 %v3607
  %4761 = vmatmul.mubr.bf16.gmra.mxu0 %v3606
  %v4762 = vpop.f32.mrf.mxu0
  %v4763 = vadd.f32 %v4722, %v4762
  %v4764 = vpop.f32.mrf.mxu0
  %v4765 = vpop.f32.mrf.mxu0
  %v4766 = vadd.f32 %v4725, %v4765
  %v4767 = vpop.f32.mrf.mxu0
  %4768 = vdwg.mxu0
  %4769 = vmatprep.subr.bf16.mxu0 0
  %4770 = vmatpush1.bf16.msra.mxu0 %v4442
  %4771 = vmatprep.subr.bf16.mxu0 0
  %4772 = vmatpush1.bf16.msra.mxu0 %v4441
  %4773 = vmatprep.subr.bf16.mxu0 0
  %4774 = vmatpush1.bf16.msra.mxu0 %v4440
  %4775 = vmatprep.subr.bf16.mxu0 0
  %4776 = vmatpush1.bf16.msra.mxu0 %v4439
  %4777 = vmatprep.subr.bf16.mxu0 0
  %4778 = vmatpush1.bf16.msra.mxu0 %v4438
  %4779 = vmatprep.subr.bf16.mxu0 0
  %4780 = vmatpush1.bf16.msra.mxu0 %v4437
  %4781 = vmatprep.subr.bf16.mxu0 0
  %4782 = vmatpush1.bf16.msra.mxu0 %v4436
  %4783 = vmatprep.subr.bf16.mxu0 0
  %4784 = vmatpush1.bf16.msra.mxu0 %v4435
  %4785 = vmatprep.subr.bf16.mxu0 0
  %4786 = vmatpush2.bf16.msra.mxu0 %v4450
  %4787 = vmatprep.subr.bf16.mxu0 0
  %4788 = vmatpush2.bf16.msra.mxu0 %v4449
  %4789 = vmatprep.subr.bf16.mxu0 0
  %4790 = vmatpush2.bf16.msra.mxu0 %v4448
  %4791 = vmatprep.subr.bf16.mxu0 0
  %4792 = vmatpush2.bf16.msra.mxu0 %v4447
  %4793 = vmatprep.subr.bf16.mxu0 0
  %4794 = vmatpush2.bf16.msra.mxu0 %v4446
  %4795 = vmatprep.subr.bf16.mxu0 0
  %4796 = vmatpush2.bf16.msra.mxu0 %v4445
  %4797 = vmatprep.subr.bf16.mxu0 0
  %4798 = vmatpush2.bf16.msra.mxu0 %v4444
  %4799 = vmatprep.subr.bf16.mxu0 0
  %4800 = vmatpush2.bf16.msra.mxu0 %v4443
  %4801 = vmatprep.mubr.bf16.mxu0 %v3609
  %4802 = vmatmul.mubr.bf16.gmra.mxu0 %v3608
  %v4803 = vpop.f32.mrf.mxu0
  %v4804 = vadd.f32 %v4763, %v4803
  %v4805 = vpop.f32.mrf.mxu0
  %v4806 = vpop.f32.mrf.mxu0
  %v4807 = vadd.f32 %v4766, %v4806
  %v4808 = vpop.f32.mrf.mxu0
  %4809 = vdwg.mxu0
  %4810 = vmatprep.subr.bf16.mxu0 0
  %4811 = vmatpush1.bf16.msra.mxu0 %v4458
  %4812 = vmatprep.subr.bf16.mxu0 0
  %4813 = vmatpush1.bf16.msra.mxu0 %v4457
  %4814 = vmatprep.subr.bf16.mxu0 0
  %4815 = vmatpush1.bf16.msra.mxu0 %v4456
  %4816 = vmatprep.subr.bf16.mxu0 0
  %4817 = vmatpush1.bf16.msra.mxu0 %v4455
  %4818 = vmatprep.subr.bf16.mxu0 0
  %4819 = vmatpush1.bf16.msra.mxu0 %v4454
  %4820 = vmatprep.subr.bf16.mxu0 0
  %4821 = vmatpush1.bf16.msra.mxu0 %v4453
  %4822 = vmatprep.subr.bf16.mxu0 0
  %4823 = vmatpush1.bf16.msra.mxu0 %v4452
  %4824 = vmatprep.subr.bf16.mxu0 0
  %4825 = vmatpush1.bf16.msra.mxu0 %v4451
  %4826 = vmatprep.subr.bf16.mxu0 0
  %4827 = vmatpush2.bf16.msra.mxu0 %v4466
  %4828 = vmatprep.subr.bf16.mxu0 0
  %4829 = vmatpush2.bf16.msra.mxu0 %v4465
  %4830 = vmatprep.subr.bf16.mxu0 0
  %4831 = vmatpush2.bf16.msra.mxu0 %v4464
  %4832 = vmatprep.subr.bf16.mxu0 0
  %4833 = vmatpush2.bf16.msra.mxu0 %v4463
  %4834 = vmatprep.subr.bf16.mxu0 0
  %4835 = vmatpush2.bf16.msra.mxu0 %v4462
  %4836 = vmatprep.subr.bf16.mxu0 0
  %4837 = vmatpush2.bf16.msra.mxu0 %v4461
  %4838 = vmatprep.subr.bf16.mxu0 0
  %4839 = vmatpush2.bf16.msra.mxu0 %v4460
  %4840 = vmatprep.subr.bf16.mxu0 0
  %4841 = vmatpush2.bf16.msra.mxu0 %v4459
  %4842 = vmatprep.mubr.bf16.mxu0 %v3611
  %4843 = vmatmul.mubr.bf16.gmra.mxu0 %v3610
  %v4844 = vpop.f32.mrf.mxu0
  %v4845 = vadd.f32 %v4804, %v4844
  %v4846 = vpop.f32.mrf.mxu0
  %v4847 = vpop.f32.mrf.mxu0
  %v4848 = vadd.f32 %v4807, %v4847
  %v4849 = vpop.f32.mrf.mxu0
  %4850 = vdwg.mxu0
  %4851 = vmatprep.subr.bf16.mxu0 0
  %4852 = vmatpush1.bf16.msra.mxu0 %v4474
  %4853 = vmatprep.subr.bf16.mxu0 0
  %4854 = vmatpush1.bf16.msra.mxu0 %v4473
  %4855 = vmatprep.subr.bf16.mxu0 0
  %4856 = vmatpush1.bf16.msra.mxu0 %v4472
  %4857 = vmatprep.subr.bf16.mxu0 0
  %4858 = vmatpush1.bf16.msra.mxu0 %v4471
  %4859 = vmatprep.subr.bf16.mxu0 0
  %4860 = vmatpush1.bf16.msra.mxu0 %v4470
  %4861 = vmatprep.subr.bf16.mxu0 0
  %4862 = vmatpush1.bf16.msra.mxu0 %v4469
  %4863 = vmatprep.subr.bf16.mxu0 0
  %4864 = vmatpush1.bf16.msra.mxu0 %v4468
  %4865 = vmatprep.subr.bf16.mxu0 0
  %4866 = vmatpush1.bf16.msra.mxu0 %v4467
  %4867 = vmatprep.subr.bf16.mxu0 0
  %4868 = vmatpush2.bf16.msra.mxu0 %v4482
  %4869 = vmatprep.subr.bf16.mxu0 0
  %4870 = vmatpush2.bf16.msra.mxu0 %v4481
  %4871 = vmatprep.subr.bf16.mxu0 0
  %4872 = vmatpush2.bf16.msra.mxu0 %v4480
  %4873 = vmatprep.subr.bf16.mxu0 0
  %4874 = vmatpush2.bf16.msra.mxu0 %v4479
  %4875 = vmatprep.subr.bf16.mxu0 0
  %4876 = vmatpush2.bf16.msra.mxu0 %v4478
  %4877 = vmatprep.subr.bf16.mxu0 0
  %4878 = vmatpush2.bf16.msra.mxu0 %v4477
  %4879 = vmatprep.subr.bf16.mxu0 0
  %4880 = vmatpush2.bf16.msra.mxu0 %v4476
  %4881 = vmatprep.subr.bf16.mxu0 0
  %4882 = vmatpush2.bf16.msra.mxu0 %v4475
  %4883 = vmatprep.mubr.bf16.mxu0 %v3613
  %4884 = vmatmul.mubr.bf16.gmra.mxu0 %v3612
  %v4885 = vpop.f32.mrf.mxu0
  %v4886 = vadd.f32 %v4845, %v4885
  %v4887 = vpop.f32.mrf.mxu0
  %v4888 = vpop.f32.mrf.mxu0
  %v4889 = vadd.f32 %v4848, %v4888
  %v4890 = vpop.f32.mrf.mxu0
  %4891 = vdwg.mxu0
  %4892 = vmatprep.subr.bf16.mxu0 0
  %4893 = vmatpush1.bf16.msra.mxu0 %v4490
  %4894 = vmatprep.subr.bf16.mxu0 0
  %4895 = vmatpush1.bf16.msra.mxu0 %v4489
  %4896 = vmatprep.subr.bf16.mxu0 0
  %4897 = vmatpush1.bf16.msra.mxu0 %v4488
  %4898 = vmatprep.subr.bf16.mxu0 0
  %4899 = vmatpush1.bf16.msra.mxu0 %v4487
  %4900 = vmatprep.subr.bf16.mxu0 0
  %4901 = vmatpush1.bf16.msra.mxu0 %v4486
  %4902 = vmatprep.subr.bf16.mxu0 0
  %4903 = vmatpush1.bf16.msra.mxu0 %v4485
  %4904 = vmatprep.subr.bf16.mxu0 0
  %4905 = vmatpush1.bf16.msra.mxu0 %v4484
  %4906 = vmatprep.subr.bf16.mxu0 0
  %4907 = vmatpush1.bf16.msra.mxu0 %v4483
  %4908 = vmatprep.subr.bf16.mxu0 0
  %4909 = vmatpush2.bf16.msra.mxu0 %v4498
  %4910 = vmatprep.subr.bf16.mxu0 0
  %4911 = vmatpush2.bf16.msra.mxu0 %v4497
  %4912 = vmatprep.subr.bf16.mxu0 0
  %4913 = vmatpush2.bf16.msra.mxu0 %v4496
  %4914 = vmatprep.subr.bf16.mxu0 0
  %4915 = vmatpush2.bf16.msra.mxu0 %v4495
  %4916 = vmatprep.subr.bf16.mxu0 0
  %4917 = vmatpush2.bf16.msra.mxu0 %v4494
  %4918 = vmatprep.subr.bf16.mxu0 0
  %4919 = vmatpush2.bf16.msra.mxu0 %v4493
  %4920 = vmatprep.subr.bf16.mxu0 0
  %4921 = vmatpush2.bf16.msra.mxu0 %v4492
  %4922 = vmatprep.subr.bf16.mxu0 0
  %4923 = vmatpush2.bf16.msra.mxu0 %v4491
  %4924 = vmatprep.mubr.bf16.mxu0 %v3615
  %4925 = vmatmul.mubr.bf16.gmra.mxu0 %v3614
  %v4926 = vpop.f32.mrf.mxu0
  %v4927 = vadd.f32 %v4886, %v4926
  %v4928 = vpop.f32.mrf.mxu0
  %v4929 = vpop.f32.mrf.mxu0
  %v4930 = vadd.f32 %v4889, %v4929
  %v4931 = vpop.f32.mrf.mxu0
  %4932 = vdwg.mxu0
  %4933 = vmatprep.subr.bf16.mxu0 0
  %4934 = vmatpush1.bf16.msra.mxu0 %v4506
  %4935 = vmatprep.subr.bf16.mxu0 0
  %4936 = vmatpush1.bf16.msra.mxu0 %v4505
  %4937 = vmatprep.subr.bf16.mxu0 0
  %4938 = vmatpush1.bf16.msra.mxu0 %v4504
  %4939 = vmatprep.subr.bf16.mxu0 0
  %4940 = vmatpush1.bf16.msra.mxu0 %v4503
  %4941 = vmatprep.subr.bf16.mxu0 0
  %4942 = vmatpush1.bf16.msra.mxu0 %v4502
  %4943 = vmatprep.subr.bf16.mxu0 0
  %4944 = vmatpush1.bf16.msra.mxu0 %v4501
  %4945 = vmatprep.subr.bf16.mxu0 0
  %4946 = vmatpush1.bf16.msra.mxu0 %v4500
  %4947 = vmatprep.subr.bf16.mxu0 0
  %4948 = vmatpush1.bf16.msra.mxu0 %v4499
  %4949 = vmatprep.subr.bf16.mxu0 0
  %4950 = vmatpush2.bf16.msra.mxu0 %v4514
  %4951 = vmatprep.subr.bf16.mxu0 0
  %4952 = vmatpush2.bf16.msra.mxu0 %v4513
  %4953 = vmatprep.subr.bf16.mxu0 0
  %4954 = vmatpush2.bf16.msra.mxu0 %v4512
  %4955 = vmatprep.subr.bf16.mxu0 0
  %4956 = vmatpush2.bf16.msra.mxu0 %v4511
  %4957 = vmatprep.subr.bf16.mxu0 0
  %4958 = vmatpush2.bf16.msra.mxu0 %v4510
  %4959 = vmatprep.subr.bf16.mxu0 0
  %4960 = vmatpush2.bf16.msra.mxu0 %v4509
  %4961 = vmatprep.subr.bf16.mxu0 0
  %4962 = vmatpush2.bf16.msra.mxu0 %v4508
  %4963 = vmatprep.subr.bf16.mxu0 0
  %4964 = vmatpush2.bf16.msra.mxu0 %v4507
  %4965 = vmatprep.mubr.bf16.mxu0 %v3617
  %4966 = vmatmul.mubr.bf16.gmra.mxu0 %v3616
  %v4967 = vpop.f32.mrf.mxu0
  %v4968 = vadd.f32 %v4927, %v4967
  %v4969 = vpop.f32.mrf.mxu0
  %v4970 = vpop.f32.mrf.mxu0
  %v4971 = vadd.f32 %v4930, %v4970
  %v4972 = vpop.f32.mrf.mxu0
  %4973 = vdwg.mxu0
  %v4974 = vadd.f32 %v3043, %v4968
  %v4975 = vadd.f32 %v3044, %v4971
  %v4976 = vsel %vm44, %v4974, 0.0
  %4977 = vadd.xlane.f32.xlu0 %v4976
  %v4978 = vpop.xlane.xlu0 %4977
  %v4979 = vsel %vm44, %v4975, 0.0
  %4980 = vadd.xlane.f32.xlu0 %v4979
  %v4981 = vpop.xlane.xlu0 %4980
  %v4982 = vmul.f32 %v4978, %v526
  %v4983 = vmul.f32 %v4981, %v526
  %v4984 = vsub.f32 %v4974, %v4982
  %v4985 = vsub.f32 %v4975, %v4983
  %v4986 = vmul.f32 %v4984, %v4984
  %v4987 = vmul.f32 %v4985, %v4985
  %v4988 = vsel %vm44, %v4986, 0.0
  %4989 = vadd.xlane.f32.xlu0 %v4988
  %v4990 = vpop.xlane.xlu0 %4989
  %v4991 = vsel %vm44, %v4987, 0.0
  %4992 = vadd.xlane.f32.xlu0 %v4991
  %v4993 = vpop.xlane.xlu0 %4992
  %v4994 = vmul.f32 %v4990, %v526
  %v4995 = vmul.f32 %v4993, %v526
  %v4996 = vadd.f32 %v4994, 1e-05
  %v4997 = vadd.f32 %v4995, 1e-05
  %v4998 = vrsqrt.pop %v4996
  %v4999 = vrsqrt.pop %v4997
  %v5000 = vmul.f32 %v4984, %v4998
  %v5001 = vmul.f32 %v4985, %v4999
  %5002 = vrot.lane.b32.xlu0 %v2535, 103
  %v5003 = vpop.permute.xlu0 %5002
  %v5005 = vmul.f32 %v5000, %v5003
  %v5006 = vmul.f32 %v5001, %v5003
  %5007 = vrot.lane.b32.xlu0 %v2535, 98
  %v5008 = vpop.permute.xlu0 %5007
  %v5010 = vadd.f32 %v5005, %v5008
  %v5011 = vadd.f32 %v5006, %v5008
  %s5012 = scalar_lea.vmem %s1, 80
  %v5013 = vld [vmem:[%s5012] sm:$0xff]
  %v5014 = vld [vmem:[%s5012 + $0x8] sm:$0xff]
  %v5015 = vld [vmem:[%s5012 + $0x10] sm:$0xff]
  %v5016 = vld [vmem:[%s5012 + $0x18] sm:$0xff]
  %v5017 = vld [vmem:[%s5012 + $0x20] sm:$0x3]
  %v5018 = vlaneseq
  %v5019 = vshrl.u32 %v5018, 7
  %v5020 = vsub.s32 0, %v5019
  %v5021 = vrot.slane %v5017, %v5020
  %v5023 = vsel %vm44, %v5010, 0
  %v5026 = vsel %vm44, %v5011, 0
  %v5029 = vsel %vm51, %v5013, 0
  %5031 = vmatprep.subr.mxu0 0.0
  %5032 = vmatpush1.msra.mxu0 0.0
  %5033 = vmatprep.subr.mxu0 0.0
  %5034 = vmatpush1.msra.mxu0 0.0
  %5035 = vmatprep.subr.mxu0 0.0
  %5036 = vmatpush1.msra.mxu0 0.0
  %5037 = vmatprep.subr.mxu0 0.0
  %5038 = vmatpush1.msra.mxu0 0.0
  %5039 = vmatprep.subr.mxu0 0.0
  %5040 = vmatpush1.msra.mxu0 0.0
  %5041 = vmatprep.subr.mxu0 0.0
  %5042 = vmatpush1.msra.mxu0 0.0
  %5043 = vmatprep.subr.mxu0 0.0
  %5044 = vmatpush1.msra.mxu0 0.0
  %5045 = vmatprep.subr.mxu0 0.0
  %5046 = vmatpush1.msra.mxu0 0.0
  %5047 = vmatprep.subr.mxu0 0.0
  %5048 = vmatpush1.msra.mxu0 0.0
  %5049 = vmatprep.subr.mxu0 0.0
  %5050 = vmatpush1.msra.mxu0 0.0
  %5051 = vmatprep.subr.mxu0 0.0
  %5052 = vmatpush1.msra.mxu0 0.0
  %5053 = vmatprep.subr.mxu0 0.0
  %5054 = vmatpush1.msra.mxu0 0.0
  %5055 = vmatprep.subr.mxu0 0.0
  %5056 = vmatpush1.msra.mxu0 0.0
  %5057 = vmatprep.subr.mxu0 0.0
  %5058 = vmatpush1.msra.mxu0 0.0
  %5059 = vmatprep.subr.mxu0 0.0
  %5060 = vmatpush1.msra.mxu0 0.0
  %5061 = vmatprep.subr.mxu0 0.0
  %5062 = vmatpush1.msra.mxu0 %v5029
  %5063 = vmatprep.subr.mxu0 0.0
  %5064 = vmatpush2.msra.mxu0 0.0
  %5065 = vmatprep.subr.mxu0 0.0
  %5066 = vmatpush2.msra.mxu0 0.0
  %5067 = vmatprep.subr.mxu0 0.0
  %5068 = vmatpush2.msra.mxu0 0.0
  %5069 = vmatprep.subr.mxu0 0.0
  %5070 = vmatpush2.msra.mxu0 0.0
  %5071 = vmatprep.subr.mxu0 0.0
  %5072 = vmatpush2.msra.mxu0 0.0
  %5073 = vmatprep.subr.mxu0 0.0
  %5074 = vmatpush2.msra.mxu0 0.0
  %5075 = vmatprep.subr.mxu0 0.0
  %5076 = vmatpush2.msra.mxu0 0.0
  %5077 = vmatprep.subr.mxu0 0.0
  %5078 = vmatpush2.msra.mxu0 0.0
  %5079 = vmatprep.subr.mxu0 0.0
  %5080 = vmatpush2.msra.mxu0 0.0
  %5081 = vmatprep.subr.mxu0 0.0
  %5082 = vmatpush2.msra.mxu0 0.0
  %5083 = vmatprep.subr.mxu0 0.0
  %5084 = vmatpush2.msra.mxu0 0.0
  %5085 = vmatprep.subr.mxu0 0.0
  %5086 = vmatpush2.msra.mxu0 0.0
  %5087 = vmatprep.subr.mxu0 0.0
  %5088 = vmatpush2.msra.mxu0 0.0
  %5089 = vmatprep.subr.mxu0 0.0
  %5090 = vmatpush2.msra.mxu0 0.0
  %5091 = vmatprep.subr.mxu0 0.0
  %5092 = vmatpush2.msra.mxu0 0.0
  %5093 = vmatprep.subr.mxu0 0.0
  %5094 = vmatpush2.msra.mxu0 0.0
  %5095 = vmatprep.mubr.f32.mxu0 0.0
  %5096 = vmatmul.mubr.f32.gmra.mxu0 %v5023
  %v5097 = vpop.f32.mrf.mxu0
  %v5098 = vadd.f32 %v5021, %v5097
  %v5099 = vpop.f32.mrf.mxu0
  %5100 = vmatprep.mubr.f32.mxu0 0.0
  %5101 = vmatmul.mubr.f32.gmra.mxu0 %v5026
  %v5102 = vpop.f32.mrf.mxu0
  %v5103 = vadd.f32 %v5021, %v5102
  %v5104 = vpop.f32.mrf.mxu0
  %5105 = vdwg.mxu0
  %5107 = vset.pattern.permute.xlu0 5
  %5108 = vperm.xlu0 %5107, %v5014
  %v5109 = vpop.permute.xlu0 %5108
  %5112 = vset.pattern.permute.xlu0 5
  %5113 = vperm.xlu0 %5112, %v5015
  %v5114 = vpop.permute.xlu0 %5113
  %v5116 = vsel %vm44, %v5014, 0
  %v5118 = vsel %vm44, %v5015, 0
  %5120 = vmatprep.subr.mxu0 0.0
  %5121 = vmatpush1.xpose.msra.mxu0 0.0
  %5122 = vmatprep.subr.mxu0 0.0
  %5123 = vmatpush1.xpose.msra.mxu0 0.0
  %5124 = vmatprep.subr.mxu0 0.0
  %5125 = vmatpush1.xpose.msra.mxu0 0.0
  %5126 = vmatprep.subr.mxu0 0.0
  %5127 = vmatpush1.xpose.msra.mxu0 0.0
  %5128 = vmatprep.subr.mxu0 0.0
  %5129 = vmatpush1.xpose.msra.mxu0 0.0
  %5130 = vmatprep.subr.mxu0 0.0
  %5131 = vmatpush1.xpose.msra.mxu0 0.0
  %5132 = vmatprep.subr.mxu0 0.0
  %5133 = vmatpush1.xpose.msra.mxu0 0.0
  %5134 = vmatprep.subr.mxu0 0.0
  %5135 = vmatpush1.xpose.msra.mxu0 0.0
  %5136 = vmatprep.subr.mxu0 0.0
  %5137 = vmatpush1.xpose.msra.mxu0 0.0
  %5138 = vmatprep.subr.mxu0 0.0
  %5139 = vmatpush1.xpose.msra.mxu0 0.0
  %5140 = vmatprep.subr.mxu0 0.0
  %5141 = vmatpush1.xpose.msra.mxu0 0.0
  %5142 = vmatprep.subr.mxu0 0.0
  %5143 = vmatpush1.xpose.msra.mxu0 0.0
  %5144 = vmatprep.subr.mxu0 0.0
  %5145 = vmatpush1.xpose.msra.mxu0 0.0
  %5146 = vmatprep.subr.mxu0 0.0
  %5147 = vmatpush1.xpose.msra.mxu0 0.0
  %5148 = vmatprep.subr.mxu0 0.0
  %5149 = vmatpush1.xpose.msra.mxu0 %v5026
  %5150 = vmatprep.subr.mxu0 0.0
  %5151 = vmatpush1.xpose.msra.mxu0 %v5023
  %5152 = vmatprep.subr.mxu0 0.0
  %5153 = vmatpush2.xpose.msra.mxu0 0.0
  %5154 = vmatprep.subr.mxu0 0.0
  %5155 = vmatpush2.xpose.msra.mxu0 0.0
  %5156 = vmatprep.subr.mxu0 0.0
  %5157 = vmatpush2.xpose.msra.mxu0 0.0
  %5158 = vmatprep.subr.mxu0 0.0
  %5159 = vmatpush2.xpose.msra.mxu0 0.0
  %5160 = vmatprep.subr.mxu0 0.0
  %5161 = vmatpush2.xpose.msra.mxu0 0.0
  %5162 = vmatprep.subr.mxu0 0.0
  %5163 = vmatpush2.xpose.msra.mxu0 0.0
  %5164 = vmatprep.subr.mxu0 0.0
  %5165 = vmatpush2.xpose.msra.mxu0 0.0
  %5166 = vmatprep.subr.mxu0 0.0
  %5167 = vmatpush2.xpose.msra.mxu0 0.0
  %5168 = vmatprep.subr.mxu0 0.0
  %5169 = vmatpush2.xpose.msra.mxu0 0.0
  %5170 = vmatprep.subr.mxu0 0.0
  %5171 = vmatpush2.xpose.msra.mxu0 0.0
  %5172 = vmatprep.subr.mxu0 0.0
  %5173 = vmatpush2.xpose.msra.mxu0 0.0
  %5174 = vmatprep.subr.mxu0 0.0
  %5175 = vmatpush2.xpose.msra.mxu0 0.0
  %5176 = vmatprep.subr.mxu0 0.0
  %5177 = vmatpush2.xpose.msra.mxu0 0.0
  %5178 = vmatprep.subr.mxu0 0.0
  %5179 = vmatpush2.xpose.msra.mxu0 0.0
  %5180 = vmatprep.subr.mxu0 0.0
  %5181 = vmatpush2.xpose.msra.mxu0 0.0
  %5182 = vmatprep.subr.mxu0 0.0
  %5183 = vmatpush2.xpose.msra.mxu0 0.0
  %5184 = vmatprep.mubr.f32.mxu0 0.0
  %5185 = vmatmul.mubr.f32.gmra.mxu0 %v5116
  %v5186 = vpop.f32.mrf.mxu0
  %v5187 = vadd.f32 %v5109, %v5186
  %v5188 = vpop.f32.mrf.mxu0
  %5189 = vmatprep.mubr.f32.mxu0 0.0
  %5190 = vmatmul.mubr.f32.gmra.mxu0 %v5118
  %v5191 = vpop.f32.mrf.mxu0
  %v5192 = vadd.f32 %v5114, %v5191
  %v5193 = vpop.f32.mrf.mxu0
  %5194 = vdwg.mxu0
  %5196 = vset.pattern.permute.xlu0 0
  %5197 = vperm.xlu0 %5196, %v5098
  %v5198 = vpop.permute.xlu0 %5197
  %5201 = vset.pattern.permute.xlu0 0
  %5202 = vperm.xlu0 %5201, %v5103
  %v5203 = vpop.permute.xlu0 %5202
  %v5205 = vlaneseq
  %v5206 = vshrl.u32 %v5205, 7
  %v5207 = vsub.s32 0, %v5206
  %v5208 = vrot.slane %v5187, %v5207
  %v5209 = vmul.f32 %v5198, %v5208
  %v5210 = vmul.f32 %v5203, %v5208
  %v5211 = vadd.f32 %v5209, %v33
  %v5212 = vadd.f32 %v5210, %v34
  %v5213 = vsel %vm237, %v5211, -inf
  %5214 = vmax.xlane.f32.xlu0 %v5213
  %v5215 = vpop.xlane.xlu0 %5214
  %v5216 = vsel %vm237, %v5212, -inf
  %5217 = vmax.xlane.f32.xlu0 %v5216
  %v5218 = vpop.xlane.xlu0 %5217
  %v5219 = vsub.f32 %v5211, %v5215
  %v5220 = vsub.f32 %v5212, %v5218
  %v5221 = vmul.f32 %v5219, 1.442695
  %v5222 = vpow.pop %v5221
  %v5223 = vmul.f32 %v5220, 1.442695
  %v5224 = vpow.pop %v5223
  %v5225 = vsel %vm237, %v5222, 0.0
  %5226 = vadd.xlane.f32.xlu0 %v5225
  %v5227 = vpop.xlane.xlu0 %5226
  %v5228 = vsel %vm237, %v5224, 0.0
  %5229 = vadd.xlane.f32.xlu0 %v5228
  %v5230 = vpop.xlane.xlu0 %5229
  %v5231 = vrcp.pop %v5227
  %v5232 = vrcp.pop %v5230
  %v5233 = vmul.f32 %v5222, %v5231
  %v5234 = vmul.f32 %v5224, %v5232
  %v5235 = vlaneseq
  %v5236 = vshrl.u32 %v5235, 7
  %v5237 = vsub.s32 5, %v5236
  %v5238 = vrot.slane %v5187, %v5237
  %v5239 = vmul.f32 %v5233, %v5238
  %v5240 = vmul.f32 %v5234, %v5238
  %v5241 = vsel %vm237, %v5239, 0.0
  %5242 = vadd.xlane.f32.xlu0 %v5241
  %v5243 = vpop.xlane.xlu0 %5242
  %v5244 = vsel %vm237, %v5240, 0.0
  %5245 = vadd.xlane.f32.xlu0 %v5244
  %v5246 = vpop.xlane.xlu0 %5245
  %v5247 = vlaneseq
  %v5248 = vshrl.u32 %v5247, 7
  %v5249 = vsub.s32 0, %v5248
  %v5250 = vrot.slane %v5016, %v5249
  %v5251 = vmul.f32 %v5243, %v5250
  %v5252 = vmul.f32 %v5246, %v5250
  %v5253 = vadd.f32 %v5251, 0.0
  %v5254 = vadd.f32 %v5252, 0.0
  %5255 = vset.pattern.permute.xlu0 1
  %5256 = vperm.xlu0 %5255, %v5098
  %v5257 = vpop.permute.xlu0 %5256
  %5259 = vset.pattern.permute.xlu0 1
  %5260 = vperm.xlu0 %5259, %v5103
  %v5261 = vpop.permute.xlu0 %5260
  %v5263 = vlaneseq
  %v5264 = vshrl.u32 %v5263, 7
  %v5265 = vsub.s32 1, %v5264
  %v5266 = vrot.slane %v5187, %v5265
  %v5267 = vmul.f32 %v5257, %v5266
  %v5268 = vmul.f32 %v5261, %v5266
  %v5269 = vadd.f32 %v5267, %v33
  %v5270 = vadd.f32 %v5268, %v34
  %v5271 = vsel %vm237, %v5269, -inf
  %5272 = vmax.xlane.f32.xlu0 %v5271
  %v5273 = vpop.xlane.xlu0 %5272
  %v5274 = vsel %vm237, %v5270, -inf
  %5275 = vmax.xlane.f32.xlu0 %v5274
  %v5276 = vpop.xlane.xlu0 %5275
  %v5277 = vsub.f32 %v5269, %v5273
  %v5278 = vsub.f32 %v5270, %v5276
  %v5279 = vmul.f32 %v5277, 1.442695
  %v5280 = vpow.pop %v5279
  %v5281 = vmul.f32 %v5278, 1.442695
  %v5282 = vpow.pop %v5281
  %v5283 = vsel %vm237, %v5280, 0.0
  %5284 = vadd.xlane.f32.xlu0 %v5283
  %v5285 = vpop.xlane.xlu0 %5284
  %v5286 = vsel %vm237, %v5282, 0.0
  %5287 = vadd.xlane.f32.xlu0 %v5286
  %v5288 = vpop.xlane.xlu0 %5287
  %v5289 = vrcp.pop %v5285
  %v5290 = vrcp.pop %v5288
  %v5291 = vmul.f32 %v5280, %v5289
  %v5292 = vmul.f32 %v5282, %v5290
  %v5293 = vlaneseq
  %v5294 = vshrl.u32 %v5293, 7
  %v5295 = vsub.s32 6, %v5294
  %v5296 = vrot.slane %v5187, %v5295
  %v5297 = vmul.f32 %v5291, %v5296
  %v5298 = vmul.f32 %v5292, %v5296
  %v5299 = vsel %vm237, %v5297, 0.0
  %5300 = vadd.xlane.f32.xlu0 %v5299
  %v5301 = vpop.xlane.xlu0 %5300
  %v5302 = vsel %vm237, %v5298, 0.0
  %5303 = vadd.xlane.f32.xlu0 %v5302
  %v5304 = vpop.xlane.xlu0 %5303
  %v5305 = vlaneseq
  %v5306 = vshrl.u32 %v5305, 7
  %v5307 = vsub.s32 1, %v5306
  %v5308 = vrot.slane %v5016, %v5307
  %v5309 = vmul.f32 %v5301, %v5308
  %v5310 = vmul.f32 %v5304, %v5308
  %v5311 = vadd.f32 %v5253, %v5309
  %v5312 = vadd.f32 %v5254, %v5310
  %5313 = vset.pattern.permute.xlu0 2
  %5314 = vperm.xlu0 %5313, %v5098
  %v5315 = vpop.permute.xlu0 %5314
  %5317 = vset.pattern.permute.xlu0 2
  %5318 = vperm.xlu0 %5317, %v5103
  %v5319 = vpop.permute.xlu0 %5318
  %v5321 = vlaneseq
  %v5322 = vshrl.u32 %v5321, 7
  %v5323 = vsub.s32 2, %v5322
  %v5324 = vrot.slane %v5187, %v5323
  %v5325 = vmul.f32 %v5315, %v5324
  %v5326 = vmul.f32 %v5319, %v5324
  %v5327 = vadd.f32 %v5325, %v33
  %v5328 = vadd.f32 %v5326, %v34
  %v5329 = vsel %vm237, %v5327, -inf
  %5330 = vmax.xlane.f32.xlu0 %v5329
  %v5331 = vpop.xlane.xlu0 %5330
  %v5332 = vsel %vm237, %v5328, -inf
  %5333 = vmax.xlane.f32.xlu0 %v5332
  %v5334 = vpop.xlane.xlu0 %5333
  %v5335 = vsub.f32 %v5327, %v5331
  %v5336 = vsub.f32 %v5328, %v5334
  %v5337 = vmul.f32 %v5335, 1.442695
  %v5338 = vpow.pop %v5337
  %v5339 = vmul.f32 %v5336, 1.442695
  %v5340 = vpow.pop %v5339
  %v5341 = vsel %vm237, %v5338, 0.0
  %5342 = vadd.xlane.f32.xlu0 %v5341
  %v5343 = vpop.xlane.xlu0 %5342
  %v5344 = vsel %vm237, %v5340, 0.0
  %5345 = vadd.xlane.f32.xlu0 %v5344
  %v5346 = vpop.xlane.xlu0 %5345
  %v5347 = vrcp.pop %v5343
  %v5348 = vrcp.pop %v5346
  %v5349 = vmul.f32 %v5338, %v5347
  %v5350 = vmul.f32 %v5340, %v5348
  %v5351 = vlaneseq
  %v5352 = vshrl.u32 %v5351, 7
  %v5353 = vsub.s32 7, %v5352
  %v5354 = vrot.slane %v5187, %v5353
  %v5355 = vmul.f32 %v5349, %v5354
  %v5356 = vmul.f32 %v5350, %v5354
  %v5357 = vsel %vm237, %v5355, 0.0
  %5358 = vadd.xlane.f32.xlu0 %v5357
  %v5359 = vpop.xlane.xlu0 %5358
  %v5360 = vsel %vm237, %v5356, 0.0
  %5361 = vadd.xlane.f32.xlu0 %v5360
  %v5362 = vpop.xlane.xlu0 %5361
  %v5363 = vlaneseq
  %v5364 = vshrl.u32 %v5363, 7
  %v5365 = vsub.s32 2, %v5364
  %v5366 = vrot.slane %v5016, %v5365
  %v5367 = vmul.f32 %v5359, %v5366
  %v5368 = vmul.f32 %v5362, %v5366
  %v5369 = vadd.f32 %v5311, %v5367
  %v5370 = vadd.f32 %v5312, %v5368
  %5371 = vset.pattern.permute.xlu0 3
  %5372 = vperm.xlu0 %5371, %v5098
  %v5373 = vpop.permute.xlu0 %5372
  %5375 = vset.pattern.permute.xlu0 3
  %5376 = vperm.xlu0 %5375, %v5103
  %v5377 = vpop.permute.xlu0 %5376
  %v5379 = vlaneseq
  %v5380 = vshrl.u32 %v5379, 7
  %v5381 = vsub.s32 3, %v5380
  %v5382 = vrot.slane %v5187, %v5381
  %v5383 = vmul.f32 %v5373, %v5382
  %v5384 = vmul.f32 %v5377, %v5382
  %v5385 = vadd.f32 %v5383, %v33
  %v5386 = vadd.f32 %v5384, %v34
  %v5387 = vsel %vm237, %v5385, -inf
  %5388 = vmax.xlane.f32.xlu0 %v5387
  %v5389 = vpop.xlane.xlu0 %5388
  %v5390 = vsel %vm237, %v5386, -inf
  %5391 = vmax.xlane.f32.xlu0 %v5390
  %v5392 = vpop.xlane.xlu0 %5391
  %v5393 = vsub.f32 %v5385, %v5389
  %v5394 = vsub.f32 %v5386, %v5392
  %v5395 = vmul.f32 %v5393, 1.442695
  %v5396 = vpow.pop %v5395
  %v5397 = vmul.f32 %v5394, 1.442695
  %v5398 = vpow.pop %v5397
  %v5399 = vsel %vm237, %v5396, 0.0
  %5400 = vadd.xlane.f32.xlu0 %v5399
  %v5401 = vpop.xlane.xlu0 %5400
  %v5402 = vsel %vm237, %v5398, 0.0
  %5403 = vadd.xlane.f32.xlu0 %v5402
  %v5404 = vpop.xlane.xlu0 %5403
  %v5405 = vrcp.pop %v5401
  %v5406 = vrcp.pop %v5404
  %v5407 = vmul.f32 %v5396, %v5405
  %v5408 = vmul.f32 %v5398, %v5406
  %v5409 = vlaneseq
  %v5410 = vshrl.u32 %v5409, 7
  %v5411 = vsub.s32 0, %v5410
  %v5412 = vrot.slane %v5192, %v5411
  %v5413 = vmul.f32 %v5407, %v5412
  %v5414 = vmul.f32 %v5408, %v5412
  %v5415 = vsel %vm237, %v5413, 0.0
  %5416 = vadd.xlane.f32.xlu0 %v5415
  %v5417 = vpop.xlane.xlu0 %5416
  %v5418 = vsel %vm237, %v5414, 0.0
  %5419 = vadd.xlane.f32.xlu0 %v5418
  %v5420 = vpop.xlane.xlu0 %5419
  %v5421 = vlaneseq
  %v5422 = vshrl.u32 %v5421, 7
  %v5423 = vsub.s32 3, %v5422
  %v5424 = vrot.slane %v5016, %v5423
  %v5425 = vmul.f32 %v5417, %v5424
  %v5426 = vmul.f32 %v5420, %v5424
  %v5427 = vadd.f32 %v5369, %v5425
  %v5428 = vadd.f32 %v5370, %v5426
  %5429 = vset.pattern.permute.xlu0 4
  %5430 = vperm.xlu0 %5429, %v5098
  %v5431 = vpop.permute.xlu0 %5430
  %5433 = vset.pattern.permute.xlu0 4
  %5434 = vperm.xlu0 %5433, %v5103
  %v5435 = vpop.permute.xlu0 %5434
  %v5437 = vlaneseq
  %v5438 = vshrl.u32 %v5437, 7
  %v5439 = vsub.s32 4, %v5438
  %v5440 = vrot.slane %v5187, %v5439
  %v5441 = vmul.f32 %v5431, %v5440
  %v5442 = vmul.f32 %v5435, %v5440
  %v5443 = vadd.f32 %v5441, %v33
  %v5444 = vadd.f32 %v5442, %v34
  %v5445 = vsel %vm237, %v5443, -inf
  %5446 = vmax.xlane.f32.xlu0 %v5445
  %v5447 = vpop.xlane.xlu0 %5446
  %v5448 = vsel %vm237, %v5444, -inf
  %5449 = vmax.xlane.f32.xlu0 %v5448
  %v5450 = vpop.xlane.xlu0 %5449
  %v5451 = vsub.f32 %v5443, %v5447
  %v5452 = vsub.f32 %v5444, %v5450
  %v5453 = vmul.f32 %v5451, 1.442695
  %v5454 = vpow.pop %v5453
  %v5455 = vmul.f32 %v5452, 1.442695
  %v5456 = vpow.pop %v5455
  %v5457 = vsel %vm237, %v5454, 0.0
  %5458 = vadd.xlane.f32.xlu0 %v5457
  %v5459 = vpop.xlane.xlu0 %5458
  %v5460 = vsel %vm237, %v5456, 0.0
  %5461 = vadd.xlane.f32.xlu0 %v5460
  %v5462 = vpop.xlane.xlu0 %5461
  %v5463 = vrcp.pop %v5459
  %v5464 = vrcp.pop %v5462
  %v5465 = vmul.f32 %v5454, %v5463
  %v5466 = vmul.f32 %v5456, %v5464
  %v5467 = vlaneseq
  %v5468 = vshrl.u32 %v5467, 7
  %v5469 = vsub.s32 1, %v5468
  %v5470 = vrot.slane %v5192, %v5469
  %v5471 = vmul.f32 %v5465, %v5470
  %v5472 = vmul.f32 %v5466, %v5470
  %v5473 = vsel %vm237, %v5471, 0.0
  %5474 = vadd.xlane.f32.xlu0 %v5473
  %v5475 = vpop.xlane.xlu0 %5474
  %v5476 = vsel %vm237, %v5472, 0.0
  %5477 = vadd.xlane.f32.xlu0 %v5476
  %v5478 = vpop.xlane.xlu0 %5477
  %v5479 = vlaneseq
  %v5480 = vshrl.u32 %v5479, 7
  %v5481 = vsub.s32 4, %v5480
  %v5482 = vrot.slane %v5016, %v5481
  %v5483 = vmul.f32 %v5475, %v5482
  %v5484 = vmul.f32 %v5478, %v5482
  %v5485 = vadd.f32 %v5427, %v5483
  %v5486 = vadd.f32 %v5428, %v5484
  %v5487 = vadd.f32 %v5010, %v5485
  %v5488 = vadd.f32 %v5011, %v5486
  %5490 = vrot.lane.b32.xlu0 %v5021, 123
  %v5491 = vpop.permute.xlu0 %5490
  %v5493 = vadd.f32 %v5487, %v5491
  %v5494 = vadd.f32 %v5488, %v5491
  %v5495 = vsel %vm44, %v5493, 0.0
  %5496 = vadd.xlane.f32.xlu0 %v5495
  %v5497 = vpop.xlane.xlu0 %5496
  %v5498 = vsel %vm44, %v5494, 0.0
  %5499 = vadd.xlane.f32.xlu0 %v5498
  %v5500 = vpop.xlane.xlu0 %5499
  %v5501 = vmul.f32 %v5497, %v526
  %v5502 = vmul.f32 %v5500, %v526
  %v5503 = vsub.f32 %v5493, %v5501
  %v5504 = vsub.f32 %v5494, %v5502
  %v5505 = vmul.f32 %v5503, %v5503
  %v5506 = vmul.f32 %v5504, %v5504
  %v5507 = vsel %vm44, %v5505, 0.0
  %5508 = vadd.xlane.f32.xlu0 %v5507
  %v5509 = vpop.xlane.xlu0 %5508
  %v5510 = vsel %vm44, %v5506, 0.0
  %5511 = vadd.xlane.f32.xlu0 %v5510
  %v5512 = vpop.xlane.xlu0 %5511
  %v5513 = vmul.f32 %v5509, %v526
  %v5514 = vmul.f32 %v5512, %v526
  %v5515 = vadd.f32 %v5513, 1e-05
  %v5516 = vadd.f32 %v5514, 1e-05
  %v5517 = vrsqrt.pop %v5515
  %v5518 = vrsqrt.pop %v5516
  %v5519 = vmul.f32 %v5503, %v5517
  %v5520 = vmul.f32 %v5504, %v5518
  %5521 = vrot.lane.b32.xlu0 %v5021, 118
  %v5522 = vpop.permute.xlu0 %5521
  %v5524 = vmul.f32 %v5519, %v5522
  %v5525 = vmul.f32 %v5520, %v5522
  %5526 = vrot.lane.b32.xlu0 %v5021, 113
  %v5527 = vpop.permute.xlu0 %5526
  %v5529 = vadd.f32 %v5524, %v5527
  %v5530 = vadd.f32 %v5525, %v5527
  %s5531 = scalar_lea.vmem %s2, 128
  %v5532 = vld [vmem:[%s5531] sm:$0x77]
  %v5533 = vld [vmem:[%s5531 + $0x8] sm:$0x77]
  %v5534 = vld [vmem:[%s5531 + $0x10] sm:$0x77]
  %v5535 = vld [vmem:[%s5531 + $0x18] sm:$0x77]
  %v5536 = vld [vmem:[%s5531 + $0x20] sm:$0x77]
  %v5537 = vld [vmem:[%s5531 + $0x28] sm:$0x77]
  %v5538 = vld [vmem:[%s5531 + $0x30] sm:$0x77]
  %v5539 = vld [vmem:[%s5531 + $0x38] sm:$0x77]
  %v5540 = vunpack.c.l.bf16 %v5532
  %v5541 = vunpack.c.h.bf16 %v5532
  %v5542 = vunpack.c.l.bf16 %v5533
  %v5543 = vunpack.c.h.bf16 %v5533
  %v5544 = vunpack.c.l.bf16 %v5534
  %v5545 = vunpack.c.h.bf16 %v5534
  %v5546 = vunpack.c.l.bf16 %v5535
  %v5547 = vunpack.c.h.bf16 %v5535
  %v5548 = vunpack.c.l.bf16 %v5536
  %v5549 = vunpack.c.h.bf16 %v5536
  %v5550 = vunpack.c.l.bf16 %v5537
  %v5551 = vunpack.c.h.bf16 %v5537
  %v5552 = vunpack.c.l.bf16 %v5538
  %v5553 = vunpack.c.h.bf16 %v5538
  %v5554 = vunpack.c.l.bf16 %v5539
  %v5555 = vunpack.c.h.bf16 %v5539
  %v5556 = vpack.c.bf16 %v5530, %v5529
  %v5557 = vlaneseq
  %v5558 = vshrl.u32 %v5557, 7
  %v5559 = vsub.s32 5, %v5558
  %v5560 = vrot.slane %v5540, %v5559
  %v5561 = vlaneseq
  %v5562 = vshrl.u32 %v5561, 7
  %v5563 = vsub.s32 5, %v5562
  %v5564 = vrot.slane %v5541, %v5563
  %v5565 = vlaneseq
  %v5566 = vshrl.u32 %v5565, 7
  %v5567 = vsub.s32 5, %v5566
  %v5568 = vrot.slane %v5542, %v5567
  %v5569 = vlaneseq
  %v5570 = vshrl.u32 %v5569, 7
  %v5571 = vsub.s32 5, %v5570
  %v5572 = vrot.slane %v5543, %v5571
  %v5573 = vlaneseq
  %v5574 = vshrl.u32 %v5573, 7
  %v5575 = vsub.s32 5, %v5574
  %v5576 = vrot.slane %v5544, %v5575
  %v5577 = vlaneseq
  %v5578 = vshrl.u32 %v5577, 7
  %v5579 = vsub.s32 5, %v5578
  %v5580 = vrot.slane %v5545, %v5579
  %v5581 = vlaneseq
  %v5582 = vshrl.u32 %v5581, 7
  %v5583 = vsub.s32 5, %v5582
  %v5584 = vrot.slane %v5546, %v5583
  %v5585 = vlaneseq
  %v5586 = vshrl.u32 %v5585, 7
  %v5587 = vsub.s32 5, %v5586
  %v5588 = vrot.slane %v5547, %v5587
  %v5589 = vlaneseq
  %v5590 = vshrl.u32 %v5589, 7
  %v5591 = vsub.s32 5, %v5590
  %v5592 = vrot.slane %v5548, %v5591
  %v5593 = vlaneseq
  %v5594 = vshrl.u32 %v5593, 7
  %v5595 = vsub.s32 5, %v5594
  %v5596 = vrot.slane %v5549, %v5595
  %v5597 = vlaneseq
  %v5598 = vshrl.u32 %v5597, 7
  %v5599 = vsub.s32 5, %v5598
  %v5600 = vrot.slane %v5550, %v5599
  %v5601 = vlaneseq
  %v5602 = vshrl.u32 %v5601, 7
  %v5603 = vsub.s32 5, %v5602
  %v5604 = vrot.slane %v5551, %v5603
  %v5605 = vlaneseq
  %v5606 = vshrl.u32 %v5605, 7
  %v5607 = vsub.s32 5, %v5606
  %v5608 = vrot.slane %v5552, %v5607
  %v5609 = vlaneseq
  %v5610 = vshrl.u32 %v5609, 7
  %v5611 = vsub.s32 5, %v5610
  %v5612 = vrot.slane %v5553, %v5611
  %v5613 = vlaneseq
  %v5614 = vshrl.u32 %v5613, 7
  %v5615 = vsub.s32 5, %v5614
  %v5616 = vrot.slane %v5554, %v5615
  %v5617 = vlaneseq
  %v5618 = vshrl.u32 %v5617, 7
  %v5619 = vsub.s32 5, %v5618
  %v5620 = vrot.slane %v5555, %v5619
  %v5629 = vunpack.c.l.b16 %v5532
  %v5630 = vunpack.c.h.b16 %v5532
  %v5631 = vunpack.c.l.b16 %v5533
  %v5632 = vunpack.c.h.b16 %v5533
  %v5633 = vunpack.c.l.b16 %v5534
  %v5634 = vunpack.c.h.b16 %v5534
  %v5635 = vunpack.c.l.b16 %v5535
  %v5636 = vunpack.c.h.b16 %v5535
  %v5637 = vunpack.c.l.b16 %v5536
  %v5638 = vunpack.c.h.b16 %v5536
  %v5639 = vunpack.c.l.b16 %v5537
  %v5640 = vunpack.c.h.b16 %v5537
  %v5641 = vunpack.c.l.b16 %v5538
  %v5642 = vunpack.c.h.b16 %v5538
  %v5643 = vunpack.c.l.b16 %v5539
  %v5644 = vunpack.c.h.b16 %v5539
  %v5645 = vpack.c.b16 %v5629, %v5629
  %v5646 = vpack.c.b16 %v5630, %v5630
  %v5647 = vpack.c.b16 %v5631, %v5631
  %v5648 = vpack.c.b16 %v5632, %v5632
  %v5649 = vpack.c.b16 %v5633, %v5633
  %v5650 = vpack.c.b16 %v5634, %v5634
  %v5651 = vpack.c.b16 %v5635, %v5635
  %v5652 = vpack.c.b16 %v5636, %v5636
  %v5653 = vpack.c.b16 %v5637, %v5637
  %v5654 = vpack.c.b16 %v5638, %v5638
  %v5655 = vpack.c.b16 %v5639, %v5639
  %v5656 = vpack.c.b16 %v5640, %v5640
  %v5657 = vpack.c.b16 %v5641, %v5641
  %v5658 = vpack.c.b16 %v5642, %v5642
  %v5659 = vpack.c.b16 %v5643, %v5643
  %v5660 = vpack.c.b16 %v5644, %v5644
  %v5662 = vsel %vm44, %v5556, 0
  %v5665 = vand.u32 %v5645, %v692
  %v5668 = vand.u32 %v5646, %v692
  %v5671 = vand.u32 %v5647, %v692
  %v5674 = vand.u32 %v5648, %v692
  %v5677 = vand.u32 %v5649, %v692
  %v5680 = vand.u32 %v5650, %v692
  %v5683 = vand.u32 %v5651, %v692
  %v5686 = vand.u32 %v5652, %v692
  %v5689 = vand.u32 %v5653, %v692
  %v5692 = vand.u32 %v5654, %v692
  %v5695 = vand.u32 %v5655, %v692
  %v5698 = vand.u32 %v5656, %v692
  %v5701 = vand.u32 %v5657, %v692
  %v5704 = vand.u32 %v5658, %v692
  %v5707 = vand.u32 %v5659, %v692
  %v5710 = vand.u32 %v5660, %v692
  %5712 = vmatprep.subr.bf16.mxu0 0
  %5713 = vmatpush1.bf16.msra.mxu0 0
  %5714 = vmatprep.subr.bf16.mxu0 0
  %5715 = vmatpush1.bf16.msra.mxu0 0
  %5716 = vmatprep.subr.bf16.mxu0 0
  %5717 = vmatpush1.bf16.msra.mxu0 0
  %5718 = vmatprep.subr.bf16.mxu0 0
  %5719 = vmatpush1.bf16.msra.mxu0 0
  %5720 = vmatprep.subr.bf16.mxu0 0
  %5721 = vmatpush1.bf16.msra.mxu0 0
  %5722 = vmatprep.subr.bf16.mxu0 0
  %5723 = vmatpush1.bf16.msra.mxu0 0
  %5724 = vmatprep.subr.bf16.mxu0 0
  %5725 = vmatpush1.bf16.msra.mxu0 0
  %5726 = vmatprep.subr.bf16.mxu0 %v5668
  %5727 = vmatpush1.bf16.msra.mxu0 %v5665
  %5728 = vmatprep.subr.bf16.mxu0 0
  %5729 = vmatpush2.bf16.msra.mxu0 0
  %5730 = vmatprep.subr.bf16.mxu0 0
  %5731 = vmatpush2.bf16.msra.mxu0 0
  %5732 = vmatprep.subr.bf16.mxu0 0
  %5733 = vmatpush2.bf16.msra.mxu0 0
  %5734 = vmatprep.subr.bf16.mxu0 0
  %5735 = vmatpush2.bf16.msra.mxu0 0
  %5736 = vmatprep.subr.bf16.mxu0 0
  %5737 = vmatpush2.bf16.msra.mxu0 0
  %5738 = vmatprep.subr.bf16.mxu0 0
  %5739 = vmatpush2.bf16.msra.mxu0 0
  %5740 = vmatprep.subr.bf16.mxu0 0
  %5741 = vmatpush2.bf16.msra.mxu0 0
  %5742 = vmatprep.subr.bf16.mxu0 0
  %5743 = vmatpush2.bf16.msra.mxu0 0
  %5744 = vmatprep.mubr.bf16.mxu0 0
  %5745 = vmatmul.mubr.bf16.gmra.mxu0 %v5662
  %v5746 = vpop.f32.mrf.mxu0
  %v5747 = vadd.f32 %v5560, %v5746
  %v5748 = vpop.f32.mrf.mxu0
  %v5749 = vadd.f32 %v5564, %v5748
  %v5750 = vpop.f32.mrf.mxu0
  %v5751 = vadd.f32 %v5560, %v5750
  %v5752 = vpop.f32.mrf.mxu0
  %v5753 = vadd.f32 %v5564, %v5752
  %5754 = vdwg.mxu0
  %5755 = vmatprep.subr.bf16.mxu0 0
  %5756 = vmatpush1.bf16.msra.mxu0 0
  %5757 = vmatprep.subr.bf16.mxu0 0
  %5758 = vmatpush1.bf16.msra.mxu0 0
  %5759 = vmatprep.subr.bf16.mxu0 0
  %5760 = vmatpush1.bf16.msra.mxu0 0
  %5761 = vmatprep.subr.bf16.mxu0 0
  %5762 = vmatpush1.bf16.msra.mxu0 0
  %5763 = vmatprep.subr.bf16.mxu0 0
  %5764 = vmatpush1.bf16.msra.mxu0 0
  %5765 = vmatprep.subr.bf16.mxu0 0
  %5766 = vmatpush1.bf16.msra.mxu0 0
  %5767 = vmatprep.subr.bf16.mxu0 0
  %5768 = vmatpush1.bf16.msra.mxu0 0
  %5769 = vmatprep.subr.bf16.mxu0 %v5674
  %5770 = vmatpush1.bf16.msra.mxu0 %v5671
  %5771 = vmatprep.subr.bf16.mxu0 0
  %5772 = vmatpush2.bf16.msra.mxu0 0
  %5773 = vmatprep.subr.bf16.mxu0 0
  %5774 = vmatpush2.bf16.msra.mxu0 0
  %5775 = vmatprep.subr.bf16.mxu0 0
  %5776 = vmatpush2.bf16.msra.mxu0 0
  %5777 = vmatprep.subr.bf16.mxu0 0
  %5778 = vmatpush2.bf16.msra.mxu0 0
  %5779 = vmatprep.subr.bf16.mxu0 0
  %5780 = vmatpush2.bf16.msra.mxu0 0
  %5781 = vmatprep.subr.bf16.mxu0 0
  %5782 = vmatpush2.bf16.msra.mxu0 0
  %5783 = vmatprep.subr.bf16.mxu0 0
  %5784 = vmatpush2.bf16.msra.mxu0 0
  %5785 = vmatprep.subr.bf16.mxu0 0
  %5786 = vmatpush2.bf16.msra.mxu0 0
  %5787 = vmatprep.mubr.bf16.mxu0 0
  %5788 = vmatmul.mubr.bf16.gmra.mxu0 %v5662
  %v5789 = vpop.f32.mrf.mxu0
  %v5790 = vadd.f32 %v5568, %v5789
  %v5791 = vpop.f32.mrf.mxu0
  %v5792 = vadd.f32 %v5572, %v5791
  %v5793 = vpop.f32.mrf.mxu0
  %v5794 = vadd.f32 %v5568, %v5793
  %v5795 = vpop.f32.mrf.mxu0
  %v5796 = vadd.f32 %v5572, %v5795
  %5797 = vdwg.mxu0
  %5798 = vmatprep.subr.bf16.mxu0 0
  %5799 = vmatpush1.bf16.msra.mxu0 0
  %5800 = vmatprep.subr.bf16.mxu0 0
  %5801 = vmatpush1.bf16.msra.mxu0 0
  %5802 = vmatprep.subr.bf16.mxu0 0
  %5803 = vmatpush1.bf16.msra.mxu0 0
  %5804 = vmatprep.subr.bf16.mxu0 0
  %5805 = vmatpush1.bf16.msra.mxu0 0
  %5806 = vmatprep.subr.bf16.mxu0 0
  %5807 = vmatpush1.bf16.msra.mxu0 0
  %5808 = vmatprep.subr.bf16.mxu0 0
  %5809 = vmatpush1.bf16.msra.mxu0 0
  %5810 = vmatprep.subr.bf16.mxu0 0
  %5811 = vmatpush1.bf16.msra.mxu0 0
  %5812 = vmatprep.subr.bf16.mxu0 %v5680
  %5813 = vmatpush1.bf16.msra.mxu0 %v5677
  %5814 = vmatprep.subr.bf16.mxu0 0
  %5815 = vmatpush2.bf16.msra.mxu0 0
  %5816 = vmatprep.subr.bf16.mxu0 0
  %5817 = vmatpush2.bf16.msra.mxu0 0
  %5818 = vmatprep.subr.bf16.mxu0 0
  %5819 = vmatpush2.bf16.msra.mxu0 0
  %5820 = vmatprep.subr.bf16.mxu0 0
  %5821 = vmatpush2.bf16.msra.mxu0 0
  %5822 = vmatprep.subr.bf16.mxu0 0
  %5823 = vmatpush2.bf16.msra.mxu0 0
  %5824 = vmatprep.subr.bf16.mxu0 0
  %5825 = vmatpush2.bf16.msra.mxu0 0
  %5826 = vmatprep.subr.bf16.mxu0 0
  %5827 = vmatpush2.bf16.msra.mxu0 0
  %5828 = vmatprep.subr.bf16.mxu0 0
  %5829 = vmatpush2.bf16.msra.mxu0 0
  %5830 = vmatprep.mubr.bf16.mxu0 0
  %5831 = vmatmul.mubr.bf16.gmra.mxu0 %v5662
  %v5832 = vpop.f32.mrf.mxu0
  %v5833 = vadd.f32 %v5576, %v5832
  %v5834 = vpop.f32.mrf.mxu0
  %v5835 = vadd.f32 %v5580, %v5834
  %v5836 = vpop.f32.mrf.mxu0
  %v5837 = vadd.f32 %v5576, %v5836
  %v5838 = vpop.f32.mrf.mxu0
  %v5839 = vadd.f32 %v5580, %v5838
  %5840 = vdwg.mxu0
  %5841 = vmatprep.subr.bf16.mxu0 0
  %5842 = vmatpush1.bf16.msra.mxu0 0
  %5843 = vmatprep.subr.bf16.mxu0 0
  %5844 = vmatpush1.bf16.msra.mxu0 0
  %5845 = vmatprep.subr.bf16.mxu0 0
  %5846 = vmatpush1.bf16.msra.mxu0 0
  %5847 = vmatprep.subr.bf16.mxu0 0
  %5848 = vmatpush1.bf16.msra.mxu0 0
  %5849 = vmatprep.subr.bf16.mxu0 0
  %5850 = vmatpush1.bf16.msra.mxu0 0
  %5851 = vmatprep.subr.bf16.mxu0 0
  %5852 = vmatpush1.bf16.msra.mxu0 0
  %5853 = vmatprep.subr.bf16.mxu0 0
  %5854 = vmatpush1.bf16.msra.mxu0 0
  %5855 = vmatprep.subr.bf16.mxu0 %v5686
  %5856 = vmatpush1.bf16.msra.mxu0 %v5683
  %5857 = vmatprep.subr.bf16.mxu0 0
  %5858 = vmatpush2.bf16.msra.mxu0 0
  %5859 = vmatprep.subr.bf16.mxu0 0
  %5860 = vmatpush2.bf16.msra.mxu0 0
  %5861 = vmatprep.subr.bf16.mxu0 0
  %5862 = vmatpush2.bf16.msra.mxu0 0
  %5863 = vmatprep.subr.bf16.mxu0 0
  %5864 = vmatpush2.bf16.msra.mxu0 0
  %5865 = vmatprep.subr.bf16.mxu0 0
  %5866 = vmatpush2.bf16.msra.mxu0 0
  %5867 = vmatprep.subr.bf16.mxu0 0
  %5868 = vmatpush2.bf16.msra.mxu0 0
  %5869 = vmatprep.subr.bf16.mxu0 0
  %5870 = vmatpush2.bf16.msra.mxu0 0
  %5871 = vmatprep.subr.bf16.mxu0 0
  %5872 = vmatpush2.bf16.msra.mxu0 0
  %5873 = vmatprep.mubr.bf16.mxu0 0
  %5874 = vmatmul.mubr.bf16.gmra.mxu0 %v5662
  %v5875 = vpop.f32.mrf.mxu0
  %v5876 = vadd.f32 %v5584, %v5875
  %v5877 = vpop.f32.mrf.mxu0
  %v5878 = vadd.f32 %v5588, %v5877
  %v5879 = vpop.f32.mrf.mxu0
  %v5880 = vadd.f32 %v5584, %v5879
  %v5881 = vpop.f32.mrf.mxu0
  %v5882 = vadd.f32 %v5588, %v5881
  %5883 = vdwg.mxu0
  %5884 = vmatprep.subr.bf16.mxu0 0
  %5885 = vmatpush1.bf16.msra.mxu0 0
  %5886 = vmatprep.subr.bf16.mxu0 0
  %5887 = vmatpush1.bf16.msra.mxu0 0
  %5888 = vmatprep.subr.bf16.mxu0 0
  %5889 = vmatpush1.bf16.msra.mxu0 0
  %5890 = vmatprep.subr.bf16.mxu0 0
  %5891 = vmatpush1.bf16.msra.mxu0 0
  %5892 = vmatprep.subr.bf16.mxu0 0
  %5893 = vmatpush1.bf16.msra.mxu0 0
  %5894 = vmatprep.subr.bf16.mxu0 0
  %5895 = vmatpush1.bf16.msra.mxu0 0
  %5896 = vmatprep.subr.bf16.mxu0 0
  %5897 = vmatpush1.bf16.msra.mxu0 0
  %5898 = vmatprep.subr.bf16.mxu0 %v5692
  %5899 = vmatpush1.bf16.msra.mxu0 %v5689
  %5900 = vmatprep.subr.bf16.mxu0 0
  %5901 = vmatpush2.bf16.msra.mxu0 0
  %5902 = vmatprep.subr.bf16.mxu0 0
  %5903 = vmatpush2.bf16.msra.mxu0 0
  %5904 = vmatprep.subr.bf16.mxu0 0
  %5905 = vmatpush2.bf16.msra.mxu0 0
  %5906 = vmatprep.subr.bf16.mxu0 0
  %5907 = vmatpush2.bf16.msra.mxu0 0
  %5908 = vmatprep.subr.bf16.mxu0 0
  %5909 = vmatpush2.bf16.msra.mxu0 0
  %5910 = vmatprep.subr.bf16.mxu0 0
  %5911 = vmatpush2.bf16.msra.mxu0 0
  %5912 = vmatprep.subr.bf16.mxu0 0
  %5913 = vmatpush2.bf16.msra.mxu0 0
  %5914 = vmatprep.subr.bf16.mxu0 0
  %5915 = vmatpush2.bf16.msra.mxu0 0
  %5916 = vmatprep.mubr.bf16.mxu0 0
  %5917 = vmatmul.mubr.bf16.gmra.mxu0 %v5662
  %v5918 = vpop.f32.mrf.mxu0
  %v5919 = vadd.f32 %v5592, %v5918
  %v5920 = vpop.f32.mrf.mxu0
  %v5921 = vadd.f32 %v5596, %v5920
  %v5922 = vpop.f32.mrf.mxu0
  %v5923 = vadd.f32 %v5592, %v5922
  %v5924 = vpop.f32.mrf.mxu0
  %v5925 = vadd.f32 %v5596, %v5924
  %5926 = vdwg.mxu0
  %5927 = vmatprep.subr.bf16.mxu0 0
  %5928 = vmatpush1.bf16.msra.mxu0 0
  %5929 = vmatprep.subr.bf16.mxu0 0
  %5930 = vmatpush1.bf16.msra.mxu0 0
  %5931 = vmatprep.subr.bf16.mxu0 0
  %5932 = vmatpush1.bf16.msra.mxu0 0
  %5933 = vmatprep.subr.bf16.mxu0 0
  %5934 = vmatpush1.bf16.msra.mxu0 0
  %5935 = vmatprep.subr.bf16.mxu0 0
  %5936 = vmatpush1.bf16.msra.mxu0 0
  %5937 = vmatprep.subr.bf16.mxu0 0
  %5938 = vmatpush1.bf16.msra.mxu0 0
  %5939 = vmatprep.subr.bf16.mxu0 0
  %5940 = vmatpush1.bf16.msra.mxu0 0
  %5941 = vmatprep.subr.bf16.mxu0 %v5698
  %5942 = vmatpush1.bf16.msra.mxu0 %v5695
  %5943 = vmatprep.subr.bf16.mxu0 0
  %5944 = vmatpush2.bf16.msra.mxu0 0
  %5945 = vmatprep.subr.bf16.mxu0 0
  %5946 = vmatpush2.bf16.msra.mxu0 0
  %5947 = vmatprep.subr.bf16.mxu0 0
  %5948 = vmatpush2.bf16.msra.mxu0 0
  %5949 = vmatprep.subr.bf16.mxu0 0
  %5950 = vmatpush2.bf16.msra.mxu0 0
  %5951 = vmatprep.subr.bf16.mxu0 0
  %5952 = vmatpush2.bf16.msra.mxu0 0
  %5953 = vmatprep.subr.bf16.mxu0 0
  %5954 = vmatpush2.bf16.msra.mxu0 0
  %5955 = vmatprep.subr.bf16.mxu0 0
  %5956 = vmatpush2.bf16.msra.mxu0 0
  %5957 = vmatprep.subr.bf16.mxu0 0
  %5958 = vmatpush2.bf16.msra.mxu0 0
  %5959 = vmatprep.mubr.bf16.mxu0 0
  %5960 = vmatmul.mubr.bf16.gmra.mxu0 %v5662
  %v5961 = vpop.f32.mrf.mxu0
  %v5962 = vadd.f32 %v5600, %v5961
  %v5963 = vpop.f32.mrf.mxu0
  %v5964 = vadd.f32 %v5604, %v5963
  %v5965 = vpop.f32.mrf.mxu0
  %v5966 = vadd.f32 %v5600, %v5965
  %v5967 = vpop.f32.mrf.mxu0
  %v5968 = vadd.f32 %v5604, %v5967
  %5969 = vdwg.mxu0
  %5970 = vmatprep.subr.bf16.mxu0 0
  %5971 = vmatpush1.bf16.msra.mxu0 0
  %5972 = vmatprep.subr.bf16.mxu0 0
  %5973 = vmatpush1.bf16.msra.mxu0 0
  %5974 = vmatprep.subr.bf16.mxu0 0
  %5975 = vmatpush1.bf16.msra.mxu0 0
  %5976 = vmatprep.subr.bf16.mxu0 0
  %5977 = vmatpush1.bf16.msra.mxu0 0
  %5978 = vmatprep.subr.bf16.mxu0 0
  %5979 = vmatpush1.bf16.msra.mxu0 0
  %5980 = vmatprep.subr.bf16.mxu0 0
  %5981 = vmatpush1.bf16.msra.mxu0 0
  %5982 = vmatprep.subr.bf16.mxu0 0
  %5983 = vmatpush1.bf16.msra.mxu0 0
  %5984 = vmatprep.subr.bf16.mxu0 %v5704
  %5985 = vmatpush1.bf16.msra.mxu0 %v5701
  %5986 = vmatprep.subr.bf16.mxu0 0
  %5987 = vmatpush2.bf16.msra.mxu0 0
  %5988 = vmatprep.subr.bf16.mxu0 0
  %5989 = vmatpush2.bf16.msra.mxu0 0
  %5990 = vmatprep.subr.bf16.mxu0 0
  %5991 = vmatpush2.bf16.msra.mxu0 0
  %5992 = vmatprep.subr.bf16.mxu0 0
  %5993 = vmatpush2.bf16.msra.mxu0 0
  %5994 = vmatprep.subr.bf16.mxu0 0
  %5995 = vmatpush2.bf16.msra.mxu0 0
  %5996 = vmatprep.subr.bf16.mxu0 0
  %5997 = vmatpush2.bf16.msra.mxu0 0
  %5998 = vmatprep.subr.bf16.mxu0 0
  %5999 = vmatpush2.bf16.msra.mxu0 0
  %6000 = vmatprep.subr.bf16.mxu0 0
  %6001 = vmatpush2.bf16.msra.mxu0 0
  %6002 = vmatprep.mubr.bf16.mxu0 0
  %6003 = vmatmul.mubr.bf16.gmra.mxu0 %v5662
  %v6004 = vpop.f32.mrf.mxu0
  %v6005 = vadd.f32 %v5608, %v6004
  %v6006 = vpop.f32.mrf.mxu0
  %v6007 = vadd.f32 %v5612, %v6006
  %v6008 = vpop.f32.mrf.mxu0
  %v6009 = vadd.f32 %v5608, %v6008
  %v6010 = vpop.f32.mrf.mxu0
  %v6011 = vadd.f32 %v5612, %v6010
  %6012 = vdwg.mxu0
  %6013 = vmatprep.subr.bf16.mxu0 0
  %6014 = vmatpush1.bf16.msra.mxu0 0
  %6015 = vmatprep.subr.bf16.mxu0 0
  %6016 = vmatpush1.bf16.msra.mxu0 0
  %6017 = vmatprep.subr.bf16.mxu0 0
  %6018 = vmatpush1.bf16.msra.mxu0 0
  %6019 = vmatprep.subr.bf16.mxu0 0
  %6020 = vmatpush1.bf16.msra.mxu0 0
  %6021 = vmatprep.subr.bf16.mxu0 0
  %6022 = vmatpush1.bf16.msra.mxu0 0
  %6023 = vmatprep.subr.bf16.mxu0 0
  %6024 = vmatpush1.bf16.msra.mxu0 0
  %6025 = vmatprep.subr.bf16.mxu0 0
  %6026 = vmatpush1.bf16.msra.mxu0 0
  %6027 = vmatprep.subr.bf16.mxu0 %v5710
  %6028 = vmatpush1.bf16.msra.mxu0 %v5707
  %6029 = vmatprep.subr.bf16.mxu0 0
  %6030 = vmatpush2.bf16.msra.mxu0 0
  %6031 = vmatprep.subr.bf16.mxu0 0
  %6032 = vmatpush2.bf16.msra.mxu0 0
  %6033 = vmatprep.subr.bf16.mxu0 0
  %6034 = vmatpush2.bf16.msra.mxu0 0
  %6035 = vmatprep.subr.bf16.mxu0 0
  %6036 = vmatpush2.bf16.msra.mxu0 0
  %6037 = vmatprep.subr.bf16.mxu0 0
  %6038 = vmatpush2.bf16.msra.mxu0 0
  %6039 = vmatprep.subr.bf16.mxu0 0
  %6040 = vmatpush2.bf16.msra.mxu0 0
  %6041 = vmatprep.subr.bf16.mxu0 0
  %6042 = vmatpush2.bf16.msra.mxu0 0
  %6043 = vmatprep.subr.bf16.mxu0 0
  %6044 = vmatpush2.bf16.msra.mxu0 0
  %6045 = vmatprep.mubr.bf16.mxu0 0
  %6046 = vmatmul.mubr.bf16.gmra.mxu0 %v5662
  %v6047 = vpop.f32.mrf.mxu0
  %v6048 = vadd.f32 %v5616, %v6047
  %v6049 = vpop.f32.mrf.mxu0
  %v6050 = vadd.f32 %v5620, %v6049
  %v6051 = vpop.f32.mrf.mxu0
  %v6052 = vadd.f32 %v5616, %v6051
  %v6053 = vpop.f32.mrf.mxu0
  %v6054 = vadd.f32 %v5620, %v6053
  %6055 = vdwg.mxu0
  %v6056 = vmax.f32 %v5747, 0.0
  %v6057 = vmax.f32 %v5749, 0.0
  %v6058 = vmax.f32 %v5790, 0.0
  %v6059 = vmax.f32 %v5792, 0.0
  %v6060 = vmax.f32 %v5833, 0.0
  %v6061 = vmax.f32 %v5835, 0.0
  %v6062 = vmax.f32 %v5876, 0.0
  %v6063 = vmax.f32 %v5878, 0.0
  %v6064 = vmax.f32 %v5919, 0.0
  %v6065 = vmax.f32 %v5921, 0.0
  %v6066 = vmax.f32 %v5962, 0.0
  %v6067 = vmax.f32 %v5964, 0.0
  %v6068 = vmax.f32 %v6005, 0.0
  %v6069 = vmax.f32 %v6007, 0.0
  %v6070 = vmax.f32 %v6048, 0.0
  %v6071 = vmax.f32 %v6050, 0.0
  %v6072 = vmax.f32 %v5751, 0.0
  %v6073 = vmax.f32 %v5753, 0.0
  %v6074 = vmax.f32 %v5794, 0.0
  %v6075 = vmax.f32 %v5796, 0.0
  %v6076 = vmax.f32 %v5837, 0.0
  %v6077 = vmax.f32 %v5839, 0.0
  %v6078 = vmax.f32 %v5880, 0.0
  %v6079 = vmax.f32 %v5882, 0.0
  %v6080 = vmax.f32 %v5923, 0.0
  %v6081 = vmax.f32 %v5925, 0.0
  %v6082 = vmax.f32 %v5966, 0.0
  %v6083 = vmax.f32 %v5968, 0.0
  %v6084 = vmax.f32 %v6009, 0.0
  %v6085 = vmax.f32 %v6011, 0.0
  %v6086 = vmax.f32 %v6052, 0.0
  %v6087 = vmax.f32 %v6054, 0.0
  %v6088 = vpack.c.bf16 %v6072, %v6056
  %v6089 = vpack.c.bf16 %v6073, %v6057
  %v6090 = vpack.c.bf16 %v6074, %v6058
  %v6091 = vpack.c.bf16 %v6075, %v6059
  %v6092 = vpack.c.bf16 %v6076, %v6060
  %v6093 = vpack.c.bf16 %v6077, %v6061
  %v6094 = vpack.c.bf16 %v6078, %v6062
  %v6095 = vpack.c.bf16 %v6079, %v6063
  %v6096 = vpack.c.bf16 %v6080, %v6064
  %v6097 = vpack.c.bf16 %v6081, %v6065
  %v6098 = vpack.c.bf16 %v6082, %v6066
  %v6099 = vpack.c.bf16 %v6083, %v6067
  %v6100 = vpack.c.bf16 %v6084, %v6068
  %v6101 = vpack.c.bf16 %v6085, %v6069
  %v6102 = vpack.c.bf16 %v6086, %v6070
  %v6103 = vpack.c.bf16 %v6087, %v6071
  %s6104 = scalar_lea.vmem %s3, 2048
  %v6105 = vld [vmem:[%s6104] sm:$0xf]
  %v6106 = vld [vmem:[%s6104 + $0x4] sm:$0xf]
  %v6107 = vld [vmem:[%s6104 + $0x8] sm:$0xf]
  %v6108 = vld [vmem:[%s6104 + $0xc] sm:$0xf]
  %v6109 = vld [vmem:[%s6104 + $0x10] sm:$0xf]
  %v6110 = vld [vmem:[%s6104 + $0x14] sm:$0xf]
  %v6111 = vld [vmem:[%s6104 + $0x18] sm:$0xf]
  %v6112 = vld [vmem:[%s6104 + $0x1c] sm:$0xf]
  %v6113 = vld [vmem:[%s6104 + $0x20] sm:$0xf]
  %v6114 = vld [vmem:[%s6104 + $0x24] sm:$0xf]
  %v6115 = vld [vmem:[%s6104 + $0x28] sm:$0xf]
  %v6116 = vld [vmem:[%s6104 + $0x2c] sm:$0xf]
  %v6117 = vld [vmem:[%s6104 + $0x30] sm:$0xf]
  %v6118 = vld [vmem:[%s6104 + $0x34] sm:$0xf]
  %v6119 = vld [vmem:[%s6104 + $0x38] sm:$0xf]
  %v6120 = vld [vmem:[%s6104 + $0x3c] sm:$0xf]
  %v6121 = vld [vmem:[%s6104 + $0x40] sm:$0xf]
  %v6122 = vld [vmem:[%s6104 + $0x44] sm:$0xf]
  %v6123 = vld [vmem:[%s6104 + $0x48] sm:$0xf]
  %v6124 = vld [vmem:[%s6104 + $0x4c] sm:$0xf]
  %v6125 = vld [vmem:[%s6104 + $0x50] sm:$0xf]
  %v6126 = vld [vmem:[%s6104 + $0x54] sm:$0xf]
  %v6127 = vld [vmem:[%s6104 + $0x58] sm:$0xf]
  %v6128 = vld [vmem:[%s6104 + $0x5c] sm:$0xf]
  %v6129 = vld [vmem:[%s6104 + $0x60] sm:$0xf]
  %v6130 = vld [vmem:[%s6104 + $0x64] sm:$0xf]
  %v6131 = vld [vmem:[%s6104 + $0x68] sm:$0xf]
  %v6132 = vld [vmem:[%s6104 + $0x6c] sm:$0xf]
  %v6133 = vld [vmem:[%s6104 + $0x70] sm:$0xf]
  %v6134 = vld [vmem:[%s6104 + $0x74] sm:$0xf]
  %v6135 = vld [vmem:[%s6104 + $0x78] sm:$0xf]
  %v6136 = vld [vmem:[%s6104 + $0x7c] sm:$0xf]
  %v6137 = vld [vmem:[%s6104 + $0x80] sm:$0xf]
  %v6138 = vld [vmem:[%s6104 + $0x84] sm:$0xf]
  %v6139 = vld [vmem:[%s6104 + $0x88] sm:$0xf]
  %v6140 = vld [vmem:[%s6104 + $0x8c] sm:$0xf]
  %v6141 = vld [vmem:[%s6104 + $0x90] sm:$0xf]
  %v6142 = vld [vmem:[%s6104 + $0x94] sm:$0xf]
  %v6143 = vld [vmem:[%s6104 + $0x98] sm:$0xf]
  %v6144 = vld [vmem:[%s6104 + $0x9c] sm:$0xf]
  %v6145 = vld [vmem:[%s6104 + $0xa0] sm:$0xf]
  %v6146 = vld [vmem:[%s6104 + $0xa4] sm:$0xf]
  %v6147 = vld [vmem:[%s6104 + $0xa8] sm:$0xf]
  %v6148 = vld [vmem:[%s6104 + $0xac] sm:$0xf]
  %v6149 = vld [vmem:[%s6104 + $0xb0] sm:$0xf]
  %v6150 = vld [vmem:[%s6104 + $0xb4] sm:$0xf]
  %v6151 = vld [vmem:[%s6104 + $0xb8] sm:$0xf]
  %v6152 = vld [vmem:[%s6104 + $0xbc] sm:$0xf]
  %v6153 = vld [vmem:[%s6104 + $0xc0] sm:$0xf]
  %v6154 = vld [vmem:[%s6104 + $0xc4] sm:$0xf]
  %v6155 = vld [vmem:[%s6104 + $0xc8] sm:$0xf]
  %v6156 = vld [vmem:[%s6104 + $0xcc] sm:$0xf]
  %v6157 = vld [vmem:[%s6104 + $0xd0] sm:$0xf]
  %v6158 = vld [vmem:[%s6104 + $0xd4] sm:$0xf]
  %v6159 = vld [vmem:[%s6104 + $0xd8] sm:$0xf]
  %v6160 = vld [vmem:[%s6104 + $0xdc] sm:$0xf]
  %v6161 = vld [vmem:[%s6104 + $0xe0] sm:$0xf]
  %v6162 = vld [vmem:[%s6104 + $0xe4] sm:$0xf]
  %v6163 = vld [vmem:[%s6104 + $0xe8] sm:$0xf]
  %v6164 = vld [vmem:[%s6104 + $0xec] sm:$0xf]
  %v6165 = vld [vmem:[%s6104 + $0xf0] sm:$0xf]
  %v6166 = vld [vmem:[%s6104 + $0xf4] sm:$0xf]
  %v6167 = vld [vmem:[%s6104 + $0xf8] sm:$0xf]
  %v6168 = vld [vmem:[%s6104 + $0xfc] sm:$0xf]
  %v6169 = vld [vmem:[%s6104 + $0x100] sm:$0xf]
  %v6170 = vld [vmem:[%s6104 + $0x104] sm:$0xf]
  %v6171 = vld [vmem:[%s6104 + $0x108] sm:$0xf]
  %v6172 = vld [vmem:[%s6104 + $0x10c] sm:$0xf]
  %v6173 = vld [vmem:[%s6104 + $0x110] sm:$0xf]
  %v6174 = vld [vmem:[%s6104 + $0x114] sm:$0xf]
  %v6175 = vld [vmem:[%s6104 + $0x118] sm:$0xf]
  %v6176 = vld [vmem:[%s6104 + $0x11c] sm:$0xf]
  %v6177 = vld [vmem:[%s6104 + $0x120] sm:$0xf]
  %v6178 = vld [vmem:[%s6104 + $0x124] sm:$0xf]
  %v6179 = vld [vmem:[%s6104 + $0x128] sm:$0xf]
  %v6180 = vld [vmem:[%s6104 + $0x12c] sm:$0xf]
  %v6181 = vld [vmem:[%s6104 + $0x130] sm:$0xf]
  %v6182 = vld [vmem:[%s6104 + $0x134] sm:$0xf]
  %v6183 = vld [vmem:[%s6104 + $0x138] sm:$0xf]
  %v6184 = vld [vmem:[%s6104 + $0x13c] sm:$0xf]
  %v6185 = vld [vmem:[%s6104 + $0x140] sm:$0xf]
  %v6186 = vld [vmem:[%s6104 + $0x144] sm:$0xf]
  %v6187 = vld [vmem:[%s6104 + $0x148] sm:$0xf]
  %v6188 = vld [vmem:[%s6104 + $0x14c] sm:$0xf]
  %v6189 = vld [vmem:[%s6104 + $0x150] sm:$0xf]
  %v6190 = vld [vmem:[%s6104 + $0x154] sm:$0xf]
  %v6191 = vld [vmem:[%s6104 + $0x158] sm:$0xf]
  %v6192 = vld [vmem:[%s6104 + $0x15c] sm:$0xf]
  %v6193 = vld [vmem:[%s6104 + $0x160] sm:$0xf]
  %v6194 = vld [vmem:[%s6104 + $0x164] sm:$0xf]
  %v6195 = vld [vmem:[%s6104 + $0x168] sm:$0xf]
  %v6196 = vld [vmem:[%s6104 + $0x16c] sm:$0xf]
  %v6197 = vld [vmem:[%s6104 + $0x170] sm:$0xf]
  %v6198 = vld [vmem:[%s6104 + $0x174] sm:$0xf]
  %v6199 = vld [vmem:[%s6104 + $0x178] sm:$0xf]
  %v6200 = vld [vmem:[%s6104 + $0x17c] sm:$0xf]
  %v6201 = vld [vmem:[%s6104 + $0x180] sm:$0xf]
  %v6202 = vld [vmem:[%s6104 + $0x184] sm:$0xf]
  %v6203 = vld [vmem:[%s6104 + $0x188] sm:$0xf]
  %v6204 = vld [vmem:[%s6104 + $0x18c] sm:$0xf]
  %v6205 = vld [vmem:[%s6104 + $0x190] sm:$0xf]
  %v6206 = vld [vmem:[%s6104 + $0x194] sm:$0xf]
  %v6207 = vld [vmem:[%s6104 + $0x198] sm:$0xf]
  %v6208 = vld [vmem:[%s6104 + $0x19c] sm:$0xf]
  %v6209 = vld [vmem:[%s6104 + $0x1a0] sm:$0xf]
  %v6210 = vld [vmem:[%s6104 + $0x1a4] sm:$0xf]
  %v6211 = vld [vmem:[%s6104 + $0x1a8] sm:$0xf]
  %v6212 = vld [vmem:[%s6104 + $0x1ac] sm:$0xf]
  %v6213 = vld [vmem:[%s6104 + $0x1b0] sm:$0xf]
  %v6214 = vld [vmem:[%s6104 + $0x1b4] sm:$0xf]
  %v6215 = vld [vmem:[%s6104 + $0x1b8] sm:$0xf]
  %v6216 = vld [vmem:[%s6104 + $0x1bc] sm:$0xf]
  %v6217 = vld [vmem:[%s6104 + $0x1c0] sm:$0xf]
  %v6218 = vld [vmem:[%s6104 + $0x1c4] sm:$0xf]
  %v6219 = vld [vmem:[%s6104 + $0x1c8] sm:$0xf]
  %v6220 = vld [vmem:[%s6104 + $0x1cc] sm:$0xf]
  %v6221 = vld [vmem:[%s6104 + $0x1d0] sm:$0xf]
  %v6222 = vld [vmem:[%s6104 + $0x1d4] sm:$0xf]
  %v6223 = vld [vmem:[%s6104 + $0x1d8] sm:$0xf]
  %v6224 = vld [vmem:[%s6104 + $0x1dc] sm:$0xf]
  %v6225 = vld [vmem:[%s6104 + $0x1e0] sm:$0xf]
  %v6226 = vld [vmem:[%s6104 + $0x1e4] sm:$0xf]
  %v6227 = vld [vmem:[%s6104 + $0x1e8] sm:$0xf]
  %v6228 = vld [vmem:[%s6104 + $0x1ec] sm:$0xf]
  %v6229 = vld [vmem:[%s6104 + $0x1f0] sm:$0xf]
  %v6230 = vld [vmem:[%s6104 + $0x1f4] sm:$0xf]
  %v6231 = vld [vmem:[%s6104 + $0x1f8] sm:$0xf]
  %v6232 = vld [vmem:[%s6104 + $0x1fc] sm:$0xf]
  %v6233 = vld [vmem:[%s6104 + $0x200] sm:$0xf]
  %v6234 = vld [vmem:[%s6104 + $0x204] sm:$0xf]
  %v6235 = vld [vmem:[%s6104 + $0x208] sm:$0xf]
  %v6236 = vld [vmem:[%s6104 + $0x20c] sm:$0xf]
  %v6237 = vld [vmem:[%s6104 + $0x210] sm:$0xf]
  %v6238 = vld [vmem:[%s6104 + $0x214] sm:$0xf]
  %v6239 = vld [vmem:[%s6104 + $0x218] sm:$0xf]
  %v6240 = vld [vmem:[%s6104 + $0x21c] sm:$0xf]
  %v6241 = vld [vmem:[%s6104 + $0x220] sm:$0xf]
  %v6242 = vld [vmem:[%s6104 + $0x224] sm:$0xf]
  %v6243 = vld [vmem:[%s6104 + $0x228] sm:$0xf]
  %v6244 = vld [vmem:[%s6104 + $0x22c] sm:$0xf]
  %v6245 = vld [vmem:[%s6104 + $0x230] sm:$0xf]
  %v6246 = vld [vmem:[%s6104 + $0x234] sm:$0xf]
  %v6247 = vld [vmem:[%s6104 + $0x238] sm:$0xf]
  %v6248 = vld [vmem:[%s6104 + $0x23c] sm:$0xf]
  %v6249 = vld [vmem:[%s6104 + $0x240] sm:$0xf]
  %v6250 = vld [vmem:[%s6104 + $0x244] sm:$0xf]
  %v6251 = vld [vmem:[%s6104 + $0x248] sm:$0xf]
  %v6252 = vld [vmem:[%s6104 + $0x24c] sm:$0xf]
  %v6253 = vld [vmem:[%s6104 + $0x250] sm:$0xf]
  %v6254 = vld [vmem:[%s6104 + $0x254] sm:$0xf]
  %v6255 = vld [vmem:[%s6104 + $0x258] sm:$0xf]
  %v6256 = vld [vmem:[%s6104 + $0x25c] sm:$0xf]
  %v6257 = vld [vmem:[%s6104 + $0x260] sm:$0xf]
  %v6258 = vld [vmem:[%s6104 + $0x264] sm:$0xf]
  %v6259 = vld [vmem:[%s6104 + $0x268] sm:$0xf]
  %v6260 = vld [vmem:[%s6104 + $0x26c] sm:$0xf]
  %v6261 = vld [vmem:[%s6104 + $0x270] sm:$0xf]
  %v6262 = vld [vmem:[%s6104 + $0x274] sm:$0xf]
  %v6263 = vld [vmem:[%s6104 + $0x278] sm:$0xf]
  %v6264 = vld [vmem:[%s6104 + $0x27c] sm:$0xf]
  %v6265 = vld [vmem:[%s6104 + $0x280] sm:$0xf]
  %v6266 = vld [vmem:[%s6104 + $0x284] sm:$0xf]
  %v6267 = vld [vmem:[%s6104 + $0x288] sm:$0xf]
  %v6268 = vld [vmem:[%s6104 + $0x28c] sm:$0xf]
  %v6269 = vld [vmem:[%s6104 + $0x290] sm:$0xf]
  %v6270 = vld [vmem:[%s6104 + $0x294] sm:$0xf]
  %v6271 = vld [vmem:[%s6104 + $0x298] sm:$0xf]
  %v6272 = vld [vmem:[%s6104 + $0x29c] sm:$0xf]
  %v6273 = vld [vmem:[%s6104 + $0x2a0] sm:$0xf]
  %v6274 = vld [vmem:[%s6104 + $0x2a4] sm:$0xf]
  %v6275 = vld [vmem:[%s6104 + $0x2a8] sm:$0xf]
  %v6276 = vld [vmem:[%s6104 + $0x2ac] sm:$0xf]
  %v6277 = vld [vmem:[%s6104 + $0x2b0] sm:$0xf]
  %v6278 = vld [vmem:[%s6104 + $0x2b4] sm:$0xf]
  %v6279 = vld [vmem:[%s6104 + $0x2b8] sm:$0xf]
  %v6280 = vld [vmem:[%s6104 + $0x2bc] sm:$0xf]
  %v6281 = vld [vmem:[%s6104 + $0x2c0] sm:$0xf]
  %v6282 = vld [vmem:[%s6104 + $0x2c4] sm:$0xf]
  %v6283 = vld [vmem:[%s6104 + $0x2c8] sm:$0xf]
  %v6284 = vld [vmem:[%s6104 + $0x2cc] sm:$0xf]
  %v6285 = vld [vmem:[%s6104 + $0x2d0] sm:$0xf]
  %v6286 = vld [vmem:[%s6104 + $0x2d4] sm:$0xf]
  %v6287 = vld [vmem:[%s6104 + $0x2d8] sm:$0xf]
  %v6288 = vld [vmem:[%s6104 + $0x2dc] sm:$0xf]
  %v6289 = vld [vmem:[%s6104 + $0x2e0] sm:$0xf]
  %v6290 = vld [vmem:[%s6104 + $0x2e4] sm:$0xf]
  %v6291 = vld [vmem:[%s6104 + $0x2e8] sm:$0xf]
  %v6292 = vld [vmem:[%s6104 + $0x2ec] sm:$0xf]
  %v6293 = vld [vmem:[%s6104 + $0x2f0] sm:$0xf]
  %v6294 = vld [vmem:[%s6104 + $0x2f4] sm:$0xf]
  %v6295 = vld [vmem:[%s6104 + $0x2f8] sm:$0xf]
  %v6296 = vld [vmem:[%s6104 + $0x2fc] sm:$0xf]
  %v6297 = vld [vmem:[%s6104 + $0x300] sm:$0xf]
  %v6298 = vld [vmem:[%s6104 + $0x304] sm:$0xf]
  %v6299 = vld [vmem:[%s6104 + $0x308] sm:$0xf]
  %v6300 = vld [vmem:[%s6104 + $0x30c] sm:$0xf]
  %v6301 = vld [vmem:[%s6104 + $0x310] sm:$0xf]
  %v6302 = vld [vmem:[%s6104 + $0x314] sm:$0xf]
  %v6303 = vld [vmem:[%s6104 + $0x318] sm:$0xf]
  %v6304 = vld [vmem:[%s6104 + $0x31c] sm:$0xf]
  %v6305 = vld [vmem:[%s6104 + $0x320] sm:$0xf]
  %v6306 = vld [vmem:[%s6104 + $0x324] sm:$0xf]
  %v6307 = vld [vmem:[%s6104 + $0x328] sm:$0xf]
  %v6308 = vld [vmem:[%s6104 + $0x32c] sm:$0xf]
  %v6309 = vld [vmem:[%s6104 + $0x330] sm:$0xf]
  %v6310 = vld [vmem:[%s6104 + $0x334] sm:$0xf]
  %v6311 = vld [vmem:[%s6104 + $0x338] sm:$0xf]
  %v6312 = vld [vmem:[%s6104 + $0x33c] sm:$0xf]
  %v6313 = vld [vmem:[%s6104 + $0x340] sm:$0xf]
  %v6314 = vld [vmem:[%s6104 + $0x344] sm:$0xf]
  %v6315 = vld [vmem:[%s6104 + $0x348] sm:$0xf]
  %v6316 = vld [vmem:[%s6104 + $0x34c] sm:$0xf]
  %v6317 = vld [vmem:[%s6104 + $0x350] sm:$0xf]
  %v6318 = vld [vmem:[%s6104 + $0x354] sm:$0xf]
  %v6319 = vld [vmem:[%s6104 + $0x358] sm:$0xf]
  %v6320 = vld [vmem:[%s6104 + $0x35c] sm:$0xf]
  %v6321 = vld [vmem:[%s6104 + $0x360] sm:$0xf]
  %v6322 = vld [vmem:[%s6104 + $0x364] sm:$0xf]
  %v6323 = vld [vmem:[%s6104 + $0x368] sm:$0xf]
  %v6324 = vld [vmem:[%s6104 + $0x36c] sm:$0xf]
  %v6325 = vld [vmem:[%s6104 + $0x370] sm:$0xf]
  %v6326 = vld [vmem:[%s6104 + $0x374] sm:$0xf]
  %v6327 = vld [vmem:[%s6104 + $0x378] sm:$0xf]
  %v6328 = vld [vmem:[%s6104 + $0x37c] sm:$0xf]
  %v6329 = vld [vmem:[%s6104 + $0x380] sm:$0xf]
  %v6330 = vld [vmem:[%s6104 + $0x384] sm:$0xf]
  %v6331 = vld [vmem:[%s6104 + $0x388] sm:$0xf]
  %v6332 = vld [vmem:[%s6104 + $0x38c] sm:$0xf]
  %v6333 = vld [vmem:[%s6104 + $0x390] sm:$0xf]
  %v6334 = vld [vmem:[%s6104 + $0x394] sm:$0xf]
  %v6335 = vld [vmem:[%s6104 + $0x398] sm:$0xf]
  %v6336 = vld [vmem:[%s6104 + $0x39c] sm:$0xf]
  %v6337 = vld [vmem:[%s6104 + $0x3a0] sm:$0xf]
  %v6338 = vld [vmem:[%s6104 + $0x3a4] sm:$0xf]
  %v6339 = vld [vmem:[%s6104 + $0x3a8] sm:$0xf]
  %v6340 = vld [vmem:[%s6104 + $0x3ac] sm:$0xf]
  %v6341 = vld [vmem:[%s6104 + $0x3b0] sm:$0xf]
  %v6342 = vld [vmem:[%s6104 + $0x3b4] sm:$0xf]
  %v6343 = vld [vmem:[%s6104 + $0x3b8] sm:$0xf]
  %v6344 = vld [vmem:[%s6104 + $0x3bc] sm:$0xf]
  %v6345 = vld [vmem:[%s6104 + $0x3c0] sm:$0xf]
  %v6346 = vld [vmem:[%s6104 + $0x3c4] sm:$0xf]
  %v6347 = vld [vmem:[%s6104 + $0x3c8] sm:$0xf]
  %v6348 = vld [vmem:[%s6104 + $0x3cc] sm:$0xf]
  %v6349 = vld [vmem:[%s6104 + $0x3d0] sm:$0xf]
  %v6350 = vld [vmem:[%s6104 + $0x3d4] sm:$0xf]
  %v6351 = vld [vmem:[%s6104 + $0x3d8] sm:$0xf]
  %v6352 = vld [vmem:[%s6104 + $0x3dc] sm:$0xf]
  %v6353 = vld [vmem:[%s6104 + $0x3e0] sm:$0xf]
  %v6354 = vld [vmem:[%s6104 + $0x3e4] sm:$0xf]
  %v6355 = vld [vmem:[%s6104 + $0x3e8] sm:$0xf]
  %v6356 = vld [vmem:[%s6104 + $0x3ec] sm:$0xf]
  %v6357 = vld [vmem:[%s6104 + $0x3f0] sm:$0xf]
  %v6358 = vld [vmem:[%s6104 + $0x3f4] sm:$0xf]
  %v6359 = vld [vmem:[%s6104 + $0x3f8] sm:$0xf]
  %v6360 = vld [vmem:[%s6104 + $0x3fc] sm:$0xf]
  %v6617 = vunpack.c.l.b16 %v6105
  %v6618 = vunpack.c.l.b16 %v6106
  %v6619 = vunpack.c.l.b16 %v6107
  %v6620 = vunpack.c.l.b16 %v6108
  %v6621 = vunpack.c.l.b16 %v6109
  %v6622 = vunpack.c.l.b16 %v6110
  %v6623 = vunpack.c.l.b16 %v6111
  %v6624 = vunpack.c.l.b16 %v6112
  %v6625 = vunpack.c.l.b16 %v6113
  %v6626 = vunpack.c.l.b16 %v6114
  %v6627 = vunpack.c.l.b16 %v6115
  %v6628 = vunpack.c.l.b16 %v6116
  %v6629 = vunpack.c.l.b16 %v6117
  %v6630 = vunpack.c.l.b16 %v6118
  %v6631 = vunpack.c.l.b16 %v6119
  %v6632 = vunpack.c.l.b16 %v6120
  %v6633 = vunpack.c.l.b16 %v6121
  %v6634 = vunpack.c.l.b16 %v6122
  %v6635 = vunpack.c.l.b16 %v6123
  %v6636 = vunpack.c.l.b16 %v6124
  %v6637 = vunpack.c.l.b16 %v6125
  %v6638 = vunpack.c.l.b16 %v6126
  %v6639 = vunpack.c.l.b16 %v6127
  %v6640 = vunpack.c.l.b16 %v6128
  %v6641 = vunpack.c.l.b16 %v6129
  %v6642 = vunpack.c.l.b16 %v6130
  %v6643 = vunpack.c.l.b16 %v6131
  %v6644 = vunpack.c.l.b16 %v6132
  %v6645 = vunpack.c.l.b16 %v6133
  %v6646 = vunpack.c.l.b16 %v6134
  %v6647 = vunpack.c.l.b16 %v6135
  %v6648 = vunpack.c.l.b16 %v6136
  %v6649 = vunpack.c.l.b16 %v6137
  %v6650 = vunpack.c.l.b16 %v6138
  %v6651 = vunpack.c.l.b16 %v6139
  %v6652 = vunpack.c.l.b16 %v6140
  %v6653 = vunpack.c.l.b16 %v6141
  %v6654 = vunpack.c.l.b16 %v6142
  %v6655 = vunpack.c.l.b16 %v6143
  %v6656 = vunpack.c.l.b16 %v6144
  %v6657 = vunpack.c.l.b16 %v6145
  %v6658 = vunpack.c.l.b16 %v6146
  %v6659 = vunpack.c.l.b16 %v6147
  %v6660 = vunpack.c.l.b16 %v6148
  %v6661 = vunpack.c.l.b16 %v6149
  %v6662 = vunpack.c.l.b16 %v6150
  %v6663 = vunpack.c.l.b16 %v6151
  %v6664 = vunpack.c.l.b16 %v6152
  %v6665 = vunpack.c.l.b16 %v6153
  %v6666 = vunpack.c.l.b16 %v6154
  %v6667 = vunpack.c.l.b16 %v6155
  %v6668 = vunpack.c.l.b16 %v6156
  %v6669 = vunpack.c.l.b16 %v6157
  %v6670 = vunpack.c.l.b16 %v6158
  %v6671 = vunpack.c.l.b16 %v6159
  %v6672 = vunpack.c.l.b16 %v6160
  %v6673 = vunpack.c.l.b16 %v6161
  %v6674 = vunpack.c.l.b16 %v6162
  %v6675 = vunpack.c.l.b16 %v6163
  %v6676 = vunpack.c.l.b16 %v6164
  %v6677 = vunpack.c.l.b16 %v6165
  %v6678 = vunpack.c.l.b16 %v6166
  %v6679 = vunpack.c.l.b16 %v6167
  %v6680 = vunpack.c.l.b16 %v6168
  %v6681 = vunpack.c.l.b16 %v6169
  %v6682 = vunpack.c.l.b16 %v6170
  %v6683 = vunpack.c.l.b16 %v6171
  %v6684 = vunpack.c.l.b16 %v6172
  %v6685 = vunpack.c.l.b16 %v6173
  %v6686 = vunpack.c.l.b16 %v6174
  %v6687 = vunpack.c.l.b16 %v6175
  %v6688 = vunpack.c.l.b16 %v6176
  %v6689 = vunpack.c.l.b16 %v6177
  %v6690 = vunpack.c.l.b16 %v6178
  %v6691 = vunpack.c.l.b16 %v6179
  %v6692 = vunpack.c.l.b16 %v6180
  %v6693 = vunpack.c.l.b16 %v6181
  %v6694 = vunpack.c.l.b16 %v6182
  %v6695 = vunpack.c.l.b16 %v6183
  %v6696 = vunpack.c.l.b16 %v6184
  %v6697 = vunpack.c.l.b16 %v6185
  %v6698 = vunpack.c.l.b16 %v6186
  %v6699 = vunpack.c.l.b16 %v6187
  %v6700 = vunpack.c.l.b16 %v6188
  %v6701 = vunpack.c.l.b16 %v6189
  %v6702 = vunpack.c.l.b16 %v6190
  %v6703 = vunpack.c.l.b16 %v6191
  %v6704 = vunpack.c.l.b16 %v6192
  %v6705 = vunpack.c.l.b16 %v6193
  %v6706 = vunpack.c.l.b16 %v6194
  %v6707 = vunpack.c.l.b16 %v6195
  %v6708 = vunpack.c.l.b16 %v6196
  %v6709 = vunpack.c.l.b16 %v6197
  %v6710 = vunpack.c.l.b16 %v6198
  %v6711 = vunpack.c.l.b16 %v6199
  %v6712 = vunpack.c.l.b16 %v6200
  %v6713 = vunpack.c.l.b16 %v6201
  %v6714 = vunpack.c.l.b16 %v6202
  %v6715 = vunpack.c.l.b16 %v6203
  %v6716 = vunpack.c.l.b16 %v6204
  %v6717 = vunpack.c.l.b16 %v6205
  %v6718 = vunpack.c.l.b16 %v6206
  %v6719 = vunpack.c.l.b16 %v6207
  %v6720 = vunpack.c.l.b16 %v6208
  %v6721 = vunpack.c.l.b16 %v6209
  %v6722 = vunpack.c.l.b16 %v6210
  %v6723 = vunpack.c.l.b16 %v6211
  %v6724 = vunpack.c.l.b16 %v6212
  %v6725 = vunpack.c.l.b16 %v6213
  %v6726 = vunpack.c.l.b16 %v6214
  %v6727 = vunpack.c.l.b16 %v6215
  %v6728 = vunpack.c.l.b16 %v6216
  %v6729 = vunpack.c.l.b16 %v6217
  %v6730 = vunpack.c.l.b16 %v6218
  %v6731 = vunpack.c.l.b16 %v6219
  %v6732 = vunpack.c.l.b16 %v6220
  %v6733 = vunpack.c.l.b16 %v6221
  %v6734 = vunpack.c.l.b16 %v6222
  %v6735 = vunpack.c.l.b16 %v6223
  %v6736 = vunpack.c.l.b16 %v6224
  %v6737 = vunpack.c.l.b16 %v6225
  %v6738 = vunpack.c.l.b16 %v6226
  %v6739 = vunpack.c.l.b16 %v6227
  %v6740 = vunpack.c.l.b16 %v6228
  %v6741 = vunpack.c.l.b16 %v6229
  %v6742 = vunpack.c.l.b16 %v6230
  %v6743 = vunpack.c.l.b16 %v6231
  %v6744 = vunpack.c.l.b16 %v6232
  %v6745 = vunpack.c.l.b16 %v6233
  %v6746 = vunpack.c.l.b16 %v6234
  %v6747 = vunpack.c.l.b16 %v6235
  %v6748 = vunpack.c.l.b16 %v6236
  %v6749 = vunpack.c.l.b16 %v6237
  %v6750 = vunpack.c.l.b16 %v6238
  %v6751 = vunpack.c.l.b16 %v6239
  %v6752 = vunpack.c.l.b16 %v6240
  %v6753 = vunpack.c.l.b16 %v6241
  %v6754 = vunpack.c.l.b16 %v6242
  %v6755 = vunpack.c.l.b16 %v6243
  %v6756 = vunpack.c.l.b16 %v6244
  %v6757 = vunpack.c.l.b16 %v6245
  %v6758 = vunpack.c.l.b16 %v6246
  %v6759 = vunpack.c.l.b16 %v6247
  %v6760 = vunpack.c.l.b16 %v6248
  %v6761 = vunpack.c.l.b16 %v6249
  %v6762 = vunpack.c.l.b16 %v6250
  %v6763 = vunpack.c.l.b16 %v6251
  %v6764 = vunpack.c.l.b16 %v6252
  %v6765 = vunpack.c.l.b16 %v6253
  %v6766 = vunpack.c.l.b16 %v6254
  %v6767 = vunpack.c.l.b16 %v6255
  %v6768 = vunpack.c.l.b16 %v6256
  %v6769 = vunpack.c.l.b16 %v6257
  %v6770 = vunpack.c.l.b16 %v6258
  %v6771 = vunpack.c.l.b16 %v6259
  %v6772 = vunpack.c.l.b16 %v6260
  %v6773 = vunpack.c.l.b16 %v6261
  %v6774 = vunpack.c.l.b16 %v6262
  %v6775 = vunpack.c.l.b16 %v6263
  %v6776 = vunpack.c.l.b16 %v6264
  %v6777 = vunpack.c.l.b16 %v6265
  %v6778 = vunpack.c.l.b16 %v6266
  %v6779 = vunpack.c.l.b16 %v6267
  %v6780 = vunpack.c.l.b16 %v6268
  %v6781 = vunpack.c.l.b16 %v6269
  %v6782 = vunpack.c.l.b16 %v6270
  %v6783 = vunpack.c.l.b16 %v6271
  %v6784 = vunpack.c.l.b16 %v6272
  %v6785 = vunpack.c.l.b16 %v6273
  %v6786 = vunpack.c.l.b16 %v6274
  %v6787 = vunpack.c.l.b16 %v6275
  %v6788 = vunpack.c.l.b16 %v6276
  %v6789 = vunpack.c.l.b16 %v6277
  %v6790 = vunpack.c.l.b16 %v6278
  %v6791 = vunpack.c.l.b16 %v6279
  %v6792 = vunpack.c.l.b16 %v6280
  %v6793 = vunpack.c.l.b16 %v6281
  %v6794 = vunpack.c.l.b16 %v6282
  %v6795 = vunpack.c.l.b16 %v6283
  %v6796 = vunpack.c.l.b16 %v6284
  %v6797 = vunpack.c.l.b16 %v6285
  %v6798 = vunpack.c.l.b16 %v6286
  %v6799 = vunpack.c.l.b16 %v6287
  %v6800 = vunpack.c.l.b16 %v6288
  %v6801 = vunpack.c.l.b16 %v6289
  %v6802 = vunpack.c.l.b16 %v6290
  %v6803 = vunpack.c.l.b16 %v6291
  %v6804 = vunpack.c.l.b16 %v6292
  %v6805 = vunpack.c.l.b16 %v6293
  %v6806 = vunpack.c.l.b16 %v6294
  %v6807 = vunpack.c.l.b16 %v6295
  %v6808 = vunpack.c.l.b16 %v6296
  %v6809 = vunpack.c.l.b16 %v6297
  %v6810 = vunpack.c.l.b16 %v6298
  %v6811 = vunpack.c.l.b16 %v6299
  %v6812 = vunpack.c.l.b16 %v6300
  %v6813 = vunpack.c.l.b16 %v6301
  %v6814 = vunpack.c.l.b16 %v6302
  %v6815 = vunpack.c.l.b16 %v6303
  %v6816 = vunpack.c.l.b16 %v6304
  %v6817 = vunpack.c.l.b16 %v6305
  %v6818 = vunpack.c.l.b16 %v6306
  %v6819 = vunpack.c.l.b16 %v6307
  %v6820 = vunpack.c.l.b16 %v6308
  %v6821 = vunpack.c.l.b16 %v6309
  %v6822 = vunpack.c.l.b16 %v6310
  %v6823 = vunpack.c.l.b16 %v6311
  %v6824 = vunpack.c.l.b16 %v6312
  %v6825 = vunpack.c.l.b16 %v6313
  %v6826 = vunpack.c.l.b16 %v6314
  %v6827 = vunpack.c.l.b16 %v6315
  %v6828 = vunpack.c.l.b16 %v6316
  %v6829 = vunpack.c.l.b16 %v6317
  %v6830 = vunpack.c.l.b16 %v6318
  %v6831 = vunpack.c.l.b16 %v6319
  %v6832 = vunpack.c.l.b16 %v6320
  %v6833 = vunpack.c.l.b16 %v6321
  %v6834 = vunpack.c.l.b16 %v6322
  %v6835 = vunpack.c.l.b16 %v6323
  %v6836 = vunpack.c.l.b16 %v6324
  %v6837 = vunpack.c.l.b16 %v6325
  %v6838 = vunpack.c.l.b16 %v6326
  %v6839 = vunpack.c.l.b16 %v6327
  %v6840 = vunpack.c.l.b16 %v6328
  %v6841 = vunpack.c.l.b16 %v6329
  %v6842 = vunpack.c.l.b16 %v6330
  %v6843 = vunpack.c.l.b16 %v6331
  %v6844 = vunpack.c.l.b16 %v6332
  %v6845 = vunpack.c.l.b16 %v6333
  %v6846 = vunpack.c.l.b16 %v6334
  %v6847 = vunpack.c.l.b16 %v6335
  %v6848 = vunpack.c.l.b16 %v6336
  %v6849 = vunpack.c.l.b16 %v6337
  %v6850 = vunpack.c.l.b16 %v6338
  %v6851 = vunpack.c.l.b16 %v6339
  %v6852 = vunpack.c.l.b16 %v6340
  %v6853 = vunpack.c.l.b16 %v6341
  %v6854 = vunpack.c.l.b16 %v6342
  %v6855 = vunpack.c.l.b16 %v6343
  %v6856 = vunpack.c.l.b16 %v6344
  %v6857 = vunpack.c.l.b16 %v6345
  %v6858 = vunpack.c.l.b16 %v6346
  %v6859 = vunpack.c.l.b16 %v6347
  %v6860 = vunpack.c.l.b16 %v6348
  %v6861 = vunpack.c.l.b16 %v6349
  %v6862 = vunpack.c.l.b16 %v6350
  %v6863 = vunpack.c.l.b16 %v6351
  %v6864 = vunpack.c.l.b16 %v6352
  %v6865 = vunpack.c.l.b16 %v6353
  %v6866 = vunpack.c.l.b16 %v6354
  %v6867 = vunpack.c.l.b16 %v6355
  %v6868 = vunpack.c.l.b16 %v6356
  %v6869 = vunpack.c.l.b16 %v6357
  %v6870 = vunpack.c.l.b16 %v6358
  %v6871 = vunpack.c.l.b16 %v6359
  %v6872 = vunpack.c.l.b16 %v6360
  %v6873 = vpack.c.b16 %v6618, %v6617
  %v6874 = vpack.c.b16 %v6620, %v6619
  %v6875 = vpack.c.b16 %v6622, %v6621
  %v6876 = vpack.c.b16 %v6624, %v6623
  %v6877 = vpack.c.b16 %v6626, %v6625
  %v6878 = vpack.c.b16 %v6628, %v6627
  %v6879 = vpack.c.b16 %v6630, %v6629
  %v6880 = vpack.c.b16 %v6632, %v6631
  %v6881 = vpack.c.b16 %v6634, %v6633
  %v6882 = vpack.c.b16 %v6636, %v6635
  %v6883 = vpack.c.b16 %v6638, %v6637
  %v6884 = vpack.c.b16 %v6640, %v6639
  %v6885 = vpack.c.b16 %v6642, %v6641
  %v6886 = vpack.c.b16 %v6644, %v6643
  %v6887 = vpack.c.b16 %v6646, %v6645
  %v6888 = vpack.c.b16 %v6648, %v6647
  %v6889 = vpack.c.b16 %v6650, %v6649
  %v6890 = vpack.c.b16 %v6652, %v6651
  %v6891 = vpack.c.b16 %v6654, %v6653
  %v6892 = vpack.c.b16 %v6656, %v6655
  %v6893 = vpack.c.b16 %v6658, %v6657
  %v6894 = vpack.c.b16 %v6660, %v6659
  %v6895 = vpack.c.b16 %v6662, %v6661
  %v6896 = vpack.c.b16 %v6664, %v6663
  %v6897 = vpack.c.b16 %v6666, %v6665
  %v6898 = vpack.c.b16 %v6668, %v6667
  %v6899 = vpack.c.b16 %v6670, %v6669
  %v6900 = vpack.c.b16 %v6672, %v6671
  %v6901 = vpack.c.b16 %v6674, %v6673
  %v6902 = vpack.c.b16 %v6676, %v6675
  %v6903 = vpack.c.b16 %v6678, %v6677
  %v6904 = vpack.c.b16 %v6680, %v6679
  %v6905 = vpack.c.b16 %v6682, %v6681
  %v6906 = vpack.c.b16 %v6684, %v6683
  %v6907 = vpack.c.b16 %v6686, %v6685
  %v6908 = vpack.c.b16 %v6688, %v6687
  %v6909 = vpack.c.b16 %v6690, %v6689
  %v6910 = vpack.c.b16 %v6692, %v6691
  %v6911 = vpack.c.b16 %v6694, %v6693
  %v6912 = vpack.c.b16 %v6696, %v6695
  %v6913 = vpack.c.b16 %v6698, %v6697
  %v6914 = vpack.c.b16 %v6700, %v6699
  %v6915 = vpack.c.b16 %v6702, %v6701
  %v6916 = vpack.c.b16 %v6704, %v6703
  %v6917 = vpack.c.b16 %v6706, %v6705
  %v6918 = vpack.c.b16 %v6708, %v6707
  %v6919 = vpack.c.b16 %v6710, %v6709
  %v6920 = vpack.c.b16 %v6712, %v6711
  %v6921 = vpack.c.b16 %v6714, %v6713
  %v6922 = vpack.c.b16 %v6716, %v6715
  %v6923 = vpack.c.b16 %v6718, %v6717
  %v6924 = vpack.c.b16 %v6720, %v6719
  %v6925 = vpack.c.b16 %v6722, %v6721
  %v6926 = vpack.c.b16 %v6724, %v6723
  %v6927 = vpack.c.b16 %v6726, %v6725
  %v6928 = vpack.c.b16 %v6728, %v6727
  %v6929 = vpack.c.b16 %v6730, %v6729
  %v6930 = vpack.c.b16 %v6732, %v6731
  %v6931 = vpack.c.b16 %v6734, %v6733
  %v6932 = vpack.c.b16 %v6736, %v6735
  %v6933 = vpack.c.b16 %v6738, %v6737
  %v6934 = vpack.c.b16 %v6740, %v6739
  %v6935 = vpack.c.b16 %v6742, %v6741
  %v6936 = vpack.c.b16 %v6744, %v6743
  %v6937 = vpack.c.b16 %v6746, %v6745
  %v6938 = vpack.c.b16 %v6748, %v6747
  %v6939 = vpack.c.b16 %v6750, %v6749
  %v6940 = vpack.c.b16 %v6752, %v6751
  %v6941 = vpack.c.b16 %v6754, %v6753
  %v6942 = vpack.c.b16 %v6756, %v6755
  %v6943 = vpack.c.b16 %v6758, %v6757
  %v6944 = vpack.c.b16 %v6760, %v6759
  %v6945 = vpack.c.b16 %v6762, %v6761
  %v6946 = vpack.c.b16 %v6764, %v6763
  %v6947 = vpack.c.b16 %v6766, %v6765
  %v6948 = vpack.c.b16 %v6768, %v6767
  %v6949 = vpack.c.b16 %v6770, %v6769
  %v6950 = vpack.c.b16 %v6772, %v6771
  %v6951 = vpack.c.b16 %v6774, %v6773
  %v6952 = vpack.c.b16 %v6776, %v6775
  %v6953 = vpack.c.b16 %v6778, %v6777
  %v6954 = vpack.c.b16 %v6780, %v6779
  %v6955 = vpack.c.b16 %v6782, %v6781
  %v6956 = vpack.c.b16 %v6784, %v6783
  %v6957 = vpack.c.b16 %v6786, %v6785
  %v6958 = vpack.c.b16 %v6788, %v6787
  %v6959 = vpack.c.b16 %v6790, %v6789
  %v6960 = vpack.c.b16 %v6792, %v6791
  %v6961 = vpack.c.b16 %v6794, %v6793
  %v6962 = vpack.c.b16 %v6796, %v6795
  %v6963 = vpack.c.b16 %v6798, %v6797
  %v6964 = vpack.c.b16 %v6800, %v6799
  %v6965 = vpack.c.b16 %v6802, %v6801
  %v6966 = vpack.c.b16 %v6804, %v6803
  %v6967 = vpack.c.b16 %v6806, %v6805
  %v6968 = vpack.c.b16 %v6808, %v6807
  %v6969 = vpack.c.b16 %v6810, %v6809
  %v6970 = vpack.c.b16 %v6812, %v6811
  %v6971 = vpack.c.b16 %v6814, %v6813
  %v6972 = vpack.c.b16 %v6816, %v6815
  %v6973 = vpack.c.b16 %v6818, %v6817
  %v6974 = vpack.c.b16 %v6820, %v6819
  %v6975 = vpack.c.b16 %v6822, %v6821
  %v6976 = vpack.c.b16 %v6824, %v6823
  %v6977 = vpack.c.b16 %v6826, %v6825
  %v6978 = vpack.c.b16 %v6828, %v6827
  %v6979 = vpack.c.b16 %v6830, %v6829
  %v6980 = vpack.c.b16 %v6832, %v6831
  %v6981 = vpack.c.b16 %v6834, %v6833
  %v6982 = vpack.c.b16 %v6836, %v6835
  %v6983 = vpack.c.b16 %v6838, %v6837
  %v6984 = vpack.c.b16 %v6840, %v6839
  %v6985 = vpack.c.b16 %v6842, %v6841
  %v6986 = vpack.c.b16 %v6844, %v6843
  %v6987 = vpack.c.b16 %v6846, %v6845
  %v6988 = vpack.c.b16 %v6848, %v6847
  %v6989 = vpack.c.b16 %v6850, %v6849
  %v6990 = vpack.c.b16 %v6852, %v6851
  %v6991 = vpack.c.b16 %v6854, %v6853
  %v6992 = vpack.c.b16 %v6856, %v6855
  %v6993 = vpack.c.b16 %v6858, %v6857
  %v6994 = vpack.c.b16 %v6860, %v6859
  %v6995 = vpack.c.b16 %v6862, %v6861
  %v6996 = vpack.c.b16 %v6864, %v6863
  %v6997 = vpack.c.b16 %v6866, %v6865
  %v6998 = vpack.c.b16 %v6868, %v6867
  %v6999 = vpack.c.b16 %v6870, %v6869
  %v7000 = vpack.c.b16 %v6872, %v6871
  %7129 = vrot.lane.b32.xlu0 %v5021, 108
  %v7130 = vpop.permute.xlu0 %7129
  %7132 = vmatprep.subr.bf16.mxu0 0
  %7133 = vmatpush1.bf16.msra.mxu0 %v6880
  %7134 = vmatprep.subr.bf16.mxu0 0
  %7135 = vmatpush1.bf16.msra.mxu0 %v6879
  %7136 = vmatprep.subr.bf16.mxu0 0
  %7137 = vmatpush1.bf16.msra.mxu0 %v6878
  %7138 = vmatprep.subr.bf16.mxu0 0
  %7139 = vmatpush1.bf16.msra.mxu0 %v6877
  %7140 = vmatprep.subr.bf16.mxu0 0
  %7141 = vmatpush1.bf16.msra.mxu0 %v6876
  %7142 = vmatprep.subr.bf16.mxu0 0
  %7143 = vmatpush1.bf16.msra.mxu0 %v6875
  %7144 = vmatprep.subr.bf16.mxu0 0
  %7145 = vmatpush1.bf16.msra.mxu0 %v6874
  %7146 = vmatprep.subr.bf16.mxu0 0
  %7147 = vmatpush1.bf16.msra.mxu0 %v6873
  %7148 = vmatprep.subr.bf16.mxu0 0
  %7149 = vmatpush2.bf16.msra.mxu0 %v6888
  %7150 = vmatprep.subr.bf16.mxu0 0
  %7151 = vmatpush2.bf16.msra.mxu0 %v6887
  %7152 = vmatprep.subr.bf16.mxu0 0
  %7153 = vmatpush2.bf16.msra.mxu0 %v6886
  %7154 = vmatprep.subr.bf16.mxu0 0
  %7155 = vmatpush2.bf16.msra.mxu0 %v6885
  %7156 = vmatprep.subr.bf16.mxu0 0
  %7157 = vmatpush2.bf16.msra.mxu0 %v6884
  %7158 = vmatprep.subr.bf16.mxu0 0
  %7159 = vmatpush2.bf16.msra.mxu0 %v6883
  %7160 = vmatprep.subr.bf16.mxu0 0
  %7161 = vmatpush2.bf16.msra.mxu0 %v6882
  %7162 = vmatprep.subr.bf16.mxu0 0
  %7163 = vmatpush2.bf16.msra.mxu0 %v6881
  %7164 = vmatprep.mubr.bf16.mxu0 %v6089
  %7165 = vmatmul.mubr.bf16.gmra.mxu0 %v6088
  %v7166 = vpop.f32.mrf.mxu0
  %v7167 = vadd.f32 %v7130, %v7166
  %v7168 = vpop.f32.mrf.mxu0
  %v7169 = vpop.f32.mrf.mxu0
  %v7170 = vadd.f32 %v7130, %v7169
  %v7171 = vpop.f32.mrf.mxu0
  %7172 = vdwg.mxu0
  %7173 = vmatprep.subr.bf16.mxu0 0
  %7174 = vmatpush1.bf16.msra.mxu0 %v6896
  %7175 = vmatprep.subr.bf16.mxu0 0
  %7176 = vmatpush1.bf16.msra.mxu0 %v6895
  %7177 = vmatprep.subr.bf16.mxu0 0
  %7178 = vmatpush1.bf16.msra.mxu0 %v6894
  %7179 = vmatprep.subr.bf16.mxu0 0
  %7180 = vmatpush1.bf16.msra.mxu0 %v6893
  %7181 = vmatprep.subr.bf16.mxu0 0
  %7182 = vmatpush1.bf16.msra.mxu0 %v6892
  %7183 = vmatprep.subr.bf16.mxu0 0
  %7184 = vmatpush1.bf16.msra.mxu0 %v6891
  %7185 = vmatprep.subr.bf16.mxu0 0
  %7186 = vmatpush1.bf16.msra.mxu0 %v6890
  %7187 = vmatprep.subr.bf16.mxu0 0
  %7188 = vmatpush1.bf16.msra.mxu0 %v6889
  %7189 = vmatprep.subr.bf16.mxu0 0
  %7190 = vmatpush2.bf16.msra.mxu0 %v6904
  %7191 = vmatprep.subr.bf16.mxu0 0
  %7192 = vmatpush2.bf16.msra.mxu0 %v6903
  %7193 = vmatprep.subr.bf16.mxu0 0
  %7194 = vmatpush2.bf16.msra.mxu0 %v6902
  %7195 = vmatprep.subr.bf16.mxu0 0
  %7196 = vmatpush2.bf16.msra.mxu0 %v6901
  %7197 = vmatprep.subr.bf16.mxu0 0
  %7198 = vmatpush2.bf16.msra.mxu0 %v6900
  %7199 = vmatprep.subr.bf16.mxu0 0
  %7200 = vmatpush2.bf16.msra.mxu0 %v6899
  %7201 = vmatprep.subr.bf16.mxu0 0
  %7202 = vmatpush2.bf16.msra.mxu0 %v6898
  %7203 = vmatprep.subr.bf16.mxu0 0
  %7204 = vmatpush2.bf16.msra.mxu0 %v6897
  %7205 = vmatprep.mubr.bf16.mxu0 %v6091
  %7206 = vmatmul.mubr.bf16.gmra.mxu0 %v6090
  %v7207 = vpop.f32.mrf.mxu0
  %v7208 = vadd.f32 %v7167, %v7207
  %v7209 = vpop.f32.mrf.mxu0
  %v7210 = vpop.f32.mrf.mxu0
  %v7211 = vadd.f32 %v7170, %v7210
  %v7212 = vpop.f32.mrf.mxu0
  %7213 = vdwg.mxu0
  %7214 = vmatprep.subr.bf16.mxu0 0
  %7215 = vmatpush1.bf16.msra.mxu0 %v6912
  %7216 = vmatprep.subr.bf16.mxu0 0
  %7217 = vmatpush1.bf16.msra.mxu0 %v6911
  %7218 = vmatprep.subr.bf16.mxu0 0
  %7219 = vmatpush1.bf16.msra.mxu0 %v6910
  %7220 = vmatprep.subr.bf16.mxu0 0
  %7221 = vmatpush1.bf16.msra.mxu0 %v6909
  %7222 = vmatprep.subr.bf16.mxu0 0
  %7223 = vmatpush1.bf16.msra.mxu0 %v6908
  %7224 = vmatprep.subr.bf16.mxu0 0
  %7225 = vmatpush1.bf16.msra.mxu0 %v6907
  %7226 = vmatprep.subr.bf16.mxu0 0
  %7227 = vmatpush1.bf16.msra.mxu0 %v6906
  %7228 = vmatprep.subr.bf16.mxu0 0
  %7229 = vmatpush1.bf16.msra.mxu0 %v6905
  %7230 = vmatprep.subr.bf16.mxu0 0
  %7231 = vmatpush2.bf16.msra.mxu0 %v6920
  %7232 = vmatprep.subr.bf16.mxu0 0
  %7233 = vmatpush2.bf16.msra.mxu0 %v6919
  %7234 = vmatprep.subr.bf16.mxu0 0
  %7235 = vmatpush2.bf16.msra.mxu0 %v6918
  %7236 = vmatprep.subr.bf16.mxu0 0
  %7237 = vmatpush2.bf16.msra.mxu0 %v6917
  %7238 = vmatprep.subr.bf16.mxu0 0
  %7239 = vmatpush2.bf16.msra.mxu0 %v6916
  %7240 = vmatprep.subr.bf16.mxu0 0
  %7241 = vmatpush2.bf16.msra.mxu0 %v6915
  %7242 = vmatprep.subr.bf16.mxu0 0
  %7243 = vmatpush2.bf16.msra.mxu0 %v6914
  %7244 = vmatprep.subr.bf16.mxu0 0
  %7245 = vmatpush2.bf16.msra.mxu0 %v6913
  %7246 = vmatprep.mubr.bf16.mxu0 %v6093
  %7247 = vmatmul.mubr.bf16.gmra.mxu0 %v6092
  %v7248 = vpop.f32.mrf.mxu0
  %v7249 = vadd.f32 %v7208, %v7248
  %v7250 = vpop.f32.mrf.mxu0
  %v7251 = vpop.f32.mrf.mxu0
  %v7252 = vadd.f32 %v7211, %v7251
  %v7253 = vpop.f32.mrf.mxu0
  %7254 = vdwg.mxu0
  %7255 = vmatprep.subr.bf16.mxu0 0
  %7256 = vmatpush1.bf16.msra.mxu0 %v6928
  %7257 = vmatprep.subr.bf16.mxu0 0
  %7258 = vmatpush1.bf16.msra.mxu0 %v6927
  %7259 = vmatprep.subr.bf16.mxu0 0
  %7260 = vmatpush1.bf16.msra.mxu0 %v6926
  %7261 = vmatprep.subr.bf16.mxu0 0
  %7262 = vmatpush1.bf16.msra.mxu0 %v6925
  %7263 = vmatprep.subr.bf16.mxu0 0
  %7264 = vmatpush1.bf16.msra.mxu0 %v6924
  %7265 = vmatprep.subr.bf16.mxu0 0
  %7266 = vmatpush1.bf16.msra.mxu0 %v6923
  %7267 = vmatprep.subr.bf16.mxu0 0
  %7268 = vmatpush1.bf16.msra.mxu0 %v6922
  %7269 = vmatprep.subr.bf16.mxu0 0
  %7270 = vmatpush1.bf16.msra.mxu0 %v6921
  %7271 = vmatprep.subr.bf16.mxu0 0
  %7272 = vmatpush2.bf16.msra.mxu0 %v6936
  %7273 = vmatprep.subr.bf16.mxu0 0
  %7274 = vmatpush2.bf16.msra.mxu0 %v6935
  %7275 = vmatprep.subr.bf16.mxu0 0
  %7276 = vmatpush2.bf16.msra.mxu0 %v6934
  %7277 = vmatprep.subr.bf16.mxu0 0
  %7278 = vmatpush2.bf16.msra.mxu0 %v6933
  %7279 = vmatprep.subr.bf16.mxu0 0
  %7280 = vmatpush2.bf16.msra.mxu0 %v6932
  %7281 = vmatprep.subr.bf16.mxu0 0
  %7282 = vmatpush2.bf16.msra.mxu0 %v6931
  %7283 = vmatprep.subr.bf16.mxu0 0
  %7284 = vmatpush2.bf16.msra.mxu0 %v6930
  %7285 = vmatprep.subr.bf16.mxu0 0
  %7286 = vmatpush2.bf16.msra.mxu0 %v6929
  %7287 = vmatprep.mubr.bf16.mxu0 %v6095
  %7288 = vmatmul.mubr.bf16.gmra.mxu0 %v6094
  %v7289 = vpop.f32.mrf.mxu0
  %v7290 = vadd.f32 %v7249, %v7289
  %v7291 = vpop.f32.mrf.mxu0
  %v7292 = vpop.f32.mrf.mxu0
  %v7293 = vadd.f32 %v7252, %v7292
  %v7294 = vpop.f32.mrf.mxu0
  %7295 = vdwg.mxu0
  %7296 = vmatprep.subr.bf16.mxu0 0
  %7297 = vmatpush1.bf16.msra.mxu0 %v6944
  %7298 = vmatprep.subr.bf16.mxu0 0
  %7299 = vmatpush1.bf16.msra.mxu0 %v6943
  %7300 = vmatprep.subr.bf16.mxu0 0
  %7301 = vmatpush1.bf16.msra.mxu0 %v6942
  %7302 = vmatprep.subr.bf16.mxu0 0
  %7303 = vmatpush1.bf16.msra.mxu0 %v6941
  %7304 = vmatprep.subr.bf16.mxu0 0
  %7305 = vmatpush1.bf16.msra.mxu0 %v6940
  %7306 = vmatprep.subr.bf16.mxu0 0
  %7307 = vmatpush1.bf16.msra.mxu0 %v6939
  %7308 = vmatprep.subr.bf16.mxu0 0
  %7309 = vmatpush1.bf16.msra.mxu0 %v6938
  %7310 = vmatprep.subr.bf16.mxu0 0
  %7311 = vmatpush1.bf16.msra.mxu0 %v6937
  %7312 = vmatprep.subr.bf16.mxu0 0
  %7313 = vmatpush2.bf16.msra.mxu0 %v6952
  %7314 = vmatprep.subr.bf16.mxu0 0
  %7315 = vmatpush2.bf16.msra.mxu0 %v6951
  %7316 = vmatprep.subr.bf16.mxu0 0
  %7317 = vmatpush2.bf16.msra.mxu0 %v6950
  %7318 = vmatprep.subr.bf16.mxu0 0
  %7319 = vmatpush2.bf16.msra.mxu0 %v6949
  %7320 = vmatprep.subr.bf16.mxu0 0
  %7321 = vmatpush2.bf16.msra.mxu0 %v6948
  %7322 = vmatprep.subr.bf16.mxu0 0
  %7323 = vmatpush2.bf16.msra.mxu0 %v6947
  %7324 = vmatprep.subr.bf16.mxu0 0
  %7325 = vmatpush2.bf16.msra.mxu0 %v6946
  %7326 = vmatprep.subr.bf16.mxu0 0
  %7327 = vmatpush2.bf16.msra.mxu0 %v6945
  %7328 = vmatprep.mubr.bf16.mxu0 %v6097
  %7329 = vmatmul.mubr.bf16.gmra.mxu0 %v6096
  %v7330 = vpop.f32.mrf.mxu0
  %v7331 = vadd.f32 %v7290, %v7330
  %v7332 = vpop.f32.mrf.mxu0
  %v7333 = vpop.f32.mrf.mxu0
  %v7334 = vadd.f32 %v7293, %v7333
  %v7335 = vpop.f32.mrf.mxu0
  %7336 = vdwg.mxu0
  %7337 = vmatprep.subr.bf16.mxu0 0
  %7338 = vmatpush1.bf16.msra.mxu0 %v6960
  %7339 = vmatprep.subr.bf16.mxu0 0
  %7340 = vmatpush1.bf16.msra.mxu0 %v6959
  %7341 = vmatprep.subr.bf16.mxu0 0
  %7342 = vmatpush1.bf16.msra.mxu0 %v6958
  %7343 = vmatprep.subr.bf16.mxu0 0
  %7344 = vmatpush1.bf16.msra.mxu0 %v6957
  %7345 = vmatprep.subr.bf16.mxu0 0
  %7346 = vmatpush1.bf16.msra.mxu0 %v6956
  %7347 = vmatprep.subr.bf16.mxu0 0
  %7348 = vmatpush1.bf16.msra.mxu0 %v6955
  %7349 = vmatprep.subr.bf16.mxu0 0
  %7350 = vmatpush1.bf16.msra.mxu0 %v6954
  %7351 = vmatprep.subr.bf16.mxu0 0
  %7352 = vmatpush1.bf16.msra.mxu0 %v6953
  %7353 = vmatprep.subr.bf16.mxu0 0
  %7354 = vmatpush2.bf16.msra.mxu0 %v6968
  %7355 = vmatprep.subr.bf16.mxu0 0
  %7356 = vmatpush2.bf16.msra.mxu0 %v6967
  %7357 = vmatprep.subr.bf16.mxu0 0
  %7358 = vmatpush2.bf16.msra.mxu0 %v6966
  %7359 = vmatprep.subr.bf16.mxu0 0
  %7360 = vmatpush2.bf16.msra.mxu0 %v6965
  %7361 = vmatprep.subr.bf16.mxu0 0
  %7362 = vmatpush2.bf16.msra.mxu0 %v6964
  %7363 = vmatprep.subr.bf16.mxu0 0
  %7364 = vmatpush2.bf16.msra.mxu0 %v6963
  %7365 = vmatprep.subr.bf16.mxu0 0
  %7366 = vmatpush2.bf16.msra.mxu0 %v6962
  %7367 = vmatprep.subr.bf16.mxu0 0
  %7368 = vmatpush2.bf16.msra.mxu0 %v6961
  %7369 = vmatprep.mubr.bf16.mxu0 %v6099
  %7370 = vmatmul.mubr.bf16.gmra.mxu0 %v6098
  %v7371 = vpop.f32.mrf.mxu0
  %v7372 = vadd.f32 %v7331, %v7371
  %v7373 = vpop.f32.mrf.mxu0
  %v7374 = vpop.f32.mrf.mxu0
  %v7375 = vadd.f32 %v7334, %v7374
  %v7376 = vpop.f32.mrf.mxu0
  %7377 = vdwg.mxu0
  %7378 = vmatprep.subr.bf16.mxu0 0
  %7379 = vmatpush1.bf16.msra.mxu0 %v6976
  %7380 = vmatprep.subr.bf16.mxu0 0
  %7381 = vmatpush1.bf16.msra.mxu0 %v6975
  %7382 = vmatprep.subr.bf16.mxu0 0
  %7383 = vmatpush1.bf16.msra.mxu0 %v6974
  %7384 = vmatprep.subr.bf16.mxu0 0
  %7385 = vmatpush1.bf16.msra.mxu0 %v6973
  %7386 = vmatprep.subr.bf16.mxu0 0
  %7387 = vmatpush1.bf16.msra.mxu0 %v6972
  %7388 = vmatprep.subr.bf16.mxu0 0
  %7389 = vmatpush1.bf16.msra.mxu0 %v6971
  %7390 = vmatprep.subr.bf16.mxu0 0
  %7391 = vmatpush1.bf16.msra.mxu0 %v6970
  %7392 = vmatprep.subr.bf16.mxu0 0
  %7393 = vmatpush1.bf16.msra.mxu0 %v6969
  %7394 = vmatprep.subr.bf16.mxu0 0
  %7395 = vmatpush2.bf16.msra.mxu0 %v6984
  %7396 = vmatprep.subr.bf16.mxu0 0
  %7397 = vmatpush2.bf16.msra.mxu0 %v6983
  %7398 = vmatprep.subr.bf16.mxu0 0
  %7399 = vmatpush2.bf16.msra.mxu0 %v6982
  %7400 = vmatprep.subr.bf16.mxu0 0
  %7401 = vmatpush2.bf16.msra.mxu0 %v6981
  %7402 = vmatprep.subr.bf16.mxu0 0
  %7403 = vmatpush2.bf16.msra.mxu0 %v6980
  %7404 = vmatprep.subr.bf16.mxu0 0
  %7405 = vmatpush2.bf16.msra.mxu0 %v6979
  %7406 = vmatprep.subr.bf16.mxu0 0
  %7407 = vmatpush2.bf16.msra.mxu0 %v6978
  %7408 = vmatprep.subr.bf16.mxu0 0
  %7409 = vmatpush2.bf16.msra.mxu0 %v6977
  %7410 = vmatprep.mubr.bf16.mxu0 %v6101
  %7411 = vmatmul.mubr.bf16.gmra.mxu0 %v6100
  %v7412 = vpop.f32.mrf.mxu0
  %v7413 = vadd.f32 %v7372, %v7412
  %v7414 = vpop.f32.mrf.mxu0
  %v7415 = vpop.f32.mrf.mxu0
  %v7416 = vadd.f32 %v7375, %v7415
  %v7417 = vpop.f32.mrf.mxu0
  %7418 = vdwg.mxu0
  %7419 = vmatprep.subr.bf16.mxu0 0
  %7420 = vmatpush1.bf16.msra.mxu0 %v6992
  %7421 = vmatprep.subr.bf16.mxu0 0
  %7422 = vmatpush1.bf16.msra.mxu0 %v6991
  %7423 = vmatprep.subr.bf16.mxu0 0
  %7424 = vmatpush1.bf16.msra.mxu0 %v6990
  %7425 = vmatprep.subr.bf16.mxu0 0
  %7426 = vmatpush1.bf16.msra.mxu0 %v6989
  %7427 = vmatprep.subr.bf16.mxu0 0
  %7428 = vmatpush1.bf16.msra.mxu0 %v6988
  %7429 = vmatprep.subr.bf16.mxu0 0
  %7430 = vmatpush1.bf16.msra.mxu0 %v6987
  %7431 = vmatprep.subr.bf16.mxu0 0
  %7432 = vmatpush1.bf16.msra.mxu0 %v6986
  %7433 = vmatprep.subr.bf16.mxu0 0
  %7434 = vmatpush1.bf16.msra.mxu0 %v6985
  %7435 = vmatprep.subr.bf16.mxu0 0
  %7436 = vmatpush2.bf16.msra.mxu0 %v7000
  %7437 = vmatprep.subr.bf16.mxu0 0
  %7438 = vmatpush2.bf16.msra.mxu0 %v6999
  %7439 = vmatprep.subr.bf16.mxu0 0
  %7440 = vmatpush2.bf16.msra.mxu0 %v6998
  %7441 = vmatprep.subr.bf16.mxu0 0
  %7442 = vmatpush2.bf16.msra.mxu0 %v6997
  %7443 = vmatprep.subr.bf16.mxu0 0
  %7444 = vmatpush2.bf16.msra.mxu0 %v6996
  %7445 = vmatprep.subr.bf16.mxu0 0
  %7446 = vmatpush2.bf16.msra.mxu0 %v6995
  %7447 = vmatprep.subr.bf16.mxu0 0
  %7448 = vmatpush2.bf16.msra.mxu0 %v6994
  %7449 = vmatprep.subr.bf16.mxu0 0
  %7450 = vmatpush2.bf16.msra.mxu0 %v6993
  %7451 = vmatprep.mubr.bf16.mxu0 %v6103
  %7452 = vmatmul.mubr.bf16.gmra.mxu0 %v6102
  %v7453 = vpop.f32.mrf.mxu0
  %v7454 = vadd.f32 %v7413, %v7453
  %v7455 = vpop.f32.mrf.mxu0
  %v7456 = vpop.f32.mrf.mxu0
  %v7457 = vadd.f32 %v7416, %v7456
  %v7458 = vpop.f32.mrf.mxu0
  %7459 = vdwg.mxu0
  %v7460 = vadd.f32 %v5529, %v7454
  %v7461 = vadd.f32 %v5530, %v7457
  %v7462 = vsel %vm44, %v7460, 0.0
  %7463 = vadd.xlane.f32.xlu0 %v7462
  %v7464 = vpop.xlane.xlu0 %7463
  %v7465 = vsel %vm44, %v7461, 0.0
  %7466 = vadd.xlane.f32.xlu0 %v7465
  %v7467 = vpop.xlane.xlu0 %7466
  %v7468 = vmul.f32 %v7464, %v526
  %v7469 = vmul.f32 %v7467, %v526
  %v7470 = vsub.f32 %v7460, %v7468
  %v7471 = vsub.f32 %v7461, %v7469
  %v7472 = vmul.f32 %v7470, %v7470
  %v7473 = vmul.f32 %v7471, %v7471
  %v7474 = vsel %vm44, %v7472, 0.0
  %7475 = vadd.xlane.f32.xlu0 %v7474
  %v7476 = vpop.xlane.xlu0 %7475
  %v7477 = vsel %vm44, %v7473, 0.0
  %7478 = vadd.xlane.f32.xlu0 %v7477
  %v7479 = vpop.xlane.xlu0 %7478
  %v7480 = vmul.f32 %v7476, %v526
  %v7481 = vmul.f32 %v7479, %v526
  %v7482 = vadd.f32 %v7480, 1e-05
  %v7483 = vadd.f32 %v7481, 1e-05
  %v7484 = vrsqrt.pop %v7482
  %v7485 = vrsqrt.pop %v7483
  %v7486 = vmul.f32 %v7470, %v7484
  %v7487 = vmul.f32 %v7471, %v7485
  %7488 = vrot.lane.b32.xlu0 %v5021, 103
  %v7489 = vpop.permute.xlu0 %7488
  %v7491 = vmul.f32 %v7486, %v7489
  %v7492 = vmul.f32 %v7487, %v7489
  %7493 = vrot.lane.b32.xlu0 %v5021, 98
  %v7494 = vpop.permute.xlu0 %7493
  %v7496 = vadd.f32 %v7491, %v7494
  %v7497 = vadd.f32 %v7492, %v7494
  %7499 = vset.pattern.permute.xlu0 5
  %7500 = vperm.xlu0 %7499, %v39
  %v7501 = vpop.permute.xlu0 %7500
  %v7502 = vrot.slane %v39, 1
  %v7503 = vrot.slane %v7501, 1
  %v7505 = vsel %vm44, %v7502, 0
  %v7508 = vsel %vm44, %v7496, 0
  %v7511 = vsel %vm44, %v7497, 0
  %7513 = vmatprep.subr.mxu0 0.0
  %7514 = vmatpush1.xpose.msra.mxu0 0.0
  %7515 = vmatprep.subr.mxu0 0.0
  %7516 = vmatpush1.xpose.msra.mxu0 0.0
  %7517 = vmatprep.subr.mxu0 0.0
  %7518 = vmatpush1.xpose.msra.mxu0 0.0
  %7519 = vmatprep.subr.mxu0 0.0
  %7520 = vmatpush1.xpose.msra.mxu0 0.0
  %7521 = vmatprep.subr.mxu0 0.0
  %7522 = vmatpush1.xpose.msra.mxu0 0.0
  %7523 = vmatprep.subr.mxu0 0.0
  %7524 = vmatpush1.xpose.msra.mxu0 0.0
  %7525 = vmatprep.subr.mxu0 0.0
  %7526 = vmatpush1.xpose.msra.mxu0 0.0
  %7527 = vmatprep.subr.mxu0 0.0
  %7528 = vmatpush1.xpose.msra.mxu0 0.0
  %7529 = vmatprep.subr.mxu0 0.0
  %7530 = vmatpush1.xpose.msra.mxu0 0.0
  %7531 = vmatprep.subr.mxu0 0.0
  %7532 = vmatpush1.xpose.msra.mxu0 0.0
  %7533 = vmatprep.subr.mxu0 0.0
  %7534 = vmatpush1.xpose.msra.mxu0 0.0
  %7535 = vmatprep.subr.mxu0 0.0
  %7536 = vmatpush1.xpose.msra.mxu0 0.0
  %7537 = vmatprep.subr.mxu0 0.0
  %7538 = vmatpush1.xpose.msra.mxu0 0.0
  %7539 = vmatprep.subr.mxu0 0.0
  %7540 = vmatpush1.xpose.msra.mxu0 0.0
  %7541 = vmatprep.subr.mxu0 0.0
  %7542 = vmatpush1.xpose.msra.mxu0 %v7511
  %7543 = vmatprep.subr.mxu0 0.0
  %7544 = vmatpush1.xpose.msra.mxu0 %v7508
  %7545 = vmatprep.subr.mxu0 0.0
  %7546 = vmatpush2.xpose.msra.mxu0 0.0
  %7547 = vmatprep.subr.mxu0 0.0
  %7548 = vmatpush2.xpose.msra.mxu0 0.0
  %7549 = vmatprep.subr.mxu0 0.0
  %7550 = vmatpush2.xpose.msra.mxu0 0.0
  %7551 = vmatprep.subr.mxu0 0.0
  %7552 = vmatpush2.xpose.msra.mxu0 0.0
  %7553 = vmatprep.subr.mxu0 0.0
  %7554 = vmatpush2.xpose.msra.mxu0 0.0
  %7555 = vmatprep.subr.mxu0 0.0
  %7556 = vmatpush2.xpose.msra.mxu0 0.0
  %7557 = vmatprep.subr.mxu0 0.0
  %7558 = vmatpush2.xpose.msra.mxu0 0.0
  %7559 = vmatprep.subr.mxu0 0.0
  %7560 = vmatpush2.xpose.msra.mxu0 0.0
  %7561 = vmatprep.subr.mxu0 0.0
  %7562 = vmatpush2.xpose.msra.mxu0 0.0
  %7563 = vmatprep.subr.mxu0 0.0
  %7564 = vmatpush2.xpose.msra.mxu0 0.0
  %7565 = vmatprep.subr.mxu0 0.0
  %7566 = vmatpush2.xpose.msra.mxu0 0.0
  %7567 = vmatprep.subr.mxu0 0.0
  %7568 = vmatpush2.xpose.msra.mxu0 0.0
  %7569 = vmatprep.subr.mxu0 0.0
  %7570 = vmatpush2.xpose.msra.mxu0 0.0
  %7571 = vmatprep.subr.mxu0 0.0
  %7572 = vmatpush2.xpose.msra.mxu0 0.0
  %7573 = vmatprep.subr.mxu0 0.0
  %7574 = vmatpush2.xpose.msra.mxu0 0.0
  %7575 = vmatprep.subr.mxu0 0.0
  %7576 = vmatpush2.xpose.msra.mxu0 0.0
  %7577 = vmatprep.mubr.f32.mxu0 0.0
  %7578 = vmatmul.mubr.f32.gmra.mxu0 %v7505
  %v7579 = vpop.f32.mrf.mxu0
  %v7580 = vadd.f32 %v7503, %v7579
  %v7581 = vpop.f32.mrf.mxu0
  %7582 = vdwg.mxu0
  %vm7583 = vcmask 122880
  %7584 = vst.msk [vmem:[%s4] sm:$0x1] %vm7583, %v7580
  // Predicated region
  $region18: #{transformer_forward.1} parent=0 // pred_check
    _
  $region19: #{transformer_forward.1} parent=0 // pred_check_branch
    %7586 = sbr.rel (0) target = $region21
  $region20: #{transformer_forward.1} parent=0 // pred_region
    _
  $region21: #{transformer_forward.1} parent=0 // pred_fallthru
    _
  // Predicated region
  $region22: #{transformer_forward.1} parent=0 // pred_check
    _
  $region23: #{transformer_forward.1} parent=0 // pred_check_branch
    %7588 = sbr.rel (0) target = $region25
  $region24: #{transformer_forward.1} parent=0 // pred_region
    _
  $region25: #{transformer_forward.1} parent=0 // pred_fallthru
    _

</llo_original>
